<compile_context>
chip_gen: v5e
topology: v5e:2x2
jax: 0.10.0
libtpu: 0.0.40
codegen_flags: <defaults>
</compile_context>

<pallas_src>
import math

import jax
import jax.numpy as jnp
from jax.experimental import pallas as pl
from jax.experimental.pallas import tpu as pltpu

jax.config.update("jax_default_matmul_precision", "highest")

# ----- model config (small, but lane-dense) ---------------------------------
B = 2            # batch
S = 16           # sequence length
D_MODEL = 128    # d_model (multiple of 128 -> lane-dense stores)
N_BRANCHES = 4   # n_branches == n_heads
D_K = 32
D_V = 32
D_FF = 256       # per-branch FFN width = D_FF // N_BRANCHES = 64
EPS = 1e-6
NEG_INF = -1e9


def _layer_norm(z, gamma, beta, d):
    """torch LayerNormalization: (z - mean) / (std_unbiased + eps) * g + b."""
    mean = jnp.mean(z, axis=-1, keepdims=True)
    var = jnp.sum((z - mean) ** 2, axis=-1, keepdims=True) / (d - 1)
    std = jnp.sqrt(var)
    return gamma * ((z - mean) / (std + EPS)) + beta


def encoder_layer_kernel(x_ref, mask_ref, wqkv_ref, bqkv_ref,
                         wo_ref, bo_ref, w1_ref, b1_ref, w2_ref, b2_ref,
                         ln_br_ref, ln_fin_ref,
                         out_ref, attn_ref):
    """One batch element per grid step; everything resident in VMEM.

    x_ref:      (1, S, D)
    mask_ref:   (1, S, S)     float, >0.5 means "masked" (fill with -1e9)
    wqkv_ref:   (D, 3*H*d_k)  fused [W_q | W_k | W_v] (already (in,out) layout)
    bqkv_ref:   (1, 3*H*d_k)
    wo_ref:     (H, d_v, D)   kappa pre-folded
    bo_ref:     (H, 1, D)     kappa pre-folded
    w1_ref:     (H, D, Fb)    conv1 (1x1) weights as matmuls
    b1_ref:     (H, 1, Fb)
    w2_ref:     (H, Fb, D)
    b2_ref:     (H, 1, D)
    ln_br_ref:  (H, 2, D)     per-branch [gamma; beta], alpha pre-folded
    ln_fin_ref: (2, D)        final [gamma; beta]
    out_ref:    (1, S, D)
    attn_ref:   (1, H, S, S)
    """
    S_, D = x_ref.shape[1], x_ref.shape[2]
    H = attn_ref.shape[1]
    d_v = wo_ref.shape[1]
    d_k = (wqkv_ref.shape[1] - H * d_v) // (2 * H)

    x = x_ref[0]                           # (S, D)
    mask = mask_ref[0]                     # (S, S)

    # Fused q/k/v projection: one MXU matmul instead of three.
    qkv = jnp.dot(x, wqkv_ref[...],
                  preferred_element_type=jnp.float32) + bqkv_ref[...]

    inv_scale = 1.0 / math.sqrt(d_k)
    acc = jnp.zeros((S_, D), jnp.float32)

    for h in range(H):                     # static unroll, H = 4
        qh = qkv[:, h * d_k:(h + 1) * d_k]
        kh = qkv[:, H * d_k + h * d_k: H * d_k + (h + 1) * d_k]
        vh = qkv[:, 2 * H * d_k + h * d_v: 2 * H * d_k + (h + 1) * d_v]

        # scores = q @ k^T / sqrt(d_k)   (contract last dims, no transpose)
        scores = jax.lax.dot_general(
            qh, kh, (((1,), (1,)), ((), ())),
            preferred_element_type=jnp.float32) * inv_scale
        scores = jnp.where(mask > 0.5, NEG_INF, scores)

        m = jnp.max(scores, axis=-1, keepdims=True)
        e = jnp.exp(scores - m)
        attn_p = e / jnp.sum(e, axis=-1, keepdims=True)
        # TODO(synk): attention/branch dropout omitted (inference mode).
        attn_ref[0, h] = attn_p

        ctx = jnp.dot(attn_p, vh, preferred_element_type=jnp.float32)   # (S, d_v)

        # Per-branch output projection; kappa already folded into wo/bo.
        br = jnp.dot(ctx, wo_ref[h],
                     preferred_element_type=jnp.float32) + bo_ref[h]    # (S, D)

        # Position-wise FFN (1x1 convs == per-position matmuls).
        hid = jnp.maximum(
            jnp.dot(br, w1_ref[h],
                    preferred_element_type=jnp.float32) + b1_ref[h], 0.0)
        ffn = jnp.dot(hid, w2_ref[h],
                      preferred_element_type=jnp.float32) + b2_ref[h]

        ln_par = ln_br_ref[h]              # (2, D); alpha folded in
        acc = acc + _layer_norm(br + ffn, ln_par[0:1, :], ln_par[1:2, :], D)

    ln_fin = ln_fin_ref[...]
    out = _layer_norm(x + acc, ln_fin[0:1, :], ln_fin[1:2, :], D)
    out_ref[0] = out.astype(out_ref.dtype)


def weighted_encoder_layer_pallas(x, mask_f, packed):
    """x: (B, S, D) float32, mask_f: (B, S, S) float32 (1.0 = masked)."""
    B_, S_, D = x.shape
    H = packed["ln_br"].shape[0]

    def full(a):
        # Whole-array VMEM block; constant block index -> fetched once.
        return pl.BlockSpec(a.shape, lambda b, n=a.ndim: (0,) * n)

    in_specs = [
        pl.BlockSpec((1, S_, D), lambda b: (b, 0, 0)),
        pl.BlockSpec((1, S_, S_), lambda b: (b, 0, 0)),
        full(packed["wqkv"]), full(packed["bqkv"]),
        full(packed["wo"]), full(packed["bo"]),
        full(packed["w1"]), full(packed["b1"]),
        full(packed["w2"]), full(packed["b2"]),
        full(packed["ln_br"]), full(packed["ln_fin"]),
    ]
    out_specs = (
        pl.BlockSpec((1, S_, D), lambda b: (b, 0, 0)),
        pl.BlockSpec((1, H, S_, S_), lambda b: (b, 0, 0, 0)),
    )
    out_shape = (
        jax.ShapeDtypeStruct((B_, S_, D), jnp.float32),
        jax.ShapeDtypeStruct((B_, H, S_, S_), jnp.float32),
    )
    return pl.pallas_call(
        encoder_layer_kernel,
        out_shape=out_shape,
        grid=(B_,),
        in_specs=in_specs,
        out_specs=out_specs,
        compiler_params=pltpu.CompilerParams(
            dimension_semantics=("parallel",)),
    )(x, mask_f, packed["wqkv"], packed["bqkv"], packed["wo"], packed["bo"],
      packed["w1"], packed["b1"], packed["w2"], packed["b2"],
      packed["ln_br"], packed["ln_fin"])


# ----- parameters -------------------------------------------------------------
def init_params(key):
    """Returns (raw params in PyTorch-like form, packed/folded kernel params)."""
    H, dk, dv, D = N_BRANCHES, D_K, D_V, D_MODEL
    Fb = D_FF // N_BRANCHES
    ks = jax.random.split(key, 18)

    def xavier(k, fan_in, fan_out, shape):
        std = math.sqrt(2.0 / (fan_in + fan_out))
        return (jax.random.normal(k, shape) * std).astype(jnp.float32)

    raw = {
        "wq": xavier(ks[0], D, H * dk, (D, H * dk)),
        "wk": xavier(ks[1], D, H * dk, (D, H * dk)),
        "wv": xavier(ks[2], D, H * dv, (D, H * dv)),
        "bq": 0.02 * jax.random.normal(ks[3], (H * dk,)),
        "bk": 0.02 * jax.random.normal(ks[4], (H * dk,)),
        "bv": 0.02 * jax.random.normal(ks[5], (H * dv,)),
        "wo": xavier(ks[6], dv, D, (H, dv, D)),
        "bo": 0.02 * jax.random.normal(ks[7], (H, D)),
        "w1": xavier(ks[8], D, Fb, (H, D, Fb)),
        "b1": 0.02 * jax.random.normal(ks[9], (H, Fb)),
        "w2": xavier(ks[10], Fb, D, (H, Fb, D)),
        "b2": 0.02 * jax.random.normal(ks[11], (H, D)),
        "g_br": 1.0 + 0.05 * jax.random.normal(ks[14], (H, D)),
        "b_br": 0.05 * jax.random.normal(ks[15], (H, D)),
        "g_fin": 1.0 + 0.05 * jax.random.normal(ks[16], (D,)),
        "b_fin": 0.05 * jax.random.normal(ks[17], (D,)),
    }
    kp = jax.random.uniform(ks[12], (H,))
    al = jax.random.uniform(ks[13], (H,))
    raw["kappa"] = kp / kp.sum()
    raw["alpha"] = al / al.sum()
    raw = {k: v.astype(jnp.float32) for k, v in raw.items()}

    packed = {
        "wqkv": jnp.concatenate([raw["wq"], raw["wk"], raw["wv"]], axis=1),
        "bqkv": jnp.concatenate([raw["bq"], raw["bk"], raw["bv"]])[None, :],
        # kappa folded into the branch output projection:
        "wo": raw["kappa"][:, None, None] * raw["wo"],
        "bo": (raw["kappa"][:, None] * raw["bo"])[:, None, :],
        "w1": raw["w1"],
        "b1": raw["b1"][:, None, :],
        "w2": raw["w2"],
        "b2": raw["b2"][:, None, :],
        # alpha folded into the per-branch layer-norm affine:
        "ln_br": jnp.stack([raw["alpha"][:, None] * raw["g_br"],
                            raw["alpha"][:, None] * raw["b_br"]], axis=1),
        "ln_fin": jnp.stack([raw["g_fin"], raw["b_fin"]], axis=0),
    }
    return raw, packed


# ----- pure-JAX reference mirroring the PyTorch forward -----------------------
def reference_forward(x, mask_bool, raw):
    B_, S_, D = x.shape
    H, dk, dv = N_BRANCHES, D_K, D_V

    q = x @ raw["wq"] + raw["bq"]
    k = x @ raw["wk"] + raw["bk"]
    v = x @ raw["wv"] + raw["bv"]
    qs = q.reshape(B_, S_, H, dk).transpose(0, 2, 1, 3)
    ks = k.reshape(B_, S_, H, dk).transpose(0, 2, 1, 3)
    vs = v.reshape(B_, S_, H, dv).transpose(0, 2, 1, 3)

    scores = jnp.einsum("bhsd,bhtd->bhst", qs, ks) / math.sqrt(dk)
    scores = jnp.where(mask_bool[:, None, :, :], NEG_INF, scores)
    attn = jax.nn.softmax(scores, axis=-1)
    ctx = jnp.einsum("bhst,bhtd->bhsd", attn, vs)
    ctx = ctx.transpose(0, 2, 1, 3).reshape(B_, S_, H * dv)

    def ln(z, g, b):
        mean = z.mean(-1, keepdims=True)
        std = jnp.sqrt(((z - mean) ** 2).sum(-1, keepdims=True) / (D - 1))
        return g * ((z - mean) / (std + EPS)) + b

    total = jnp.zeros_like(x)
    for h in range(H):
        c = ctx[..., h * dv:(h + 1) * dv]
        o = raw["kappa"][h] * (c @ raw["wo"][h] + raw["bo"][h])
        hid = jax.nn.relu(o @ raw["w1"][h] + raw["b1"][h])
        f = hid @ raw["w2"][h] + raw["b2"][h]
        total = total + raw["alpha"][h] * ln(o + f, raw["g_br"][h], raw["b_br"][h])
    out = ln(x + total, raw["g_fin"], raw["b_fin"])
    return out, attn


if __name__ == "__main__":
    root = jax.random.PRNGKey(0)
    k_par, k_x = jax.random.split(root)
    raw, packed = init_params(k_par)

    x = jax.random.normal(k_x, (B, S, D_MODEL), dtype=jnp.float32)

    # Padding-style self-attention mask: batch 0 fully valid, batch 1 masks
    # key positions >= 13 (True / 1.0 means "masked").
    key_valid = jnp.array([S, 13], dtype=jnp.int32)
    col = jnp.arange(S)[None, None, :]
    mask_bool = jnp.broadcast_to(col >= key_valid[:, None, None], (B, S, S))
    mask_f = mask_bool.astype(jnp.float32)

    out, attn = weighted_encoder_layer_pallas(x, mask_f, packed)
    jax.block_until_ready((out, attn))

    out_ref, attn_ref = reference_forward(x, mask_bool, raw)
    assert out.shape == (B, S, D_MODEL) and attn.shape == (B, N_BRANCHES, S, S)
    assert jnp.allclose(out, out_ref, atol=1e-3, rtol=1e-3), "output mismatch vs reference"
    assert jnp.allclose(attn, attn_ref, atol=1e-3, rtol=1e-3), "attention mismatch vs reference"

    print("KERNEL_OK")
</pallas_src>

<mosaic_0001>
module attributes {stable_mosaic.version = 11 : i64} {
  func.func @encoder_layer_kernel(%arg0: i32, %arg1: memref<1x16x128xf32, #tpu.memory_space<vmem>>, %arg2: memref<1x16x16xf32, #tpu.memory_space<vmem>>, %arg3: memref<128x384xf32, #tpu.memory_space<vmem>>, %arg4: memref<1x384xf32, #tpu.memory_space<vmem>>, %arg5: memref<4x32x128xf32, #tpu.memory_space<vmem>>, %arg6: memref<4x1x128xf32, #tpu.memory_space<vmem>>, %arg7: memref<4x128x64xf32, #tpu.memory_space<vmem>>, %arg8: memref<4x1x64xf32, #tpu.memory_space<vmem>>, %arg9: memref<4x64x128xf32, #tpu.memory_space<vmem>>, %arg10: memref<4x1x128xf32, #tpu.memory_space<vmem>>, %arg11: memref<4x2x128xf32, #tpu.memory_space<vmem>>, %arg12: memref<2x128xf32, #tpu.memory_space<vmem>>, %arg13: memref<1x16x128xf32, #tpu.memory_space<vmem>>, %arg14: memref<1x4x16x16xf32, #tpu.memory_space<vmem>>) attributes {dimension_semantics = [#tpu.dimension_semantics<parallel>], iteration_bounds = array<i64: 2>, scalar_prefetch = 0 : i64, scratch_operands = 0 : i64, tpu.core_type = #tpu.core_type<tc>, window_params = [{transform_indices = @transform_0, window_bounds = array<i64: 1, 16, 128>}, {transform_indices = @transform_1, window_bounds = array<i64: 1, 16, 16>}, {pipeline_mode = #tpu.pipeline_mode<synchronous>, transform_indices = @transform_2, window_bounds = array<i64: 128, 384>}, {pipeline_mode = #tpu.pipeline_mode<synchronous>, transform_indices = @transform_3, window_bounds = array<i64: 1, 384>}, {pipeline_mode = #tpu.pipeline_mode<synchronous>, transform_indices = @transform_4, window_bounds = array<i64: 4, 32, 128>}, {pipeline_mode = #tpu.pipeline_mode<synchronous>, transform_indices = @transform_5, window_bounds = array<i64: 4, 1, 128>}, {pipeline_mode = #tpu.pipeline_mode<synchronous>, transform_indices = @transform_6, window_bounds = array<i64: 4, 128, 64>}, {pipeline_mode = #tpu.pipeline_mode<synchronous>, transform_indices = @transform_7, window_bounds = array<i64: 4, 1, 64>}, {pipeline_mode = #tpu.pipeline_mode<synchronous>, transform_indices = @transform_8, window_bounds = array<i64: 4, 64, 128>}, {pipeline_mode = #tpu.pipeline_mode<synchronous>, transform_indices = @transform_9, window_bounds = array<i64: 4, 1, 128>}, {pipeline_mode = #tpu.pipeline_mode<synchronous>, transform_indices = @transform_10, window_bounds = array<i64: 4, 2, 128>}, {pipeline_mode = #tpu.pipeline_mode<synchronous>, transform_indices = @transform_11, window_bounds = array<i64: 2, 128>}, {transform_indices = @transform_12, window_bounds = array<i64: 1, 16, 128>}, {transform_indices = @transform_13, window_bounds = array<i64: 1, 4, 16, 16>}]} {
    %c0 = arith.constant 0 : index
    %c0_0 = arith.constant 0 : index
    %c0_1 = arith.constant 0 : index
    %0 = vector.load %arg1[%c0, %c0_0, %c0_1] : memref<1x16x128xf32, #tpu.memory_space<vmem>>, vector<1x16x128xf32>
    %1 = vector.shape_cast %0 : vector<1x16x128xf32> to vector<16x128xf32>
    %c0_2 = arith.constant 0 : index
    %c0_3 = arith.constant 0 : index
    %c0_4 = arith.constant 0 : index
    %2 = vector.load %arg2[%c0_2, %c0_3, %c0_4] : memref<1x16x16xf32, #tpu.memory_space<vmem>>, vector<1x16x16xf32>
    %3 = vector.shape_cast %2 : vector<1x16x16xf32> to vector<16x16xf32>
    %c0_5 = arith.constant 0 : index
    %c0_6 = arith.constant 0 : index
    %4 = vector.load %arg3[%c0_5, %c0_6] : memref<128x384xf32, #tpu.memory_space<vmem>>, vector<128x384xf32>
    %cst = arith.constant dense<0.000000e+00> : vector<16x384xf32>
    %5 = tpu.matmul %1, %4, %cst {dimension_numbers = #tpu.dot_dimension_numbers<[1], [0], [0], [1], [0, 0, 1, 1], [], []>, precision = #tpu.contract_precision<fp32>} : vector<16x128xf32>, vector<128x384xf32>, vector<16x384xf32> -> vector<16x384xf32>
    %c0_7 = arith.constant 0 : index
    %c0_8 = arith.constant 0 : index
    %6 = vector.load %arg4[%c0_7, %c0_8] : memref<1x384xf32, #tpu.memory_space<vmem>>, vector<1x384xf32>
    %7 = vector.broadcast %6 : vector<1x384xf32> to vector<16x384xf32>
    %8 = arith.addf %5, %7 : vector<16x384xf32>
    %cst_9 = arith.constant 0.000000e+00 : f32
    %9 = vector.broadcast %cst_9 : f32 to vector<16x128xf32>
    %10 = vector.extract_strided_slice %8 {offsets = [0, 0], sizes = [16, 32], strides = [1, 1]} : vector<16x384xf32> to vector<16x32xf32>
    %11 = vector.extract_strided_slice %8 {offsets = [0, 128], sizes = [16, 32], strides = [1, 1]} : vector<16x384xf32> to vector<16x32xf32>
    %12 = vector.extract_strided_slice %8 {offsets = [0, 256], sizes = [16, 32], strides = [1, 1]} : vector<16x384xf32> to vector<16x32xf32>
    %cst_10 = arith.constant dense<0.000000e+00> : vector<16x16xf32>
    %13 = tpu.matmul %10, %11, %cst_10 {dimension_numbers = #tpu.dot_dimension_numbers<[1], [1], [0], [0], [0, 0, 1, 0], [], []>, precision = #tpu.contract_precision<fp32>} : vector<16x32xf32>, vector<16x32xf32>, vector<16x16xf32> -> vector<16x16xf32>
    %cst_11 = arith.constant 0.176776692 : f32
    %14 = vector.broadcast %cst_11 : f32 to vector<16x16xf32>
    %15 = arith.mulf %13, %14 : vector<16x16xf32>
    %cst_12 = arith.constant 5.000000e-01 : f32
    %16 = vector.broadcast %cst_12 : f32 to vector<16x16xf32>
    %17 = arith.cmpf ogt, %3, %16 : vector<16x16xf32>
    %cst_13 = arith.constant -1.000000e+09 : f32
    %18 = vector.broadcast %cst_13 : f32 to vector<16x16xf32>
    %19 = arith.select %17, %18, %15 : vector<16x16xi1>, vector<16x16xf32>
    %cst_14 = arith.constant dense<0xFF800000> : vector<16xf32>
    %20 = vector.multi_reduction <maximumf>, %19, %cst_14 [1] : vector<16x16xf32> to vector<16xf32>
    %21 = vector.shape_cast %20 : vector<16xf32> to vector<16x1xf32>
    %22 = vector.broadcast %21 : vector<16x1xf32> to vector<16x16xf32>
    %23 = arith.subf %19, %22 : vector<16x16xf32>
    %24 = math.exp %23 : vector<16x16xf32>
    %cst_15 = arith.constant dense<0.000000e+00> : vector<16xf32>
    %25 = vector.multi_reduction <add>, %24, %cst_15 [1] : vector<16x16xf32> to vector<16xf32>
    %26 = vector.shape_cast %25 : vector<16xf32> to vector<16x1xf32>
    %27 = vector.broadcast %26 : vector<16x1xf32> to vector<16x16xf32>
    %28 = arith.divf %24, %27 : vector<16x16xf32>
    %c0_16 = arith.constant 0 : index
    %c0_17 = arith.constant 0 : index
    %c0_18 = arith.constant 0 : index
    %c0_19 = arith.constant 0 : index
    %29 = vector.load %arg14[%c0_16, %c0_17, %c0_18, %c0_19] : memref<1x4x16x16xf32, #tpu.memory_space<vmem>>, vector<1x1x16x16xf32>
    %30 = vector.shape_cast %29 : vector<1x1x16x16xf32> to vector<16x16xf32>
    %31 = vector.shape_cast %28 : vector<16x16xf32> to vector<1x1x16x16xf32>
    tpu.vector_store %arg14[%c0_16, %c0_17, %c0_18, %c0_19], %31 {strides = array<i32>} : memref<1x4x16x16xf32, #tpu.memory_space<vmem>>, vector<1x1x16x16xf32>,
    %cst_20 = arith.constant dense<0.000000e+00> : vector<16x32xf32>
    %32 = tpu.matmul %28, %12, %cst_20 {dimension_numbers = #tpu.dot_dimension_numbers<[1], [0], [0], [1], [0, 0, 1, 1], [], []>, precision = #tpu.contract_precision<fp32>} : vector<16x16xf32>, vector<16x32xf32>, vector<16x32xf32> -> vector<16x32xf32>
    %c0_21 = arith.constant 0 : index
    %c0_22 = arith.constant 0 : index
    %c0_23 = arith.constant 0 : index
    %33 = vector.load %arg5[%c0_21, %c0_22, %c0_23] : memref<4x32x128xf32, #tpu.memory_space<vmem>>, vector<1x32x128xf32>
    %34 = vector.shape_cast %33 : vector<1x32x128xf32> to vector<32x128xf32>
    %cst_24 = arith.constant dense<0.000000e+00> : vector<16x128xf32>
    %35 = tpu.matmul %32, %34, %cst_24 {dimension_numbers = #tpu.dot_dimension_numbers<[1], [0], [0], [1], [0, 0, 1, 1], [], []>, precision = #tpu.contract_precision<fp32>} : vector<16x32xf32>, vector<32x128xf32>, vector<16x128xf32> -> vector<16x128xf32>
    %c0_25 = arith.constant 0 : index
    %c0_26 = arith.constant 0 : index
    %c0_27 = arith.constant 0 : index
    %36 = vector.load %arg6[%c0_25, %c0_26, %c0_27] : memref<4x1x128xf32, #tpu.memory_space<vmem>>, vector<1x1x128xf32>
    %37 = vector.shape_cast %36 : vector<1x1x128xf32> to vector<1x128xf32>
    %38 = vector.broadcast %37 : vector<1x128xf32> to vector<16x128xf32>
    %39 = arith.addf %35, %38 : vector<16x128xf32>
    %c0_28 = arith.constant 0 : index
    %c0_29 = arith.constant 0 : index
    %c0_30 = arith.constant 0 : index
    %40 = vector.load %arg7[%c0_28, %c0_29, %c0_30] : memref<4x128x64xf32, #tpu.memory_space<vmem>>, vector<1x128x64xf32>
    %41 = vector.shape_cast %40 : vector<1x128x64xf32> to vector<128x64xf32>
    %cst_31 = arith.constant dense<0.000000e+00> : vector<16x64xf32>
    %42 = tpu.matmul %39, %41, %cst_31 {dimension_numbers = #tpu.dot_dimension_numbers<[1], [0], [0], [1], [0, 0, 1, 1], [], []>, precision = #tpu.contract_precision<fp32>} : vector<16x128xf32>, vector<128x64xf32>, vector<16x64xf32> -> vector<16x64xf32>
    %c0_32 = arith.constant 0 : index
    %c0_33 = arith.constant 0 : index
    %c0_34 = arith.constant 0 : index
    %43 = vector.load %arg8[%c0_32, %c0_33, %c0_34] : memref<4x1x64xf32, #tpu.memory_space<vmem>>, vector<1x1x64xf32>
    %44 = vector.shape_cast %43 : vector<1x1x64xf32> to vector<1x64xf32>
    %45 = vector.broadcast %44 : vector<1x64xf32> to vector<16x64xf32>
    %46 = arith.addf %42, %45 : vector<16x64xf32>
    %cst_35 = arith.constant 0.000000e+00 : f32
    %47 = vector.broadcast %cst_35 : f32 to vector<16x64xf32>
    %48 = arith.maximumf %46, %47 : vector<16x64xf32>
    %c0_36 = arith.constant 0 : index
    %c0_37 = arith.constant 0 : index
    %c0_38 = arith.constant 0 : index
    %49 = vector.load %arg9[%c0_36, %c0_37, %c0_38] : memref<4x64x128xf32, #tpu.memory_space<vmem>>, vector<1x64x128xf32>
    %50 = vector.shape_cast %49 : vector<1x64x128xf32> to vector<64x128xf32>
    %cst_39 = arith.constant dense<0.000000e+00> : vector<16x128xf32>
    %51 = tpu.matmul %48, %50, %cst_39 {dimension_numbers = #tpu.dot_dimension_numbers<[1], [0], [0], [1], [0, 0, 1, 1], [], []>, precision = #tpu.contract_precision<fp32>} : vector<16x64xf32>, vector<64x128xf32>, vector<16x128xf32> -> vector<16x128xf32>
    %c0_40 = arith.constant 0 : index
    %c0_41 = arith.constant 0 : index
    %c0_42 = arith.constant 0 : index
    %52 = vector.load %arg10[%c0_40, %c0_41, %c0_42] : memref<4x1x128xf32, #tpu.memory_space<vmem>>, vector<1x1x128xf32>
    %53 = vector.shape_cast %52 : vector<1x1x128xf32> to vector<1x128xf32>
    %54 = vector.broadcast %53 : vector<1x128xf32> to vector<16x128xf32>
    %55 = arith.addf %51, %54 : vector<16x128xf32>
    %c0_43 = arith.constant 0 : index
    %c0_44 = arith.constant 0 : index
    %c0_45 = arith.constant 0 : index
    %56 = vector.load %arg11[%c0_43, %c0_44, %c0_45] : memref<4x2x128xf32, #tpu.memory_space<vmem>>, vector<1x2x128xf32>
    %57 = vector.shape_cast %56 : vector<1x2x128xf32> to vector<2x128xf32>
    %58 = arith.addf %39, %55 : vector<16x128xf32>
    %59 = vector.extract_strided_slice %57 {offsets = [0, 0], sizes = [1, 128], strides = [1, 1]} : vector<2x128xf32> to vector<1x128xf32>
    %60 = vector.extract_strided_slice %57 {offsets = [1, 0], sizes = [1, 128], strides = [1, 1]} : vector<2x128xf32> to vector<1x128xf32>
    %cst_46 = arith.constant dense<0.000000e+00> : vector<16xf32>
    %61 = vector.multi_reduction <add>, %58, %cst_46 [1] : vector<16x128xf32> to vector<16xf32>
    %62 = vector.shape_cast %61 : vector<16xf32> to vector<16x1xf32>
    %cst_47 = arith.constant 1.280000e+02 : f32
    %63 = vector.broadcast %cst_47 : f32 to vector<16x1xf32>
    %64 = arith.divf %62, %63 : vector<16x1xf32>
    %65 = vector.broadcast %64 : vector<16x1xf32> to vector<16x128xf32>
    %66 = arith.subf %58, %65 : vector<16x128xf32>
    %67 = arith.mulf %66, %66 : vector<16x128xf32>
    %cst_48 = arith.constant dense<0.000000e+00> : vector<16xf32>
    %68 = vector.multi_reduction <add>, %67, %cst_48 [1] : vector<16x128xf32> to vector<16xf32>
    %69 = vector.shape_cast %68 : vector<16xf32> to vector<16x1xf32>
    %cst_49 = arith.constant 1.270000e+02 : f32
    %70 = vector.broadcast %cst_49 : f32 to vector<16x1xf32>
    %71 = arith.divf %69, %70 : vector<16x1xf32>
    %72 = math.sqrt %71 : vector<16x1xf32>
    %73 = vector.broadcast %64 : vector<16x1xf32> to vector<16x128xf32>
    %74 = arith.subf %58, %73 : vector<16x128xf32>
    %cst_50 = arith.constant 9.99999997E-7 : f32
    %75 = vector.broadcast %cst_50 : f32 to vector<16x1xf32>
    %76 = arith.addf %72, %75 : vector<16x1xf32>
    %77 = vector.broadcast %76 : vector<16x1xf32> to vector<16x128xf32>
    %78 = arith.divf %74, %77 : vector<16x128xf32>
    %79 = vector.broadcast %59 : vector<1x128xf32> to vector<16x128xf32>
    %80 = arith.mulf %79, %78 : vector<16x128xf32>
    %81 = vector.broadcast %60 : vector<1x128xf32> to vector<16x128xf32>
    %82 = arith.addf %80, %81 : vector<16x128xf32>
    %83 = arith.addf %9, %82 : vector<16x128xf32>
    %84 = vector.extract_strided_slice %8 {offsets = [0, 32], sizes = [16, 32], strides = [1, 1]} : vector<16x384xf32> to vector<16x32xf32>
    %85 = vector.extract_strided_slice %8 {offsets = [0, 160], sizes = [16, 32], strides = [1, 1]} : vector<16x384xf32> to vector<16x32xf32>
    %86 = vector.extract_strided_slice %8 {offsets = [0, 288], sizes = [16, 32], strides = [1, 1]} : vector<16x384xf32> to vector<16x32xf32>
    %cst_51 = arith.constant dense<0.000000e+00> : vector<16x16xf32>
    %87 = tpu.matmul %84, %85, %cst_51 {dimension_numbers = #tpu.dot_dimension_numbers<[1], [1], [0], [0], [0, 0, 1, 0], [], []>, precision = #tpu.contract_precision<fp32>} : vector<16x32xf32>, vector<16x32xf32>, vector<16x16xf32> -> vector<16x16xf32>
    %cst_52 = arith.constant 0.176776692 : f32
    %88 = vector.broadcast %cst_52 : f32 to vector<16x16xf32>
    %89 = arith.mulf %87, %88 : vector<16x16xf32>
    %cst_53 = arith.constant 5.000000e-01 : f32
    %90 = vector.broadcast %cst_53 : f32 to vector<16x16xf32>
    %91 = arith.cmpf ogt, %3, %90 : vector<16x16xf32>
    %cst_54 = arith.constant -1.000000e+09 : f32
    %92 = vector.broadcast %cst_54 : f32 to vector<16x16xf32>
    %93 = arith.select %91, %92, %89 : vector<16x16xi1>, vector<16x16xf32>
    %cst_55 = arith.constant dense<0xFF800000> : vector<16xf32>
    %94 = vector.multi_reduction <maximumf>, %93, %cst_55 [1] : vector<16x16xf32> to vector<16xf32>
    %95 = vector.shape_cast %94 : vector<16xf32> to vector<16x1xf32>
    %96 = vector.broadcast %95 : vector<16x1xf32> to vector<16x16xf32>
    %97 = arith.subf %93, %96 : vector<16x16xf32>
    %98 = math.exp %97 : vector<16x16xf32>
    %cst_56 = arith.constant dense<0.000000e+00> : vector<16xf32>
    %99 = vector.multi_reduction <add>, %98, %cst_56 [1] : vector<16x16xf32> to vector<16xf32>
    %100 = vector.shape_cast %99 : vector<16xf32> to vector<16x1xf32>
    %101 = vector.broadcast %100 : vector<16x1xf32> to vector<16x16xf32>
    %102 = arith.divf %98, %101 : vector<16x16xf32>
    %c0_57 = arith.constant 0 : index
    %c1 = arith.constant 1 : index
    %c0_58 = arith.constant 0 : index
    %c0_59 = arith.constant 0 : index
    %103 = vector.load %arg14[%c0_57, %c1, %c0_58, %c0_59] : memref<1x4x16x16xf32, #tpu.memory_space<vmem>>, vector<1x1x16x16xf32>
    %104 = vector.shape_cast %103 : vector<1x1x16x16xf32> to vector<16x16xf32>
    %105 = vector.shape_cast %102 : vector<16x16xf32> to vector<1x1x16x16xf32>
    tpu.vector_store %arg14[%c0_57, %c1, %c0_58, %c0_59], %105 {strides = array<i32>} : memref<1x4x16x16xf32, #tpu.memory_space<vmem>>, vector<1x1x16x16xf32>,
    %cst_60 = arith.constant dense<0.000000e+00> : vector<16x32xf32>
    %106 = tpu.matmul %102, %86, %cst_60 {dimension_numbers = #tpu.dot_dimension_numbers<[1], [0], [0], [1], [0, 0, 1, 1], [], []>, precision = #tpu.contract_precision<fp32>} : vector<16x16xf32>, vector<16x32xf32>, vector<16x32xf32> -> vector<16x32xf32>
    %c1_61 = arith.constant 1 : index
    %c0_62 = arith.constant 0 : index
    %c0_63 = arith.constant 0 : index
    %107 = vector.load %arg5[%c1_61, %c0_62, %c0_63] : memref<4x32x128xf32, #tpu.memory_space<vmem>>, vector<1x32x128xf32>
    %108 = vector.shape_cast %107 : vector<1x32x128xf32> to vector<32x128xf32>
    %cst_64 = arith.constant dense<0.000000e+00> : vector<16x128xf32>
    %109 = tpu.matmul %106, %108, %cst_64 {dimension_numbers = #tpu.dot_dimension_numbers<[1], [0], [0], [1], [0, 0, 1, 1], [], []>, precision = #tpu.contract_precision<fp32>} : vector<16x32xf32>, vector<32x128xf32>, vector<16x128xf32> -> vector<16x128xf32>
    %c1_65 = arith.constant 1 : index
    %c0_66 = arith.constant 0 : index
    %c0_67 = arith.constant 0 : index
    %110 = vector.load %arg6[%c1_65, %c0_66, %c0_67] : memref<4x1x128xf32, #tpu.memory_space<vmem>>, vector<1x1x128xf32>
    %111 = vector.shape_cast %110 : vector<1x1x128xf32> to vector<1x128xf32>
    %112 = vector.broadcast %111 : vector<1x128xf32> to vector<16x128xf32>
    %113 = arith.addf %109, %112 : vector<16x128xf32>
    %c1_68 = arith.constant 1 : index
    %c0_69 = arith.constant 0 : index
    %c0_70 = arith.constant 0 : index
    %114 = vector.load %arg7[%c1_68, %c0_69, %c0_70] : memref<4x128x64xf32, #tpu.memory_space<vmem>>, vector<1x128x64xf32>
    %115 = vector.shape_cast %114 : vector<1x128x64xf32> to vector<128x64xf32>
    %cst_71 = arith.constant dense<0.000000e+00> : vector<16x64xf32>
    %116 = tpu.matmul %113, %115, %cst_71 {dimension_numbers = #tpu.dot_dimension_numbers<[1], [0], [0], [1], [0, 0, 1, 1], [], []>, precision = #tpu.contract_precision<fp32>} : vector<16x128xf32>, vector<128x64xf32>, vector<16x64xf32> -> vector<16x64xf32>
    %c1_72 = arith.constant 1 : index
    %c0_73 = arith.constant 0 : index
    %c0_74 = arith.constant 0 : index
    %117 = vector.load %arg8[%c1_72, %c0_73, %c0_74] : memref<4x1x64xf32, #tpu.memory_space<vmem>>, vector<1x1x64xf32>
    %118 = vector.shape_cast %117 : vector<1x1x64xf32> to vector<1x64xf32>
    %119 = vector.broadcast %118 : vector<1x64xf32> to vector<16x64xf32>
    %120 = arith.addf %116, %119 : vector<16x64xf32>
    %cst_75 = arith.constant 0.000000e+00 : f32
    %121 = vector.broadcast %cst_75 : f32 to vector<16x64xf32>
    %122 = arith.maximumf %120, %121 : vector<16x64xf32>
    %c1_76 = arith.constant 1 : index
    %c0_77 = arith.constant 0 : index
    %c0_78 = arith.constant 0 : index
    %123 = vector.load %arg9[%c1_76, %c0_77, %c0_78] : memref<4x64x128xf32, #tpu.memory_space<vmem>>, vector<1x64x128xf32>
    %124 = vector.shape_cast %123 : vector<1x64x128xf32> to vector<64x128xf32>
    %cst_79 = arith.constant dense<0.000000e+00> : vector<16x128xf32>
    %125 = tpu.matmul %122, %124, %cst_79 {dimension_numbers = #tpu.dot_dimension_numbers<[1], [0], [0], [1], [0, 0, 1, 1], [], []>, precision = #tpu.contract_precision<fp32>} : vector<16x64xf32>, vector<64x128xf32>, vector<16x128xf32> -> vector<16x128xf32>
    %c1_80 = arith.constant 1 : index
    %c0_81 = arith.constant 0 : index
    %c0_82 = arith.constant 0 : index
    %126 = vector.load %arg10[%c1_80, %c0_81, %c0_82] : memref<4x1x128xf32, #tpu.memory_space<vmem>>, vector<1x1x128xf32>
    %127 = vector.shape_cast %126 : vector<1x1x128xf32> to vector<1x128xf32>
    %128 = vector.broadcast %127 : vector<1x128xf32> to vector<16x128xf32>
    %129 = arith.addf %125, %128 : vector<16x128xf32>
    %c1_83 = arith.constant 1 : index
    %c0_84 = arith.constant 0 : index
    %c0_85 = arith.constant 0 : index
    %130 = vector.load %arg11[%c1_83, %c0_84, %c0_85] : memref<4x2x128xf32, #tpu.memory_space<vmem>>, vector<1x2x128xf32>
    %131 = vector.shape_cast %130 : vector<1x2x128xf32> to vector<2x128xf32>
    %132 = arith.addf %113, %129 : vector<16x128xf32>
    %133 = vector.extract_strided_slice %131 {offsets = [0, 0], sizes = [1, 128], strides = [1, 1]} : vector<2x128xf32> to vector<1x128xf32>
    %134 = vector.extract_strided_slice %131 {offsets = [1, 0], sizes = [1, 128], strides = [1, 1]} : vector<2x128xf32> to vector<1x128xf32>
    %cst_86 = arith.constant dense<0.000000e+00> : vector<16xf32>
    %135 = vector.multi_reduction <add>, %132, %cst_86 [1] : vector<16x128xf32> to vector<16xf32>
    %136 = vector.shape_cast %135 : vector<16xf32> to vector<16x1xf32>
    %cst_87 = arith.constant 1.280000e+02 : f32
    %137 = vector.broadcast %cst_87 : f32 to vector<16x1xf32>
    %138 = arith.divf %136, %137 : vector<16x1xf32>
    %139 = vector.broadcast %138 : vector<16x1xf32> to vector<16x128xf32>
    %140 = arith.subf %132, %139 : vector<16x128xf32>
    %141 = arith.mulf %140, %140 : vector<16x128xf32>
    %cst_88 = arith.constant dense<0.000000e+00> : vector<16xf32>
    %142 = vector.multi_reduction <add>, %141, %cst_88 [1] : vector<16x128xf32> to vector<16xf32>
    %143 = vector.shape_cast %142 : vector<16xf32> to vector<16x1xf32>
    %cst_89 = arith.constant 1.270000e+02 : f32
    %144 = vector.broadcast %cst_89 : f32 to vector<16x1xf32>
    %145 = arith.divf %143, %144 : vector<16x1xf32>
    %146 = math.sqrt %145 : vector<16x1xf32>
    %147 = vector.broadcast %138 : vector<16x1xf32> to vector<16x128xf32>
    %148 = arith.subf %132, %147 : vector<16x128xf32>
    %cst_90 = arith.constant 9.99999997E-7 : f32
    %149 = vector.broadcast %cst_90 : f32 to vector<16x1xf32>
    %150 = arith.addf %146, %149 : vector<16x1xf32>
    %151 = vector.broadcast %150 : vector<16x1xf32> to vector<16x128xf32>
    %152 = arith.divf %148, %151 : vector<16x128xf32>
    %153 = vector.broadcast %133 : vector<1x128xf32> to vector<16x128xf32>
    %154 = arith.mulf %153, %152 : vector<16x128xf32>
    %155 = vector.broadcast %134 : vector<1x128xf32> to vector<16x128xf32>
    %156 = arith.addf %154, %155 : vector<16x128xf32>
    %157 = arith.addf %83, %156 : vector<16x128xf32>
    %158 = vector.extract_strided_slice %8 {offsets = [0, 64], sizes = [16, 32], strides = [1, 1]} : vector<16x384xf32> to vector<16x32xf32>
    %159 = vector.extract_strided_slice %8 {offsets = [0, 192], sizes = [16, 32], strides = [1, 1]} : vector<16x384xf32> to vector<16x32xf32>
    %160 = vector.extract_strided_slice %8 {offsets = [0, 320], sizes = [16, 32], strides = [1, 1]} : vector<16x384xf32> to vector<16x32xf32>
    %cst_91 = arith.constant dense<0.000000e+00> : vector<16x16xf32>
    %161 = tpu.matmul %158, %159, %cst_91 {dimension_numbers = #tpu.dot_dimension_numbers<[1], [1], [0], [0], [0, 0, 1, 0], [], []>, precision = #tpu.contract_precision<fp32>} : vector<16x32xf32>, vector<16x32xf32>, vector<16x16xf32> -> vector<16x16xf32>
    %cst_92 = arith.constant 0.176776692 : f32
    %162 = vector.broadcast %cst_92 : f32 to vector<16x16xf32>
    %163 = arith.mulf %161, %162 : vector<16x16xf32>
    %cst_93 = arith.constant 5.000000e-01 : f32
    %164 = vector.broadcast %cst_93 : f32 to vector<16x16xf32>
    %165 = arith.cmpf ogt, %3, %164 : vector<16x16xf32>
    %cst_94 = arith.constant -1.000000e+09 : f32
    %166 = vector.broadcast %cst_94 : f32 to vector<16x16xf32>
    %167 = arith.select %165, %166, %163 : vector<16x16xi1>, vector<16x16xf32>
    %cst_95 = arith.constant dense<0xFF800000> : vector<16xf32>
    %168 = vector.multi_reduction <maximumf>, %167, %cst_95 [1] : vector<16x16xf32> to vector<16xf32>
    %169 = vector.shape_cast %168 : vector<16xf32> to vector<16x1xf32>
    %170 = vector.broadcast %169 : vector<16x1xf32> to vector<16x16xf32>
    %171 = arith.subf %167, %170 : vector<16x16xf32>
    %172 = math.exp %171 : vector<16x16xf32>
    %cst_96 = arith.constant dense<0.000000e+00> : vector<16xf32>
    %173 = vector.multi_reduction <add>, %172, %cst_96 [1] : vector<16x16xf32> to vector<16xf32>
    %174 = vector.shape_cast %173 : vector<16xf32> to vector<16x1xf32>
    %175 = vector.broadcast %174 : vector<16x1xf32> to vector<16x16xf32>
    %176 = arith.divf %172, %175 : vector<16x16xf32>
    %c0_97 = arith.constant 0 : index
    %c2 = arith.constant 2 : index
    %c0_98 = arith.constant 0 : index
    %c0_99 = arith.constant 0 : index
    %177 = vector.load %arg14[%c0_97, %c2, %c0_98, %c0_99] : memref<1x4x16x16xf32, #tpu.memory_space<vmem>>, vector<1x1x16x16xf32>
    %178 = vector.shape_cast %177 : vector<1x1x16x16xf32> to vector<16x16xf32>
    %179 = vector.shape_cast %176 : vector<16x16xf32> to vector<1x1x16x16xf32>
    tpu.vector_store %arg14[%c0_97, %c2, %c0_98, %c0_99], %179 {strides = array<i32>} : memref<1x4x16x16xf32, #tpu.memory_space<vmem>>, vector<1x1x16x16xf32>,
    %cst_100 = arith.constant dense<0.000000e+00> : vector<16x32xf32>
    %180 = tpu.matmul %176, %160, %cst_100 {dimension_numbers = #tpu.dot_dimension_numbers<[1], [0], [0], [1], [0, 0, 1, 1], [], []>, precision = #tpu.contract_precision<fp32>} : vector<16x16xf32>, vector<16x32xf32>, vector<16x32xf32> -> vector<16x32xf32>
    %c2_101 = arith.constant 2 : index
    %c0_102 = arith.constant 0 : index
    %c0_103 = arith.constant 0 : index
    %181 = vector.load %arg5[%c2_101, %c0_102, %c0_103] : memref<4x32x128xf32, #tpu.memory_space<vmem>>, vector<1x32x128xf32>
    %182 = vector.shape_cast %181 : vector<1x32x128xf32> to vector<32x128xf32>
    %cst_104 = arith.constant dense<0.000000e+00> : vector<16x128xf32>
    %183 = tpu.matmul %180, %182, %cst_104 {dimension_numbers = #tpu.dot_dimension_numbers<[1], [0], [0], [1], [0, 0, 1, 1], [], []>, precision = #tpu.contract_precision<fp32>} : vector<16x32xf32>, vector<32x128xf32>, vector<16x128xf32> -> vector<16x128xf32>
    %c2_105 = arith.constant 2 : index
    %c0_106 = arith.constant 0 : index
    %c0_107 = arith.constant 0 : index
    %184 = vector.load %arg6[%c2_105, %c0_106, %c0_107] : memref<4x1x128xf32, #tpu.memory_space<vmem>>, vector<1x1x128xf32>
    %185 = vector.shape_cast %184 : vector<1x1x128xf32> to vector<1x128xf32>
    %186 = vector.broadcast %185 : vector<1x128xf32> to vector<16x128xf32>
    %187 = arith.addf %183, %186 : vector<16x128xf32>
    %c2_108 = arith.constant 2 : index
    %c0_109 = arith.constant 0 : index
    %c0_110 = arith.constant 0 : index
    %188 = vector.load %arg7[%c2_108, %c0_109, %c0_110] : memref<4x128x64xf32, #tpu.memory_space<vmem>>, vector<1x128x64xf32>
    %189 = vector.shape_cast %188 : vector<1x128x64xf32> to vector<128x64xf32>
    %cst_111 = arith.constant dense<0.000000e+00> : vector<16x64xf32>
    %190 = tpu.matmul %187, %189, %cst_111 {dimension_numbers = #tpu.dot_dimension_numbers<[1], [0], [0], [1], [0, 0, 1, 1], [], []>, precision = #tpu.contract_precision<fp32>} : vector<16x128xf32>, vector<128x64xf32>, vector<16x64xf32> -> vector<16x64xf32>
    %c2_112 = arith.constant 2 : index
    %c0_113 = arith.constant 0 : index
    %c0_114 = arith.constant 0 : index
    %191 = vector.load %arg8[%c2_112, %c0_113, %c0_114] : memref<4x1x64xf32, #tpu.memory_space<vmem>>, vector<1x1x64xf32>
    %192 = vector.shape_cast %191 : vector<1x1x64xf32> to vector<1x64xf32>
    %193 = vector.broadcast %192 : vector<1x64xf32> to vector<16x64xf32>
    %194 = arith.addf %190, %193 : vector<16x64xf32>
    %cst_115 = arith.constant 0.000000e+00 : f32
    %195 = vector.broadcast %cst_115 : f32 to vector<16x64xf32>
    %196 = arith.maximumf %194, %195 : vector<16x64xf32>
    %c2_116 = arith.constant 2 : index
    %c0_117 = arith.constant 0 : index
    %c0_118 = arith.constant 0 : index
    %197 = vector.load %arg9[%c2_116, %c0_117, %c0_118] : memref<4x64x128xf32, #tpu.memory_space<vmem>>, vector<1x64x128xf32>
    %198 = vector.shape_cast %197 : vector<1x64x128xf32> to vector<64x128xf32>
    %cst_119 = arith.constant dense<0.000000e+00> : vector<16x128xf32>
    %199 = tpu.matmul %196, %198, %cst_119 {dimension_numbers = #tpu.dot_dimension_numbers<[1], [0], [0], [1], [0, 0, 1, 1], [], []>, precision = #tpu.contract_precision<fp32>} : vector<16x64xf32>, vector<64x128xf32>, vector<16x128xf32> -> vector<16x128xf32>
    %c2_120 = arith.constant 2 : index
    %c0_121 = arith.constant 0 : index
    %c0_122 = arith.constant 0 : index
    %200 = vector.load %arg10[%c2_120, %c0_121, %c0_122] : memref<4x1x128xf32, #tpu.memory_space<vmem>>, vector<1x1x128xf32>
    %201 = vector.shape_cast %200 : vector<1x1x128xf32> to vector<1x128xf32>
    %202 = vector.broadcast %201 : vector<1x128xf32> to vector<16x128xf32>
    %203 = arith.addf %199, %202 : vector<16x128xf32>
    %c2_123 = arith.constant 2 : index
    %c0_124 = arith.constant 0 : index
    %c0_125 = arith.constant 0 : index
    %204 = vector.load %arg11[%c2_123, %c0_124, %c0_125] : memref<4x2x128xf32, #tpu.memory_space<vmem>>, vector<1x2x128xf32>
    %205 = vector.shape_cast %204 : vector<1x2x128xf32> to vector<2x128xf32>
    %206 = arith.addf %187, %203 : vector<16x128xf32>
    %207 = vector.extract_strided_slice %205 {offsets = [0, 0], sizes = [1, 128], strides = [1, 1]} : vector<2x128xf32> to vector<1x128xf32>
    %208 = vector.extract_strided_slice %205 {offsets = [1, 0], sizes = [1, 128], strides = [1, 1]} : vector<2x128xf32> to vector<1x128xf32>
    %cst_126 = arith.constant dense<0.000000e+00> : vector<16xf32>
    %209 = vector.multi_reduction <add>, %206, %cst_126 [1] : vector<16x128xf32> to vector<16xf32>
    %210 = vector.shape_cast %209 : vector<16xf32> to vector<16x1xf32>
    %cst_127 = arith.constant 1.280000e+02 : f32
    %211 = vector.broadcast %cst_127 : f32 to vector<16x1xf32>
    %212 = arith.divf %210, %211 : vector<16x1xf32>
    %213 = vector.broadcast %212 : vector<16x1xf32> to vector<16x128xf32>
    %214 = arith.subf %206, %213 : vector<16x128xf32>
    %215 = arith.mulf %214, %214 : vector<16x128xf32>
    %cst_128 = arith.constant dense<0.000000e+00> : vector<16xf32>
    %216 = vector.multi_reduction <add>, %215, %cst_128 [1] : vector<16x128xf32> to vector<16xf32>
    %217 = vector.shape_cast %216 : vector<16xf32> to vector<16x1xf32>
    %cst_129 = arith.constant 1.270000e+02 : f32
    %218 = vector.broadcast %cst_129 : f32 to vector<16x1xf32>
    %219 = arith.divf %217, %218 : vector<16x1xf32>
    %220 = math.sqrt %219 : vector<16x1xf32>
    %221 = vector.broadcast %212 : vector<16x1xf32> to vector<16x128xf32>
    %222 = arith.subf %206, %221 : vector<16x128xf32>
    %cst_130 = arith.constant 9.99999997E-7 : f32
    %223 = vector.broadcast %cst_130 : f32 to vector<16x1xf32>
    %224 = arith.addf %220, %223 : vector<16x1xf32>
    %225 = vector.broadcast %224 : vector<16x1xf32> to vector<16x128xf32>
    %226 = arith.divf %222, %225 : vector<16x128xf32>
    %227 = vector.broadcast %207 : vector<1x128xf32> to vector<16x128xf32>
    %228 = arith.mulf %227, %226 : vector<16x128xf32>
    %229 = vector.broadcast %208 : vector<1x128xf32> to vector<16x128xf32>
    %230 = arith.addf %228, %229 : vector<16x128xf32>
    %231 = arith.addf %157, %230 : vector<16x128xf32>
    %232 = vector.extract_strided_slice %8 {offsets = [0, 96], sizes = [16, 32], strides = [1, 1]} : vector<16x384xf32> to vector<16x32xf32>
    %233 = vector.extract_strided_slice %8 {offsets = [0, 224], sizes = [16, 32], strides = [1, 1]} : vector<16x384xf32> to vector<16x32xf32>
    %234 = vector.extract_strided_slice %8 {offsets = [0, 352], sizes = [16, 32], strides = [1, 1]} : vector<16x384xf32> to vector<16x32xf32>
    %cst_131 = arith.constant dense<0.000000e+00> : vector<16x16xf32>
    %235 = tpu.matmul %232, %233, %cst_131 {dimension_numbers = #tpu.dot_dimension_numbers<[1], [1], [0], [0], [0, 0, 1, 0], [], []>, precision = #tpu.contract_precision<fp32>} : vector<16x32xf32>, vector<16x32xf32>, vector<16x16xf32> -> vector<16x16xf32>
    %cst_132 = arith.constant 0.176776692 : f32
    %236 = vector.broadcast %cst_132 : f32 to vector<16x16xf32>
    %237 = arith.mulf %235, %236 : vector<16x16xf32>
    %cst_133 = arith.constant 5.000000e-01 : f32
    %238 = vector.broadcast %cst_133 : f32 to vector<16x16xf32>
    %239 = arith.cmpf ogt, %3, %238 : vector<16x16xf32>
    %cst_134 = arith.constant -1.000000e+09 : f32
    %240 = vector.broadcast %cst_134 : f32 to vector<16x16xf32>
    %241 = arith.select %239, %240, %237 : vector<16x16xi1>, vector<16x16xf32>
    %cst_135 = arith.constant dense<0xFF800000> : vector<16xf32>
    %242 = vector.multi_reduction <maximumf>, %241, %cst_135 [1] : vector<16x16xf32> to vector<16xf32>
    %243 = vector.shape_cast %242 : vector<16xf32> to vector<16x1xf32>
    %244 = vector.broadcast %243 : vector<16x1xf32> to vector<16x16xf32>
    %245 = arith.subf %241, %244 : vector<16x16xf32>
    %246 = math.exp %245 : vector<16x16xf32>
    %cst_136 = arith.constant dense<0.000000e+00> : vector<16xf32>
    %247 = vector.multi_reduction <add>, %246, %cst_136 [1] : vector<16x16xf32> to vector<16xf32>
    %248 = vector.shape_cast %247 : vector<16xf32> to vector<16x1xf32>
    %249 = vector.broadcast %248 : vector<16x1xf32> to vector<16x16xf32>
    %250 = arith.divf %246, %249 : vector<16x16xf32>
    %c0_137 = arith.constant 0 : index
    %c3 = arith.constant 3 : index
    %c0_138 = arith.constant 0 : index
    %c0_139 = arith.constant 0 : index
    %251 = vector.load %arg14[%c0_137, %c3, %c0_138, %c0_139] : memref<1x4x16x16xf32, #tpu.memory_space<vmem>>, vector<1x1x16x16xf32>
    %252 = vector.shape_cast %251 : vector<1x1x16x16xf32> to vector<16x16xf32>
    %253 = vector.shape_cast %250 : vector<16x16xf32> to vector<1x1x16x16xf32>
    tpu.vector_store %arg14[%c0_137, %c3, %c0_138, %c0_139], %253 {strides = array<i32>} : memref<1x4x16x16xf32, #tpu.memory_space<vmem>>, vector<1x1x16x16xf32>,
    %cst_140 = arith.constant dense<0.000000e+00> : vector<16x32xf32>
    %254 = tpu.matmul %250, %234, %cst_140 {dimension_numbers = #tpu.dot_dimension_numbers<[1], [0], [0], [1], [0, 0, 1, 1], [], []>, precision = #tpu.contract_precision<fp32>} : vector<16x16xf32>, vector<16x32xf32>, vector<16x32xf32> -> vector<16x32xf32>
    %c3_141 = arith.constant 3 : index
    %c0_142 = arith.constant 0 : index
    %c0_143 = arith.constant 0 : index
    %255 = vector.load %arg5[%c3_141, %c0_142, %c0_143] : memref<4x32x128xf32, #tpu.memory_space<vmem>>, vector<1x32x128xf32>
    %256 = vector.shape_cast %255 : vector<1x32x128xf32> to vector<32x128xf32>
    %cst_144 = arith.constant dense<0.000000e+00> : vector<16x128xf32>
    %257 = tpu.matmul %254, %256, %cst_144 {dimension_numbers = #tpu.dot_dimension_numbers<[1], [0], [0], [1], [0, 0, 1, 1], [], []>, precision = #tpu.contract_precision<fp32>} : vector<16x32xf32>, vector<32x128xf32>, vector<16x128xf32> -> vector<16x128xf32>
    %c3_145 = arith.constant 3 : index
    %c0_146 = arith.constant 0 : index
    %c0_147 = arith.constant 0 : index
    %258 = vector.load %arg6[%c3_145, %c0_146, %c0_147] : memref<4x1x128xf32, #tpu.memory_space<vmem>>, vector<1x1x128xf32>
    %259 = vector.shape_cast %258 : vector<1x1x128xf32> to vector<1x128xf32>
    %260 = vector.broadcast %259 : vector<1x128xf32> to vector<16x128xf32>
    %261 = arith.addf %257, %260 : vector<16x128xf32>
    %c3_148 = arith.constant 3 : index
    %c0_149 = arith.constant 0 : index
    %c0_150 = arith.constant 0 : index
    %262 = vector.load %arg7[%c3_148, %c0_149, %c0_150] : memref<4x128x64xf32, #tpu.memory_space<vmem>>, vector<1x128x64xf32>
    %263 = vector.shape_cast %262 : vector<1x128x64xf32> to vector<128x64xf32>
    %cst_151 = arith.constant dense<0.000000e+00> : vector<16x64xf32>
    %264 = tpu.matmul %261, %263, %cst_151 {dimension_numbers = #tpu.dot_dimension_numbers<[1], [0], [0], [1], [0, 0, 1, 1], [], []>, precision = #tpu.contract_precision<fp32>} : vector<16x128xf32>, vector<128x64xf32>, vector<16x64xf32> -> vector<16x64xf32>
    %c3_152 = arith.constant 3 : index
    %c0_153 = arith.constant 0 : index
    %c0_154 = arith.constant 0 : index
    %265 = vector.load %arg8[%c3_152, %c0_153, %c0_154] : memref<4x1x64xf32, #tpu.memory_space<vmem>>, vector<1x1x64xf32>
    %266 = vector.shape_cast %265 : vector<1x1x64xf32> to vector<1x64xf32>
    %267 = vector.broadcast %266 : vector<1x64xf32> to vector<16x64xf32>
    %268 = arith.addf %264, %267 : vector<16x64xf32>
    %cst_155 = arith.constant 0.000000e+00 : f32
    %269 = vector.broadcast %cst_155 : f32 to vector<16x64xf32>
    %270 = arith.maximumf %268, %269 : vector<16x64xf32>
    %c3_156 = arith.constant 3 : index
    %c0_157 = arith.constant 0 : index
    %c0_158 = arith.constant 0 : index
    %271 = vector.load %arg9[%c3_156, %c0_157, %c0_158] : memref<4x64x128xf32, #tpu.memory_space<vmem>>, vector<1x64x128xf32>
    %272 = vector.shape_cast %271 : vector<1x64x128xf32> to vector<64x128xf32>
    %cst_159 = arith.constant dense<0.000000e+00> : vector<16x128xf32>
    %273 = tpu.matmul %270, %272, %cst_159 {dimension_numbers = #tpu.dot_dimension_numbers<[1], [0], [0], [1], [0, 0, 1, 1], [], []>, precision = #tpu.contract_precision<fp32>} : vector<16x64xf32>, vector<64x128xf32>, vector<16x128xf32> -> vector<16x128xf32>
    %c3_160 = arith.constant 3 : index
    %c0_161 = arith.constant 0 : index
    %c0_162 = arith.constant 0 : index
    %274 = vector.load %arg10[%c3_160, %c0_161, %c0_162] : memref<4x1x128xf32, #tpu.memory_space<vmem>>, vector<1x1x128xf32>
    %275 = vector.shape_cast %274 : vector<1x1x128xf32> to vector<1x128xf32>
    %276 = vector.broadcast %275 : vector<1x128xf32> to vector<16x128xf32>
    %277 = arith.addf %273, %276 : vector<16x128xf32>
    %c3_163 = arith.constant 3 : index
    %c0_164 = arith.constant 0 : index
    %c0_165 = arith.constant 0 : index
    %278 = vector.load %arg11[%c3_163, %c0_164, %c0_165] : memref<4x2x128xf32, #tpu.memory_space<vmem>>, vector<1x2x128xf32>
    %279 = vector.shape_cast %278 : vector<1x2x128xf32> to vector<2x128xf32>
    %280 = arith.addf %261, %277 : vector<16x128xf32>
    %281 = vector.extract_strided_slice %279 {offsets = [0, 0], sizes = [1, 128], strides = [1, 1]} : vector<2x128xf32> to vector<1x128xf32>
    %282 = vector.extract_strided_slice %279 {offsets = [1, 0], sizes = [1, 128], strides = [1, 1]} : vector<2x128xf32> to vector<1x128xf32>
    %cst_166 = arith.constant dense<0.000000e+00> : vector<16xf32>
    %283 = vector.multi_reduction <add>, %280, %cst_166 [1] : vector<16x128xf32> to vector<16xf32>
    %284 = vector.shape_cast %283 : vector<16xf32> to vector<16x1xf32>
    %cst_167 = arith.constant 1.280000e+02 : f32
    %285 = vector.broadcast %cst_167 : f32 to vector<16x1xf32>
    %286 = arith.divf %284, %285 : vector<16x1xf32>
    %287 = vector.broadcast %286 : vector<16x1xf32> to vector<16x128xf32>
    %288 = arith.subf %280, %287 : vector<16x128xf32>
    %289 = arith.mulf %288, %288 : vector<16x128xf32>
    %cst_168 = arith.constant dense<0.000000e+00> : vector<16xf32>
    %290 = vector.multi_reduction <add>, %289, %cst_168 [1] : vector<16x128xf32> to vector<16xf32>
    %291 = vector.shape_cast %290 : vector<16xf32> to vector<16x1xf32>
    %cst_169 = arith.constant 1.270000e+02 : f32
    %292 = vector.broadcast %cst_169 : f32 to vector<16x1xf32>
    %293 = arith.divf %291, %292 : vector<16x1xf32>
    %294 = math.sqrt %293 : vector<16x1xf32>
    %295 = vector.broadcast %286 : vector<16x1xf32> to vector<16x128xf32>
    %296 = arith.subf %280, %295 : vector<16x128xf32>
    %cst_170 = arith.constant 9.99999997E-7 : f32
    %297 = vector.broadcast %cst_170 : f32 to vector<16x1xf32>
    %298 = arith.addf %294, %297 : vector<16x1xf32>
    %299 = vector.broadcast %298 : vector<16x1xf32> to vector<16x128xf32>
    %300 = arith.divf %296, %299 : vector<16x128xf32>
    %301 = vector.broadcast %281 : vector<1x128xf32> to vector<16x128xf32>
    %302 = arith.mulf %301, %300 : vector<16x128xf32>
    %303 = vector.broadcast %282 : vector<1x128xf32> to vector<16x128xf32>
    %304 = arith.addf %302, %303 : vector<16x128xf32>
    %305 = arith.addf %231, %304 : vector<16x128xf32>
    %c0_171 = arith.constant 0 : index
    %c0_172 = arith.constant 0 : index
    %306 = vector.load %arg12[%c0_171, %c0_172] : memref<2x128xf32, #tpu.memory_space<vmem>>, vector<2x128xf32>
    %307 = arith.addf %1, %305 : vector<16x128xf32>
    %308 = vector.extract_strided_slice %306 {offsets = [0, 0], sizes = [1, 128], strides = [1, 1]} : vector<2x128xf32> to vector<1x128xf32>
    %309 = vector.extract_strided_slice %306 {offsets = [1, 0], sizes = [1, 128], strides = [1, 1]} : vector<2x128xf32> to vector<1x128xf32>
    %cst_173 = arith.constant dense<0.000000e+00> : vector<16xf32>
    %310 = vector.multi_reduction <add>, %307, %cst_173 [1] : vector<16x128xf32> to vector<16xf32>
    %311 = vector.shape_cast %310 : vector<16xf32> to vector<16x1xf32>
    %cst_174 = arith.constant 1.280000e+02 : f32
    %312 = vector.broadcast %cst_174 : f32 to vector<16x1xf32>
    %313 = arith.divf %311, %312 : vector<16x1xf32>
    %314 = vector.broadcast %313 : vector<16x1xf32> to vector<16x128xf32>
    %315 = arith.subf %307, %314 : vector<16x128xf32>
    %316 = arith.mulf %315, %315 : vector<16x128xf32>
    %cst_175 = arith.constant dense<0.000000e+00> : vector<16xf32>
    %317 = vector.multi_reduction <add>, %316, %cst_175 [1] : vector<16x128xf32> to vector<16xf32>
    %318 = vector.shape_cast %317 : vector<16xf32> to vector<16x1xf32>
    %cst_176 = arith.constant 1.270000e+02 : f32
    %319 = vector.broadcast %cst_176 : f32 to vector<16x1xf32>
    %320 = arith.divf %318, %319 : vector<16x1xf32>
    %321 = math.sqrt %320 : vector<16x1xf32>
    %322 = vector.broadcast %313 : vector<16x1xf32> to vector<16x128xf32>
    %323 = arith.subf %307, %322 : vector<16x128xf32>
    %cst_177 = arith.constant 9.99999997E-7 : f32
    %324 = vector.broadcast %cst_177 : f32 to vector<16x1xf32>
    %325 = arith.addf %321, %324 : vector<16x1xf32>
    %326 = vector.broadcast %325 : vector<16x1xf32> to vector<16x128xf32>
    %327 = arith.divf %323, %326 : vector<16x128xf32>
    %328 = vector.broadcast %308 : vector<1x128xf32> to vector<16x128xf32>
    %329 = arith.mulf %328, %327 : vector<16x128xf32>
    %330 = vector.broadcast %309 : vector<1x128xf32> to vector<16x128xf32>
    %331 = arith.addf %329, %330 : vector<16x128xf32>
    %c0_178 = arith.constant 0 : index
    %c0_179 = arith.constant 0 : index
    %c0_180 = arith.constant 0 : index
    %332 = vector.load %arg13[%c0_178, %c0_179, %c0_180] : memref<1x16x128xf32, #tpu.memory_space<vmem>>, vector<1x16x128xf32>
    %333 = vector.shape_cast %332 : vector<1x16x128xf32> to vector<16x128xf32>
    %334 = vector.shape_cast %331 : vector<16x128xf32> to vector<1x16x128xf32>
    tpu.vector_store %arg13[%c0_178, %c0_179, %c0_180], %334 {strides = array<i32>} : memref<1x16x128xf32, #tpu.memory_space<vmem>>, vector<1x16x128xf32>,
    return
  }
  func.func @transform_0(%arg0: i32) -> (i32, i32, i32) {
    %c0_i32 = arith.constant 0 : i32
    %c0_i32_0 = arith.constant 0 : i32
    %c0_i32_1 = arith.constant 0 : i32
    return %arg0, %c0_i32, %c0_i32_0 : i32, i32, i32
  }
  func.func @transform_1(%arg0: i32) -> (i32, i32, i32) {
    %c0_i32 = arith.constant 0 : i32
    %c0_i32_0 = arith.constant 0 : i32
    %c0_i32_1 = arith.constant 0 : i32
    return %arg0, %c0_i32, %c0_i32_0 : i32, i32, i32
  }
  func.func @transform_2(%arg0: i32) -> (i32, i32) {
    %c0_i32 = arith.constant 0 : i32
    %c0_i32_0 = arith.constant 0 : i32
    %c0_i32_1 = arith.constant 0 : i32
    return %c0_i32, %c0_i32_0 : i32, i32
  }
  func.func @transform_3(%arg0: i32) -> (i32, i32) {
    %c0_i32 = arith.constant 0 : i32
    %c0_i32_0 = arith.constant 0 : i32
    %c0_i32_1 = arith.constant 0 : i32
    return %c0_i32, %c0_i32_0 : i32, i32
  }
  func.func @transform_4(%arg0: i32) -> (i32, i32, i32) {
    %c0_i32 = arith.constant 0 : i32
    %c0_i32_0 = arith.constant 0 : i32
    %c0_i32_1 = arith.constant 0 : i32
    %c0_i32_2 = arith.constant 0 : i32
    return %c0_i32, %c0_i32_0, %c0_i32_1 : i32, i32, i32
  }
  func.func @transform_5(%arg0: i32) -> (i32, i32, i32) {
    %c0_i32 = arith.constant 0 : i32
    %c0_i32_0 = arith.constant 0 : i32
    %c0_i32_1 = arith.constant 0 : i32
    %c0_i32_2 = arith.constant 0 : i32
    return %c0_i32, %c0_i32_0, %c0_i32_1 : i32, i32, i32
  }
  func.func @transform_6(%arg0: i32) -> (i32, i32, i32) {
    %c0_i32 = arith.constant 0 : i32
    %c0_i32_0 = arith.constant 0 : i32
    %c0_i32_1 = arith.constant 0 : i32
    %c0_i32_2 = arith.constant 0 : i32
    return %c0_i32, %c0_i32_0, %c0_i32_1 : i32, i32, i32
  }
  func.func @transform_7(%arg0: i32) -> (i32, i32, i32) {
    %c0_i32 = arith.constant 0 : i32
    %c0_i32_0 = arith.constant 0 : i32
    %c0_i32_1 = arith.constant 0 : i32
    %c0_i32_2 = arith.constant 0 : i32
    return %c0_i32, %c0_i32_0, %c0_i32_1 : i32, i32, i32
  }
  func.func @transform_8(%arg0: i32) -> (i32, i32, i32) {
    %c0_i32 = arith.constant 0 : i32
    %c0_i32_0 = arith.constant 0 : i32
    %c0_i32_1 = arith.constant 0 : i32
    %c0_i32_2 = arith.constant 0 : i32
    return %c0_i32, %c0_i32_0, %c0_i32_1 : i32, i32, i32
  }
  func.func @transform_9(%arg0: i32) -> (i32, i32, i32) {
    %c0_i32 = arith.constant 0 : i32
    %c0_i32_0 = arith.constant 0 : i32
    %c0_i32_1 = arith.constant 0 : i32
    %c0_i32_2 = arith.constant 0 : i32
    return %c0_i32, %c0_i32_0, %c0_i32_1 : i32, i32, i32
  }
  func.func @transform_10(%arg0: i32) -> (i32, i32, i32) {
    %c0_i32 = arith.constant 0 : i32
    %c0_i32_0 = arith.constant 0 : i32
    %c0_i32_1 = arith.constant 0 : i32
    %c0_i32_2 = arith.constant 0 : i32
    return %c0_i32, %c0_i32_0, %c0_i32_1 : i32, i32, i32
  }
  func.func @transform_11(%arg0: i32) -> (i32, i32) {
    %c0_i32 = arith.constant 0 : i32
    %c0_i32_0 = arith.constant 0 : i32
    %c0_i32_1 = arith.constant 0 : i32
    return %c0_i32, %c0_i32_0 : i32, i32
  }
  func.func @transform_12(%arg0: i32) -> (i32, i32, i32) {
    %c0_i32 = arith.constant 0 : i32
    %c0_i32_0 = arith.constant 0 : i32
    %c0_i32_1 = arith.constant 0 : i32
    return %arg0, %c0_i32, %c0_i32_0 : i32, i32, i32
  }
  func.func @transform_13(%arg0: i32) -> (i32, i32, i32, i32) {
    %c0_i32 = arith.constant 0 : i32
    %c0_i32_0 = arith.constant 0 : i32
    %c0_i32_1 = arith.constant 0 : i32
    %c0_i32_2 = arith.constant 0 : i32
    return %arg0, %c0_i32, %c0_i32_0, %c0_i32_1 : i32, i32, i32, i32
  }
}

</mosaic_0001>

<llo_original>
// kernel: tpu_custom_call.1
$region0: #{tpu_custom_call.1}
  #allocation0 [shape = 'u32[]', space=smem, size = 0x4, offset = 0x4, fixed_abs, tag = 'smem constant byte address 0x4 - core index']
  #allocation1 [shape = 'u32[72,128]{1,0:T(1,128)}', space=vmem, size = 0x9000, scoped, tag = 'internal scratch']
  %s0 = inlined_call_operand.hbm [shape: f32[2,16,128], index: 0, kind: input, shape index: {}]
  %s1 = inlined_call_operand.hbm [shape: f32[2,16,16], index: 1, kind: input, shape index: {}]
  %s2 = inlined_call_operand.vmem [shape: f32[128,384], index: 2, kind: input, shape index: {}]
  %s3 = inlined_call_operand.hbm [shape: f32[1,384], index: 3, kind: input, shape index: {}]
  %s4 = inlined_call_operand.vmem [shape: f32[4,32,128], index: 4, kind: input, shape index: {}]
  %s5 = inlined_call_operand.hbm [shape: f32[4,1,128], index: 5, kind: input, shape index: {}]
  %s6 = inlined_call_operand.vmem [shape: f32[4,128,64], index: 6, kind: input, shape index: {}]
  %s7 = inlined_call_operand.hbm [shape: f32[4,1,64], index: 7, kind: input, shape index: {}]
  %s8 = inlined_call_operand.vmem [shape: f32[4,64,128], index: 8, kind: input, shape index: {}]
  %s9 = inlined_call_operand.hbm [shape: f32[4,1,128], index: 9, kind: input, shape index: {}]
  %s10 = inlined_call_operand.vmem [shape: f32[4,2,128], index: 10, kind: input, shape index: {}]
  %s11 = inlined_call_operand.hbm [shape: f32[2,128], index: 11, kind: input, shape index: {}]
  %s12 = inlined_call_operand.hbm [shape: f32[2,16,128], index: 12, kind: output, shape index: {0}]
  %s13 = inlined_call_operand.hbm [shape: f32[2,4,16,16], index: 13, kind: output, shape index: {1}]
  %14 = xla_tuple %s12, %s13
  %s15 = sld [smem:[#allocation0]]
  $region117: #{tpu_custom_call.1} parent=0
    _
  %s17 = ssub.s32 1, %s15
  %s18 = scalar_select 0, %s17, %s15
  $region1: #{tpu_custom_call.1} parent=0
    #allocation2 [shape = 'u8[16384]{0}', space=vmem, size = 0x4000, scoped, tag = 'input window, operand 0']
    #allocation3 [shape = 's32[2]{0}', space=sflag, size = 0x8, scoped, tag = 'scoped memory for tpu_custom_call.1']
    #allocation4 [shape = 's32[2]{0}', space=sflag, size = 0x8, scoped, tag = 'scoped memory for tpu_custom_call.1']
    #allocation5 [shape = 'u8[16384]{0}', space=vmem, size = 0x4000, scoped, tag = 'input window, operand 1']
    #allocation6 [shape = 's32[2]{0}', space=sflag, size = 0x8, scoped, tag = 'scoped memory for tpu_custom_call.1']
    #allocation7 [shape = 'u8[1536]{0}', space=vmem, size = 0x800, scoped, tag = 'input window, operand 3, single buffered']
    #allocation8 [shape = 'u8[2048]{0}', space=vmem, size = 0x800, scoped, tag = 'input window, operand 5, single buffered']
    #allocation9 [shape = 's32[1]{0}', space=sflag, size = 0x4, scoped, tag = 'scoped memory for tpu_custom_call.1']
    #allocation10 [shape = 'u8[2048]{0}', space=vmem, size = 0x800, scoped, tag = 'input window, operand 7, single buffered']
    #allocation11 [shape = 'u8[2048]{0}', space=vmem, size = 0x800, scoped, tag = 'input window, operand 9, single buffered']
    #allocation12 [shape = 's32[1]{0}', space=sflag, size = 0x4, scoped, tag = 'scoped memory for tpu_custom_call.1']
    #allocation13 [shape = 'u8[1024]{0}', space=vmem, size = 0x400, scoped, tag = 'input window, operand 11, single buffered']
    #allocation14 [shape = 'u8[16384]{0}', space=vmem, size = 0x4000, scoped, tag = 'output window, operand 0']
    #allocation15 [shape = 'u8[65536]{0}', space=vmem, size = 0x10000, scoped, tag = 'output window, operand 1']
    #allocation16 [shape = 's32[2]{0}', space=sflag, size = 0x8, scoped, tag = 'scoped memory for tpu_custom_call.1']
    %19 = vsyncpa [#allocation3], 0
    %s20 = scalar_lea.sflag [#allocation3], 1
    %21 = vsyncpa %s20, 0
    %22 = vsyncpa [#allocation6], 0
    %s23 = scalar_lea.sflag [#allocation6], 1
    %24 = vsyncpa %s23, 0
    %25 = vsyncpa [#allocation9], 0
    %26 = vsyncpa [#allocation12], 0
    %27 = vsyncpa [#allocation4], 0
    %s28 = scalar_lea.sflag [#allocation4], 1
    %29 = vsyncpa %s28, 0
    %30 = vsyncpa [#allocation16], 0
    %s31 = scalar_lea.sflag [#allocation16], 1
    %32 = vsyncpa %s31, 0
    loop: start=0, step=1, limit=4
    $region2: #{tpu_custom_call.1} parent=1 // loop_pre_header
      _
    $region3: #{tpu_custom_call.1} parent=1 // loop_header
      %s34 = sphi 0, %s38
      %p35 = scmp.ge.s32.totalorder %s34, 4
      %s44 = sphi 0, %s46
      %s47 = sphi 0, %s44
      %s48 = sphi 0, %s47
      %s64 = sphi 0, %s48
      %s70 = sphi 0, %s72
      %s73 = sphi 0, %s70
      %s74 = sphi 0, %s73
      %s90 = sphi 0, %s74
      %s94 = sphi 0, %s94
      %s96 = sphi 0, %s94
      %s97 = sphi 0, %s96
      %s111 = sphi 0, %s97
      %s115 = sphi 0, %s115
      %s117 = sphi 0, %s115
      %s118 = sphi 0, %s117
      %s132 = sphi 0, %s118
      %s136 = sphi 0, %s136
      %s138 = sphi 0, %s136
      %s139 = sphi 0, %s138
      %s153 = sphi 0, %s139
      %s157 = sphi 0, %s157
      %s159 = sphi 0, %s157
      %s160 = sphi 0, %s159
      %s174 = sphi 0, %s160
      %s178 = sphi 0, %s178
      %s180 = sphi 0, %s178
      %s181 = sphi 0, %s180
      %s195 = sphi 0, %s181
      %s199 = sphi 0, %s199
      %s201 = sphi 0, %s199
      %s202 = sphi 0, %s201
      %s216 = sphi 0, %s202
      %s220 = sphi 0, %s220
      %s222 = sphi 0, %s220
      %s223 = sphi 0, %s222
      %s237 = sphi 0, %s223
      %s241 = sphi 0, %s241
      %s243 = sphi 0, %s241
      %s244 = sphi 0, %s243
      %s258 = sphi 0, %s244
      %s262 = sphi 0, %s262
      %s264 = sphi 0, %s262
      %s265 = sphi 0, %s264
      %s279 = sphi 0, %s265
      %s283 = sphi 0, %s283
      %s285 = sphi 0, %s283
      %s286 = sphi 0, %s285
      %s300 = sphi 0, %s286
      %s306 = sphi 0, %s308
      %s309 = sphi 0, %s306
      %s310 = sphi 0, %s309
      %s326 = sphi 0, %s310
      %s332 = sphi 0, %s334
      %s335 = sphi 0, %s332
      %s336 = sphi 0, %s335
      %s352 = sphi 0, %s336
    $region4: #{tpu_custom_call.1} parent=1 // loop_header_branch
      %37 = sbr.rel (%p35) target = $region8
    $region5: #{tpu_custom_call.1} parent=1 // loop_body
      %s39 = ssub.s32 %s34, 1
      %s40 = ssub.s32 %s34, 2
      %s41 = sadd.s32 %s34, 1
      %s42 = ssub.s32 %s34, %s41
      %p43 = scmp.eq.s32.totalorder %s42, 0
      %s45 = sadd.s32 %s44, 1
      %s46 = scalar_select %p43, %s44, %s45
      %p49 = pneg %p43
      %p50 = scmp.eq.s32.totalorder %s34, 1
      %p51 = por %p49, %p50
      %p52 = scmp.ne.s32.totalorder %s44, %s47
      %p53 = scmp.eq.s32.totalorder %s34, 0
      %p54 = por %p52, %p53
      %p55 = scmp.ne.s32.totalorder %s44, %s47
      %p56 = scmp.eq.s32.totalorder %s39, 1
      %p57 = por %p55, %p56
      %p58 = scmp.ne.s32.totalorder %s47, %s48
      %p59 = scmp.eq.s32.totalorder %s39, 0
      %p60 = por %p58, %p59
      %p61 = scmp.ne.s32.totalorder %s47, %s48
      %p62 = scmp.eq.s32.totalorder %s40, 1
      %p63 = por %p61, %p62
      %p65 = scmp.ne.s32.totalorder %s48, %s64
      %p66 = scmp.eq.s32.totalorder %s40, 0
      %p67 = por %p65, %p66
      %s68 = ssub.s32 %s34, %s41
      %p69 = scmp.eq.s32.totalorder %s68, 0
      %s71 = sadd.s32 %s70, 1
      %s72 = scalar_select %p69, %s70, %s71
      %p75 = pneg %p69
      %p76 = scmp.eq.s32.totalorder %s34, 1
      %p77 = por %p75, %p76
      %p78 = scmp.ne.s32.totalorder %s70, %s73
      %p79 = scmp.eq.s32.totalorder %s34, 0
      %p80 = por %p78, %p79
      %p81 = scmp.ne.s32.totalorder %s70, %s73
      %p82 = scmp.eq.s32.totalorder %s39, 1
      %p83 = por %p81, %p82
      %p84 = scmp.ne.s32.totalorder %s73, %s74
      %p85 = scmp.eq.s32.totalorder %s39, 0
      %p86 = por %p84, %p85
      %p87 = scmp.ne.s32.totalorder %s73, %s74
      %p88 = scmp.eq.s32.totalorder %s40, 1
      %p89 = por %p87, %p88
      %p91 = scmp.ne.s32.totalorder %s74, %s90
      %p92 = scmp.eq.s32.totalorder %s40, 0
      %p93 = por %p91, %p92
      %s95 = sadd.s32 %s94, 1
      %p98 = scmp.eq.s32.totalorder %s34, 1
      %p99 = scmp.ne.s32.totalorder %s94, %s96
      %p100 = scmp.eq.s32.totalorder %s34, 0
      %p101 = por %p99, %p100
      %p102 = scmp.ne.s32.totalorder %s94, %s96
      %p103 = scmp.eq.s32.totalorder %s39, 1
      %p104 = por %p102, %p103
      %p105 = scmp.ne.s32.totalorder %s96, %s97
      %p106 = scmp.eq.s32.totalorder %s39, 0
      %p107 = por %p105, %p106
      %p108 = scmp.ne.s32.totalorder %s96, %s97
      %p109 = scmp.eq.s32.totalorder %s40, 1
      %p110 = por %p108, %p109
      %p112 = scmp.ne.s32.totalorder %s97, %s111
      %p113 = scmp.eq.s32.totalorder %s40, 0
      %p114 = por %p112, %p113
      %s116 = sadd.s32 %s115, 1
      %p119 = scmp.eq.s32.totalorder %s34, 1
      %p120 = scmp.ne.s32.totalorder %s115, %s117
      %p121 = scmp.eq.s32.totalorder %s34, 0
      %p122 = por %p120, %p121
      %p123 = scmp.ne.s32.totalorder %s115, %s117
      %p124 = scmp.eq.s32.totalorder %s39, 1
      %p125 = por %p123, %p124
      %p126 = scmp.ne.s32.totalorder %s117, %s118
      %p127 = scmp.eq.s32.totalorder %s39, 0
      %p128 = por %p126, %p127
      %p129 = scmp.ne.s32.totalorder %s117, %s118
      %p130 = scmp.eq.s32.totalorder %s40, 1
      %p131 = por %p129, %p130
      %p133 = scmp.ne.s32.totalorder %s118, %s132
      %p134 = scmp.eq.s32.totalorder %s40, 0
      %p135 = por %p133, %p134
      %s137 = sadd.s32 %s136, 1
      %p140 = scmp.eq.s32.totalorder %s34, 1
      %p141 = scmp.ne.s32.totalorder %s136, %s138
      %p142 = scmp.eq.s32.totalorder %s34, 0
      %p143 = por %p141, %p142
      %p144 = scmp.ne.s32.totalorder %s136, %s138
      %p145 = scmp.eq.s32.totalorder %s39, 1
      %p146 = por %p144, %p145
      %p147 = scmp.ne.s32.totalorder %s138, %s139
      %p148 = scmp.eq.s32.totalorder %s39, 0
      %p149 = por %p147, %p148
      %p150 = scmp.ne.s32.totalorder %s138, %s139
      %p151 = scmp.eq.s32.totalorder %s40, 1
      %p152 = por %p150, %p151
      %p154 = scmp.ne.s32.totalorder %s139, %s153
      %p155 = scmp.eq.s32.totalorder %s40, 0
      %p156 = por %p154, %p155
      %s158 = sadd.s32 %s157, 1
      %p161 = scmp.eq.s32.totalorder %s34, 1
      %p162 = scmp.ne.s32.totalorder %s157, %s159
      %p163 = scmp.eq.s32.totalorder %s34, 0
      %p164 = por %p162, %p163
      %p165 = scmp.ne.s32.totalorder %s157, %s159
      %p166 = scmp.eq.s32.totalorder %s39, 1
      %p167 = por %p165, %p166
      %p168 = scmp.ne.s32.totalorder %s159, %s160
      %p169 = scmp.eq.s32.totalorder %s39, 0
      %p170 = por %p168, %p169
      %p171 = scmp.ne.s32.totalorder %s159, %s160
      %p172 = scmp.eq.s32.totalorder %s40, 1
      %p173 = por %p171, %p172
      %p175 = scmp.ne.s32.totalorder %s160, %s174
      %p176 = scmp.eq.s32.totalorder %s40, 0
      %p177 = por %p175, %p176
      %s179 = sadd.s32 %s178, 1
      %p182 = scmp.eq.s32.totalorder %s34, 1
      %p183 = scmp.ne.s32.totalorder %s178, %s180
      %p184 = scmp.eq.s32.totalorder %s34, 0
      %p185 = por %p183, %p184
      %p186 = scmp.ne.s32.totalorder %s178, %s180
      %p187 = scmp.eq.s32.totalorder %s39, 1
      %p188 = por %p186, %p187
      %p189 = scmp.ne.s32.totalorder %s180, %s181
      %p190 = scmp.eq.s32.totalorder %s39, 0
      %p191 = por %p189, %p190
      %p192 = scmp.ne.s32.totalorder %s180, %s181
      %p193 = scmp.eq.s32.totalorder %s40, 1
      %p194 = por %p192, %p193
      %p196 = scmp.ne.s32.totalorder %s181, %s195
      %p197 = scmp.eq.s32.totalorder %s40, 0
      %p198 = por %p196, %p197
      %s200 = sadd.s32 %s199, 1
      %p203 = scmp.eq.s32.totalorder %s34, 1
      %p204 = scmp.ne.s32.totalorder %s199, %s201
      %p205 = scmp.eq.s32.totalorder %s34, 0
      %p206 = por %p204, %p205
      %p207 = scmp.ne.s32.totalorder %s199, %s201
      %p208 = scmp.eq.s32.totalorder %s39, 1
      %p209 = por %p207, %p208
      %p210 = scmp.ne.s32.totalorder %s201, %s202
      %p211 = scmp.eq.s32.totalorder %s39, 0
      %p212 = por %p210, %p211
      %p213 = scmp.ne.s32.totalorder %s201, %s202
      %p214 = scmp.eq.s32.totalorder %s40, 1
      %p215 = por %p213, %p214
      %p217 = scmp.ne.s32.totalorder %s202, %s216
      %p218 = scmp.eq.s32.totalorder %s40, 0
      %p219 = por %p217, %p218
      %s221 = sadd.s32 %s220, 1
      %p224 = scmp.eq.s32.totalorder %s34, 1
      %p225 = scmp.ne.s32.totalorder %s220, %s222
      %p226 = scmp.eq.s32.totalorder %s34, 0
      %p227 = por %p225, %p226
      %p228 = scmp.ne.s32.totalorder %s220, %s222
      %p229 = scmp.eq.s32.totalorder %s39, 1
      %p230 = por %p228, %p229
      %p231 = scmp.ne.s32.totalorder %s222, %s223
      %p232 = scmp.eq.s32.totalorder %s39, 0
      %p233 = por %p231, %p232
      %p234 = scmp.ne.s32.totalorder %s222, %s223
      %p235 = scmp.eq.s32.totalorder %s40, 1
      %p236 = por %p234, %p235
      %p238 = scmp.ne.s32.totalorder %s223, %s237
      %p239 = scmp.eq.s32.totalorder %s40, 0
      %p240 = por %p238, %p239
      %s242 = sadd.s32 %s241, 1
      %p245 = scmp.eq.s32.totalorder %s34, 1
      %p246 = scmp.ne.s32.totalorder %s241, %s243
      %p247 = scmp.eq.s32.totalorder %s34, 0
      %p248 = por %p246, %p247
      %p249 = scmp.ne.s32.totalorder %s241, %s243
      %p250 = scmp.eq.s32.totalorder %s39, 1
      %p251 = por %p249, %p250
      %p252 = scmp.ne.s32.totalorder %s243, %s244
      %p253 = scmp.eq.s32.totalorder %s39, 0
      %p254 = por %p252, %p253
      %p255 = scmp.ne.s32.totalorder %s243, %s244
      %p256 = scmp.eq.s32.totalorder %s40, 1
      %p257 = por %p255, %p256
      %p259 = scmp.ne.s32.totalorder %s244, %s258
      %p260 = scmp.eq.s32.totalorder %s40, 0
      %p261 = por %p259, %p260
      %s263 = sadd.s32 %s262, 1
      %p266 = scmp.eq.s32.totalorder %s34, 1
      %p267 = scmp.ne.s32.totalorder %s262, %s264
      %p268 = scmp.eq.s32.totalorder %s34, 0
      %p269 = por %p267, %p268
      %p270 = scmp.ne.s32.totalorder %s262, %s264
      %p271 = scmp.eq.s32.totalorder %s39, 1
      %p272 = por %p270, %p271
      %p273 = scmp.ne.s32.totalorder %s264, %s265
      %p274 = scmp.eq.s32.totalorder %s39, 0
      %p275 = por %p273, %p274
      %p276 = scmp.ne.s32.totalorder %s264, %s265
      %p277 = scmp.eq.s32.totalorder %s40, 1
      %p278 = por %p276, %p277
      %p280 = scmp.ne.s32.totalorder %s265, %s279
      %p281 = scmp.eq.s32.totalorder %s40, 0
      %p282 = por %p280, %p281
      %s284 = sadd.s32 %s283, 1
      %p287 = scmp.eq.s32.totalorder %s34, 1
      %p288 = scmp.ne.s32.totalorder %s283, %s285
      %p289 = scmp.eq.s32.totalorder %s34, 0
      %p290 = por %p288, %p289
      %p291 = scmp.ne.s32.totalorder %s283, %s285
      %p292 = scmp.eq.s32.totalorder %s39, 1
      %p293 = por %p291, %p292
      %p294 = scmp.ne.s32.totalorder %s285, %s286
      %p295 = scmp.eq.s32.totalorder %s39, 0
      %p296 = por %p294, %p295
      %p297 = scmp.ne.s32.totalorder %s285, %s286
      %p298 = scmp.eq.s32.totalorder %s40, 1
      %p299 = por %p297, %p298
      %p301 = scmp.ne.s32.totalorder %s286, %s300
      %p302 = scmp.eq.s32.totalorder %s40, 0
      %p303 = por %p301, %p302
      %s304 = ssub.s32 %s34, %s41
      %p305 = scmp.eq.s32.totalorder %s304, 0
      %s307 = sadd.s32 %s306, 1
      %s308 = scalar_select %p305, %s306, %s307
      %p311 = pneg %p305
      %p312 = scmp.eq.s32.totalorder %s34, 1
      %p313 = por %p311, %p312
      %p314 = scmp.ne.s32.totalorder %s306, %s309
      %p315 = scmp.eq.s32.totalorder %s34, 0
      %p316 = por %p314, %p315
      %p317 = scmp.ne.s32.totalorder %s306, %s309
      %p318 = scmp.eq.s32.totalorder %s39, 1
      %p319 = por %p317, %p318
      %p320 = scmp.ne.s32.totalorder %s309, %s310
      %p321 = scmp.eq.s32.totalorder %s39, 0
      %p322 = por %p320, %p321
      %p323 = scmp.ne.s32.totalorder %s309, %s310
      %p324 = scmp.eq.s32.totalorder %s40, 1
      %p325 = por %p323, %p324
      %p327 = scmp.ne.s32.totalorder %s310, %s326
      %p328 = scmp.eq.s32.totalorder %s40, 0
      %p329 = por %p327, %p328
      %s330 = ssub.s32 %s34, %s41
      %p331 = scmp.eq.s32.totalorder %s330, 0
      %s333 = sadd.s32 %s332, 1
      %s334 = scalar_select %p331, %s332, %s333
      %p337 = pneg %p331
      %p338 = scmp.eq.s32.totalorder %s34, 1
      %p339 = por %p337, %p338
      %p340 = scmp.ne.s32.totalorder %s332, %s335
      %p341 = scmp.eq.s32.totalorder %s34, 0
      %p342 = por %p340, %p341
      %p343 = scmp.ne.s32.totalorder %s332, %s335
      %p344 = scmp.eq.s32.totalorder %s39, 1
      %p345 = por %p343, %p344
      %p346 = scmp.ne.s32.totalorder %s335, %s336
      %p347 = scmp.eq.s32.totalorder %s39, 0
      %p348 = por %p346, %p347
      %p349 = scmp.ne.s32.totalorder %s335, %s336
      %p350 = scmp.eq.s32.totalorder %s40, 1
      %p351 = por %p349, %p350
      %p353 = scmp.ne.s32.totalorder %s336, %s352
      %p354 = scmp.eq.s32.totalorder %s40, 0
      %p355 = por %p353, %p354
      %p356 = scmp.le.s32.totalorder 1, %s34
      %p357 = scmp.lt.s32.totalorder %s34, 3
      %p358 = pnand %p356, %p357
      %p359 = pneg %p358
      // Predicated region
      $region9: #{tpu_custom_call.1} parent=5 // pred_check
        _
      $region10: #{tpu_custom_call.1} parent=5 // pred_check_branch
        %361 = sbr.rel (%p358) target = $region12
      $region11: #{tpu_custom_call.1} parent=5 // pred_region
        %s362 = ssub.s32 %s34, 1
        // Predicated region
        $region13: #{tpu_custom_call.1} parent=11 // pred_check
          %p363 = pneg %p107
        $region14: #{tpu_custom_call.1} parent=11 // pred_check_branch
          %365 = sbr.rel (%p363) target = $region16
        $region15: #{tpu_custom_call.1} parent=11 // pred_region
          _
        $region16: #{tpu_custom_call.1} parent=11 // pred_fallthru
          _
        // Predicated region
        $region17: #{tpu_custom_call.1} parent=11 // pred_check
          %p366 = pneg %p128
        $region18: #{tpu_custom_call.1} parent=11 // pred_check_branch
          %368 = sbr.rel (%p366) target = $region20
        $region19: #{tpu_custom_call.1} parent=11 // pred_region
          %370 = vsyncadd [#allocation6], 0
          %s372 = sshll.u32 %s3, 4
          %s373 = int_to_ptr.hbm [resolvable:$true] %s372
          %s374 = sshll.u32 [#allocation7], 4
          %s375 = int_to_ptr.vmem [resolvable:$true] %s374
          %377 = dma.hbm_to_vmem [thread:$0]  %s373, 48, %s375, [#allocation6]
        $region20: #{tpu_custom_call.1} parent=11 // pred_fallthru
          _
        // Predicated region
        $region21: #{tpu_custom_call.1} parent=11 // pred_check
          %p378 = pneg %p149
        $region22: #{tpu_custom_call.1} parent=11 // pred_check_branch
          %380 = sbr.rel (%p378) target = $region24
        $region23: #{tpu_custom_call.1} parent=11 // pred_region
          _
        $region24: #{tpu_custom_call.1} parent=11 // pred_fallthru
          _
        // Predicated region
        $region25: #{tpu_custom_call.1} parent=11 // pred_check
          %p381 = pneg %p170
        $region26: #{tpu_custom_call.1} parent=11 // pred_check_branch
          %383 = sbr.rel (%p381) target = $region28
        $region27: #{tpu_custom_call.1} parent=11 // pred_region
          %385 = vsyncadd [#allocation9], 0
          %s386 = sshll.u32 %s5, 4
          %s387 = int_to_ptr.hbm [resolvable:$true] %s386
          %s388 = sshll.u32 [#allocation8], 4
          %s389 = int_to_ptr.vmem [resolvable:$true] %s388
          %394 = dma.hbm_to_vmem [thread:$0]  %s387, 64, %s389, [#allocation9], 16, 16, 1
        $region28: #{tpu_custom_call.1} parent=11 // pred_fallthru
          _
        // Predicated region
        $region29: #{tpu_custom_call.1} parent=11 // pred_check
          %p395 = pneg %p191
        $region30: #{tpu_custom_call.1} parent=11 // pred_check_branch
          %397 = sbr.rel (%p395) target = $region32
        $region31: #{tpu_custom_call.1} parent=11 // pred_region
          _
        $region32: #{tpu_custom_call.1} parent=11 // pred_fallthru
          _
        // Predicated region
        $region33: #{tpu_custom_call.1} parent=11 // pred_check
          %p398 = pneg %p212
        $region34: #{tpu_custom_call.1} parent=11 // pred_check_branch
          %400 = sbr.rel (%p398) target = $region36
        $region35: #{tpu_custom_call.1} parent=11 // pred_region
          %402 = vsyncadd [#allocation9], 0
          %s403 = sshll.u32 %s7, 4
          %s404 = int_to_ptr.hbm [resolvable:$true] %s403
          %s405 = sshll.u32 [#allocation10], 4
          %s406 = int_to_ptr.vmem [resolvable:$true] %s405
          %411 = dma.hbm_to_vmem [thread:$0]  %s404, 64, %s406, [#allocation9], 16, 16, 1
        $region36: #{tpu_custom_call.1} parent=11 // pred_fallthru
          _
        // Predicated region
        $region37: #{tpu_custom_call.1} parent=11 // pred_check
          %p412 = pneg %p233
        $region38: #{tpu_custom_call.1} parent=11 // pred_check_branch
          %414 = sbr.rel (%p412) target = $region40
        $region39: #{tpu_custom_call.1} parent=11 // pred_region
          _
        $region40: #{tpu_custom_call.1} parent=11 // pred_fallthru
          _
        // Predicated region
        $region41: #{tpu_custom_call.1} parent=11 // pred_check
          %p415 = pneg %p254
        $region42: #{tpu_custom_call.1} parent=11 // pred_check_branch
          %417 = sbr.rel (%p415) target = $region44
        $region43: #{tpu_custom_call.1} parent=11 // pred_region
          %419 = vsyncadd [#allocation12], 0
          %s420 = sshll.u32 %s9, 4
          %s421 = int_to_ptr.hbm [resolvable:$true] %s420
          %s422 = sshll.u32 [#allocation11], 4
          %s423 = int_to_ptr.vmem [resolvable:$true] %s422
          %428 = dma.hbm_to_vmem [thread:$0]  %s421, 64, %s423, [#allocation12], 16, 16, 1
        $region44: #{tpu_custom_call.1} parent=11 // pred_fallthru
          _
        // Predicated region
        $region45: #{tpu_custom_call.1} parent=11 // pred_check
          %p429 = pneg %p275
        $region46: #{tpu_custom_call.1} parent=11 // pred_check_branch
          %431 = sbr.rel (%p429) target = $region48
        $region47: #{tpu_custom_call.1} parent=11 // pred_region
          _
        $region48: #{tpu_custom_call.1} parent=11 // pred_fallthru
          _
        // Predicated region
        $region49: #{tpu_custom_call.1} parent=11 // pred_check
          %p432 = pneg %p296
        $region50: #{tpu_custom_call.1} parent=11 // pred_check_branch
          %434 = sbr.rel (%p432) target = $region52
        $region51: #{tpu_custom_call.1} parent=11 // pred_region
          %436 = vsyncadd [#allocation12], 0
          %s438 = sshll.u32 %s11, 4
          %s439 = int_to_ptr.hbm [resolvable:$true] %s438
          %s440 = sshll.u32 [#allocation13], 4
          %s441 = int_to_ptr.vmem [resolvable:$true] %s440
          %443 = dma.hbm_to_vmem [thread:$0]  %s439, 32, %s441, [#allocation12]
        $region52: #{tpu_custom_call.1} parent=11 // pred_fallthru
          _
      $region12: #{tpu_custom_call.1} parent=5 // pred_fallthru
        _
      %p444 = scmp.lt.s32.totalorder %s34, 2
      // Predicated region
      $region53: #{tpu_custom_call.1} parent=5 // pred_check
        %p445 = pneg %p444
      $region54: #{tpu_custom_call.1} parent=5 // pred_check_branch
        %447 = sbr.rel (%p445) target = $region56
      $region55: #{tpu_custom_call.1} parent=5 // pred_region
        // Predicated region
        $region57: #{tpu_custom_call.1} parent=55 // pred_check
          %p448 = pneg %p54
        $region58: #{tpu_custom_call.1} parent=55 // pred_check_branch
          %450 = sbr.rel (%p448) target = $region60
        $region59: #{tpu_custom_call.1} parent=55 // pred_region
          %s451 = sand.u32 %s44, 1
          %s452 = scalar_lea.sflag [#allocation3], %s451
          %s453 = sand.u32 %s44, 1
          %s454 = smul.addr %s453, 16
          %s455 = scalar_lea.vmem [#allocation2], %s454
          %457 = vsyncadd %s452, 0
          %s458 = smul.addr %s34, 2
          %s459 = smul.addr %s458, 8
          %s460 = scalar_lea.hbm %s0, %s459
          %s461 = sshll.u32 %s460, 4
          %s462 = int_to_ptr.hbm [resolvable:$true] %s461
          %s463 = sshll.u32 %s455, 4
          %s464 = int_to_ptr.vmem [resolvable:$true] %s463
          %469 = dma.hbm_to_vmem [thread:$0]  %s462, 256, %s464, %s452, 128, 128, 8
        $region60: #{tpu_custom_call.1} parent=55 // pred_fallthru
          _
        // Predicated region
        $region61: #{tpu_custom_call.1} parent=55 // pred_check
          %p470 = pneg %p80
        $region62: #{tpu_custom_call.1} parent=55 // pred_check_branch
          %472 = sbr.rel (%p470) target = $region64
        $region63: #{tpu_custom_call.1} parent=55 // pred_region
          %s473 = sand.u32 %s34, 1
          %s474 = scalar_lea.sflag [#allocation6], %s473
          %s475 = sand.u32 %s70, 1
          %s476 = smul.addr %s475, 16
          %s477 = scalar_lea.vmem [#allocation5], %s476
          %479 = vsyncadd %s474, 0
          %s480 = smul.addr %s34, 2
          %s481 = smul.addr %s480, 8
          %s482 = scalar_lea.hbm %s1, %s481
          %s483 = sshll.u32 %s482, 4
          %s484 = int_to_ptr.hbm [resolvable:$true] %s483
          %s485 = sshll.u32 %s477, 4
          %s486 = int_to_ptr.vmem [resolvable:$true] %s485
          %491 = dma.hbm_to_vmem [thread:$0]  %s484, 256, %s486, %s474, 128, 128, 8
        $region64: #{tpu_custom_call.1} parent=55 // pred_fallthru
          _
      $region56: #{tpu_custom_call.1} parent=5 // pred_fallthru
        _
      %p492 = scmp.le.s32.totalorder 1, %s34
      %p493 = scmp.lt.s32.totalorder %s34, 3
      %p494 = pnand %p492, %p493
      %p495 = pneg %p494
      // Predicated region
      $region65: #{tpu_custom_call.1} parent=5 // pred_check
        _
      $region66: #{tpu_custom_call.1} parent=5 // pred_check_branch
        %497 = sbr.rel (%p494) target = $region68
      $region67: #{tpu_custom_call.1} parent=5 // pred_region
        %s498 = ssub.s32 %s34, 1
        %s499 = sand.u32 %s47, 1
        %s500 = scalar_lea.sflag [#allocation3], %s499
        %s501 = sand.u32 %s47, 1
        %s502 = smul.addr %s501, 16
        %s503 = scalar_lea.vmem [#allocation2], %s502
        // Predicated region
        $region69: #{tpu_custom_call.1} parent=67 // pred_check
          %p504 = pneg %p60
        $region70: #{tpu_custom_call.1} parent=67 // pred_check_branch
          %506 = sbr.rel (%p504) target = $region72
        $region71: #{tpu_custom_call.1} parent=67 // pred_region
          %508 = dma.done %s500, 256
        $region72: #{tpu_custom_call.1} parent=67 // pred_fallthru
          _
        %s509 = sand.u32 %s39, 1
        %s510 = scalar_lea.sflag [#allocation6], %s509
        %s511 = sand.u32 %s73, 1
        %s512 = smul.addr %s511, 16
        %s513 = scalar_lea.vmem [#allocation5], %s512
        // Predicated region
        $region73: #{tpu_custom_call.1} parent=67 // pred_check
          %p514 = pneg %p86
        $region74: #{tpu_custom_call.1} parent=67 // pred_check_branch
          %516 = sbr.rel (%p514) target = $region76
        $region75: #{tpu_custom_call.1} parent=67 // pred_region
          %518 = dma.done %s510, 256
        $region76: #{tpu_custom_call.1} parent=67 // pred_fallthru
          _
        // Predicated region
        $region77: #{tpu_custom_call.1} parent=67 // pred_check
          %p519 = pneg %p128
        $region78: #{tpu_custom_call.1} parent=67 // pred_check_branch
          %521 = sbr.rel (%p519) target = $region80
        $region79: #{tpu_custom_call.1} parent=67 // pred_region
          %523 = dma.done [#allocation6], 48
        $region80: #{tpu_custom_call.1} parent=67 // pred_fallthru
          _
        // Predicated region
        $region81: #{tpu_custom_call.1} parent=67 // pred_check
          %p524 = pneg %p170
        $region82: #{tpu_custom_call.1} parent=67 // pred_check_branch
          %526 = sbr.rel (%p524) target = $region84
        $region83: #{tpu_custom_call.1} parent=67 // pred_region
          %528 = dma.done [#allocation9], 64
        $region84: #{tpu_custom_call.1} parent=67 // pred_fallthru
          _
        // Predicated region
        $region85: #{tpu_custom_call.1} parent=67 // pred_check
          %p529 = pneg %p212
        $region86: #{tpu_custom_call.1} parent=67 // pred_check_branch
          %531 = sbr.rel (%p529) target = $region88
        $region87: #{tpu_custom_call.1} parent=67 // pred_region
          %533 = dma.done [#allocation9], 64
        $region88: #{tpu_custom_call.1} parent=67 // pred_fallthru
          _
        // Predicated region
        $region89: #{tpu_custom_call.1} parent=67 // pred_check
          %p534 = pneg %p254
        $region90: #{tpu_custom_call.1} parent=67 // pred_check_branch
          %536 = sbr.rel (%p534) target = $region92
        $region91: #{tpu_custom_call.1} parent=67 // pred_region
          %538 = dma.done [#allocation12], 64
        $region92: #{tpu_custom_call.1} parent=67 // pred_fallthru
          _
        // Predicated region
        $region93: #{tpu_custom_call.1} parent=67 // pred_check
          %p539 = pneg %p296
        $region94: #{tpu_custom_call.1} parent=67 // pred_check_branch
          %541 = sbr.rel (%p539) target = $region96
        $region95: #{tpu_custom_call.1} parent=67 // pred_region
          %543 = dma.done [#allocation12], 32
        $region96: #{tpu_custom_call.1} parent=67 // pred_fallthru
          _
        %s544 = sand.u32 %s47, 1
        %s545 = scalar_lea.sflag [#allocation3], %s544
        %s546 = sand.u32 %s47, 1
        %s547 = smul.addr %s546, 16
        %s548 = scalar_lea.vmem [#allocation2], %s547
        %p549 = pneg %p60
        %p550 = pneg %p57
        %s551 = sand.u32 %s39, 1
        %s552 = scalar_lea.sflag [#allocation6], %s551
        %s553 = sand.u32 %s73, 1
        %s554 = smul.addr %s553, 16
        %s555 = scalar_lea.vmem [#allocation5], %s554
        %p556 = pneg %p86
        %p557 = pneg %p83
        %p558 = pneg %p107
        %p559 = pneg %p104
        %p560 = pneg %p128
        %p561 = pneg %p125
        %p562 = pneg %p149
        %p563 = pneg %p146
        %p564 = pneg %p170
        %p565 = pneg %p167
        %p566 = pneg %p191
        %p567 = pneg %p188
        %p568 = pneg %p212
        %p569 = pneg %p209
        %p570 = pneg %p233
        %p571 = pneg %p230
        %p572 = pneg %p254
        %p573 = pneg %p251
        %p574 = pneg %p275
        %p575 = pneg %p272
        %p576 = pneg %p296
        %p577 = pneg %p293
        %p578 = pneg %p322
        %p579 = pneg %p319
        %s580 = sand.u32 %s309, 1
        %s581 = scalar_lea.sflag [#allocation4], %s580
        %s582 = sand.u32 %s309, 1
        %s583 = smul.addr %s582, 16
        %s584 = scalar_lea.vmem [#allocation14], %s583
        %p585 = pneg %p348
        %p586 = pneg %p345
        %s587 = sand.u32 %s335, 1
        %s588 = scalar_lea.sflag [#allocation16], %s587
        %s589 = sand.u32 %s335, 1
        %s590 = smul.addr %s589, 64
        %s591 = scalar_lea.vmem [#allocation15], %s590
        %v592 = vld [vmem:[%s503] sm:$0xff]
        %v593 = vld [vmem:[%s503 + $0x8] sm:$0xff]
        %v594 = vld [vmem:[%s513] sm:$0xff]
        %v595 = vld [vmem:[%s513 + $0x8] sm:$0xff]
        %v596 = vld [vmem:[%s2] sm:$0xff]
        %v597 = vld [vmem:[%s2 + $0x8] sm:$0xff]
        %v598 = vld [vmem:[%s2 + $0x10] sm:$0xff]
        %v599 = vld [vmem:[%s2 + $0x18] sm:$0xff]
        %v600 = vld [vmem:[%s2 + $0x20] sm:$0xff]
        %v601 = vld [vmem:[%s2 + $0x28] sm:$0xff]
        %v602 = vld [vmem:[%s2 + $0x30] sm:$0xff]
        %v603 = vld [vmem:[%s2 + $0x38] sm:$0xff]
        %v604 = vld [vmem:[%s2 + $0x40] sm:$0xff]
        %v605 = vld [vmem:[%s2 + $0x48] sm:$0xff]
        %v606 = vld [vmem:[%s2 + $0x50] sm:$0xff]
        %v607 = vld [vmem:[%s2 + $0x58] sm:$0xff]
        %v608 = vld [vmem:[%s2 + $0x60] sm:$0xff]
        %v609 = vld [vmem:[%s2 + $0x68] sm:$0xff]
        %v610 = vld [vmem:[%s2 + $0x70] sm:$0xff]
        %v611 = vld [vmem:[%s2 + $0x78] sm:$0xff]
        %v612 = vld [vmem:[%s2 + $0x80] sm:$0xff]
        %v613 = vld [vmem:[%s2 + $0x88] sm:$0xff]
        %v614 = vld [vmem:[%s2 + $0x90] sm:$0xff]
        %v615 = vld [vmem:[%s2 + $0x98] sm:$0xff]
        %v616 = vld [vmem:[%s2 + $0xa0] sm:$0xff]
        %v617 = vld [vmem:[%s2 + $0xa8] sm:$0xff]
        %v618 = vld [vmem:[%s2 + $0xb0] sm:$0xff]
        %v619 = vld [vmem:[%s2 + $0xb8] sm:$0xff]
        %v620 = vld [vmem:[%s2 + $0xc0] sm:$0xff]
        %v621 = vld [vmem:[%s2 + $0xc8] sm:$0xff]
        %v622 = vld [vmem:[%s2 + $0xd0] sm:$0xff]
        %v623 = vld [vmem:[%s2 + $0xd8] sm:$0xff]
        %v624 = vld [vmem:[%s2 + $0xe0] sm:$0xff]
        %v625 = vld [vmem:[%s2 + $0xe8] sm:$0xff]
        %v626 = vld [vmem:[%s2 + $0xf0] sm:$0xff]
        %v627 = vld [vmem:[%s2 + $0xf8] sm:$0xff]
        %v628 = vld [vmem:[%s2 + $0x100] sm:$0xff]
        %v629 = vld [vmem:[%s2 + $0x108] sm:$0xff]
        %v630 = vld [vmem:[%s2 + $0x110] sm:$0xff]
        %v631 = vld [vmem:[%s2 + $0x118] sm:$0xff]
        %v632 = vld [vmem:[%s2 + $0x120] sm:$0xff]
        %v633 = vld [vmem:[%s2 + $0x128] sm:$0xff]
        %v634 = vld [vmem:[%s2 + $0x130] sm:$0xff]
        %v635 = vld [vmem:[%s2 + $0x138] sm:$0xff]
        %v636 = vld [vmem:[%s2 + $0x140] sm:$0xff]
        %v637 = vld [vmem:[%s2 + $0x148] sm:$0xff]
        %v638 = vld [vmem:[%s2 + $0x150] sm:$0xff]
        %v639 = vld [vmem:[%s2 + $0x158] sm:$0xff]
        %v640 = vld [vmem:[%s2 + $0x160] sm:$0xff]
        %v641 = vld [vmem:[%s2 + $0x168] sm:$0xff]
        %v642 = vld [vmem:[%s2 + $0x170] sm:$0xff]
        %v643 = vld [vmem:[%s2 + $0x178] sm:$0xff]
        %v644 = vld [vmem:[#allocation7] sm:$0x7]
        %v646 = vperm.slane %v644, 0
        %v647 = vperm.slane %v644, 1
        %v648 = vperm.slane %v644, 2
        %v652 = vand.u32 %v641, 4294901760
        %653 = vmatpush.msra.mxu0 %v652
        %v654 = vand.u32 %v638, 4294901760
        %655 = vmatpush.msra.mxu0 %v654
        %v656 = vand.u32 %v635, 4294901760
        %657 = vmatpush.msra.mxu0 %v656
        %v658 = vand.u32 %v632, 4294901760
        %659 = vmatpush.msra.mxu0 %v658
        %v660 = vand.u32 %v629, 4294901760
        %661 = vmatpush.msra.mxu0 %v660
        %v662 = vand.u32 %v626, 4294901760
        %663 = vmatpush.msra.mxu0 %v662
        %v664 = vand.u32 %v623, 4294901760
        %665 = vmatpush.msra.mxu0 %v664
        %v666 = vand.u32 %v620, 4294901760
        %667 = vmatpush.msra.mxu0 %v666
        %v668 = vand.u32 %v617, 4294901760
        %669 = vmatpush.msra.mxu0 %v668
        %v670 = vand.u32 %v614, 4294901760
        %671 = vmatpush.msra.mxu0 %v670
        %v672 = vand.u32 %v611, 4294901760
        %673 = vmatpush.msra.mxu0 %v672
        %v674 = vand.u32 %v608, 4294901760
        %675 = vmatpush.msra.mxu0 %v674
        %v676 = vand.u32 %v605, 4294901760
        %677 = vmatpush.msra.mxu0 %v676
        %v678 = vand.u32 %v602, 4294901760
        %679 = vmatpush.msra.mxu0 %v678
        %v680 = vand.u32 %v599, 4294901760
        %681 = vmatpush.msra.mxu0 %v680
        %v682 = vand.u32 %v596, 4294901760
        %683 = vmatpush.msra.mxu0 %v682
        %v684 = vand.u32 %v592, 4294901760
        %v685 = vsub.f32 %v592, %v684
        %v686 = vand.u32 %v685, 4294901760
        %v687 = vsub.f32 %v685, %v686
        %v688 = vand.u32 %v687, 4294901760
        %689 = vmatmul.f32.gmra.mxu0 %v688
        %v690 = vpop.f32.mrf.mxu0
        %v691 = vadd.f32 %v646, %v690
        %v692 = vand.u32 %v593, 4294901760
        %v693 = vsub.f32 %v593, %v692
        %v694 = vand.u32 %v693, 4294901760
        %v695 = vsub.f32 %v693, %v694
        %v696 = vand.u32 %v695, 4294901760
        %697 = vmatmul.f32.gmra.mxu0 %v696
        %v698 = vpop.f32.mrf.mxu0
        %v699 = vadd.f32 %v646, %v698
        %700 = vdwg.mxu0
        %v701 = vand.u32 %v641, 4294901760
        %v702 = vsub.f32 %v641, %v701
        %v703 = vand.u32 %v702, 4294901760
        %v704 = vsub.f32 %v702, %v703
        %v705 = vand.u32 %v704, 4294901760
        %706 = vmatpush.msra.mxu0 %v705
        %v707 = vand.u32 %v638, 4294901760
        %v708 = vsub.f32 %v638, %v707
        %v709 = vand.u32 %v708, 4294901760
        %v710 = vsub.f32 %v708, %v709
        %v711 = vand.u32 %v710, 4294901760
        %712 = vmatpush.msra.mxu0 %v711
        %v713 = vand.u32 %v635, 4294901760
        %v714 = vsub.f32 %v635, %v713
        %v715 = vand.u32 %v714, 4294901760
        %v716 = vsub.f32 %v714, %v715
        %v717 = vand.u32 %v716, 4294901760
        %718 = vmatpush.msra.mxu0 %v717
        %v719 = vand.u32 %v632, 4294901760
        %v720 = vsub.f32 %v632, %v719
        %v721 = vand.u32 %v720, 4294901760
        %v722 = vsub.f32 %v720, %v721
        %v723 = vand.u32 %v722, 4294901760
        %724 = vmatpush.msra.mxu0 %v723
        %v725 = vand.u32 %v629, 4294901760
        %v726 = vsub.f32 %v629, %v725
        %v727 = vand.u32 %v726, 4294901760
        %v728 = vsub.f32 %v726, %v727
        %v729 = vand.u32 %v728, 4294901760
        %730 = vmatpush.msra.mxu0 %v729
        %v731 = vand.u32 %v626, 4294901760
        %v732 = vsub.f32 %v626, %v731
        %v733 = vand.u32 %v732, 4294901760
        %v734 = vsub.f32 %v732, %v733
        %v735 = vand.u32 %v734, 4294901760
        %736 = vmatpush.msra.mxu0 %v735
        %v737 = vand.u32 %v623, 4294901760
        %v738 = vsub.f32 %v623, %v737
        %v739 = vand.u32 %v738, 4294901760
        %v740 = vsub.f32 %v738, %v739
        %v741 = vand.u32 %v740, 4294901760
        %742 = vmatpush.msra.mxu0 %v741
        %v743 = vand.u32 %v620, 4294901760
        %v744 = vsub.f32 %v620, %v743
        %v745 = vand.u32 %v744, 4294901760
        %v746 = vsub.f32 %v744, %v745
        %v747 = vand.u32 %v746, 4294901760
        %748 = vmatpush.msra.mxu0 %v747
        %v749 = vand.u32 %v617, 4294901760
        %v750 = vsub.f32 %v617, %v749
        %v751 = vand.u32 %v750, 4294901760
        %v752 = vsub.f32 %v750, %v751
        %v753 = vand.u32 %v752, 4294901760
        %754 = vmatpush.msra.mxu0 %v753
        %v755 = vand.u32 %v614, 4294901760
        %v756 = vsub.f32 %v614, %v755
        %v757 = vand.u32 %v756, 4294901760
        %v758 = vsub.f32 %v756, %v757
        %v759 = vand.u32 %v758, 4294901760
        %760 = vmatpush.msra.mxu0 %v759
        %v761 = vand.u32 %v611, 4294901760
        %v762 = vsub.f32 %v611, %v761
        %v763 = vand.u32 %v762, 4294901760
        %v764 = vsub.f32 %v762, %v763
        %v765 = vand.u32 %v764, 4294901760
        %766 = vmatpush.msra.mxu0 %v765
        %v767 = vand.u32 %v608, 4294901760
        %v768 = vsub.f32 %v608, %v767
        %v769 = vand.u32 %v768, 4294901760
        %v770 = vsub.f32 %v768, %v769
        %v771 = vand.u32 %v770, 4294901760
        %772 = vmatpush.msra.mxu0 %v771
        %v773 = vand.u32 %v605, 4294901760
        %v774 = vsub.f32 %v605, %v773
        %v775 = vand.u32 %v774, 4294901760
        %v776 = vsub.f32 %v774, %v775
        %v777 = vand.u32 %v776, 4294901760
        %778 = vmatpush.msra.mxu0 %v777
        %v779 = vand.u32 %v602, 4294901760
        %v780 = vsub.f32 %v602, %v779
        %v781 = vand.u32 %v780, 4294901760
        %v782 = vsub.f32 %v780, %v781
        %v783 = vand.u32 %v782, 4294901760
        %784 = vmatpush.msra.mxu0 %v783
        %v785 = vand.u32 %v599, 4294901760
        %v786 = vsub.f32 %v599, %v785
        %v787 = vand.u32 %v786, 4294901760
        %v788 = vsub.f32 %v786, %v787
        %v789 = vand.u32 %v788, 4294901760
        %790 = vmatpush.msra.mxu0 %v789
        %v791 = vand.u32 %v596, 4294901760
        %v792 = vsub.f32 %v596, %v791
        %v793 = vand.u32 %v792, 4294901760
        %v794 = vsub.f32 %v792, %v793
        %v795 = vand.u32 %v794, 4294901760
        %796 = vmatpush.msra.mxu0 %v795
        %v797 = vand.u32 %v592, 4294901760
        %798 = vmatmul.f32.gmra.mxu0 %v797
        %v799 = vpop.f32.mrf.mxu0
        %v800 = vadd.f32 %v691, %v799
        %v801 = vand.u32 %v593, 4294901760
        %802 = vmatmul.f32.gmra.mxu0 %v801
        %v803 = vpop.f32.mrf.mxu0
        %v804 = vadd.f32 %v699, %v803
        %805 = vdwg.mxu0
        %v806 = vand.u32 %v641, 4294901760
        %v807 = vsub.f32 %v641, %v806
        %808 = vmatpush.msra.mxu0 %v807
        %v809 = vand.u32 %v638, 4294901760
        %v810 = vsub.f32 %v638, %v809
        %811 = vmatpush.msra.mxu0 %v810
        %v812 = vand.u32 %v635, 4294901760
        %v813 = vsub.f32 %v635, %v812
        %814 = vmatpush.msra.mxu0 %v813
        %v815 = vand.u32 %v632, 4294901760
        %v816 = vsub.f32 %v632, %v815
        %817 = vmatpush.msra.mxu0 %v816
        %v818 = vand.u32 %v629, 4294901760
        %v819 = vsub.f32 %v629, %v818
        %820 = vmatpush.msra.mxu0 %v819
        %v821 = vand.u32 %v626, 4294901760
        %v822 = vsub.f32 %v626, %v821
        %823 = vmatpush.msra.mxu0 %v822
        %v824 = vand.u32 %v623, 4294901760
        %v825 = vsub.f32 %v623, %v824
        %826 = vmatpush.msra.mxu0 %v825
        %v827 = vand.u32 %v620, 4294901760
        %v828 = vsub.f32 %v620, %v827
        %829 = vmatpush.msra.mxu0 %v828
        %v830 = vand.u32 %v617, 4294901760
        %v831 = vsub.f32 %v617, %v830
        %832 = vmatpush.msra.mxu0 %v831
        %v833 = vand.u32 %v614, 4294901760
        %v834 = vsub.f32 %v614, %v833
        %835 = vmatpush.msra.mxu0 %v834
        %v836 = vand.u32 %v611, 4294901760
        %v837 = vsub.f32 %v611, %v836
        %838 = vmatpush.msra.mxu0 %v837
        %v839 = vand.u32 %v608, 4294901760
        %v840 = vsub.f32 %v608, %v839
        %841 = vmatpush.msra.mxu0 %v840
        %v842 = vand.u32 %v605, 4294901760
        %v843 = vsub.f32 %v605, %v842
        %844 = vmatpush.msra.mxu0 %v843
        %v845 = vand.u32 %v602, 4294901760
        %v846 = vsub.f32 %v602, %v845
        %847 = vmatpush.msra.mxu0 %v846
        %v848 = vand.u32 %v599, 4294901760
        %v849 = vsub.f32 %v599, %v848
        %850 = vmatpush.msra.mxu0 %v849
        %v851 = vand.u32 %v596, 4294901760
        %v852 = vsub.f32 %v596, %v851
        %853 = vmatpush.msra.mxu0 %v852
        %v854 = vand.u32 %v592, 4294901760
        %v855 = vsub.f32 %v592, %v854
        %856 = vmatmul.f32.gmra.mxu0 %v855
        %v857 = vpop.f32.mrf.mxu0
        %v858 = vadd.f32 %v800, %v857
        %v859 = vand.u32 %v593, 4294901760
        %v860 = vsub.f32 %v593, %v859
        %861 = vmatmul.f32.gmra.mxu0 %v860
        %v862 = vpop.f32.mrf.mxu0
        %v863 = vadd.f32 %v804, %v862
        %864 = vdwg.mxu0
        %v865 = vand.u32 %v641, 4294901760
        %866 = vmatpush.msra.mxu0 %v865
        %v867 = vand.u32 %v638, 4294901760
        %868 = vmatpush.msra.mxu0 %v867
        %v869 = vand.u32 %v635, 4294901760
        %870 = vmatpush.msra.mxu0 %v869
        %v871 = vand.u32 %v632, 4294901760
        %872 = vmatpush.msra.mxu0 %v871
        %v873 = vand.u32 %v629, 4294901760
        %874 = vmatpush.msra.mxu0 %v873
        %v875 = vand.u32 %v626, 4294901760
        %876 = vmatpush.msra.mxu0 %v875
        %v877 = vand.u32 %v623, 4294901760
        %878 = vmatpush.msra.mxu0 %v877
        %v879 = vand.u32 %v620, 4294901760
        %880 = vmatpush.msra.mxu0 %v879
        %v881 = vand.u32 %v617, 4294901760
        %882 = vmatpush.msra.mxu0 %v881
        %v883 = vand.u32 %v614, 4294901760
        %884 = vmatpush.msra.mxu0 %v883
        %v885 = vand.u32 %v611, 4294901760
        %886 = vmatpush.msra.mxu0 %v885
        %v887 = vand.u32 %v608, 4294901760
        %888 = vmatpush.msra.mxu0 %v887
        %v889 = vand.u32 %v605, 4294901760
        %890 = vmatpush.msra.mxu0 %v889
        %v891 = vand.u32 %v602, 4294901760
        %892 = vmatpush.msra.mxu0 %v891
        %v893 = vand.u32 %v599, 4294901760
        %894 = vmatpush.msra.mxu0 %v893
        %v895 = vand.u32 %v596, 4294901760
        %896 = vmatpush.msra.mxu0 %v895
        %v897 = vand.u32 %v592, 4294901760
        %v898 = vsub.f32 %v592, %v897
        %v899 = vand.u32 %v898, 4294901760
        %900 = vmatmul.f32.gmra.mxu0 %v899
        %v901 = vpop.f32.mrf.mxu0
        %v902 = vadd.f32 %v858, %v901
        %v903 = vand.u32 %v593, 4294901760
        %v904 = vsub.f32 %v593, %v903
        %v905 = vand.u32 %v904, 4294901760
        %906 = vmatmul.f32.gmra.mxu0 %v905
        %v907 = vpop.f32.mrf.mxu0
        %v908 = vadd.f32 %v863, %v907
        %909 = vdwg.mxu0
        %v910 = vand.u32 %v641, 4294901760
        %v911 = vsub.f32 %v641, %v910
        %v912 = vand.u32 %v911, 4294901760
        %913 = vmatpush.msra.mxu0 %v912
        %v914 = vand.u32 %v638, 4294901760
        %v915 = vsub.f32 %v638, %v914
        %v916 = vand.u32 %v915, 4294901760
        %917 = vmatpush.msra.mxu0 %v916
        %v918 = vand.u32 %v635, 4294901760
        %v919 = vsub.f32 %v635, %v918
        %v920 = vand.u32 %v919, 4294901760
        %921 = vmatpush.msra.mxu0 %v920
        %v922 = vand.u32 %v632, 4294901760
        %v923 = vsub.f32 %v632, %v922
        %v924 = vand.u32 %v923, 4294901760
        %925 = vmatpush.msra.mxu0 %v924
        %v926 = vand.u32 %v629, 4294901760
        %v927 = vsub.f32 %v629, %v926
        %v928 = vand.u32 %v927, 4294901760
        %929 = vmatpush.msra.mxu0 %v928
        %v930 = vand.u32 %v626, 4294901760
        %v931 = vsub.f32 %v626, %v930
        %v932 = vand.u32 %v931, 4294901760
        %933 = vmatpush.msra.mxu0 %v932
        %v934 = vand.u32 %v623, 4294901760
        %v935 = vsub.f32 %v623, %v934
        %v936 = vand.u32 %v935, 4294901760
        %937 = vmatpush.msra.mxu0 %v936
        %v938 = vand.u32 %v620, 4294901760
        %v939 = vsub.f32 %v620, %v938
        %v940 = vand.u32 %v939, 4294901760
        %941 = vmatpush.msra.mxu0 %v940
        %v942 = vand.u32 %v617, 4294901760
        %v943 = vsub.f32 %v617, %v942
        %v944 = vand.u32 %v943, 4294901760
        %945 = vmatpush.msra.mxu0 %v944
        %v946 = vand.u32 %v614, 4294901760
        %v947 = vsub.f32 %v614, %v946
        %v948 = vand.u32 %v947, 4294901760
        %949 = vmatpush.msra.mxu0 %v948
        %v950 = vand.u32 %v611, 4294901760
        %v951 = vsub.f32 %v611, %v950
        %v952 = vand.u32 %v951, 4294901760
        %953 = vmatpush.msra.mxu0 %v952
        %v954 = vand.u32 %v608, 4294901760
        %v955 = vsub.f32 %v608, %v954
        %v956 = vand.u32 %v955, 4294901760
        %957 = vmatpush.msra.mxu0 %v956
        %v958 = vand.u32 %v605, 4294901760
        %v959 = vsub.f32 %v605, %v958
        %v960 = vand.u32 %v959, 4294901760
        %961 = vmatpush.msra.mxu0 %v960
        %v962 = vand.u32 %v602, 4294901760
        %v963 = vsub.f32 %v602, %v962
        %v964 = vand.u32 %v963, 4294901760
        %965 = vmatpush.msra.mxu0 %v964
        %v966 = vand.u32 %v599, 4294901760
        %v967 = vsub.f32 %v599, %v966
        %v968 = vand.u32 %v967, 4294901760
        %969 = vmatpush.msra.mxu0 %v968
        %v970 = vand.u32 %v596, 4294901760
        %v971 = vsub.f32 %v596, %v970
        %v972 = vand.u32 %v971, 4294901760
        %973 = vmatpush.msra.mxu0 %v972
        %v974 = vand.u32 %v592, 4294901760
        %975 = vmatmul.f32.gmra.mxu0 %v974
        %v976 = vpop.f32.mrf.mxu0
        %v977 = vadd.f32 %v902, %v976
        %v978 = vand.u32 %v593, 4294901760
        %979 = vmatmul.f32.gmra.mxu0 %v978
        %v980 = vpop.f32.mrf.mxu0
        %v981 = vadd.f32 %v908, %v980
        %982 = vdwg.mxu0
        %v983 = vand.u32 %v641, 4294901760
        %984 = vmatpush.msra.mxu0 %v983
        %v985 = vand.u32 %v638, 4294901760
        %986 = vmatpush.msra.mxu0 %v985
        %v987 = vand.u32 %v635, 4294901760
        %988 = vmatpush.msra.mxu0 %v987
        %v989 = vand.u32 %v632, 4294901760
        %990 = vmatpush.msra.mxu0 %v989
        %v991 = vand.u32 %v629, 4294901760
        %992 = vmatpush.msra.mxu0 %v991
        %v993 = vand.u32 %v626, 4294901760
        %994 = vmatpush.msra.mxu0 %v993
        %v995 = vand.u32 %v623, 4294901760
        %996 = vmatpush.msra.mxu0 %v995
        %v997 = vand.u32 %v620, 4294901760
        %998 = vmatpush.msra.mxu0 %v997
        %v999 = vand.u32 %v617, 4294901760
        %1000 = vmatpush.msra.mxu0 %v999
        %v1001 = vand.u32 %v614, 4294901760
        %1002 = vmatpush.msra.mxu0 %v1001
        %v1003 = vand.u32 %v611, 4294901760
        %1004 = vmatpush.msra.mxu0 %v1003
        %v1005 = vand.u32 %v608, 4294901760
        %1006 = vmatpush.msra.mxu0 %v1005
        %v1007 = vand.u32 %v605, 4294901760
        %1008 = vmatpush.msra.mxu0 %v1007
        %v1009 = vand.u32 %v602, 4294901760
        %1010 = vmatpush.msra.mxu0 %v1009
        %v1011 = vand.u32 %v599, 4294901760
        %1012 = vmatpush.msra.mxu0 %v1011
        %v1013 = vand.u32 %v596, 4294901760
        %1014 = vmatpush.msra.mxu0 %v1013
        %v1015 = vand.u32 %v592, 4294901760
        %1016 = vmatmul.f32.gmra.mxu0 %v1015
        %v1017 = vpop.f32.mrf.mxu0
        %v1018 = vadd.f32 %v977, %v1017
        %v1019 = vand.u32 %v593, 4294901760
        %1020 = vmatmul.f32.gmra.mxu0 %v1019
        %v1021 = vpop.f32.mrf.mxu0
        %v1022 = vadd.f32 %v981, %v1021
        %1023 = vdwg.mxu0
        %v1024 = vand.u32 %v642, 4294901760
        %1025 = vmatpush.msra.mxu0 %v1024
        %v1026 = vand.u32 %v639, 4294901760
        %1027 = vmatpush.msra.mxu0 %v1026
        %v1028 = vand.u32 %v636, 4294901760
        %1029 = vmatpush.msra.mxu0 %v1028
        %v1030 = vand.u32 %v633, 4294901760
        %1031 = vmatpush.msra.mxu0 %v1030
        %v1032 = vand.u32 %v630, 4294901760
        %1033 = vmatpush.msra.mxu0 %v1032
        %v1034 = vand.u32 %v627, 4294901760
        %1035 = vmatpush.msra.mxu0 %v1034
        %v1036 = vand.u32 %v624, 4294901760
        %1037 = vmatpush.msra.mxu0 %v1036
        %v1038 = vand.u32 %v621, 4294901760
        %1039 = vmatpush.msra.mxu0 %v1038
        %v1040 = vand.u32 %v618, 4294901760
        %1041 = vmatpush.msra.mxu0 %v1040
        %v1042 = vand.u32 %v615, 4294901760
        %1043 = vmatpush.msra.mxu0 %v1042
        %v1044 = vand.u32 %v612, 4294901760
        %1045 = vmatpush.msra.mxu0 %v1044
        %v1046 = vand.u32 %v609, 4294901760
        %1047 = vmatpush.msra.mxu0 %v1046
        %v1048 = vand.u32 %v606, 4294901760
        %1049 = vmatpush.msra.mxu0 %v1048
        %v1050 = vand.u32 %v603, 4294901760
        %1051 = vmatpush.msra.mxu0 %v1050
        %v1052 = vand.u32 %v600, 4294901760
        %1053 = vmatpush.msra.mxu0 %v1052
        %v1054 = vand.u32 %v597, 4294901760
        %1055 = vmatpush.msra.mxu0 %v1054
        %v1056 = vand.u32 %v592, 4294901760
        %v1057 = vsub.f32 %v592, %v1056
        %v1058 = vand.u32 %v1057, 4294901760
        %v1059 = vsub.f32 %v1057, %v1058
        %v1060 = vand.u32 %v1059, 4294901760
        %1061 = vmatmul.f32.gmra.mxu0 %v1060
        %v1062 = vpop.f32.mrf.mxu0
        %v1063 = vadd.f32 %v647, %v1062
        %v1064 = vand.u32 %v593, 4294901760
        %v1065 = vsub.f32 %v593, %v1064
        %v1066 = vand.u32 %v1065, 4294901760
        %v1067 = vsub.f32 %v1065, %v1066
        %v1068 = vand.u32 %v1067, 4294901760
        %1069 = vmatmul.f32.gmra.mxu0 %v1068
        %v1070 = vpop.f32.mrf.mxu0
        %v1071 = vadd.f32 %v647, %v1070
        %1072 = vdwg.mxu0
        %v1073 = vand.u32 %v642, 4294901760
        %v1074 = vsub.f32 %v642, %v1073
        %v1075 = vand.u32 %v1074, 4294901760
        %v1076 = vsub.f32 %v1074, %v1075
        %v1077 = vand.u32 %v1076, 4294901760
        %1078 = vmatpush.msra.mxu0 %v1077
        %v1079 = vand.u32 %v639, 4294901760
        %v1080 = vsub.f32 %v639, %v1079
        %v1081 = vand.u32 %v1080, 4294901760
        %v1082 = vsub.f32 %v1080, %v1081
        %v1083 = vand.u32 %v1082, 4294901760
        %1084 = vmatpush.msra.mxu0 %v1083
        %v1085 = vand.u32 %v636, 4294901760
        %v1086 = vsub.f32 %v636, %v1085
        %v1087 = vand.u32 %v1086, 4294901760
        %v1088 = vsub.f32 %v1086, %v1087
        %v1089 = vand.u32 %v1088, 4294901760
        %1090 = vmatpush.msra.mxu0 %v1089
        %v1091 = vand.u32 %v633, 4294901760
        %v1092 = vsub.f32 %v633, %v1091
        %v1093 = vand.u32 %v1092, 4294901760
        %v1094 = vsub.f32 %v1092, %v1093
        %v1095 = vand.u32 %v1094, 4294901760
        %1096 = vmatpush.msra.mxu0 %v1095
        %v1097 = vand.u32 %v630, 4294901760
        %v1098 = vsub.f32 %v630, %v1097
        %v1099 = vand.u32 %v1098, 4294901760
        %v1100 = vsub.f32 %v1098, %v1099
        %v1101 = vand.u32 %v1100, 4294901760
        %1102 = vmatpush.msra.mxu0 %v1101
        %v1103 = vand.u32 %v627, 4294901760
        %v1104 = vsub.f32 %v627, %v1103
        %v1105 = vand.u32 %v1104, 4294901760
        %v1106 = vsub.f32 %v1104, %v1105
        %v1107 = vand.u32 %v1106, 4294901760
        %1108 = vmatpush.msra.mxu0 %v1107
        %v1109 = vand.u32 %v624, 4294901760
        %v1110 = vsub.f32 %v624, %v1109
        %v1111 = vand.u32 %v1110, 4294901760
        %v1112 = vsub.f32 %v1110, %v1111
        %v1113 = vand.u32 %v1112, 4294901760
        %1114 = vmatpush.msra.mxu0 %v1113
        %v1115 = vand.u32 %v621, 4294901760
        %v1116 = vsub.f32 %v621, %v1115
        %v1117 = vand.u32 %v1116, 4294901760
        %v1118 = vsub.f32 %v1116, %v1117
        %v1119 = vand.u32 %v1118, 4294901760
        %1120 = vmatpush.msra.mxu0 %v1119
        %v1121 = vand.u32 %v618, 4294901760
        %v1122 = vsub.f32 %v618, %v1121
        %v1123 = vand.u32 %v1122, 4294901760
        %v1124 = vsub.f32 %v1122, %v1123
        %v1125 = vand.u32 %v1124, 4294901760
        %1126 = vmatpush.msra.mxu0 %v1125
        %v1127 = vand.u32 %v615, 4294901760
        %v1128 = vsub.f32 %v615, %v1127
        %v1129 = vand.u32 %v1128, 4294901760
        %v1130 = vsub.f32 %v1128, %v1129
        %v1131 = vand.u32 %v1130, 4294901760
        %1132 = vmatpush.msra.mxu0 %v1131
        %v1133 = vand.u32 %v612, 4294901760
        %v1134 = vsub.f32 %v612, %v1133
        %v1135 = vand.u32 %v1134, 4294901760
        %v1136 = vsub.f32 %v1134, %v1135
        %v1137 = vand.u32 %v1136, 4294901760
        %1138 = vmatpush.msra.mxu0 %v1137
        %v1139 = vand.u32 %v609, 4294901760
        %v1140 = vsub.f32 %v609, %v1139
        %v1141 = vand.u32 %v1140, 4294901760
        %v1142 = vsub.f32 %v1140, %v1141
        %v1143 = vand.u32 %v1142, 4294901760
        %1144 = vmatpush.msra.mxu0 %v1143
        %v1145 = vand.u32 %v606, 4294901760
        %v1146 = vsub.f32 %v606, %v1145
        %v1147 = vand.u32 %v1146, 4294901760
        %v1148 = vsub.f32 %v1146, %v1147
        %v1149 = vand.u32 %v1148, 4294901760
        %1150 = vmatpush.msra.mxu0 %v1149
        %v1151 = vand.u32 %v603, 4294901760
        %v1152 = vsub.f32 %v603, %v1151
        %v1153 = vand.u32 %v1152, 4294901760
        %v1154 = vsub.f32 %v1152, %v1153
        %v1155 = vand.u32 %v1154, 4294901760
        %1156 = vmatpush.msra.mxu0 %v1155
        %v1157 = vand.u32 %v600, 4294901760
        %v1158 = vsub.f32 %v600, %v1157
        %v1159 = vand.u32 %v1158, 4294901760
        %v1160 = vsub.f32 %v1158, %v1159
        %v1161 = vand.u32 %v1160, 4294901760
        %1162 = vmatpush.msra.mxu0 %v1161
        %v1163 = vand.u32 %v597, 4294901760
        %v1164 = vsub.f32 %v597, %v1163
        %v1165 = vand.u32 %v1164, 4294901760
        %v1166 = vsub.f32 %v1164, %v1165
        %v1167 = vand.u32 %v1166, 4294901760
        %1168 = vmatpush.msra.mxu0 %v1167
        %v1169 = vand.u32 %v592, 4294901760
        %1170 = vmatmul.f32.gmra.mxu0 %v1169
        %v1171 = vpop.f32.mrf.mxu0
        %v1172 = vadd.f32 %v1063, %v1171
        %v1173 = vand.u32 %v593, 4294901760
        %1174 = vmatmul.f32.gmra.mxu0 %v1173
        %v1175 = vpop.f32.mrf.mxu0
        %v1176 = vadd.f32 %v1071, %v1175
        %1177 = vdwg.mxu0
        %v1178 = vand.u32 %v642, 4294901760
        %v1179 = vsub.f32 %v642, %v1178
        %1180 = vmatpush.msra.mxu0 %v1179
        %v1181 = vand.u32 %v639, 4294901760
        %v1182 = vsub.f32 %v639, %v1181
        %1183 = vmatpush.msra.mxu0 %v1182
        %v1184 = vand.u32 %v636, 4294901760
        %v1185 = vsub.f32 %v636, %v1184
        %1186 = vmatpush.msra.mxu0 %v1185
        %v1187 = vand.u32 %v633, 4294901760
        %v1188 = vsub.f32 %v633, %v1187
        %1189 = vmatpush.msra.mxu0 %v1188
        %v1190 = vand.u32 %v630, 4294901760
        %v1191 = vsub.f32 %v630, %v1190
        %1192 = vmatpush.msra.mxu0 %v1191
        %v1193 = vand.u32 %v627, 4294901760
        %v1194 = vsub.f32 %v627, %v1193
        %1195 = vmatpush.msra.mxu0 %v1194
        %v1196 = vand.u32 %v624, 4294901760
        %v1197 = vsub.f32 %v624, %v1196
        %1198 = vmatpush.msra.mxu0 %v1197
        %v1199 = vand.u32 %v621, 4294901760
        %v1200 = vsub.f32 %v621, %v1199
        %1201 = vmatpush.msra.mxu0 %v1200
        %v1202 = vand.u32 %v618, 4294901760
        %v1203 = vsub.f32 %v618, %v1202
        %1204 = vmatpush.msra.mxu0 %v1203
        %v1205 = vand.u32 %v615, 4294901760
        %v1206 = vsub.f32 %v615, %v1205
        %1207 = vmatpush.msra.mxu0 %v1206
        %v1208 = vand.u32 %v612, 4294901760
        %v1209 = vsub.f32 %v612, %v1208
        %1210 = vmatpush.msra.mxu0 %v1209
        %v1211 = vand.u32 %v609, 4294901760
        %v1212 = vsub.f32 %v609, %v1211
        %1213 = vmatpush.msra.mxu0 %v1212
        %v1214 = vand.u32 %v606, 4294901760
        %v1215 = vsub.f32 %v606, %v1214
        %1216 = vmatpush.msra.mxu0 %v1215
        %v1217 = vand.u32 %v603, 4294901760
        %v1218 = vsub.f32 %v603, %v1217
        %1219 = vmatpush.msra.mxu0 %v1218
        %v1220 = vand.u32 %v600, 4294901760
        %v1221 = vsub.f32 %v600, %v1220
        %1222 = vmatpush.msra.mxu0 %v1221
        %v1223 = vand.u32 %v597, 4294901760
        %v1224 = vsub.f32 %v597, %v1223
        %1225 = vmatpush.msra.mxu0 %v1224
        %v1226 = vand.u32 %v592, 4294901760
        %v1227 = vsub.f32 %v592, %v1226
        %1228 = vmatmul.f32.gmra.mxu0 %v1227
        %v1229 = vpop.f32.mrf.mxu0
        %v1230 = vadd.f32 %v1172, %v1229
        %v1231 = vand.u32 %v593, 4294901760
        %v1232 = vsub.f32 %v593, %v1231
        %1233 = vmatmul.f32.gmra.mxu0 %v1232
        %v1234 = vpop.f32.mrf.mxu0
        %v1235 = vadd.f32 %v1176, %v1234
        %1236 = vdwg.mxu0
        %v1237 = vand.u32 %v642, 4294901760
        %1238 = vmatpush.msra.mxu0 %v1237
        %v1239 = vand.u32 %v639, 4294901760
        %1240 = vmatpush.msra.mxu0 %v1239
        %v1241 = vand.u32 %v636, 4294901760
        %1242 = vmatpush.msra.mxu0 %v1241
        %v1243 = vand.u32 %v633, 4294901760
        %1244 = vmatpush.msra.mxu0 %v1243
        %v1245 = vand.u32 %v630, 4294901760
        %1246 = vmatpush.msra.mxu0 %v1245
        %v1247 = vand.u32 %v627, 4294901760
        %1248 = vmatpush.msra.mxu0 %v1247
        %v1249 = vand.u32 %v624, 4294901760
        %1250 = vmatpush.msra.mxu0 %v1249
        %v1251 = vand.u32 %v621, 4294901760
        %1252 = vmatpush.msra.mxu0 %v1251
        %v1253 = vand.u32 %v618, 4294901760
        %1254 = vmatpush.msra.mxu0 %v1253
        %v1255 = vand.u32 %v615, 4294901760
        %1256 = vmatpush.msra.mxu0 %v1255
        %v1257 = vand.u32 %v612, 4294901760
        %1258 = vmatpush.msra.mxu0 %v1257
        %v1259 = vand.u32 %v609, 4294901760
        %1260 = vmatpush.msra.mxu0 %v1259
        %v1261 = vand.u32 %v606, 4294901760
        %1262 = vmatpush.msra.mxu0 %v1261
        %v1263 = vand.u32 %v603, 4294901760
        %1264 = vmatpush.msra.mxu0 %v1263
        %v1265 = vand.u32 %v600, 4294901760
        %1266 = vmatpush.msra.mxu0 %v1265
        %v1267 = vand.u32 %v597, 4294901760
        %1268 = vmatpush.msra.mxu0 %v1267
        %v1269 = vand.u32 %v592, 4294901760
        %v1270 = vsub.f32 %v592, %v1269
        %v1271 = vand.u32 %v1270, 4294901760
        %1272 = vmatmul.f32.gmra.mxu0 %v1271
        %v1273 = vpop.f32.mrf.mxu0
        %v1274 = vadd.f32 %v1230, %v1273
        %v1275 = vand.u32 %v593, 4294901760
        %v1276 = vsub.f32 %v593, %v1275
        %v1277 = vand.u32 %v1276, 4294901760
        %1278 = vmatmul.f32.gmra.mxu0 %v1277
        %v1279 = vpop.f32.mrf.mxu0
        %v1280 = vadd.f32 %v1235, %v1279
        %1281 = vdwg.mxu0
        %v1282 = vand.u32 %v642, 4294901760
        %v1283 = vsub.f32 %v642, %v1282
        %v1284 = vand.u32 %v1283, 4294901760
        %1285 = vmatpush.msra.mxu0 %v1284
        %v1286 = vand.u32 %v639, 4294901760
        %v1287 = vsub.f32 %v639, %v1286
        %v1288 = vand.u32 %v1287, 4294901760
        %1289 = vmatpush.msra.mxu0 %v1288
        %v1290 = vand.u32 %v636, 4294901760
        %v1291 = vsub.f32 %v636, %v1290
        %v1292 = vand.u32 %v1291, 4294901760
        %1293 = vmatpush.msra.mxu0 %v1292
        %v1294 = vand.u32 %v633, 4294901760
        %v1295 = vsub.f32 %v633, %v1294
        %v1296 = vand.u32 %v1295, 4294901760
        %1297 = vmatpush.msra.mxu0 %v1296
        %v1298 = vand.u32 %v630, 4294901760
        %v1299 = vsub.f32 %v630, %v1298
        %v1300 = vand.u32 %v1299, 4294901760
        %1301 = vmatpush.msra.mxu0 %v1300
        %v1302 = vand.u32 %v627, 4294901760
        %v1303 = vsub.f32 %v627, %v1302
        %v1304 = vand.u32 %v1303, 4294901760
        %1305 = vmatpush.msra.mxu0 %v1304
        %v1306 = vand.u32 %v624, 4294901760
        %v1307 = vsub.f32 %v624, %v1306
        %v1308 = vand.u32 %v1307, 4294901760
        %1309 = vmatpush.msra.mxu0 %v1308
        %v1310 = vand.u32 %v621, 4294901760
        %v1311 = vsub.f32 %v621, %v1310
        %v1312 = vand.u32 %v1311, 4294901760
        %1313 = vmatpush.msra.mxu0 %v1312
        %v1314 = vand.u32 %v618, 4294901760
        %v1315 = vsub.f32 %v618, %v1314
        %v1316 = vand.u32 %v1315, 4294901760
        %1317 = vmatpush.msra.mxu0 %v1316
        %v1318 = vand.u32 %v615, 4294901760
        %v1319 = vsub.f32 %v615, %v1318
        %v1320 = vand.u32 %v1319, 4294901760
        %1321 = vmatpush.msra.mxu0 %v1320
        %v1322 = vand.u32 %v612, 4294901760
        %v1323 = vsub.f32 %v612, %v1322
        %v1324 = vand.u32 %v1323, 4294901760
        %1325 = vmatpush.msra.mxu0 %v1324
        %v1326 = vand.u32 %v609, 4294901760
        %v1327 = vsub.f32 %v609, %v1326
        %v1328 = vand.u32 %v1327, 4294901760
        %1329 = vmatpush.msra.mxu0 %v1328
        %v1330 = vand.u32 %v606, 4294901760
        %v1331 = vsub.f32 %v606, %v1330
        %v1332 = vand.u32 %v1331, 4294901760
        %1333 = vmatpush.msra.mxu0 %v1332
        %v1334 = vand.u32 %v603, 4294901760
        %v1335 = vsub.f32 %v603, %v1334
        %v1336 = vand.u32 %v1335, 4294901760
        %1337 = vmatpush.msra.mxu0 %v1336
        %v1338 = vand.u32 %v600, 4294901760
        %v1339 = vsub.f32 %v600, %v1338
        %v1340 = vand.u32 %v1339, 4294901760
        %1341 = vmatpush.msra.mxu0 %v1340
        %v1342 = vand.u32 %v597, 4294901760
        %v1343 = vsub.f32 %v597, %v1342
        %v1344 = vand.u32 %v1343, 4294901760
        %1345 = vmatpush.msra.mxu0 %v1344
        %v1346 = vand.u32 %v592, 4294901760
        %1347 = vmatmul.f32.gmra.mxu0 %v1346
        %v1348 = vpop.f32.mrf.mxu0
        %v1349 = vadd.f32 %v1274, %v1348
        %v1350 = vand.u32 %v593, 4294901760
        %1351 = vmatmul.f32.gmra.mxu0 %v1350
        %v1352 = vpop.f32.mrf.mxu0
        %v1353 = vadd.f32 %v1280, %v1352
        %1354 = vdwg.mxu0
        %v1355 = vand.u32 %v642, 4294901760
        %1356 = vmatpush.msra.mxu0 %v1355
        %v1357 = vand.u32 %v639, 4294901760
        %1358 = vmatpush.msra.mxu0 %v1357
        %v1359 = vand.u32 %v636, 4294901760
        %1360 = vmatpush.msra.mxu0 %v1359
        %v1361 = vand.u32 %v633, 4294901760
        %1362 = vmatpush.msra.mxu0 %v1361
        %v1363 = vand.u32 %v630, 4294901760
        %1364 = vmatpush.msra.mxu0 %v1363
        %v1365 = vand.u32 %v627, 4294901760
        %1366 = vmatpush.msra.mxu0 %v1365
        %v1367 = vand.u32 %v624, 4294901760
        %1368 = vmatpush.msra.mxu0 %v1367
        %v1369 = vand.u32 %v621, 4294901760
        %1370 = vmatpush.msra.mxu0 %v1369
        %v1371 = vand.u32 %v618, 4294901760
        %1372 = vmatpush.msra.mxu0 %v1371
        %v1373 = vand.u32 %v615, 4294901760
        %1374 = vmatpush.msra.mxu0 %v1373
        %v1375 = vand.u32 %v612, 4294901760
        %1376 = vmatpush.msra.mxu0 %v1375
        %v1377 = vand.u32 %v609, 4294901760
        %1378 = vmatpush.msra.mxu0 %v1377
        %v1379 = vand.u32 %v606, 4294901760
        %1380 = vmatpush.msra.mxu0 %v1379
        %v1381 = vand.u32 %v603, 4294901760
        %1382 = vmatpush.msra.mxu0 %v1381
        %v1383 = vand.u32 %v600, 4294901760
        %1384 = vmatpush.msra.mxu0 %v1383
        %v1385 = vand.u32 %v597, 4294901760
        %1386 = vmatpush.msra.mxu0 %v1385
        %v1387 = vand.u32 %v592, 4294901760
        %1388 = vmatmul.f32.gmra.mxu0 %v1387
        %v1389 = vpop.f32.mrf.mxu0
        %v1390 = vadd.f32 %v1349, %v1389
        %v1391 = vand.u32 %v593, 4294901760
        %1392 = vmatmul.f32.gmra.mxu0 %v1391
        %v1393 = vpop.f32.mrf.mxu0
        %v1394 = vadd.f32 %v1353, %v1393
        %1395 = vdwg.mxu0
        %v1396 = vand.u32 %v643, 4294901760
        %1397 = vmatpush.msra.mxu0 %v1396
        %v1398 = vand.u32 %v640, 4294901760
        %1399 = vmatpush.msra.mxu0 %v1398
        %v1400 = vand.u32 %v637, 4294901760
        %1401 = vmatpush.msra.mxu0 %v1400
        %v1402 = vand.u32 %v634, 4294901760
        %1403 = vmatpush.msra.mxu0 %v1402
        %v1404 = vand.u32 %v631, 4294901760
        %1405 = vmatpush.msra.mxu0 %v1404
        %v1406 = vand.u32 %v628, 4294901760
        %1407 = vmatpush.msra.mxu0 %v1406
        %v1408 = vand.u32 %v625, 4294901760
        %1409 = vmatpush.msra.mxu0 %v1408
        %v1410 = vand.u32 %v622, 4294901760
        %1411 = vmatpush.msra.mxu0 %v1410
        %v1412 = vand.u32 %v619, 4294901760
        %1413 = vmatpush.msra.mxu0 %v1412
        %v1414 = vand.u32 %v616, 4294901760
        %1415 = vmatpush.msra.mxu0 %v1414
        %v1416 = vand.u32 %v613, 4294901760
        %1417 = vmatpush.msra.mxu0 %v1416
        %v1418 = vand.u32 %v610, 4294901760
        %1419 = vmatpush.msra.mxu0 %v1418
        %v1420 = vand.u32 %v607, 4294901760
        %1421 = vmatpush.msra.mxu0 %v1420
        %v1422 = vand.u32 %v604, 4294901760
        %1423 = vmatpush.msra.mxu0 %v1422
        %v1424 = vand.u32 %v601, 4294901760
        %1425 = vmatpush.msra.mxu0 %v1424
        %v1426 = vand.u32 %v598, 4294901760
        %1427 = vmatpush.msra.mxu0 %v1426
        %v1428 = vand.u32 %v592, 4294901760
        %v1429 = vsub.f32 %v592, %v1428
        %v1430 = vand.u32 %v1429, 4294901760
        %v1431 = vsub.f32 %v1429, %v1430
        %v1432 = vand.u32 %v1431, 4294901760
        %1433 = vmatmul.f32.gmra.mxu0 %v1432
        %v1434 = vpop.f32.mrf.mxu0
        %v1435 = vadd.f32 %v648, %v1434
        %v1436 = vand.u32 %v593, 4294901760
        %v1437 = vsub.f32 %v593, %v1436
        %v1438 = vand.u32 %v1437, 4294901760
        %v1439 = vsub.f32 %v1437, %v1438
        %v1440 = vand.u32 %v1439, 4294901760
        %1441 = vmatmul.f32.gmra.mxu0 %v1440
        %v1442 = vpop.f32.mrf.mxu0
        %v1443 = vadd.f32 %v648, %v1442
        %1444 = vdwg.mxu0
        %v1445 = vand.u32 %v643, 4294901760
        %v1446 = vsub.f32 %v643, %v1445
        %v1447 = vand.u32 %v1446, 4294901760
        %v1448 = vsub.f32 %v1446, %v1447
        %v1449 = vand.u32 %v1448, 4294901760
        %1450 = vmatpush.msra.mxu0 %v1449
        %v1451 = vand.u32 %v640, 4294901760
        %v1452 = vsub.f32 %v640, %v1451
        %v1453 = vand.u32 %v1452, 4294901760
        %v1454 = vsub.f32 %v1452, %v1453
        %v1455 = vand.u32 %v1454, 4294901760
        %1456 = vmatpush.msra.mxu0 %v1455
        %v1457 = vand.u32 %v637, 4294901760
        %v1458 = vsub.f32 %v637, %v1457
        %v1459 = vand.u32 %v1458, 4294901760
        %v1460 = vsub.f32 %v1458, %v1459
        %v1461 = vand.u32 %v1460, 4294901760
        %1462 = vmatpush.msra.mxu0 %v1461
        %v1463 = vand.u32 %v634, 4294901760
        %v1464 = vsub.f32 %v634, %v1463
        %v1465 = vand.u32 %v1464, 4294901760
        %v1466 = vsub.f32 %v1464, %v1465
        %v1467 = vand.u32 %v1466, 4294901760
        %1468 = vmatpush.msra.mxu0 %v1467
        %v1469 = vand.u32 %v631, 4294901760
        %v1470 = vsub.f32 %v631, %v1469
        %v1471 = vand.u32 %v1470, 4294901760
        %v1472 = vsub.f32 %v1470, %v1471
        %v1473 = vand.u32 %v1472, 4294901760
        %1474 = vmatpush.msra.mxu0 %v1473
        %v1475 = vand.u32 %v628, 4294901760
        %v1476 = vsub.f32 %v628, %v1475
        %v1477 = vand.u32 %v1476, 4294901760
        %v1478 = vsub.f32 %v1476, %v1477
        %v1479 = vand.u32 %v1478, 4294901760
        %1480 = vmatpush.msra.mxu0 %v1479
        %v1481 = vand.u32 %v625, 4294901760
        %v1482 = vsub.f32 %v625, %v1481
        %v1483 = vand.u32 %v1482, 4294901760
        %v1484 = vsub.f32 %v1482, %v1483
        %v1485 = vand.u32 %v1484, 4294901760
        %1486 = vmatpush.msra.mxu0 %v1485
        %v1487 = vand.u32 %v622, 4294901760
        %v1488 = vsub.f32 %v622, %v1487
        %v1489 = vand.u32 %v1488, 4294901760
        %v1490 = vsub.f32 %v1488, %v1489
        %v1491 = vand.u32 %v1490, 4294901760
        %1492 = vmatpush.msra.mxu0 %v1491
        %v1493 = vand.u32 %v619, 4294901760
        %v1494 = vsub.f32 %v619, %v1493
        %v1495 = vand.u32 %v1494, 4294901760
        %v1496 = vsub.f32 %v1494, %v1495
        %v1497 = vand.u32 %v1496, 4294901760
        %1498 = vmatpush.msra.mxu0 %v1497
        %v1499 = vand.u32 %v616, 4294901760
        %v1500 = vsub.f32 %v616, %v1499
        %v1501 = vand.u32 %v1500, 4294901760
        %v1502 = vsub.f32 %v1500, %v1501
        %v1503 = vand.u32 %v1502, 4294901760
        %1504 = vmatpush.msra.mxu0 %v1503
        %v1505 = vand.u32 %v613, 4294901760
        %v1506 = vsub.f32 %v613, %v1505
        %v1507 = vand.u32 %v1506, 4294901760
        %v1508 = vsub.f32 %v1506, %v1507
        %v1509 = vand.u32 %v1508, 4294901760
        %1510 = vmatpush.msra.mxu0 %v1509
        %v1511 = vand.u32 %v610, 4294901760
        %v1512 = vsub.f32 %v610, %v1511
        %v1513 = vand.u32 %v1512, 4294901760
        %v1514 = vsub.f32 %v1512, %v1513
        %v1515 = vand.u32 %v1514, 4294901760
        %1516 = vmatpush.msra.mxu0 %v1515
        %v1517 = vand.u32 %v607, 4294901760
        %v1518 = vsub.f32 %v607, %v1517
        %v1519 = vand.u32 %v1518, 4294901760
        %v1520 = vsub.f32 %v1518, %v1519
        %v1521 = vand.u32 %v1520, 4294901760
        %1522 = vmatpush.msra.mxu0 %v1521
        %v1523 = vand.u32 %v604, 4294901760
        %v1524 = vsub.f32 %v604, %v1523
        %v1525 = vand.u32 %v1524, 4294901760
        %v1526 = vsub.f32 %v1524, %v1525
        %v1527 = vand.u32 %v1526, 4294901760
        %1528 = vmatpush.msra.mxu0 %v1527
        %v1529 = vand.u32 %v601, 4294901760
        %v1530 = vsub.f32 %v601, %v1529
        %v1531 = vand.u32 %v1530, 4294901760
        %v1532 = vsub.f32 %v1530, %v1531
        %v1533 = vand.u32 %v1532, 4294901760
        %1534 = vmatpush.msra.mxu0 %v1533
        %v1535 = vand.u32 %v598, 4294901760
        %v1536 = vsub.f32 %v598, %v1535
        %v1537 = vand.u32 %v1536, 4294901760
        %v1538 = vsub.f32 %v1536, %v1537
        %v1539 = vand.u32 %v1538, 4294901760
        %1540 = vmatpush.msra.mxu0 %v1539
        %v1541 = vand.u32 %v592, 4294901760
        %1542 = vmatmul.f32.gmra.mxu0 %v1541
        %v1543 = vpop.f32.mrf.mxu0
        %v1544 = vadd.f32 %v1435, %v1543
        %v1545 = vand.u32 %v593, 4294901760
        %1546 = vmatmul.f32.gmra.mxu0 %v1545
        %v1547 = vpop.f32.mrf.mxu0
        %v1548 = vadd.f32 %v1443, %v1547
        %1549 = vdwg.mxu0
        %v1550 = vand.u32 %v643, 4294901760
        %v1551 = vsub.f32 %v643, %v1550
        %1552 = vmatpush.msra.mxu0 %v1551
        %v1553 = vand.u32 %v640, 4294901760
        %v1554 = vsub.f32 %v640, %v1553
        %1555 = vmatpush.msra.mxu0 %v1554
        %v1556 = vand.u32 %v637, 4294901760
        %v1557 = vsub.f32 %v637, %v1556
        %1558 = vmatpush.msra.mxu0 %v1557
        %v1559 = vand.u32 %v634, 4294901760
        %v1560 = vsub.f32 %v634, %v1559
        %1561 = vmatpush.msra.mxu0 %v1560
        %v1562 = vand.u32 %v631, 4294901760
        %v1563 = vsub.f32 %v631, %v1562
        %1564 = vmatpush.msra.mxu0 %v1563
        %v1565 = vand.u32 %v628, 4294901760
        %v1566 = vsub.f32 %v628, %v1565
        %1567 = vmatpush.msra.mxu0 %v1566
        %v1568 = vand.u32 %v625, 4294901760
        %v1569 = vsub.f32 %v625, %v1568
        %1570 = vmatpush.msra.mxu0 %v1569
        %v1571 = vand.u32 %v622, 4294901760
        %v1572 = vsub.f32 %v622, %v1571
        %1573 = vmatpush.msra.mxu0 %v1572
        %v1574 = vand.u32 %v619, 4294901760
        %v1575 = vsub.f32 %v619, %v1574
        %1576 = vmatpush.msra.mxu0 %v1575
        %v1577 = vand.u32 %v616, 4294901760
        %v1578 = vsub.f32 %v616, %v1577
        %1579 = vmatpush.msra.mxu0 %v1578
        %v1580 = vand.u32 %v613, 4294901760
        %v1581 = vsub.f32 %v613, %v1580
        %1582 = vmatpush.msra.mxu0 %v1581
        %v1583 = vand.u32 %v610, 4294901760
        %v1584 = vsub.f32 %v610, %v1583
        %1585 = vmatpush.msra.mxu0 %v1584
        %v1586 = vand.u32 %v607, 4294901760
        %v1587 = vsub.f32 %v607, %v1586
        %1588 = vmatpush.msra.mxu0 %v1587
        %v1589 = vand.u32 %v604, 4294901760
        %v1590 = vsub.f32 %v604, %v1589
        %1591 = vmatpush.msra.mxu0 %v1590
        %v1592 = vand.u32 %v601, 4294901760
        %v1593 = vsub.f32 %v601, %v1592
        %1594 = vmatpush.msra.mxu0 %v1593
        %v1595 = vand.u32 %v598, 4294901760
        %v1596 = vsub.f32 %v598, %v1595
        %1597 = vmatpush.msra.mxu0 %v1596
        %v1598 = vand.u32 %v592, 4294901760
        %v1599 = vsub.f32 %v592, %v1598
        %1600 = vmatmul.f32.gmra.mxu0 %v1599
        %v1601 = vpop.f32.mrf.mxu0
        %v1602 = vadd.f32 %v1544, %v1601
        %v1603 = vand.u32 %v593, 4294901760
        %v1604 = vsub.f32 %v593, %v1603
        %1605 = vmatmul.f32.gmra.mxu0 %v1604
        %v1606 = vpop.f32.mrf.mxu0
        %v1607 = vadd.f32 %v1548, %v1606
        %1608 = vdwg.mxu0
        %v1609 = vand.u32 %v643, 4294901760
        %1610 = vmatpush.msra.mxu0 %v1609
        %v1611 = vand.u32 %v640, 4294901760
        %1612 = vmatpush.msra.mxu0 %v1611
        %v1613 = vand.u32 %v637, 4294901760
        %1614 = vmatpush.msra.mxu0 %v1613
        %v1615 = vand.u32 %v634, 4294901760
        %1616 = vmatpush.msra.mxu0 %v1615
        %v1617 = vand.u32 %v631, 4294901760
        %1618 = vmatpush.msra.mxu0 %v1617
        %v1619 = vand.u32 %v628, 4294901760
        %1620 = vmatpush.msra.mxu0 %v1619
        %v1621 = vand.u32 %v625, 4294901760
        %1622 = vmatpush.msra.mxu0 %v1621
        %v1623 = vand.u32 %v622, 4294901760
        %1624 = vmatpush.msra.mxu0 %v1623
        %v1625 = vand.u32 %v619, 4294901760
        %1626 = vmatpush.msra.mxu0 %v1625
        %v1627 = vand.u32 %v616, 4294901760
        %1628 = vmatpush.msra.mxu0 %v1627
        %v1629 = vand.u32 %v613, 4294901760
        %1630 = vmatpush.msra.mxu0 %v1629
        %v1631 = vand.u32 %v610, 4294901760
        %1632 = vmatpush.msra.mxu0 %v1631
        %v1633 = vand.u32 %v607, 4294901760
        %1634 = vmatpush.msra.mxu0 %v1633
        %v1635 = vand.u32 %v604, 4294901760
        %1636 = vmatpush.msra.mxu0 %v1635
        %v1637 = vand.u32 %v601, 4294901760
        %1638 = vmatpush.msra.mxu0 %v1637
        %v1639 = vand.u32 %v598, 4294901760
        %1640 = vmatpush.msra.mxu0 %v1639
        %v1641 = vand.u32 %v592, 4294901760
        %v1642 = vsub.f32 %v592, %v1641
        %v1643 = vand.u32 %v1642, 4294901760
        %1644 = vmatmul.f32.gmra.mxu0 %v1643
        %v1645 = vpop.f32.mrf.mxu0
        %v1646 = vadd.f32 %v1602, %v1645
        %v1647 = vand.u32 %v593, 4294901760
        %v1648 = vsub.f32 %v593, %v1647
        %v1649 = vand.u32 %v1648, 4294901760
        %1650 = vmatmul.f32.gmra.mxu0 %v1649
        %v1651 = vpop.f32.mrf.mxu0
        %v1652 = vadd.f32 %v1607, %v1651
        %1653 = vdwg.mxu0
        %v1654 = vand.u32 %v643, 4294901760
        %v1655 = vsub.f32 %v643, %v1654
        %v1656 = vand.u32 %v1655, 4294901760
        %1657 = vmatpush.msra.mxu0 %v1656
        %v1658 = vand.u32 %v640, 4294901760
        %v1659 = vsub.f32 %v640, %v1658
        %v1660 = vand.u32 %v1659, 4294901760
        %1661 = vmatpush.msra.mxu0 %v1660
        %v1662 = vand.u32 %v637, 4294901760
        %v1663 = vsub.f32 %v637, %v1662
        %v1664 = vand.u32 %v1663, 4294901760
        %1665 = vmatpush.msra.mxu0 %v1664
        %v1666 = vand.u32 %v634, 4294901760
        %v1667 = vsub.f32 %v634, %v1666
        %v1668 = vand.u32 %v1667, 4294901760
        %1669 = vmatpush.msra.mxu0 %v1668
        %v1670 = vand.u32 %v631, 4294901760
        %v1671 = vsub.f32 %v631, %v1670
        %v1672 = vand.u32 %v1671, 4294901760
        %1673 = vmatpush.msra.mxu0 %v1672
        %v1674 = vand.u32 %v628, 4294901760
        %v1675 = vsub.f32 %v628, %v1674
        %v1676 = vand.u32 %v1675, 4294901760
        %1677 = vmatpush.msra.mxu0 %v1676
        %v1678 = vand.u32 %v625, 4294901760
        %v1679 = vsub.f32 %v625, %v1678
        %v1680 = vand.u32 %v1679, 4294901760
        %1681 = vmatpush.msra.mxu0 %v1680
        %v1682 = vand.u32 %v622, 4294901760
        %v1683 = vsub.f32 %v622, %v1682
        %v1684 = vand.u32 %v1683, 4294901760
        %1685 = vmatpush.msra.mxu0 %v1684
        %v1686 = vand.u32 %v619, 4294901760
        %v1687 = vsub.f32 %v619, %v1686
        %v1688 = vand.u32 %v1687, 4294901760
        %1689 = vmatpush.msra.mxu0 %v1688
        %v1690 = vand.u32 %v616, 4294901760
        %v1691 = vsub.f32 %v616, %v1690
        %v1692 = vand.u32 %v1691, 4294901760
        %1693 = vmatpush.msra.mxu0 %v1692
        %v1694 = vand.u32 %v613, 4294901760
        %v1695 = vsub.f32 %v613, %v1694
        %v1696 = vand.u32 %v1695, 4294901760
        %1697 = vmatpush.msra.mxu0 %v1696
        %v1698 = vand.u32 %v610, 4294901760
        %v1699 = vsub.f32 %v610, %v1698
        %v1700 = vand.u32 %v1699, 4294901760
        %1701 = vmatpush.msra.mxu0 %v1700
        %v1702 = vand.u32 %v607, 4294901760
        %v1703 = vsub.f32 %v607, %v1702
        %v1704 = vand.u32 %v1703, 4294901760
        %1705 = vmatpush.msra.mxu0 %v1704
        %v1706 = vand.u32 %v604, 4294901760
        %v1707 = vsub.f32 %v604, %v1706
        %v1708 = vand.u32 %v1707, 4294901760
        %1709 = vmatpush.msra.mxu0 %v1708
        %v1710 = vand.u32 %v601, 4294901760
        %v1711 = vsub.f32 %v601, %v1710
        %v1712 = vand.u32 %v1711, 4294901760
        %1713 = vmatpush.msra.mxu0 %v1712
        %v1714 = vand.u32 %v598, 4294901760
        %v1715 = vsub.f32 %v598, %v1714
        %v1716 = vand.u32 %v1715, 4294901760
        %1717 = vmatpush.msra.mxu0 %v1716
        %v1718 = vand.u32 %v592, 4294901760
        %1719 = vmatmul.f32.gmra.mxu0 %v1718
        %v1720 = vpop.f32.mrf.mxu0
        %v1721 = vadd.f32 %v1646, %v1720
        %v1722 = vand.u32 %v593, 4294901760
        %1723 = vmatmul.f32.gmra.mxu0 %v1722
        %v1724 = vpop.f32.mrf.mxu0
        %v1725 = vadd.f32 %v1652, %v1724
        %1726 = vdwg.mxu0
        %v1727 = vand.u32 %v643, 4294901760
        %1728 = vmatpush.msra.mxu0 %v1727
        %v1729 = vand.u32 %v640, 4294901760
        %1730 = vmatpush.msra.mxu0 %v1729
        %v1731 = vand.u32 %v637, 4294901760
        %1732 = vmatpush.msra.mxu0 %v1731
        %v1733 = vand.u32 %v634, 4294901760
        %1734 = vmatpush.msra.mxu0 %v1733
        %v1735 = vand.u32 %v631, 4294901760
        %1736 = vmatpush.msra.mxu0 %v1735
        %v1737 = vand.u32 %v628, 4294901760
        %1738 = vmatpush.msra.mxu0 %v1737
        %v1739 = vand.u32 %v625, 4294901760
        %1740 = vmatpush.msra.mxu0 %v1739
        %v1741 = vand.u32 %v622, 4294901760
        %1742 = vmatpush.msra.mxu0 %v1741
        %v1743 = vand.u32 %v619, 4294901760
        %1744 = vmatpush.msra.mxu0 %v1743
        %v1745 = vand.u32 %v616, 4294901760
        %1746 = vmatpush.msra.mxu0 %v1745
        %v1747 = vand.u32 %v613, 4294901760
        %1748 = vmatpush.msra.mxu0 %v1747
        %v1749 = vand.u32 %v610, 4294901760
        %1750 = vmatpush.msra.mxu0 %v1749
        %v1751 = vand.u32 %v607, 4294901760
        %1752 = vmatpush.msra.mxu0 %v1751
        %v1753 = vand.u32 %v604, 4294901760
        %1754 = vmatpush.msra.mxu0 %v1753
        %v1755 = vand.u32 %v601, 4294901760
        %1756 = vmatpush.msra.mxu0 %v1755
        %v1757 = vand.u32 %v598, 4294901760
        %1758 = vmatpush.msra.mxu0 %v1757
        %v1759 = vand.u32 %v592, 4294901760
        %1760 = vmatmul.f32.gmra.mxu0 %v1759
        %v1761 = vpop.f32.mrf.mxu0
        %v1762 = vadd.f32 %v1721, %v1761
        %v1763 = vand.u32 %v593, 4294901760
        %1764 = vmatmul.f32.gmra.mxu0 %v1763
        %v1765 = vpop.f32.mrf.mxu0
        %v1766 = vadd.f32 %v1725, %v1765
        %1767 = vdwg.mxu0
        %vm1768 = vcmask 261120
        %v1770 = vsel %vm1768, %v1018, 0
        %v1773 = vsel %vm1768, %v1022, 0
        %v1776 = vsel %vm1768, %v1390, 0
        %v1779 = vsel %vm1768, %v1394, 0
        %1781 = vmatpush.xpose.msra.mxu0 0.0
        %1782 = vmatpush.xpose.msra.mxu0 0.0
        %1783 = vmatpush.xpose.msra.mxu0 0.0
        %1784 = vmatpush.xpose.msra.mxu0 0.0
        %1785 = vmatpush.xpose.msra.mxu0 0.0
        %1786 = vmatpush.xpose.msra.mxu0 0.0
        %1787 = vmatpush.xpose.msra.mxu0 0.0
        %1788 = vmatpush.xpose.msra.mxu0 0.0
        %1789 = vmatpush.xpose.msra.mxu0 0.0
        %1790 = vmatpush.xpose.msra.mxu0 0.0
        %1791 = vmatpush.xpose.msra.mxu0 0.0
        %1792 = vmatpush.xpose.msra.mxu0 0.0
        %1793 = vmatpush.xpose.msra.mxu0 0.0
        %1794 = vmatpush.xpose.msra.mxu0 0.0
        %v1795 = vand.u32 %v1779, 4294901760
        %1796 = vmatpush.xpose.msra.mxu0 %v1795
        %v1797 = vand.u32 %v1776, 4294901760
        %1798 = vmatpush.xpose.msra.mxu0 %v1797
        %v1799 = vand.u32 %v1770, 4294901760
        %v1800 = vsub.f32 %v1770, %v1799
        %v1801 = vand.u32 %v1800, 4294901760
        %v1802 = vsub.f32 %v1800, %v1801
        %v1803 = vand.u32 %v1802, 4294901760
        %1804 = vmatmul.f32.gmra.mxu0 %v1803
        %v1805 = vpop.f32.mrf.mxu0
        %v1806 = vadd.f32 0.0, %v1805
        %v1807 = vand.u32 %v1773, 4294901760
        %v1808 = vsub.f32 %v1773, %v1807
        %v1809 = vand.u32 %v1808, 4294901760
        %v1810 = vsub.f32 %v1808, %v1809
        %v1811 = vand.u32 %v1810, 4294901760
        %1812 = vmatmul.f32.gmra.mxu0 %v1811
        %v1813 = vpop.f32.mrf.mxu0
        %v1814 = vadd.f32 0.0, %v1813
        %1815 = vdwg.mxu0
        %1816 = vmatpush.xpose.msra.mxu0 0.0
        %1817 = vmatpush.xpose.msra.mxu0 0.0
        %1818 = vmatpush.xpose.msra.mxu0 0.0
        %1819 = vmatpush.xpose.msra.mxu0 0.0
        %1820 = vmatpush.xpose.msra.mxu0 0.0
        %1821 = vmatpush.xpose.msra.mxu0 0.0
        %1822 = vmatpush.xpose.msra.mxu0 0.0
        %1823 = vmatpush.xpose.msra.mxu0 0.0
        %1824 = vmatpush.xpose.msra.mxu0 0.0
        %1825 = vmatpush.xpose.msra.mxu0 0.0
        %1826 = vmatpush.xpose.msra.mxu0 0.0
        %1827 = vmatpush.xpose.msra.mxu0 0.0
        %1828 = vmatpush.xpose.msra.mxu0 0.0
        %1829 = vmatpush.xpose.msra.mxu0 0.0
        %v1830 = vand.u32 %v1779, 4294901760
        %v1831 = vsub.f32 %v1779, %v1830
        %v1832 = vand.u32 %v1831, 4294901760
        %v1833 = vsub.f32 %v1831, %v1832
        %v1834 = vand.u32 %v1833, 4294901760
        %1835 = vmatpush.xpose.msra.mxu0 %v1834
        %v1836 = vand.u32 %v1776, 4294901760
        %v1837 = vsub.f32 %v1776, %v1836
        %v1838 = vand.u32 %v1837, 4294901760
        %v1839 = vsub.f32 %v1837, %v1838
        %v1840 = vand.u32 %v1839, 4294901760
        %1841 = vmatpush.xpose.msra.mxu0 %v1840
        %v1842 = vand.u32 %v1770, 4294901760
        %1843 = vmatmul.f32.gmra.mxu0 %v1842
        %v1844 = vpop.f32.mrf.mxu0
        %v1845 = vadd.f32 %v1806, %v1844
        %v1846 = vand.u32 %v1773, 4294901760
        %1847 = vmatmul.f32.gmra.mxu0 %v1846
        %v1848 = vpop.f32.mrf.mxu0
        %v1849 = vadd.f32 %v1814, %v1848
        %1850 = vdwg.mxu0
        %1851 = vmatpush.xpose.msra.mxu0 0.0
        %1852 = vmatpush.xpose.msra.mxu0 0.0
        %1853 = vmatpush.xpose.msra.mxu0 0.0
        %1854 = vmatpush.xpose.msra.mxu0 0.0
        %1855 = vmatpush.xpose.msra.mxu0 0.0
        %1856 = vmatpush.xpose.msra.mxu0 0.0
        %1857 = vmatpush.xpose.msra.mxu0 0.0
        %1858 = vmatpush.xpose.msra.mxu0 0.0
        %1859 = vmatpush.xpose.msra.mxu0 0.0
        %1860 = vmatpush.xpose.msra.mxu0 0.0
        %1861 = vmatpush.xpose.msra.mxu0 0.0
        %1862 = vmatpush.xpose.msra.mxu0 0.0
        %1863 = vmatpush.xpose.msra.mxu0 0.0
        %1864 = vmatpush.xpose.msra.mxu0 0.0
        %v1865 = vand.u32 %v1779, 4294901760
        %v1866 = vsub.f32 %v1779, %v1865
        %1867 = vmatpush.xpose.msra.mxu0 %v1866
        %v1868 = vand.u32 %v1776, 4294901760
        %v1869 = vsub.f32 %v1776, %v1868
        %1870 = vmatpush.xpose.msra.mxu0 %v1869
        %v1871 = vand.u32 %v1770, 4294901760
        %v1872 = vsub.f32 %v1770, %v1871
        %1873 = vmatmul.f32.gmra.mxu0 %v1872
        %v1874 = vpop.f32.mrf.mxu0
        %v1875 = vadd.f32 %v1845, %v1874
        %v1876 = vand.u32 %v1773, 4294901760
        %v1877 = vsub.f32 %v1773, %v1876
        %1878 = vmatmul.f32.gmra.mxu0 %v1877
        %v1879 = vpop.f32.mrf.mxu0
        %v1880 = vadd.f32 %v1849, %v1879
        %1881 = vdwg.mxu0
        %1882 = vmatpush.xpose.msra.mxu0 0.0
        %1883 = vmatpush.xpose.msra.mxu0 0.0
        %1884 = vmatpush.xpose.msra.mxu0 0.0
        %1885 = vmatpush.xpose.msra.mxu0 0.0
        %1886 = vmatpush.xpose.msra.mxu0 0.0
        %1887 = vmatpush.xpose.msra.mxu0 0.0
        %1888 = vmatpush.xpose.msra.mxu0 0.0
        %1889 = vmatpush.xpose.msra.mxu0 0.0
        %1890 = vmatpush.xpose.msra.mxu0 0.0
        %1891 = vmatpush.xpose.msra.mxu0 0.0
        %1892 = vmatpush.xpose.msra.mxu0 0.0
        %1893 = vmatpush.xpose.msra.mxu0 0.0
        %1894 = vmatpush.xpose.msra.mxu0 0.0
        %1895 = vmatpush.xpose.msra.mxu0 0.0
        %v1896 = vand.u32 %v1779, 4294901760
        %1897 = vmatpush.xpose.msra.mxu0 %v1896
        %v1898 = vand.u32 %v1776, 4294901760
        %1899 = vmatpush.xpose.msra.mxu0 %v1898
        %v1900 = vand.u32 %v1770, 4294901760
        %v1901 = vsub.f32 %v1770, %v1900
        %v1902 = vand.u32 %v1901, 4294901760
        %1903 = vmatmul.f32.gmra.mxu0 %v1902
        %v1904 = vpop.f32.mrf.mxu0
        %v1905 = vadd.f32 %v1875, %v1904
        %v1906 = vand.u32 %v1773, 4294901760
        %v1907 = vsub.f32 %v1773, %v1906
        %v1908 = vand.u32 %v1907, 4294901760
        %1909 = vmatmul.f32.gmra.mxu0 %v1908
        %v1910 = vpop.f32.mrf.mxu0
        %v1911 = vadd.f32 %v1880, %v1910
        %1912 = vdwg.mxu0
        %1913 = vmatpush.xpose.msra.mxu0 0.0
        %1914 = vmatpush.xpose.msra.mxu0 0.0
        %1915 = vmatpush.xpose.msra.mxu0 0.0
        %1916 = vmatpush.xpose.msra.mxu0 0.0
        %1917 = vmatpush.xpose.msra.mxu0 0.0
        %1918 = vmatpush.xpose.msra.mxu0 0.0
        %1919 = vmatpush.xpose.msra.mxu0 0.0
        %1920 = vmatpush.xpose.msra.mxu0 0.0
        %1921 = vmatpush.xpose.msra.mxu0 0.0
        %1922 = vmatpush.xpose.msra.mxu0 0.0
        %1923 = vmatpush.xpose.msra.mxu0 0.0
        %1924 = vmatpush.xpose.msra.mxu0 0.0
        %1925 = vmatpush.xpose.msra.mxu0 0.0
        %1926 = vmatpush.xpose.msra.mxu0 0.0
        %v1927 = vand.u32 %v1779, 4294901760
        %v1928 = vsub.f32 %v1779, %v1927
        %v1929 = vand.u32 %v1928, 4294901760
        %1930 = vmatpush.xpose.msra.mxu0 %v1929
        %v1931 = vand.u32 %v1776, 4294901760
        %v1932 = vsub.f32 %v1776, %v1931
        %v1933 = vand.u32 %v1932, 4294901760
        %1934 = vmatpush.xpose.msra.mxu0 %v1933
        %v1935 = vand.u32 %v1770, 4294901760
        %1936 = vmatmul.f32.gmra.mxu0 %v1935
        %v1937 = vpop.f32.mrf.mxu0
        %v1938 = vadd.f32 %v1905, %v1937
        %v1939 = vand.u32 %v1773, 4294901760
        %1940 = vmatmul.f32.gmra.mxu0 %v1939
        %v1941 = vpop.f32.mrf.mxu0
        %v1942 = vadd.f32 %v1911, %v1941
        %1943 = vdwg.mxu0
        %1944 = vmatpush.xpose.msra.mxu0 0.0
        %1945 = vmatpush.xpose.msra.mxu0 0.0
        %1946 = vmatpush.xpose.msra.mxu0 0.0
        %1947 = vmatpush.xpose.msra.mxu0 0.0
        %1948 = vmatpush.xpose.msra.mxu0 0.0
        %1949 = vmatpush.xpose.msra.mxu0 0.0
        %1950 = vmatpush.xpose.msra.mxu0 0.0
        %1951 = vmatpush.xpose.msra.mxu0 0.0
        %1952 = vmatpush.xpose.msra.mxu0 0.0
        %1953 = vmatpush.xpose.msra.mxu0 0.0
        %1954 = vmatpush.xpose.msra.mxu0 0.0
        %1955 = vmatpush.xpose.msra.mxu0 0.0
        %1956 = vmatpush.xpose.msra.mxu0 0.0
        %1957 = vmatpush.xpose.msra.mxu0 0.0
        %v1958 = vand.u32 %v1779, 4294901760
        %1959 = vmatpush.xpose.msra.mxu0 %v1958
        %v1960 = vand.u32 %v1776, 4294901760
        %1961 = vmatpush.xpose.msra.mxu0 %v1960
        %v1962 = vand.u32 %v1770, 4294901760
        %1963 = vmatmul.f32.gmra.mxu0 %v1962
        %v1964 = vpop.f32.mrf.mxu0
        %v1965 = vadd.f32 %v1938, %v1964
        %v1966 = vand.u32 %v1773, 4294901760
        %1967 = vmatmul.f32.gmra.mxu0 %v1966
        %v1968 = vpop.f32.mrf.mxu0
        %v1969 = vadd.f32 %v1942, %v1968
        %1970 = vdwg.mxu0
        %v1971 = vmul.f32 %v1965, 0.17677669
        %v1972 = vmul.f32 %v1969, 0.17677669
        %vm1973 = vcmp.gt.f32.partialorder %v594, 0.5
        %vm1974 = vcmp.gt.f32.partialorder %v595, 0.5
        %v1975 = vsel %vm1973, -1e+09, %v1971
        %v1976 = vsel %vm1974, -1e+09, %v1972
        %vm1977 = vcmask 130048
        %v1978 = vsel %vm1977, %v1975, -inf
        %1979 = vmax.xlane.f32.xlu0 %v1978
        %v1980 = vpop.xlane.xlu0 %1979
        %v1981 = vsel %vm1977, %v1976, -inf
        %1982 = vmax.xlane.f32.xlu0 %v1981
        %v1983 = vpop.xlane.xlu0 %1982
        %v1984 = vsub.f32 %v1975, %v1980
        %v1985 = vsub.f32 %v1976, %v1983
        %v1986 = vmul.f32 %v1984, 1.442695
        %v1987 = vpow.pop %v1986
        %v1988 = vmul.f32 %v1985, 1.442695
        %v1989 = vpow.pop %v1988
        %v1990 = vsel %vm1977, %v1987, 0.0
        %1991 = vadd.xlane.f32.xlu0 %v1990
        %v1992 = vpop.xlane.xlu0 %1991
        %v1993 = vsel %vm1977, %v1989, 0.0
        %1994 = vadd.xlane.f32.xlu0 %v1993
        %v1995 = vpop.xlane.xlu0 %1994
        %v1996 = vrcp.pop %v1992
        %v1997 = vmul.f32 %v1992, %v1996
        %v1998 = vsub.f32 1.0, %v1997
        %v1999 = vmul.f32 %v1996, %v1998
        %v2000 = vadd.f32 %v1996, %v1999
        %vm2001 = vweird.f32 %v1992
        %vm2002 = vweird.f32 %v1996
        %vm2003 = vmor %vm2001, %vm2002
        %v2004 = vsel %vm2003, %v1996, %v2000
        %v2005 = vand.u32 2147483647, %v1992
        %vm2006 = vcmp.eq.f32.partialorder %v2005, 8.507059e+37
        %v2007 = vand.u32 %v1992, 2147483648
        %v2008 = vor.u32 1.1754944e-38, %v2007
        %v2009 = vsel %vm2006, %v2008, %v2004
        %v2010 = vmul.f32 %v1987, %v2009
        %v2011 = vrcp.pop %v1995
        %v2012 = vmul.f32 %v1995, %v2011
        %v2013 = vsub.f32 1.0, %v2012
        %v2014 = vmul.f32 %v2011, %v2013
        %v2015 = vadd.f32 %v2011, %v2014
        %vm2016 = vweird.f32 %v1995
        %vm2017 = vweird.f32 %v2011
        %vm2018 = vmor %vm2016, %vm2017
        %v2019 = vsel %vm2018, %v2011, %v2015
        %v2020 = vand.u32 2147483647, %v1995
        %vm2021 = vcmp.eq.f32.partialorder %v2020, 8.507059e+37
        %v2022 = vand.u32 %v1995, 2147483648
        %v2023 = vor.u32 1.1754944e-38, %v2022
        %v2024 = vsel %vm2021, %v2023, %v2019
        %v2025 = vmul.f32 %v1989, %v2024
        %2026 = vst.msk [vmem:[%s591] sm:$0xff] %vm1977, %v2010
        %2027 = vst.msk [vmem:[%s591 + $0x8] sm:$0xff] %vm1977, %v2025
        %v2029 = vsel %vm1977, %v2010, 0
        %v2032 = vsel %vm1977, %v2025, 0
        %2034 = vmatpush.msra.mxu0 0.0
        %2035 = vmatpush.msra.mxu0 0.0
        %2036 = vmatpush.msra.mxu0 0.0
        %2037 = vmatpush.msra.mxu0 0.0
        %2038 = vmatpush.msra.mxu0 0.0
        %2039 = vmatpush.msra.mxu0 0.0
        %2040 = vmatpush.msra.mxu0 0.0
        %2041 = vmatpush.msra.mxu0 0.0
        %2042 = vmatpush.msra.mxu0 0.0
        %2043 = vmatpush.msra.mxu0 0.0
        %2044 = vmatpush.msra.mxu0 0.0
        %2045 = vmatpush.msra.mxu0 0.0
        %2046 = vmatpush.msra.mxu0 0.0
        %2047 = vmatpush.msra.mxu0 0.0
        %v2048 = vand.u32 %v1766, 4294901760
        %2049 = vmatpush.msra.mxu0 %v2048
        %v2050 = vand.u32 %v1762, 4294901760
        %2051 = vmatpush.msra.mxu0 %v2050
        %v2052 = vand.u32 %v2029, 4294901760
        %v2053 = vsub.f32 %v2029, %v2052
        %v2054 = vand.u32 %v2053, 4294901760
        %v2055 = vsub.f32 %v2053, %v2054
        %v2056 = vand.u32 %v2055, 4294901760
        %2057 = vmatmul.f32.gmra.mxu0 %v2056
        %v2058 = vpop.f32.mrf.mxu0
        %v2059 = vadd.f32 0.0, %v2058
        %v2060 = vand.u32 %v2032, 4294901760
        %v2061 = vsub.f32 %v2032, %v2060
        %v2062 = vand.u32 %v2061, 4294901760
        %v2063 = vsub.f32 %v2061, %v2062
        %v2064 = vand.u32 %v2063, 4294901760
        %2065 = vmatmul.f32.gmra.mxu0 %v2064
        %v2066 = vpop.f32.mrf.mxu0
        %v2067 = vadd.f32 0.0, %v2066
        %2068 = vdwg.mxu0
        %2069 = vmatpush.msra.mxu0 0.0
        %2070 = vmatpush.msra.mxu0 0.0
        %2071 = vmatpush.msra.mxu0 0.0
        %2072 = vmatpush.msra.mxu0 0.0
        %2073 = vmatpush.msra.mxu0 0.0
        %2074 = vmatpush.msra.mxu0 0.0
        %2075 = vmatpush.msra.mxu0 0.0
        %2076 = vmatpush.msra.mxu0 0.0
        %2077 = vmatpush.msra.mxu0 0.0
        %2078 = vmatpush.msra.mxu0 0.0
        %2079 = vmatpush.msra.mxu0 0.0
        %2080 = vmatpush.msra.mxu0 0.0
        %2081 = vmatpush.msra.mxu0 0.0
        %2082 = vmatpush.msra.mxu0 0.0
        %v2083 = vand.u32 %v1766, 4294901760
        %v2084 = vsub.f32 %v1766, %v2083
        %v2085 = vand.u32 %v2084, 4294901760
        %v2086 = vsub.f32 %v2084, %v2085
        %v2087 = vand.u32 %v2086, 4294901760
        %2088 = vmatpush.msra.mxu0 %v2087
        %v2089 = vand.u32 %v1762, 4294901760
        %v2090 = vsub.f32 %v1762, %v2089
        %v2091 = vand.u32 %v2090, 4294901760
        %v2092 = vsub.f32 %v2090, %v2091
        %v2093 = vand.u32 %v2092, 4294901760
        %2094 = vmatpush.msra.mxu0 %v2093
        %v2095 = vand.u32 %v2029, 4294901760
        %2096 = vmatmul.f32.gmra.mxu0 %v2095
        %v2097 = vpop.f32.mrf.mxu0
        %v2098 = vadd.f32 %v2059, %v2097
        %v2099 = vand.u32 %v2032, 4294901760
        %2100 = vmatmul.f32.gmra.mxu0 %v2099
        %v2101 = vpop.f32.mrf.mxu0
        %v2102 = vadd.f32 %v2067, %v2101
        %2103 = vdwg.mxu0
        %2104 = vmatpush.msra.mxu0 0.0
        %2105 = vmatpush.msra.mxu0 0.0
        %2106 = vmatpush.msra.mxu0 0.0
        %2107 = vmatpush.msra.mxu0 0.0
        %2108 = vmatpush.msra.mxu0 0.0
        %2109 = vmatpush.msra.mxu0 0.0
        %2110 = vmatpush.msra.mxu0 0.0
        %2111 = vmatpush.msra.mxu0 0.0
        %2112 = vmatpush.msra.mxu0 0.0
        %2113 = vmatpush.msra.mxu0 0.0
        %2114 = vmatpush.msra.mxu0 0.0
        %2115 = vmatpush.msra.mxu0 0.0
        %2116 = vmatpush.msra.mxu0 0.0
        %2117 = vmatpush.msra.mxu0 0.0
        %v2118 = vand.u32 %v1766, 4294901760
        %v2119 = vsub.f32 %v1766, %v2118
        %2120 = vmatpush.msra.mxu0 %v2119
        %v2121 = vand.u32 %v1762, 4294901760
        %v2122 = vsub.f32 %v1762, %v2121
        %2123 = vmatpush.msra.mxu0 %v2122
        %v2124 = vand.u32 %v2029, 4294901760
        %v2125 = vsub.f32 %v2029, %v2124
        %2126 = vmatmul.f32.gmra.mxu0 %v2125
        %v2127 = vpop.f32.mrf.mxu0
        %v2128 = vadd.f32 %v2098, %v2127
        %v2129 = vand.u32 %v2032, 4294901760
        %v2130 = vsub.f32 %v2032, %v2129
        %2131 = vmatmul.f32.gmra.mxu0 %v2130
        %v2132 = vpop.f32.mrf.mxu0
        %v2133 = vadd.f32 %v2102, %v2132
        %2134 = vdwg.mxu0
        %2135 = vmatpush.msra.mxu0 0.0
        %2136 = vmatpush.msra.mxu0 0.0
        %2137 = vmatpush.msra.mxu0 0.0
        %2138 = vmatpush.msra.mxu0 0.0
        %2139 = vmatpush.msra.mxu0 0.0
        %2140 = vmatpush.msra.mxu0 0.0
        %2141 = vmatpush.msra.mxu0 0.0
        %2142 = vmatpush.msra.mxu0 0.0
        %2143 = vmatpush.msra.mxu0 0.0
        %2144 = vmatpush.msra.mxu0 0.0
        %2145 = vmatpush.msra.mxu0 0.0
        %2146 = vmatpush.msra.mxu0 0.0
        %2147 = vmatpush.msra.mxu0 0.0
        %2148 = vmatpush.msra.mxu0 0.0
        %v2149 = vand.u32 %v1766, 4294901760
        %2150 = vmatpush.msra.mxu0 %v2149
        %v2151 = vand.u32 %v1762, 4294901760
        %2152 = vmatpush.msra.mxu0 %v2151
        %v2153 = vand.u32 %v2029, 4294901760
        %v2154 = vsub.f32 %v2029, %v2153
        %v2155 = vand.u32 %v2154, 4294901760
        %2156 = vmatmul.f32.gmra.mxu0 %v2155
        %v2157 = vpop.f32.mrf.mxu0
        %v2158 = vadd.f32 %v2128, %v2157
        %v2159 = vand.u32 %v2032, 4294901760
        %v2160 = vsub.f32 %v2032, %v2159
        %v2161 = vand.u32 %v2160, 4294901760
        %2162 = vmatmul.f32.gmra.mxu0 %v2161
        %v2163 = vpop.f32.mrf.mxu0
        %v2164 = vadd.f32 %v2133, %v2163
        %2165 = vdwg.mxu0
        %2166 = vmatpush.msra.mxu0 0.0
        %2167 = vmatpush.msra.mxu0 0.0
        %2168 = vmatpush.msra.mxu0 0.0
        %2169 = vmatpush.msra.mxu0 0.0
        %2170 = vmatpush.msra.mxu0 0.0
        %2171 = vmatpush.msra.mxu0 0.0
        %2172 = vmatpush.msra.mxu0 0.0
        %2173 = vmatpush.msra.mxu0 0.0
        %2174 = vmatpush.msra.mxu0 0.0
        %2175 = vmatpush.msra.mxu0 0.0
        %2176 = vmatpush.msra.mxu0 0.0
        %2177 = vmatpush.msra.mxu0 0.0
        %2178 = vmatpush.msra.mxu0 0.0
        %2179 = vmatpush.msra.mxu0 0.0
        %v2180 = vand.u32 %v1766, 4294901760
        %v2181 = vsub.f32 %v1766, %v2180
        %v2182 = vand.u32 %v2181, 4294901760
        %2183 = vmatpush.msra.mxu0 %v2182
        %v2184 = vand.u32 %v1762, 4294901760
        %v2185 = vsub.f32 %v1762, %v2184
        %v2186 = vand.u32 %v2185, 4294901760
        %2187 = vmatpush.msra.mxu0 %v2186
        %v2188 = vand.u32 %v2029, 4294901760
        %2189 = vmatmul.f32.gmra.mxu0 %v2188
        %v2190 = vpop.f32.mrf.mxu0
        %v2191 = vadd.f32 %v2158, %v2190
        %v2192 = vand.u32 %v2032, 4294901760
        %2193 = vmatmul.f32.gmra.mxu0 %v2192
        %v2194 = vpop.f32.mrf.mxu0
        %v2195 = vadd.f32 %v2164, %v2194
        %2196 = vdwg.mxu0
        %2197 = vmatpush.msra.mxu0 0.0
        %2198 = vmatpush.msra.mxu0 0.0
        %2199 = vmatpush.msra.mxu0 0.0
        %2200 = vmatpush.msra.mxu0 0.0
        %2201 = vmatpush.msra.mxu0 0.0
        %2202 = vmatpush.msra.mxu0 0.0
        %2203 = vmatpush.msra.mxu0 0.0
        %2204 = vmatpush.msra.mxu0 0.0
        %2205 = vmatpush.msra.mxu0 0.0
        %2206 = vmatpush.msra.mxu0 0.0
        %2207 = vmatpush.msra.mxu0 0.0
        %2208 = vmatpush.msra.mxu0 0.0
        %2209 = vmatpush.msra.mxu0 0.0
        %2210 = vmatpush.msra.mxu0 0.0
        %v2211 = vand.u32 %v1766, 4294901760
        %2212 = vmatpush.msra.mxu0 %v2211
        %v2213 = vand.u32 %v1762, 4294901760
        %2214 = vmatpush.msra.mxu0 %v2213
        %v2215 = vand.u32 %v2029, 4294901760
        %2216 = vmatmul.f32.gmra.mxu0 %v2215
        %v2217 = vpop.f32.mrf.mxu0
        %v2218 = vadd.f32 %v2191, %v2217
        %v2219 = vand.u32 %v2032, 4294901760
        %2220 = vmatmul.f32.gmra.mxu0 %v2219
        %v2221 = vpop.f32.mrf.mxu0
        %v2222 = vadd.f32 %v2195, %v2221
        %2223 = vdwg.mxu0
        %v2224 = vld [vmem:[%s4] sm:$0xff]
        %v2225 = vld [vmem:[%s4 + $0x8] sm:$0xff]
        %v2226 = vld [vmem:[%s4 + $0x10] sm:$0xff]
        %v2227 = vld [vmem:[%s4 + $0x18] sm:$0xff]
        %v2228 = vld [vmem:[#allocation8] sm:$0x1]
        %v2230 = vperm.slane %v2228, 0
        %v2233 = vsel %vm1768, %v2218, 0
        %v2236 = vsel %vm1768, %v2222, 0
        %2238 = vmatpush.msra.mxu0 0.0
        %2239 = vmatpush.msra.mxu0 0.0
        %2240 = vmatpush.msra.mxu0 0.0
        %2241 = vmatpush.msra.mxu0 0.0
        %2242 = vmatpush.msra.mxu0 0.0
        %2243 = vmatpush.msra.mxu0 0.0
        %2244 = vmatpush.msra.mxu0 0.0
        %2245 = vmatpush.msra.mxu0 0.0
        %2246 = vmatpush.msra.mxu0 0.0
        %2247 = vmatpush.msra.mxu0 0.0
        %2248 = vmatpush.msra.mxu0 0.0
        %2249 = vmatpush.msra.mxu0 0.0
        %v2250 = vand.u32 %v2227, 4294901760
        %2251 = vmatpush.msra.mxu0 %v2250
        %v2252 = vand.u32 %v2226, 4294901760
        %2253 = vmatpush.msra.mxu0 %v2252
        %v2254 = vand.u32 %v2225, 4294901760
        %2255 = vmatpush.msra.mxu0 %v2254
        %v2256 = vand.u32 %v2224, 4294901760
        %2257 = vmatpush.msra.mxu0 %v2256
        %v2258 = vand.u32 %v2233, 4294901760
        %v2259 = vsub.f32 %v2233, %v2258
        %v2260 = vand.u32 %v2259, 4294901760
        %v2261 = vsub.f32 %v2259, %v2260
        %v2262 = vand.u32 %v2261, 4294901760
        %2263 = vmatmul.f32.gmra.mxu0 %v2262
        %v2264 = vpop.f32.mrf.mxu0
        %v2265 = vadd.f32 %v2230, %v2264
        %v2266 = vand.u32 %v2236, 4294901760
        %v2267 = vsub.f32 %v2236, %v2266
        %v2268 = vand.u32 %v2267, 4294901760
        %v2269 = vsub.f32 %v2267, %v2268
        %v2270 = vand.u32 %v2269, 4294901760
        %2271 = vmatmul.f32.gmra.mxu0 %v2270
        %v2272 = vpop.f32.mrf.mxu0
        %v2273 = vadd.f32 %v2230, %v2272
        %2274 = vdwg.mxu0
        %2275 = vmatpush.msra.mxu0 0.0
        %2276 = vmatpush.msra.mxu0 0.0
        %2277 = vmatpush.msra.mxu0 0.0
        %2278 = vmatpush.msra.mxu0 0.0
        %2279 = vmatpush.msra.mxu0 0.0
        %2280 = vmatpush.msra.mxu0 0.0
        %2281 = vmatpush.msra.mxu0 0.0
        %2282 = vmatpush.msra.mxu0 0.0
        %2283 = vmatpush.msra.mxu0 0.0
        %2284 = vmatpush.msra.mxu0 0.0
        %2285 = vmatpush.msra.mxu0 0.0
        %2286 = vmatpush.msra.mxu0 0.0
        %v2287 = vand.u32 %v2227, 4294901760
        %v2288 = vsub.f32 %v2227, %v2287
        %v2289 = vand.u32 %v2288, 4294901760
        %v2290 = vsub.f32 %v2288, %v2289
        %v2291 = vand.u32 %v2290, 4294901760
        %2292 = vmatpush.msra.mxu0 %v2291
        %v2293 = vand.u32 %v2226, 4294901760
        %v2294 = vsub.f32 %v2226, %v2293
        %v2295 = vand.u32 %v2294, 4294901760
        %v2296 = vsub.f32 %v2294, %v2295
        %v2297 = vand.u32 %v2296, 4294901760
        %2298 = vmatpush.msra.mxu0 %v2297
        %v2299 = vand.u32 %v2225, 4294901760
        %v2300 = vsub.f32 %v2225, %v2299
        %v2301 = vand.u32 %v2300, 4294901760
        %v2302 = vsub.f32 %v2300, %v2301
        %v2303 = vand.u32 %v2302, 4294901760
        %2304 = vmatpush.msra.mxu0 %v2303
        %v2305 = vand.u32 %v2224, 4294901760
        %v2306 = vsub.f32 %v2224, %v2305
        %v2307 = vand.u32 %v2306, 4294901760
        %v2308 = vsub.f32 %v2306, %v2307
        %v2309 = vand.u32 %v2308, 4294901760
        %2310 = vmatpush.msra.mxu0 %v2309
        %v2311 = vand.u32 %v2233, 4294901760
        %2312 = vmatmul.f32.gmra.mxu0 %v2311
        %v2313 = vpop.f32.mrf.mxu0
        %v2314 = vadd.f32 %v2265, %v2313
        %v2315 = vand.u32 %v2236, 4294901760
        %2316 = vmatmul.f32.gmra.mxu0 %v2315
        %v2317 = vpop.f32.mrf.mxu0
        %v2318 = vadd.f32 %v2273, %v2317
        %2319 = vdwg.mxu0
        %2320 = vmatpush.msra.mxu0 0.0
        %2321 = vmatpush.msra.mxu0 0.0
        %2322 = vmatpush.msra.mxu0 0.0
        %2323 = vmatpush.msra.mxu0 0.0
        %2324 = vmatpush.msra.mxu0 0.0
        %2325 = vmatpush.msra.mxu0 0.0
        %2326 = vmatpush.msra.mxu0 0.0
        %2327 = vmatpush.msra.mxu0 0.0
        %2328 = vmatpush.msra.mxu0 0.0
        %2329 = vmatpush.msra.mxu0 0.0
        %2330 = vmatpush.msra.mxu0 0.0
        %2331 = vmatpush.msra.mxu0 0.0
        %v2332 = vand.u32 %v2227, 4294901760
        %v2333 = vsub.f32 %v2227, %v2332
        %2334 = vmatpush.msra.mxu0 %v2333
        %v2335 = vand.u32 %v2226, 4294901760
        %v2336 = vsub.f32 %v2226, %v2335
        %2337 = vmatpush.msra.mxu0 %v2336
        %v2338 = vand.u32 %v2225, 4294901760
        %v2339 = vsub.f32 %v2225, %v2338
        %2340 = vmatpush.msra.mxu0 %v2339
        %v2341 = vand.u32 %v2224, 4294901760
        %v2342 = vsub.f32 %v2224, %v2341
        %2343 = vmatpush.msra.mxu0 %v2342
        %v2344 = vand.u32 %v2233, 4294901760
        %v2345 = vsub.f32 %v2233, %v2344
        %2346 = vmatmul.f32.gmra.mxu0 %v2345
        %v2347 = vpop.f32.mrf.mxu0
        %v2348 = vadd.f32 %v2314, %v2347
        %v2349 = vand.u32 %v2236, 4294901760
        %v2350 = vsub.f32 %v2236, %v2349
        %2351 = vmatmul.f32.gmra.mxu0 %v2350
        %v2352 = vpop.f32.mrf.mxu0
        %v2353 = vadd.f32 %v2318, %v2352
        %2354 = vdwg.mxu0
        %2355 = vmatpush.msra.mxu0 0.0
        %2356 = vmatpush.msra.mxu0 0.0
        %2357 = vmatpush.msra.mxu0 0.0
        %2358 = vmatpush.msra.mxu0 0.0
        %2359 = vmatpush.msra.mxu0 0.0
        %2360 = vmatpush.msra.mxu0 0.0
        %2361 = vmatpush.msra.mxu0 0.0
        %2362 = vmatpush.msra.mxu0 0.0
        %2363 = vmatpush.msra.mxu0 0.0
        %2364 = vmatpush.msra.mxu0 0.0
        %2365 = vmatpush.msra.mxu0 0.0
        %2366 = vmatpush.msra.mxu0 0.0
        %v2367 = vand.u32 %v2227, 4294901760
        %2368 = vmatpush.msra.mxu0 %v2367
        %v2369 = vand.u32 %v2226, 4294901760
        %2370 = vmatpush.msra.mxu0 %v2369
        %v2371 = vand.u32 %v2225, 4294901760
        %2372 = vmatpush.msra.mxu0 %v2371
        %v2373 = vand.u32 %v2224, 4294901760
        %2374 = vmatpush.msra.mxu0 %v2373
        %v2375 = vand.u32 %v2233, 4294901760
        %v2376 = vsub.f32 %v2233, %v2375
        %v2377 = vand.u32 %v2376, 4294901760
        %2378 = vmatmul.f32.gmra.mxu0 %v2377
        %v2379 = vpop.f32.mrf.mxu0
        %v2380 = vadd.f32 %v2348, %v2379
        %v2381 = vand.u32 %v2236, 4294901760
        %v2382 = vsub.f32 %v2236, %v2381
        %v2383 = vand.u32 %v2382, 4294901760
        %2384 = vmatmul.f32.gmra.mxu0 %v2383
        %v2385 = vpop.f32.mrf.mxu0
        %v2386 = vadd.f32 %v2353, %v2385
        %2387 = vdwg.mxu0
        %2388 = vmatpush.msra.mxu0 0.0
        %2389 = vmatpush.msra.mxu0 0.0
        %2390 = vmatpush.msra.mxu0 0.0
        %2391 = vmatpush.msra.mxu0 0.0
        %2392 = vmatpush.msra.mxu0 0.0
        %2393 = vmatpush.msra.mxu0 0.0
        %2394 = vmatpush.msra.mxu0 0.0
        %2395 = vmatpush.msra.mxu0 0.0
        %2396 = vmatpush.msra.mxu0 0.0
        %2397 = vmatpush.msra.mxu0 0.0
        %2398 = vmatpush.msra.mxu0 0.0
        %2399 = vmatpush.msra.mxu0 0.0
        %v2400 = vand.u32 %v2227, 4294901760
        %v2401 = vsub.f32 %v2227, %v2400
        %v2402 = vand.u32 %v2401, 4294901760
        %2403 = vmatpush.msra.mxu0 %v2402
        %v2404 = vand.u32 %v2226, 4294901760
        %v2405 = vsub.f32 %v2226, %v2404
        %v2406 = vand.u32 %v2405, 4294901760
        %2407 = vmatpush.msra.mxu0 %v2406
        %v2408 = vand.u32 %v2225, 4294901760
        %v2409 = vsub.f32 %v2225, %v2408
        %v2410 = vand.u32 %v2409, 4294901760
        %2411 = vmatpush.msra.mxu0 %v2410
        %v2412 = vand.u32 %v2224, 4294901760
        %v2413 = vsub.f32 %v2224, %v2412
        %v2414 = vand.u32 %v2413, 4294901760
        %2415 = vmatpush.msra.mxu0 %v2414
        %v2416 = vand.u32 %v2233, 4294901760
        %2417 = vmatmul.f32.gmra.mxu0 %v2416
        %v2418 = vpop.f32.mrf.mxu0
        %v2419 = vadd.f32 %v2380, %v2418
        %v2420 = vand.u32 %v2236, 4294901760
        %2421 = vmatmul.f32.gmra.mxu0 %v2420
        %v2422 = vpop.f32.mrf.mxu0
        %v2423 = vadd.f32 %v2386, %v2422
        %2424 = vdwg.mxu0
        %2425 = vmatpush.msra.mxu0 0.0
        %2426 = vmatpush.msra.mxu0 0.0
        %2427 = vmatpush.msra.mxu0 0.0
        %2428 = vmatpush.msra.mxu0 0.0
        %2429 = vmatpush.msra.mxu0 0.0
        %2430 = vmatpush.msra.mxu0 0.0
        %2431 = vmatpush.msra.mxu0 0.0
        %2432 = vmatpush.msra.mxu0 0.0
        %2433 = vmatpush.msra.mxu0 0.0
        %2434 = vmatpush.msra.mxu0 0.0
        %2435 = vmatpush.msra.mxu0 0.0
        %2436 = vmatpush.msra.mxu0 0.0
        %v2437 = vand.u32 %v2227, 4294901760
        %2438 = vmatpush.msra.mxu0 %v2437
        %v2439 = vand.u32 %v2226, 4294901760
        %2440 = vmatpush.msra.mxu0 %v2439
        %v2441 = vand.u32 %v2225, 4294901760
        %2442 = vmatpush.msra.mxu0 %v2441
        %v2443 = vand.u32 %v2224, 4294901760
        %2444 = vmatpush.msra.mxu0 %v2443
        %v2445 = vand.u32 %v2233, 4294901760
        %2446 = vmatmul.f32.gmra.mxu0 %v2445
        %v2447 = vpop.f32.mrf.mxu0
        %v2448 = vadd.f32 %v2419, %v2447
        %v2449 = vand.u32 %v2236, 4294901760
        %2450 = vmatmul.f32.gmra.mxu0 %v2449
        %v2451 = vpop.f32.mrf.mxu0
        %v2452 = vadd.f32 %v2423, %v2451
        %2453 = vdwg.mxu0
        %v2454 = vld [vmem:[%s6] sm:$0xff]
        %v2455 = vld [vmem:[%s6 + $0x8] sm:$0xff]
        %v2456 = vld [vmem:[%s6 + $0x10] sm:$0xff]
        %v2457 = vld [vmem:[%s6 + $0x18] sm:$0xff]
        %v2458 = vld [vmem:[%s6 + $0x20] sm:$0xff]
        %v2459 = vld [vmem:[%s6 + $0x28] sm:$0xff]
        %v2460 = vld [vmem:[%s6 + $0x30] sm:$0xff]
        %v2461 = vld [vmem:[%s6 + $0x38] sm:$0xff]
        %v2462 = vld [vmem:[%s6 + $0x40] sm:$0xff]
        %v2463 = vld [vmem:[%s6 + $0x48] sm:$0xff]
        %v2464 = vld [vmem:[%s6 + $0x50] sm:$0xff]
        %v2465 = vld [vmem:[%s6 + $0x58] sm:$0xff]
        %v2466 = vld [vmem:[%s6 + $0x60] sm:$0xff]
        %v2467 = vld [vmem:[%s6 + $0x68] sm:$0xff]
        %v2468 = vld [vmem:[%s6 + $0x70] sm:$0xff]
        %v2469 = vld [vmem:[%s6 + $0x78] sm:$0xff]
        %v2470 = vld [vmem:[#allocation10] sm:$0x1]
        %v2472 = vperm.slane %v2470, 0
        %v2474 = vand.u32 %v2469, 4294901760
        %2475 = vmatpush.msra.mxu0 %v2474
        %v2476 = vand.u32 %v2468, 4294901760
        %2477 = vmatpush.msra.mxu0 %v2476
        %v2478 = vand.u32 %v2467, 4294901760
        %2479 = vmatpush.msra.mxu0 %v2478
        %v2480 = vand.u32 %v2466, 4294901760
        %2481 = vmatpush.msra.mxu0 %v2480
        %v2482 = vand.u32 %v2465, 4294901760
        %2483 = vmatpush.msra.mxu0 %v2482
        %v2484 = vand.u32 %v2464, 4294901760
        %2485 = vmatpush.msra.mxu0 %v2484
        %v2486 = vand.u32 %v2463, 4294901760
        %2487 = vmatpush.msra.mxu0 %v2486
        %v2488 = vand.u32 %v2462, 4294901760
        %2489 = vmatpush.msra.mxu0 %v2488
        %v2490 = vand.u32 %v2461, 4294901760
        %2491 = vmatpush.msra.mxu0 %v2490
        %v2492 = vand.u32 %v2460, 4294901760
        %2493 = vmatpush.msra.mxu0 %v2492
        %v2494 = vand.u32 %v2459, 4294901760
        %2495 = vmatpush.msra.mxu0 %v2494
        %v2496 = vand.u32 %v2458, 4294901760
        %2497 = vmatpush.msra.mxu0 %v2496
        %v2498 = vand.u32 %v2457, 4294901760
        %2499 = vmatpush.msra.mxu0 %v2498
        %v2500 = vand.u32 %v2456, 4294901760
        %2501 = vmatpush.msra.mxu0 %v2500
        %v2502 = vand.u32 %v2455, 4294901760
        %2503 = vmatpush.msra.mxu0 %v2502
        %v2504 = vand.u32 %v2454, 4294901760
        %2505 = vmatpush.msra.mxu0 %v2504
        %v2506 = vand.u32 %v2448, 4294901760
        %v2507 = vsub.f32 %v2448, %v2506
        %v2508 = vand.u32 %v2507, 4294901760
        %v2509 = vsub.f32 %v2507, %v2508
        %v2510 = vand.u32 %v2509, 4294901760
        %2511 = vmatmul.f32.gmra.mxu0 %v2510
        %v2512 = vpop.f32.mrf.mxu0
        %v2513 = vadd.f32 %v2472, %v2512
        %v2514 = vand.u32 %v2452, 4294901760
        %v2515 = vsub.f32 %v2452, %v2514
        %v2516 = vand.u32 %v2515, 4294901760
        %v2517 = vsub.f32 %v2515, %v2516
        %v2518 = vand.u32 %v2517, 4294901760
        %2519 = vmatmul.f32.gmra.mxu0 %v2518
        %v2520 = vpop.f32.mrf.mxu0
        %v2521 = vadd.f32 %v2472, %v2520
        %2522 = vdwg.mxu0
        %v2523 = vand.u32 %v2469, 4294901760
        %v2524 = vsub.f32 %v2469, %v2523
        %v2525 = vand.u32 %v2524, 4294901760
        %v2526 = vsub.f32 %v2524, %v2525
        %v2527 = vand.u32 %v2526, 4294901760
        %2528 = vmatpush.msra.mxu0 %v2527
        %v2529 = vand.u32 %v2468, 4294901760
        %v2530 = vsub.f32 %v2468, %v2529
        %v2531 = vand.u32 %v2530, 4294901760
        %v2532 = vsub.f32 %v2530, %v2531
        %v2533 = vand.u32 %v2532, 4294901760
        %2534 = vmatpush.msra.mxu0 %v2533
        %v2535 = vand.u32 %v2467, 4294901760
        %v2536 = vsub.f32 %v2467, %v2535
        %v2537 = vand.u32 %v2536, 4294901760
        %v2538 = vsub.f32 %v2536, %v2537
        %v2539 = vand.u32 %v2538, 4294901760
        %2540 = vmatpush.msra.mxu0 %v2539
        %v2541 = vand.u32 %v2466, 4294901760
        %v2542 = vsub.f32 %v2466, %v2541
        %v2543 = vand.u32 %v2542, 4294901760
        %v2544 = vsub.f32 %v2542, %v2543
        %v2545 = vand.u32 %v2544, 4294901760
        %2546 = vmatpush.msra.mxu0 %v2545
        %v2547 = vand.u32 %v2465, 4294901760
        %v2548 = vsub.f32 %v2465, %v2547
        %v2549 = vand.u32 %v2548, 4294901760
        %v2550 = vsub.f32 %v2548, %v2549
        %v2551 = vand.u32 %v2550, 4294901760
        %2552 = vmatpush.msra.mxu0 %v2551
        %v2553 = vand.u32 %v2464, 4294901760
        %v2554 = vsub.f32 %v2464, %v2553
        %v2555 = vand.u32 %v2554, 4294901760
        %v2556 = vsub.f32 %v2554, %v2555
        %v2557 = vand.u32 %v2556, 4294901760
        %2558 = vmatpush.msra.mxu0 %v2557
        %v2559 = vand.u32 %v2463, 4294901760
        %v2560 = vsub.f32 %v2463, %v2559
        %v2561 = vand.u32 %v2560, 4294901760
        %v2562 = vsub.f32 %v2560, %v2561
        %v2563 = vand.u32 %v2562, 4294901760
        %2564 = vmatpush.msra.mxu0 %v2563
        %v2565 = vand.u32 %v2462, 4294901760
        %v2566 = vsub.f32 %v2462, %v2565
        %v2567 = vand.u32 %v2566, 4294901760
        %v2568 = vsub.f32 %v2566, %v2567
        %v2569 = vand.u32 %v2568, 4294901760
        %2570 = vmatpush.msra.mxu0 %v2569
        %v2571 = vand.u32 %v2461, 4294901760
        %v2572 = vsub.f32 %v2461, %v2571
        %v2573 = vand.u32 %v2572, 4294901760
        %v2574 = vsub.f32 %v2572, %v2573
        %v2575 = vand.u32 %v2574, 4294901760
        %2576 = vmatpush.msra.mxu0 %v2575
        %v2577 = vand.u32 %v2460, 4294901760
        %v2578 = vsub.f32 %v2460, %v2577
        %v2579 = vand.u32 %v2578, 4294901760
        %v2580 = vsub.f32 %v2578, %v2579
        %v2581 = vand.u32 %v2580, 4294901760
        %2582 = vmatpush.msra.mxu0 %v2581
        %v2583 = vand.u32 %v2459, 4294901760
        %v2584 = vsub.f32 %v2459, %v2583
        %v2585 = vand.u32 %v2584, 4294901760
        %v2586 = vsub.f32 %v2584, %v2585
        %v2587 = vand.u32 %v2586, 4294901760
        %2588 = vmatpush.msra.mxu0 %v2587
        %v2589 = vand.u32 %v2458, 4294901760
        %v2590 = vsub.f32 %v2458, %v2589
        %v2591 = vand.u32 %v2590, 4294901760
        %v2592 = vsub.f32 %v2590, %v2591
        %v2593 = vand.u32 %v2592, 4294901760
        %2594 = vmatpush.msra.mxu0 %v2593
        %v2595 = vand.u32 %v2457, 4294901760
        %v2596 = vsub.f32 %v2457, %v2595
        %v2597 = vand.u32 %v2596, 4294901760
        %v2598 = vsub.f32 %v2596, %v2597
        %v2599 = vand.u32 %v2598, 4294901760
        %2600 = vmatpush.msra.mxu0 %v2599
        %v2601 = vand.u32 %v2456, 4294901760
        %v2602 = vsub.f32 %v2456, %v2601
        %v2603 = vand.u32 %v2602, 4294901760
        %v2604 = vsub.f32 %v2602, %v2603
        %v2605 = vand.u32 %v2604, 4294901760
        %2606 = vmatpush.msra.mxu0 %v2605
        %v2607 = vand.u32 %v2455, 4294901760
        %v2608 = vsub.f32 %v2455, %v2607
        %v2609 = vand.u32 %v2608, 4294901760
        %v2610 = vsub.f32 %v2608, %v2609
        %v2611 = vand.u32 %v2610, 4294901760
        %2612 = vmatpush.msra.mxu0 %v2611
        %v2613 = vand.u32 %v2454, 4294901760
        %v2614 = vsub.f32 %v2454, %v2613
        %v2615 = vand.u32 %v2614, 4294901760
        %v2616 = vsub.f32 %v2614, %v2615
        %v2617 = vand.u32 %v2616, 4294901760
        %2618 = vmatpush.msra.mxu0 %v2617
        %v2619 = vand.u32 %v2448, 4294901760
        %2620 = vmatmul.f32.gmra.mxu0 %v2619
        %v2621 = vpop.f32.mrf.mxu0
        %v2622 = vadd.f32 %v2513, %v2621
        %v2623 = vand.u32 %v2452, 4294901760
        %2624 = vmatmul.f32.gmra.mxu0 %v2623
        %v2625 = vpop.f32.mrf.mxu0
        %v2626 = vadd.f32 %v2521, %v2625
        %2627 = vdwg.mxu0
        %v2628 = vand.u32 %v2469, 4294901760
        %v2629 = vsub.f32 %v2469, %v2628
        %2630 = vmatpush.msra.mxu0 %v2629
        %v2631 = vand.u32 %v2468, 4294901760
        %v2632 = vsub.f32 %v2468, %v2631
        %2633 = vmatpush.msra.mxu0 %v2632
        %v2634 = vand.u32 %v2467, 4294901760
        %v2635 = vsub.f32 %v2467, %v2634
        %2636 = vmatpush.msra.mxu0 %v2635
        %v2637 = vand.u32 %v2466, 4294901760
        %v2638 = vsub.f32 %v2466, %v2637
        %2639 = vmatpush.msra.mxu0 %v2638
        %v2640 = vand.u32 %v2465, 4294901760
        %v2641 = vsub.f32 %v2465, %v2640
        %2642 = vmatpush.msra.mxu0 %v2641
        %v2643 = vand.u32 %v2464, 4294901760
        %v2644 = vsub.f32 %v2464, %v2643
        %2645 = vmatpush.msra.mxu0 %v2644
        %v2646 = vand.u32 %v2463, 4294901760
        %v2647 = vsub.f32 %v2463, %v2646
        %2648 = vmatpush.msra.mxu0 %v2647
        %v2649 = vand.u32 %v2462, 4294901760
        %v2650 = vsub.f32 %v2462, %v2649
        %2651 = vmatpush.msra.mxu0 %v2650
        %v2652 = vand.u32 %v2461, 4294901760
        %v2653 = vsub.f32 %v2461, %v2652
        %2654 = vmatpush.msra.mxu0 %v2653
        %v2655 = vand.u32 %v2460, 4294901760
        %v2656 = vsub.f32 %v2460, %v2655
        %2657 = vmatpush.msra.mxu0 %v2656
        %v2658 = vand.u32 %v2459, 4294901760
        %v2659 = vsub.f32 %v2459, %v2658
        %2660 = vmatpush.msra.mxu0 %v2659
        %v2661 = vand.u32 %v2458, 4294901760
        %v2662 = vsub.f32 %v2458, %v2661
        %2663 = vmatpush.msra.mxu0 %v2662
        %v2664 = vand.u32 %v2457, 4294901760
        %v2665 = vsub.f32 %v2457, %v2664
        %2666 = vmatpush.msra.mxu0 %v2665
        %v2667 = vand.u32 %v2456, 4294901760
        %v2668 = vsub.f32 %v2456, %v2667
        %2669 = vmatpush.msra.mxu0 %v2668
        %v2670 = vand.u32 %v2455, 4294901760
        %v2671 = vsub.f32 %v2455, %v2670
        %2672 = vmatpush.msra.mxu0 %v2671
        %v2673 = vand.u32 %v2454, 4294901760
        %v2674 = vsub.f32 %v2454, %v2673
        %2675 = vmatpush.msra.mxu0 %v2674
        %v2676 = vand.u32 %v2448, 4294901760
        %v2677 = vsub.f32 %v2448, %v2676
        %2678 = vmatmul.f32.gmra.mxu0 %v2677
        %v2679 = vpop.f32.mrf.mxu0
        %v2680 = vadd.f32 %v2622, %v2679
        %v2681 = vand.u32 %v2452, 4294901760
        %v2682 = vsub.f32 %v2452, %v2681
        %2683 = vmatmul.f32.gmra.mxu0 %v2682
        %v2684 = vpop.f32.mrf.mxu0
        %v2685 = vadd.f32 %v2626, %v2684
        %2686 = vdwg.mxu0
        %v2687 = vand.u32 %v2469, 4294901760
        %2688 = vmatpush.msra.mxu0 %v2687
        %v2689 = vand.u32 %v2468, 4294901760
        %2690 = vmatpush.msra.mxu0 %v2689
        %v2691 = vand.u32 %v2467, 4294901760
        %2692 = vmatpush.msra.mxu0 %v2691
        %v2693 = vand.u32 %v2466, 4294901760
        %2694 = vmatpush.msra.mxu0 %v2693
        %v2695 = vand.u32 %v2465, 4294901760
        %2696 = vmatpush.msra.mxu0 %v2695
        %v2697 = vand.u32 %v2464, 4294901760
        %2698 = vmatpush.msra.mxu0 %v2697
        %v2699 = vand.u32 %v2463, 4294901760
        %2700 = vmatpush.msra.mxu0 %v2699
        %v2701 = vand.u32 %v2462, 4294901760
        %2702 = vmatpush.msra.mxu0 %v2701
        %v2703 = vand.u32 %v2461, 4294901760
        %2704 = vmatpush.msra.mxu0 %v2703
        %v2705 = vand.u32 %v2460, 4294901760
        %2706 = vmatpush.msra.mxu0 %v2705
        %v2707 = vand.u32 %v2459, 4294901760
        %2708 = vmatpush.msra.mxu0 %v2707
        %v2709 = vand.u32 %v2458, 4294901760
        %2710 = vmatpush.msra.mxu0 %v2709
        %v2711 = vand.u32 %v2457, 4294901760
        %2712 = vmatpush.msra.mxu0 %v2711
        %v2713 = vand.u32 %v2456, 4294901760
        %2714 = vmatpush.msra.mxu0 %v2713
        %v2715 = vand.u32 %v2455, 4294901760
        %2716 = vmatpush.msra.mxu0 %v2715
        %v2717 = vand.u32 %v2454, 4294901760
        %2718 = vmatpush.msra.mxu0 %v2717
        %v2719 = vand.u32 %v2448, 4294901760
        %v2720 = vsub.f32 %v2448, %v2719
        %v2721 = vand.u32 %v2720, 4294901760
        %2722 = vmatmul.f32.gmra.mxu0 %v2721
        %v2723 = vpop.f32.mrf.mxu0
        %v2724 = vadd.f32 %v2680, %v2723
        %v2725 = vand.u32 %v2452, 4294901760
        %v2726 = vsub.f32 %v2452, %v2725
        %v2727 = vand.u32 %v2726, 4294901760
        %2728 = vmatmul.f32.gmra.mxu0 %v2727
        %v2729 = vpop.f32.mrf.mxu0
        %v2730 = vadd.f32 %v2685, %v2729
        %2731 = vdwg.mxu0
        %v2732 = vand.u32 %v2469, 4294901760
        %v2733 = vsub.f32 %v2469, %v2732
        %v2734 = vand.u32 %v2733, 4294901760
        %2735 = vmatpush.msra.mxu0 %v2734
        %v2736 = vand.u32 %v2468, 4294901760
        %v2737 = vsub.f32 %v2468, %v2736
        %v2738 = vand.u32 %v2737, 4294901760
        %2739 = vmatpush.msra.mxu0 %v2738
        %v2740 = vand.u32 %v2467, 4294901760
        %v2741 = vsub.f32 %v2467, %v2740
        %v2742 = vand.u32 %v2741, 4294901760
        %2743 = vmatpush.msra.mxu0 %v2742
        %v2744 = vand.u32 %v2466, 4294901760
        %v2745 = vsub.f32 %v2466, %v2744
        %v2746 = vand.u32 %v2745, 4294901760
        %2747 = vmatpush.msra.mxu0 %v2746
        %v2748 = vand.u32 %v2465, 4294901760
        %v2749 = vsub.f32 %v2465, %v2748
        %v2750 = vand.u32 %v2749, 4294901760
        %2751 = vmatpush.msra.mxu0 %v2750
        %v2752 = vand.u32 %v2464, 4294901760
        %v2753 = vsub.f32 %v2464, %v2752
        %v2754 = vand.u32 %v2753, 4294901760
        %2755 = vmatpush.msra.mxu0 %v2754
        %v2756 = vand.u32 %v2463, 4294901760
        %v2757 = vsub.f32 %v2463, %v2756
        %v2758 = vand.u32 %v2757, 4294901760
        %2759 = vmatpush.msra.mxu0 %v2758
        %v2760 = vand.u32 %v2462, 4294901760
        %v2761 = vsub.f32 %v2462, %v2760
        %v2762 = vand.u32 %v2761, 4294901760
        %2763 = vmatpush.msra.mxu0 %v2762
        %v2764 = vand.u32 %v2461, 4294901760
        %v2765 = vsub.f32 %v2461, %v2764
        %v2766 = vand.u32 %v2765, 4294901760
        %2767 = vmatpush.msra.mxu0 %v2766
        %v2768 = vand.u32 %v2460, 4294901760
        %v2769 = vsub.f32 %v2460, %v2768
        %v2770 = vand.u32 %v2769, 4294901760
        %2771 = vmatpush.msra.mxu0 %v2770
        %v2772 = vand.u32 %v2459, 4294901760
        %v2773 = vsub.f32 %v2459, %v2772
        %v2774 = vand.u32 %v2773, 4294901760
        %2775 = vmatpush.msra.mxu0 %v2774
        %v2776 = vand.u32 %v2458, 4294901760
        %v2777 = vsub.f32 %v2458, %v2776
        %v2778 = vand.u32 %v2777, 4294901760
        %2779 = vmatpush.msra.mxu0 %v2778
        %v2780 = vand.u32 %v2457, 4294901760
        %v2781 = vsub.f32 %v2457, %v2780
        %v2782 = vand.u32 %v2781, 4294901760
        %2783 = vmatpush.msra.mxu0 %v2782
        %v2784 = vand.u32 %v2456, 4294901760
        %v2785 = vsub.f32 %v2456, %v2784
        %v2786 = vand.u32 %v2785, 4294901760
        %2787 = vmatpush.msra.mxu0 %v2786
        %v2788 = vand.u32 %v2455, 4294901760
        %v2789 = vsub.f32 %v2455, %v2788
        %v2790 = vand.u32 %v2789, 4294901760
        %2791 = vmatpush.msra.mxu0 %v2790
        %v2792 = vand.u32 %v2454, 4294901760
        %v2793 = vsub.f32 %v2454, %v2792
        %v2794 = vand.u32 %v2793, 4294901760
        %2795 = vmatpush.msra.mxu0 %v2794
        %v2796 = vand.u32 %v2448, 4294901760
        %2797 = vmatmul.f32.gmra.mxu0 %v2796
        %v2798 = vpop.f32.mrf.mxu0
        %v2799 = vadd.f32 %v2724, %v2798
        %v2800 = vand.u32 %v2452, 4294901760
        %2801 = vmatmul.f32.gmra.mxu0 %v2800
        %v2802 = vpop.f32.mrf.mxu0
        %v2803 = vadd.f32 %v2730, %v2802
        %2804 = vdwg.mxu0
        %v2805 = vand.u32 %v2469, 4294901760
        %2806 = vmatpush.msra.mxu0 %v2805
        %v2807 = vand.u32 %v2468, 4294901760
        %2808 = vmatpush.msra.mxu0 %v2807
        %v2809 = vand.u32 %v2467, 4294901760
        %2810 = vmatpush.msra.mxu0 %v2809
        %v2811 = vand.u32 %v2466, 4294901760
        %2812 = vmatpush.msra.mxu0 %v2811
        %v2813 = vand.u32 %v2465, 4294901760
        %2814 = vmatpush.msra.mxu0 %v2813
        %v2815 = vand.u32 %v2464, 4294901760
        %2816 = vmatpush.msra.mxu0 %v2815
        %v2817 = vand.u32 %v2463, 4294901760
        %2818 = vmatpush.msra.mxu0 %v2817
        %v2819 = vand.u32 %v2462, 4294901760
        %2820 = vmatpush.msra.mxu0 %v2819
        %v2821 = vand.u32 %v2461, 4294901760
        %2822 = vmatpush.msra.mxu0 %v2821
        %v2823 = vand.u32 %v2460, 4294901760
        %2824 = vmatpush.msra.mxu0 %v2823
        %v2825 = vand.u32 %v2459, 4294901760
        %2826 = vmatpush.msra.mxu0 %v2825
        %v2827 = vand.u32 %v2458, 4294901760
        %2828 = vmatpush.msra.mxu0 %v2827
        %v2829 = vand.u32 %v2457, 4294901760
        %2830 = vmatpush.msra.mxu0 %v2829
        %v2831 = vand.u32 %v2456, 4294901760
        %2832 = vmatpush.msra.mxu0 %v2831
        %v2833 = vand.u32 %v2455, 4294901760
        %2834 = vmatpush.msra.mxu0 %v2833
        %v2835 = vand.u32 %v2454, 4294901760
        %2836 = vmatpush.msra.mxu0 %v2835
        %v2837 = vand.u32 %v2448, 4294901760
        %2838 = vmatmul.f32.gmra.mxu0 %v2837
        %v2839 = vpop.f32.mrf.mxu0
        %v2840 = vadd.f32 %v2799, %v2839
        %v2841 = vand.u32 %v2452, 4294901760
        %2842 = vmatmul.f32.gmra.mxu0 %v2841
        %v2843 = vpop.f32.mrf.mxu0
        %v2844 = vadd.f32 %v2803, %v2843
        %2845 = vdwg.mxu0
        %v2846 = vmax.f32 %v2840, 0.0
        %v2847 = vmax.f32 %v2844, 0.0
        %v2848 = vld [vmem:[%s8] sm:$0xff]
        %v2849 = vld [vmem:[%s8 + $0x8] sm:$0xff]
        %v2850 = vld [vmem:[%s8 + $0x10] sm:$0xff]
        %v2851 = vld [vmem:[%s8 + $0x18] sm:$0xff]
        %v2852 = vld [vmem:[%s8 + $0x20] sm:$0xff]
        %v2853 = vld [vmem:[%s8 + $0x28] sm:$0xff]
        %v2854 = vld [vmem:[%s8 + $0x30] sm:$0xff]
        %v2855 = vld [vmem:[%s8 + $0x38] sm:$0xff]
        %v2856 = vld [vmem:[#allocation11] sm:$0x1]
        %v2858 = vperm.slane %v2856, 0
        %vm2860 = vcmask 523264
        %v2862 = vsel %vm2860, %v2846, 0
        %v2865 = vsel %vm2860, %v2847, 0
        %2867 = vmatpush.msra.mxu0 0.0
        %2868 = vmatpush.msra.mxu0 0.0
        %2869 = vmatpush.msra.mxu0 0.0
        %2870 = vmatpush.msra.mxu0 0.0
        %2871 = vmatpush.msra.mxu0 0.0
        %2872 = vmatpush.msra.mxu0 0.0
        %2873 = vmatpush.msra.mxu0 0.0
        %2874 = vmatpush.msra.mxu0 0.0
        %v2875 = vand.u32 %v2855, 4294901760
        %2876 = vmatpush.msra.mxu0 %v2875
        %v2877 = vand.u32 %v2854, 4294901760
        %2878 = vmatpush.msra.mxu0 %v2877
        %v2879 = vand.u32 %v2853, 4294901760
        %2880 = vmatpush.msra.mxu0 %v2879
        %v2881 = vand.u32 %v2852, 4294901760
        %2882 = vmatpush.msra.mxu0 %v2881
        %v2883 = vand.u32 %v2851, 4294901760
        %2884 = vmatpush.msra.mxu0 %v2883
        %v2885 = vand.u32 %v2850, 4294901760
        %2886 = vmatpush.msra.mxu0 %v2885
        %v2887 = vand.u32 %v2849, 4294901760
        %2888 = vmatpush.msra.mxu0 %v2887
        %v2889 = vand.u32 %v2848, 4294901760
        %2890 = vmatpush.msra.mxu0 %v2889
        %v2891 = vand.u32 %v2862, 4294901760
        %v2892 = vsub.f32 %v2862, %v2891
        %v2893 = vand.u32 %v2892, 4294901760
        %v2894 = vsub.f32 %v2892, %v2893
        %v2895 = vand.u32 %v2894, 4294901760
        %2896 = vmatmul.f32.gmra.mxu0 %v2895
        %v2897 = vpop.f32.mrf.mxu0
        %v2898 = vadd.f32 %v2858, %v2897
        %v2899 = vand.u32 %v2865, 4294901760
        %v2900 = vsub.f32 %v2865, %v2899
        %v2901 = vand.u32 %v2900, 4294901760
        %v2902 = vsub.f32 %v2900, %v2901
        %v2903 = vand.u32 %v2902, 4294901760
        %2904 = vmatmul.f32.gmra.mxu0 %v2903
        %v2905 = vpop.f32.mrf.mxu0
        %v2906 = vadd.f32 %v2858, %v2905
        %2907 = vdwg.mxu0
        %2908 = vmatpush.msra.mxu0 0.0
        %2909 = vmatpush.msra.mxu0 0.0
        %2910 = vmatpush.msra.mxu0 0.0
        %2911 = vmatpush.msra.mxu0 0.0
        %2912 = vmatpush.msra.mxu0 0.0
        %2913 = vmatpush.msra.mxu0 0.0
        %2914 = vmatpush.msra.mxu0 0.0
        %2915 = vmatpush.msra.mxu0 0.0
        %v2916 = vand.u32 %v2855, 4294901760
        %v2917 = vsub.f32 %v2855, %v2916
        %v2918 = vand.u32 %v2917, 4294901760
        %v2919 = vsub.f32 %v2917, %v2918
        %v2920 = vand.u32 %v2919, 4294901760
        %2921 = vmatpush.msra.mxu0 %v2920
        %v2922 = vand.u32 %v2854, 4294901760
        %v2923 = vsub.f32 %v2854, %v2922
        %v2924 = vand.u32 %v2923, 4294901760
        %v2925 = vsub.f32 %v2923, %v2924
        %v2926 = vand.u32 %v2925, 4294901760
        %2927 = vmatpush.msra.mxu0 %v2926
        %v2928 = vand.u32 %v2853, 4294901760
        %v2929 = vsub.f32 %v2853, %v2928
        %v2930 = vand.u32 %v2929, 4294901760
        %v2931 = vsub.f32 %v2929, %v2930
        %v2932 = vand.u32 %v2931, 4294901760
        %2933 = vmatpush.msra.mxu0 %v2932
        %v2934 = vand.u32 %v2852, 4294901760
        %v2935 = vsub.f32 %v2852, %v2934
        %v2936 = vand.u32 %v2935, 4294901760
        %v2937 = vsub.f32 %v2935, %v2936
        %v2938 = vand.u32 %v2937, 4294901760
        %2939 = vmatpush.msra.mxu0 %v2938
        %v2940 = vand.u32 %v2851, 4294901760
        %v2941 = vsub.f32 %v2851, %v2940
        %v2942 = vand.u32 %v2941, 4294901760
        %v2943 = vsub.f32 %v2941, %v2942
        %v2944 = vand.u32 %v2943, 4294901760
        %2945 = vmatpush.msra.mxu0 %v2944
        %v2946 = vand.u32 %v2850, 4294901760
        %v2947 = vsub.f32 %v2850, %v2946
        %v2948 = vand.u32 %v2947, 4294901760
        %v2949 = vsub.f32 %v2947, %v2948
        %v2950 = vand.u32 %v2949, 4294901760
        %2951 = vmatpush.msra.mxu0 %v2950
        %v2952 = vand.u32 %v2849, 4294901760
        %v2953 = vsub.f32 %v2849, %v2952
        %v2954 = vand.u32 %v2953, 4294901760
        %v2955 = vsub.f32 %v2953, %v2954
        %v2956 = vand.u32 %v2955, 4294901760
        %2957 = vmatpush.msra.mxu0 %v2956
        %v2958 = vand.u32 %v2848, 4294901760
        %v2959 = vsub.f32 %v2848, %v2958
        %v2960 = vand.u32 %v2959, 4294901760
        %v2961 = vsub.f32 %v2959, %v2960
        %v2962 = vand.u32 %v2961, 4294901760
        %2963 = vmatpush.msra.mxu0 %v2962
        %v2964 = vand.u32 %v2862, 4294901760
        %2965 = vmatmul.f32.gmra.mxu0 %v2964
        %v2966 = vpop.f32.mrf.mxu0
        %v2967 = vadd.f32 %v2898, %v2966
        %v2968 = vand.u32 %v2865, 4294901760
        %2969 = vmatmul.f32.gmra.mxu0 %v2968
        %v2970 = vpop.f32.mrf.mxu0
        %v2971 = vadd.f32 %v2906, %v2970
        %2972 = vdwg.mxu0
        %2973 = vmatpush.msra.mxu0 0.0
        %2974 = vmatpush.msra.mxu0 0.0
        %2975 = vmatpush.msra.mxu0 0.0
        %2976 = vmatpush.msra.mxu0 0.0
        %2977 = vmatpush.msra.mxu0 0.0
        %2978 = vmatpush.msra.mxu0 0.0
        %2979 = vmatpush.msra.mxu0 0.0
        %2980 = vmatpush.msra.mxu0 0.0
        %v2981 = vand.u32 %v2855, 4294901760
        %v2982 = vsub.f32 %v2855, %v2981
        %2983 = vmatpush.msra.mxu0 %v2982
        %v2984 = vand.u32 %v2854, 4294901760
        %v2985 = vsub.f32 %v2854, %v2984
        %2986 = vmatpush.msra.mxu0 %v2985
        %v2987 = vand.u32 %v2853, 4294901760
        %v2988 = vsub.f32 %v2853, %v2987
        %2989 = vmatpush.msra.mxu0 %v2988
        %v2990 = vand.u32 %v2852, 4294901760
        %v2991 = vsub.f32 %v2852, %v2990
        %2992 = vmatpush.msra.mxu0 %v2991
        %v2993 = vand.u32 %v2851, 4294901760
        %v2994 = vsub.f32 %v2851, %v2993
        %2995 = vmatpush.msra.mxu0 %v2994
        %v2996 = vand.u32 %v2850, 4294901760
        %v2997 = vsub.f32 %v2850, %v2996
        %2998 = vmatpush.msra.mxu0 %v2997
        %v2999 = vand.u32 %v2849, 4294901760
        %v3000 = vsub.f32 %v2849, %v2999
        %3001 = vmatpush.msra.mxu0 %v3000
        %v3002 = vand.u32 %v2848, 4294901760
        %v3003 = vsub.f32 %v2848, %v3002
        %3004 = vmatpush.msra.mxu0 %v3003
        %v3005 = vand.u32 %v2862, 4294901760
        %v3006 = vsub.f32 %v2862, %v3005
        %3007 = vmatmul.f32.gmra.mxu0 %v3006
        %v3008 = vpop.f32.mrf.mxu0
        %v3009 = vadd.f32 %v2967, %v3008
        %v3010 = vand.u32 %v2865, 4294901760
        %v3011 = vsub.f32 %v2865, %v3010
        %3012 = vmatmul.f32.gmra.mxu0 %v3011
        %v3013 = vpop.f32.mrf.mxu0
        %v3014 = vadd.f32 %v2971, %v3013
        %3015 = vdwg.mxu0
        %3016 = vmatpush.msra.mxu0 0.0
        %3017 = vmatpush.msra.mxu0 0.0
        %3018 = vmatpush.msra.mxu0 0.0
        %3019 = vmatpush.msra.mxu0 0.0
        %3020 = vmatpush.msra.mxu0 0.0
        %3021 = vmatpush.msra.mxu0 0.0
        %3022 = vmatpush.msra.mxu0 0.0
        %3023 = vmatpush.msra.mxu0 0.0
        %v3024 = vand.u32 %v2855, 4294901760
        %3025 = vmatpush.msra.mxu0 %v3024
        %v3026 = vand.u32 %v2854, 4294901760
        %3027 = vmatpush.msra.mxu0 %v3026
        %v3028 = vand.u32 %v2853, 4294901760
        %3029 = vmatpush.msra.mxu0 %v3028
        %v3030 = vand.u32 %v2852, 4294901760
        %3031 = vmatpush.msra.mxu0 %v3030
        %v3032 = vand.u32 %v2851, 4294901760
        %3033 = vmatpush.msra.mxu0 %v3032
        %v3034 = vand.u32 %v2850, 4294901760
        %3035 = vmatpush.msra.mxu0 %v3034
        %v3036 = vand.u32 %v2849, 4294901760
        %3037 = vmatpush.msra.mxu0 %v3036
        %v3038 = vand.u32 %v2848, 4294901760
        %3039 = vmatpush.msra.mxu0 %v3038
        %v3040 = vand.u32 %v2862, 4294901760
        %v3041 = vsub.f32 %v2862, %v3040
        %v3042 = vand.u32 %v3041, 4294901760
        %3043 = vmatmul.f32.gmra.mxu0 %v3042
        %v3044 = vpop.f32.mrf.mxu0
        %v3045 = vadd.f32 %v3009, %v3044
        %v3046 = vand.u32 %v2865, 4294901760
        %v3047 = vsub.f32 %v2865, %v3046
        %v3048 = vand.u32 %v3047, 4294901760
        %3049 = vmatmul.f32.gmra.mxu0 %v3048
        %v3050 = vpop.f32.mrf.mxu0
        %v3051 = vadd.f32 %v3014, %v3050
        %3052 = vdwg.mxu0
        %3053 = vmatpush.msra.mxu0 0.0
        %3054 = vmatpush.msra.mxu0 0.0
        %3055 = vmatpush.msra.mxu0 0.0
        %3056 = vmatpush.msra.mxu0 0.0
        %3057 = vmatpush.msra.mxu0 0.0
        %3058 = vmatpush.msra.mxu0 0.0
        %3059 = vmatpush.msra.mxu0 0.0
        %3060 = vmatpush.msra.mxu0 0.0
        %v3061 = vand.u32 %v2855, 4294901760
        %v3062 = vsub.f32 %v2855, %v3061
        %v3063 = vand.u32 %v3062, 4294901760
        %3064 = vmatpush.msra.mxu0 %v3063
        %v3065 = vand.u32 %v2854, 4294901760
        %v3066 = vsub.f32 %v2854, %v3065
        %v3067 = vand.u32 %v3066, 4294901760
        %3068 = vmatpush.msra.mxu0 %v3067
        %v3069 = vand.u32 %v2853, 4294901760
        %v3070 = vsub.f32 %v2853, %v3069
        %v3071 = vand.u32 %v3070, 4294901760
        %3072 = vmatpush.msra.mxu0 %v3071
        %v3073 = vand.u32 %v2852, 4294901760
        %v3074 = vsub.f32 %v2852, %v3073
        %v3075 = vand.u32 %v3074, 4294901760
        %3076 = vmatpush.msra.mxu0 %v3075
        %v3077 = vand.u32 %v2851, 4294901760
        %v3078 = vsub.f32 %v2851, %v3077
        %v3079 = vand.u32 %v3078, 4294901760
        %3080 = vmatpush.msra.mxu0 %v3079
        %v3081 = vand.u32 %v2850, 4294901760
        %v3082 = vsub.f32 %v2850, %v3081
        %v3083 = vand.u32 %v3082, 4294901760
        %3084 = vmatpush.msra.mxu0 %v3083
        %v3085 = vand.u32 %v2849, 4294901760
        %v3086 = vsub.f32 %v2849, %v3085
        %v3087 = vand.u32 %v3086, 4294901760
        %3088 = vmatpush.msra.mxu0 %v3087
        %v3089 = vand.u32 %v2848, 4294901760
        %v3090 = vsub.f32 %v2848, %v3089
        %v3091 = vand.u32 %v3090, 4294901760
        %3092 = vmatpush.msra.mxu0 %v3091
        %v3093 = vand.u32 %v2862, 4294901760
        %3094 = vmatmul.f32.gmra.mxu0 %v3093
        %v3095 = vpop.f32.mrf.mxu0
        %v3096 = vadd.f32 %v3045, %v3095
        %v3097 = vand.u32 %v2865, 4294901760
        %3098 = vmatmul.f32.gmra.mxu0 %v3097
        %v3099 = vpop.f32.mrf.mxu0
        %v3100 = vadd.f32 %v3051, %v3099
        %3101 = vdwg.mxu0
        %3102 = vmatpush.msra.mxu0 0.0
        %3103 = vmatpush.msra.mxu0 0.0
        %3104 = vmatpush.msra.mxu0 0.0
        %3105 = vmatpush.msra.mxu0 0.0
        %3106 = vmatpush.msra.mxu0 0.0
        %3107 = vmatpush.msra.mxu0 0.0
        %3108 = vmatpush.msra.mxu0 0.0
        %3109 = vmatpush.msra.mxu0 0.0
        %v3110 = vand.u32 %v2855, 4294901760
        %3111 = vmatpush.msra.mxu0 %v3110
        %v3112 = vand.u32 %v2854, 4294901760
        %3113 = vmatpush.msra.mxu0 %v3112
        %v3114 = vand.u32 %v2853, 4294901760
        %3115 = vmatpush.msra.mxu0 %v3114
        %v3116 = vand.u32 %v2852, 4294901760
        %3117 = vmatpush.msra.mxu0 %v3116
        %v3118 = vand.u32 %v2851, 4294901760
        %3119 = vmatpush.msra.mxu0 %v3118
        %v3120 = vand.u32 %v2850, 4294901760
        %3121 = vmatpush.msra.mxu0 %v3120
        %v3122 = vand.u32 %v2849, 4294901760
        %3123 = vmatpush.msra.mxu0 %v3122
        %v3124 = vand.u32 %v2848, 4294901760
        %3125 = vmatpush.msra.mxu0 %v3124
        %v3126 = vand.u32 %v2862, 4294901760
        %3127 = vmatmul.f32.gmra.mxu0 %v3126
        %v3128 = vpop.f32.mrf.mxu0
        %v3129 = vadd.f32 %v3096, %v3128
        %v3130 = vand.u32 %v2865, 4294901760
        %3131 = vmatmul.f32.gmra.mxu0 %v3130
        %v3132 = vpop.f32.mrf.mxu0
        %v3133 = vadd.f32 %v3100, %v3132
        %3134 = vdwg.mxu0
        %v3135 = vld [vmem:[%s10] sm:$0x3]
        %v3136 = vadd.f32 %v2448, %v3129
        %v3137 = vadd.f32 %v2452, %v3133
        %3138 = vadd.xlane.f32.xlu0 %v3136
        %v3139 = vpop.xlane.xlu0 %3138
        %3140 = vadd.xlane.f32.xlu0 %v3137
        %v3141 = vpop.xlane.xlu0 %3140
        %v3142 = vrcp.pop 128.0
        %v3143 = vmul.f32 128.0, %v3142
        %v3144 = vsub.f32 1.0, %v3143
        %v3145 = vmul.f32 %v3142, %v3144
        %v3146 = vadd.f32 %v3142, %v3145
        %vm3147 = vweird.f32 %v3142
        %v3148 = vsel %vm3147, %v3142, %v3146
        %v3149 = vmul.f32 %v3139, %v3148
        %v3150 = vmul.f32 %v3141, %v3148
        %v3151 = vsub.f32 %v3136, %v3149
        %v3152 = vsub.f32 %v3137, %v3150
        %v3153 = vmul.f32 %v3151, %v3151
        %v3154 = vmul.f32 %v3152, %v3152
        %3155 = vadd.xlane.f32.xlu0 %v3153
        %v3156 = vpop.xlane.xlu0 %3155
        %3157 = vadd.xlane.f32.xlu0 %v3154
        %v3158 = vpop.xlane.xlu0 %3157
        %v3159 = vrcp.pop 127.0
        %v3160 = vmul.f32 127.0, %v3159
        %v3161 = vsub.f32 1.0, %v3160
        %v3162 = vmul.f32 %v3159, %v3161
        %v3163 = vadd.f32 %v3159, %v3162
        %vm3164 = vweird.f32 %v3159
        %v3165 = vsel %vm3164, %v3159, %v3163
        %v3166 = vmul.f32 %v3156, %v3165
        %v3167 = vmul.f32 %v3158, %v3165
        %v3168 = vrsqrt.pop %v3166
        %v3169 = vmul.f32 %v3168, %v3166
        %v3170 = vmul.f32 %v3169, %v3168
        %v3171 = vmul.f32 0.5, %v3170
        %v3172 = vsub.f32 1.5, %v3171
        %v3173 = vmul.f32 %v3168, %v3172
        %v3174 = vmul.f32 %v3166, %v3173
        %vm3175 = vcmp.eq.f32.partialorder %v3166, inf
        %v3176 = vsel %vm3175, %v3166, %v3174
        %vm3177 = vcmp.eq.f32.partialorder %v3166, 0.0
        %v3178 = vand.u32 %v3166, 2147483648
        %v3179 = vsel %vm3177, %v3178, %v3176
        %v3180 = vrsqrt.pop %v3167
        %v3181 = vmul.f32 %v3180, %v3167
        %v3182 = vmul.f32 %v3181, %v3180
        %v3183 = vmul.f32 0.5, %v3182
        %v3184 = vsub.f32 1.5, %v3183
        %v3185 = vmul.f32 %v3180, %v3184
        %v3186 = vmul.f32 %v3167, %v3185
        %vm3187 = vcmp.eq.f32.partialorder %v3167, inf
        %v3188 = vsel %vm3187, %v3167, %v3186
        %vm3189 = vcmp.eq.f32.partialorder %v3167, 0.0
        %v3190 = vand.u32 %v3167, 2147483648
        %v3191 = vsel %vm3189, %v3190, %v3188
        %v3192 = vadd.f32 %v3179, 1e-06
        %v3193 = vadd.f32 %v3191, 1e-06
        %v3194 = vrcp.pop %v3192
        %v3195 = vmul.f32 %v3192, %v3194
        %v3196 = vsub.f32 1.0, %v3195
        %v3197 = vmul.f32 %v3194, %v3196
        %v3198 = vadd.f32 %v3194, %v3197
        %vm3199 = vweird.f32 %v3192
        %vm3200 = vweird.f32 %v3194
        %vm3201 = vmor %vm3199, %vm3200
        %v3202 = vsel %vm3201, %v3194, %v3198
        %v3203 = vand.u32 2147483647, %v3192
        %vm3204 = vcmp.eq.f32.partialorder %v3203, 8.507059e+37
        %v3205 = vand.u32 %v3192, 2147483648
        %v3206 = vor.u32 1.1754944e-38, %v3205
        %v3207 = vsel %vm3204, %v3206, %v3202
        %v3208 = vmul.f32 %v3151, %v3207
        %v3209 = vrcp.pop %v3193
        %v3210 = vmul.f32 %v3193, %v3209
        %v3211 = vsub.f32 1.0, %v3210
        %v3212 = vmul.f32 %v3209, %v3211
        %v3213 = vadd.f32 %v3209, %v3212
        %vm3214 = vweird.f32 %v3193
        %vm3215 = vweird.f32 %v3209
        %vm3216 = vmor %vm3214, %vm3215
        %v3217 = vsel %vm3216, %v3209, %v3213
        %v3218 = vand.u32 2147483647, %v3193
        %vm3219 = vcmp.eq.f32.partialorder %v3218, 8.507059e+37
        %v3220 = vand.u32 %v3193, 2147483648
        %v3221 = vor.u32 1.1754944e-38, %v3220
        %v3222 = vsel %vm3219, %v3221, %v3217
        %v3223 = vmul.f32 %v3152, %v3222
        %v3224 = vperm.slane %v3135, 0
        %v3225 = vmul.f32 %v3224, %v3208
        %v3226 = vmul.f32 %v3224, %v3223
        %v3227 = vperm.slane %v3135, 1
        %v3228 = vadd.f32 %v3225, %v3227
        %v3229 = vadd.f32 %v3226, %v3227
        %v3230 = vadd.f32 %v3228, 0.0
        %v3231 = vadd.f32 %v3229, 0.0
        %3232 = vrot.lane.b32.xlu0 %v1018, 96
        %v3233 = vpop.permute.xlu0 %3232
        %3234 = vrot.lane.b32.xlu0 %v1022, 96
        %v3235 = vpop.permute.xlu0 %3234
        %3236 = vrot.lane.b32.xlu0 %v1390, 96
        %v3237 = vpop.permute.xlu0 %3236
        %3238 = vrot.lane.b32.xlu0 %v1394, 96
        %v3239 = vpop.permute.xlu0 %3238
        %v3240 = vsel %vm1768, %v3233, 0
        %v3242 = vsel %vm1768, %v3235, 0
        %v3244 = vsel %vm1768, %v3237, 0
        %v3246 = vsel %vm1768, %v3239, 0
        %3248 = vmatpush.xpose.msra.mxu0 0.0
        %3249 = vmatpush.xpose.msra.mxu0 0.0
        %3250 = vmatpush.xpose.msra.mxu0 0.0
        %3251 = vmatpush.xpose.msra.mxu0 0.0
        %3252 = vmatpush.xpose.msra.mxu0 0.0
        %3253 = vmatpush.xpose.msra.mxu0 0.0
        %3254 = vmatpush.xpose.msra.mxu0 0.0
        %3255 = vmatpush.xpose.msra.mxu0 0.0
        %3256 = vmatpush.xpose.msra.mxu0 0.0
        %3257 = vmatpush.xpose.msra.mxu0 0.0
        %3258 = vmatpush.xpose.msra.mxu0 0.0
        %3259 = vmatpush.xpose.msra.mxu0 0.0
        %3260 = vmatpush.xpose.msra.mxu0 0.0
        %3261 = vmatpush.xpose.msra.mxu0 0.0
        %v3262 = vand.u32 %v3246, 4294901760
        %3263 = vmatpush.xpose.msra.mxu0 %v3262
        %v3264 = vand.u32 %v3244, 4294901760
        %3265 = vmatpush.xpose.msra.mxu0 %v3264
        %v3266 = vand.u32 %v3240, 4294901760
        %v3267 = vsub.f32 %v3240, %v3266
        %v3268 = vand.u32 %v3267, 4294901760
        %v3269 = vsub.f32 %v3267, %v3268
        %v3270 = vand.u32 %v3269, 4294901760
        %3271 = vmatmul.f32.gmra.mxu0 %v3270
        %v3272 = vpop.f32.mrf.mxu0
        %v3273 = vadd.f32 0.0, %v3272
        %v3274 = vand.u32 %v3242, 4294901760
        %v3275 = vsub.f32 %v3242, %v3274
        %v3276 = vand.u32 %v3275, 4294901760
        %v3277 = vsub.f32 %v3275, %v3276
        %v3278 = vand.u32 %v3277, 4294901760
        %3279 = vmatmul.f32.gmra.mxu0 %v3278
        %v3280 = vpop.f32.mrf.mxu0
        %v3281 = vadd.f32 0.0, %v3280
        %3282 = vdwg.mxu0
        %3283 = vmatpush.xpose.msra.mxu0 0.0
        %3284 = vmatpush.xpose.msra.mxu0 0.0
        %3285 = vmatpush.xpose.msra.mxu0 0.0
        %3286 = vmatpush.xpose.msra.mxu0 0.0
        %3287 = vmatpush.xpose.msra.mxu0 0.0
        %3288 = vmatpush.xpose.msra.mxu0 0.0
        %3289 = vmatpush.xpose.msra.mxu0 0.0
        %3290 = vmatpush.xpose.msra.mxu0 0.0
        %3291 = vmatpush.xpose.msra.mxu0 0.0
        %3292 = vmatpush.xpose.msra.mxu0 0.0
        %3293 = vmatpush.xpose.msra.mxu0 0.0
        %3294 = vmatpush.xpose.msra.mxu0 0.0
        %3295 = vmatpush.xpose.msra.mxu0 0.0
        %3296 = vmatpush.xpose.msra.mxu0 0.0
        %v3297 = vand.u32 %v3246, 4294901760
        %v3298 = vsub.f32 %v3246, %v3297
        %v3299 = vand.u32 %v3298, 4294901760
        %v3300 = vsub.f32 %v3298, %v3299
        %v3301 = vand.u32 %v3300, 4294901760
        %3302 = vmatpush.xpose.msra.mxu0 %v3301
        %v3303 = vand.u32 %v3244, 4294901760
        %v3304 = vsub.f32 %v3244, %v3303
        %v3305 = vand.u32 %v3304, 4294901760
        %v3306 = vsub.f32 %v3304, %v3305
        %v3307 = vand.u32 %v3306, 4294901760
        %3308 = vmatpush.xpose.msra.mxu0 %v3307
        %v3309 = vand.u32 %v3240, 4294901760
        %3310 = vmatmul.f32.gmra.mxu0 %v3309
        %v3311 = vpop.f32.mrf.mxu0
        %v3312 = vadd.f32 %v3273, %v3311
        %v3313 = vand.u32 %v3242, 4294901760
        %3314 = vmatmul.f32.gmra.mxu0 %v3313
        %v3315 = vpop.f32.mrf.mxu0
        %v3316 = vadd.f32 %v3281, %v3315
        %3317 = vdwg.mxu0
        %3318 = vmatpush.xpose.msra.mxu0 0.0
        %3319 = vmatpush.xpose.msra.mxu0 0.0
        %3320 = vmatpush.xpose.msra.mxu0 0.0
        %3321 = vmatpush.xpose.msra.mxu0 0.0
        %3322 = vmatpush.xpose.msra.mxu0 0.0
        %3323 = vmatpush.xpose.msra.mxu0 0.0
        %3324 = vmatpush.xpose.msra.mxu0 0.0
        %3325 = vmatpush.xpose.msra.mxu0 0.0
        %3326 = vmatpush.xpose.msra.mxu0 0.0
        %3327 = vmatpush.xpose.msra.mxu0 0.0
        %3328 = vmatpush.xpose.msra.mxu0 0.0
        %3329 = vmatpush.xpose.msra.mxu0 0.0
        %3330 = vmatpush.xpose.msra.mxu0 0.0
        %3331 = vmatpush.xpose.msra.mxu0 0.0
        %v3332 = vand.u32 %v3246, 4294901760
        %v3333 = vsub.f32 %v3246, %v3332
        %3334 = vmatpush.xpose.msra.mxu0 %v3333
        %v3335 = vand.u32 %v3244, 4294901760
        %v3336 = vsub.f32 %v3244, %v3335
        %3337 = vmatpush.xpose.msra.mxu0 %v3336
        %v3338 = vand.u32 %v3240, 4294901760
        %v3339 = vsub.f32 %v3240, %v3338
        %3340 = vmatmul.f32.gmra.mxu0 %v3339
        %v3341 = vpop.f32.mrf.mxu0
        %v3342 = vadd.f32 %v3312, %v3341
        %v3343 = vand.u32 %v3242, 4294901760
        %v3344 = vsub.f32 %v3242, %v3343
        %3345 = vmatmul.f32.gmra.mxu0 %v3344
        %v3346 = vpop.f32.mrf.mxu0
        %v3347 = vadd.f32 %v3316, %v3346
        %3348 = vdwg.mxu0
        %3349 = vmatpush.xpose.msra.mxu0 0.0
        %3350 = vmatpush.xpose.msra.mxu0 0.0
        %3351 = vmatpush.xpose.msra.mxu0 0.0
        %3352 = vmatpush.xpose.msra.mxu0 0.0
        %3353 = vmatpush.xpose.msra.mxu0 0.0
        %3354 = vmatpush.xpose.msra.mxu0 0.0
        %3355 = vmatpush.xpose.msra.mxu0 0.0
        %3356 = vmatpush.xpose.msra.mxu0 0.0
        %3357 = vmatpush.xpose.msra.mxu0 0.0
        %3358 = vmatpush.xpose.msra.mxu0 0.0
        %3359 = vmatpush.xpose.msra.mxu0 0.0
        %3360 = vmatpush.xpose.msra.mxu0 0.0
        %3361 = vmatpush.xpose.msra.mxu0 0.0
        %3362 = vmatpush.xpose.msra.mxu0 0.0
        %v3363 = vand.u32 %v3246, 4294901760
        %3364 = vmatpush.xpose.msra.mxu0 %v3363
        %v3365 = vand.u32 %v3244, 4294901760
        %3366 = vmatpush.xpose.msra.mxu0 %v3365
        %v3367 = vand.u32 %v3240, 4294901760
        %v3368 = vsub.f32 %v3240, %v3367
        %v3369 = vand.u32 %v3368, 4294901760
        %3370 = vmatmul.f32.gmra.mxu0 %v3369
        %v3371 = vpop.f32.mrf.mxu0
        %v3372 = vadd.f32 %v3342, %v3371
        %v3373 = vand.u32 %v3242, 4294901760
        %v3374 = vsub.f32 %v3242, %v3373
        %v3375 = vand.u32 %v3374, 4294901760
        %3376 = vmatmul.f32.gmra.mxu0 %v3375
        %v3377 = vpop.f32.mrf.mxu0
        %v3378 = vadd.f32 %v3347, %v3377
        %3379 = vdwg.mxu0
        %3380 = vmatpush.xpose.msra.mxu0 0.0
        %3381 = vmatpush.xpose.msra.mxu0 0.0
        %3382 = vmatpush.xpose.msra.mxu0 0.0
        %3383 = vmatpush.xpose.msra.mxu0 0.0
        %3384 = vmatpush.xpose.msra.mxu0 0.0
        %3385 = vmatpush.xpose.msra.mxu0 0.0
        %3386 = vmatpush.xpose.msra.mxu0 0.0
        %3387 = vmatpush.xpose.msra.mxu0 0.0
        %3388 = vmatpush.xpose.msra.mxu0 0.0
        %3389 = vmatpush.xpose.msra.mxu0 0.0
        %3390 = vmatpush.xpose.msra.mxu0 0.0
        %3391 = vmatpush.xpose.msra.mxu0 0.0
        %3392 = vmatpush.xpose.msra.mxu0 0.0
        %3393 = vmatpush.xpose.msra.mxu0 0.0
        %v3394 = vand.u32 %v3246, 4294901760
        %v3395 = vsub.f32 %v3246, %v3394
        %v3396 = vand.u32 %v3395, 4294901760
        %3397 = vmatpush.xpose.msra.mxu0 %v3396
        %v3398 = vand.u32 %v3244, 4294901760
        %v3399 = vsub.f32 %v3244, %v3398
        %v3400 = vand.u32 %v3399, 4294901760
        %3401 = vmatpush.xpose.msra.mxu0 %v3400
        %v3402 = vand.u32 %v3240, 4294901760
        %3403 = vmatmul.f32.gmra.mxu0 %v3402
        %v3404 = vpop.f32.mrf.mxu0
        %v3405 = vadd.f32 %v3372, %v3404
        %v3406 = vand.u32 %v3242, 4294901760
        %3407 = vmatmul.f32.gmra.mxu0 %v3406
        %v3408 = vpop.f32.mrf.mxu0
        %v3409 = vadd.f32 %v3378, %v3408
        %3410 = vdwg.mxu0
        %3411 = vmatpush.xpose.msra.mxu0 0.0
        %3412 = vmatpush.xpose.msra.mxu0 0.0
        %3413 = vmatpush.xpose.msra.mxu0 0.0
        %3414 = vmatpush.xpose.msra.mxu0 0.0
        %3415 = vmatpush.xpose.msra.mxu0 0.0
        %3416 = vmatpush.xpose.msra.mxu0 0.0
        %3417 = vmatpush.xpose.msra.mxu0 0.0
        %3418 = vmatpush.xpose.msra.mxu0 0.0
        %3419 = vmatpush.xpose.msra.mxu0 0.0
        %3420 = vmatpush.xpose.msra.mxu0 0.0
        %3421 = vmatpush.xpose.msra.mxu0 0.0
        %3422 = vmatpush.xpose.msra.mxu0 0.0
        %3423 = vmatpush.xpose.msra.mxu0 0.0
        %3424 = vmatpush.xpose.msra.mxu0 0.0
        %v3425 = vand.u32 %v3246, 4294901760
        %3426 = vmatpush.xpose.msra.mxu0 %v3425
        %v3427 = vand.u32 %v3244, 4294901760
        %3428 = vmatpush.xpose.msra.mxu0 %v3427
        %v3429 = vand.u32 %v3240, 4294901760
        %3430 = vmatmul.f32.gmra.mxu0 %v3429
        %v3431 = vpop.f32.mrf.mxu0
        %v3432 = vadd.f32 %v3405, %v3431
        %v3433 = vand.u32 %v3242, 4294901760
        %3434 = vmatmul.f32.gmra.mxu0 %v3433
        %v3435 = vpop.f32.mrf.mxu0
        %v3436 = vadd.f32 %v3409, %v3435
        %3437 = vdwg.mxu0
        %v3438 = vmul.f32 %v3432, 0.17677669
        %v3439 = vmul.f32 %v3436, 0.17677669
        %v3440 = vsel %vm1973, -1e+09, %v3438
        %v3441 = vsel %vm1974, -1e+09, %v3439
        %v3442 = vsel %vm1977, %v3440, -inf
        %3443 = vmax.xlane.f32.xlu0 %v3442
        %v3444 = vpop.xlane.xlu0 %3443
        %v3445 = vsel %vm1977, %v3441, -inf
        %3446 = vmax.xlane.f32.xlu0 %v3445
        %v3447 = vpop.xlane.xlu0 %3446
        %v3448 = vsub.f32 %v3440, %v3444
        %v3449 = vsub.f32 %v3441, %v3447
        %v3450 = vmul.f32 %v3448, 1.442695
        %v3451 = vpow.pop %v3450
        %v3452 = vmul.f32 %v3449, 1.442695
        %v3453 = vpow.pop %v3452
        %v3454 = vsel %vm1977, %v3451, 0.0
        %3455 = vadd.xlane.f32.xlu0 %v3454
        %v3456 = vpop.xlane.xlu0 %3455
        %v3457 = vsel %vm1977, %v3453, 0.0
        %3458 = vadd.xlane.f32.xlu0 %v3457
        %v3459 = vpop.xlane.xlu0 %3458
        %v3460 = vrcp.pop %v3456
        %v3461 = vmul.f32 %v3456, %v3460
        %v3462 = vsub.f32 1.0, %v3461
        %v3463 = vmul.f32 %v3460, %v3462
        %v3464 = vadd.f32 %v3460, %v3463
        %vm3465 = vweird.f32 %v3456
        %vm3466 = vweird.f32 %v3460
        %vm3467 = vmor %vm3465, %vm3466
        %v3468 = vsel %vm3467, %v3460, %v3464
        %v3469 = vand.u32 2147483647, %v3456
        %vm3470 = vcmp.eq.f32.partialorder %v3469, 8.507059e+37
        %v3471 = vand.u32 %v3456, 2147483648
        %v3472 = vor.u32 1.1754944e-38, %v3471
        %v3473 = vsel %vm3470, %v3472, %v3468
        %v3474 = vmul.f32 %v3451, %v3473
        %v3475 = vrcp.pop %v3459
        %v3476 = vmul.f32 %v3459, %v3475
        %v3477 = vsub.f32 1.0, %v3476
        %v3478 = vmul.f32 %v3475, %v3477
        %v3479 = vadd.f32 %v3475, %v3478
        %vm3480 = vweird.f32 %v3459
        %vm3481 = vweird.f32 %v3475
        %vm3482 = vmor %vm3480, %vm3481
        %v3483 = vsel %vm3482, %v3475, %v3479
        %v3484 = vand.u32 2147483647, %v3459
        %vm3485 = vcmp.eq.f32.partialorder %v3484, 8.507059e+37
        %v3486 = vand.u32 %v3459, 2147483648
        %v3487 = vor.u32 1.1754944e-38, %v3486
        %v3488 = vsel %vm3485, %v3487, %v3483
        %v3489 = vmul.f32 %v3453, %v3488
        %s3490 = scalar_lea.vmem %s591, 16 [#allocation15]
        %3491 = vst.msk [vmem:[%s3490] sm:$0xff] %vm1977, %v3474
        %3492 = vst.msk [vmem:[%s3490 + $0x8] sm:$0xff] %vm1977, %v3489
        %3495 = vrot.lane.b32.xlu0 %v1762, 96
        %v3496 = vpop.permute.xlu0 %3495
        %3497 = vrot.lane.b32.xlu0 %v1766, 96
        %v3498 = vpop.permute.xlu0 %3497
        %v3502 = vsel %vm1977, %v3474, 0
        %v3505 = vsel %vm1977, %v3489, 0
        %3507 = vmatpush.msra.mxu0 0.0
        %3508 = vmatpush.msra.mxu0 0.0
        %3509 = vmatpush.msra.mxu0 0.0
        %3510 = vmatpush.msra.mxu0 0.0
        %3511 = vmatpush.msra.mxu0 0.0
        %3512 = vmatpush.msra.mxu0 0.0
        %3513 = vmatpush.msra.mxu0 0.0
        %3514 = vmatpush.msra.mxu0 0.0
        %3515 = vmatpush.msra.mxu0 0.0
        %3516 = vmatpush.msra.mxu0 0.0
        %3517 = vmatpush.msra.mxu0 0.0
        %3518 = vmatpush.msra.mxu0 0.0
        %3519 = vmatpush.msra.mxu0 0.0
        %3520 = vmatpush.msra.mxu0 0.0
        %v3521 = vand.u32 %v3498, 4294901760
        %3522 = vmatpush.msra.mxu0 %v3521
        %v3523 = vand.u32 %v3496, 4294901760
        %3524 = vmatpush.msra.mxu0 %v3523
        %v3525 = vand.u32 %v3502, 4294901760
        %v3526 = vsub.f32 %v3502, %v3525
        %v3527 = vand.u32 %v3526, 4294901760
        %v3528 = vsub.f32 %v3526, %v3527
        %v3529 = vand.u32 %v3528, 4294901760
        %3530 = vmatmul.f32.gmra.mxu0 %v3529
        %v3531 = vpop.f32.mrf.mxu0
        %v3532 = vadd.f32 0.0, %v3531
        %v3533 = vand.u32 %v3505, 4294901760
        %v3534 = vsub.f32 %v3505, %v3533
        %v3535 = vand.u32 %v3534, 4294901760
        %v3536 = vsub.f32 %v3534, %v3535
        %v3537 = vand.u32 %v3536, 4294901760
        %3538 = vmatmul.f32.gmra.mxu0 %v3537
        %v3539 = vpop.f32.mrf.mxu0
        %v3540 = vadd.f32 0.0, %v3539
        %3541 = vdwg.mxu0
        %3542 = vmatpush.msra.mxu0 0.0
        %3543 = vmatpush.msra.mxu0 0.0
        %3544 = vmatpush.msra.mxu0 0.0
        %3545 = vmatpush.msra.mxu0 0.0
        %3546 = vmatpush.msra.mxu0 0.0
        %3547 = vmatpush.msra.mxu0 0.0
        %3548 = vmatpush.msra.mxu0 0.0
        %3549 = vmatpush.msra.mxu0 0.0
        %3550 = vmatpush.msra.mxu0 0.0
        %3551 = vmatpush.msra.mxu0 0.0
        %3552 = vmatpush.msra.mxu0 0.0
        %3553 = vmatpush.msra.mxu0 0.0
        %3554 = vmatpush.msra.mxu0 0.0
        %3555 = vmatpush.msra.mxu0 0.0
        %v3556 = vand.u32 %v3498, 4294901760
        %v3557 = vsub.f32 %v3498, %v3556
        %v3558 = vand.u32 %v3557, 4294901760
        %v3559 = vsub.f32 %v3557, %v3558
        %v3560 = vand.u32 %v3559, 4294901760
        %3561 = vmatpush.msra.mxu0 %v3560
        %v3562 = vand.u32 %v3496, 4294901760
        %v3563 = vsub.f32 %v3496, %v3562
        %v3564 = vand.u32 %v3563, 4294901760
        %v3565 = vsub.f32 %v3563, %v3564
        %v3566 = vand.u32 %v3565, 4294901760
        %3567 = vmatpush.msra.mxu0 %v3566
        %v3568 = vand.u32 %v3502, 4294901760
        %3569 = vmatmul.f32.gmra.mxu0 %v3568
        %v3570 = vpop.f32.mrf.mxu0
        %v3571 = vadd.f32 %v3532, %v3570
        %v3572 = vand.u32 %v3505, 4294901760
        %3573 = vmatmul.f32.gmra.mxu0 %v3572
        %v3574 = vpop.f32.mrf.mxu0
        %v3575 = vadd.f32 %v3540, %v3574
        %3576 = vdwg.mxu0
        %3577 = vmatpush.msra.mxu0 0.0
        %3578 = vmatpush.msra.mxu0 0.0
        %3579 = vmatpush.msra.mxu0 0.0
        %3580 = vmatpush.msra.mxu0 0.0
        %3581 = vmatpush.msra.mxu0 0.0
        %3582 = vmatpush.msra.mxu0 0.0
        %3583 = vmatpush.msra.mxu0 0.0
        %3584 = vmatpush.msra.mxu0 0.0
        %3585 = vmatpush.msra.mxu0 0.0
        %3586 = vmatpush.msra.mxu0 0.0
        %3587 = vmatpush.msra.mxu0 0.0
        %3588 = vmatpush.msra.mxu0 0.0
        %3589 = vmatpush.msra.mxu0 0.0
        %3590 = vmatpush.msra.mxu0 0.0
        %v3591 = vand.u32 %v3498, 4294901760
        %v3592 = vsub.f32 %v3498, %v3591
        %3593 = vmatpush.msra.mxu0 %v3592
        %v3594 = vand.u32 %v3496, 4294901760
        %v3595 = vsub.f32 %v3496, %v3594
        %3596 = vmatpush.msra.mxu0 %v3595
        %v3597 = vand.u32 %v3502, 4294901760
        %v3598 = vsub.f32 %v3502, %v3597
        %3599 = vmatmul.f32.gmra.mxu0 %v3598
        %v3600 = vpop.f32.mrf.mxu0
        %v3601 = vadd.f32 %v3571, %v3600
        %v3602 = vand.u32 %v3505, 4294901760
        %v3603 = vsub.f32 %v3505, %v3602
        %3604 = vmatmul.f32.gmra.mxu0 %v3603
        %v3605 = vpop.f32.mrf.mxu0
        %v3606 = vadd.f32 %v3575, %v3605
        %3607 = vdwg.mxu0
        %3608 = vmatpush.msra.mxu0 0.0
        %3609 = vmatpush.msra.mxu0 0.0
        %3610 = vmatpush.msra.mxu0 0.0
        %3611 = vmatpush.msra.mxu0 0.0
        %3612 = vmatpush.msra.mxu0 0.0
        %3613 = vmatpush.msra.mxu0 0.0
        %3614 = vmatpush.msra.mxu0 0.0
        %3615 = vmatpush.msra.mxu0 0.0
        %3616 = vmatpush.msra.mxu0 0.0
        %3617 = vmatpush.msra.mxu0 0.0
        %3618 = vmatpush.msra.mxu0 0.0
        %3619 = vmatpush.msra.mxu0 0.0
        %3620 = vmatpush.msra.mxu0 0.0
        %3621 = vmatpush.msra.mxu0 0.0
        %v3622 = vand.u32 %v3498, 4294901760
        %3623 = vmatpush.msra.mxu0 %v3622
        %v3624 = vand.u32 %v3496, 4294901760
        %3625 = vmatpush.msra.mxu0 %v3624
        %v3626 = vand.u32 %v3502, 4294901760
        %v3627 = vsub.f32 %v3502, %v3626
        %v3628 = vand.u32 %v3627, 4294901760
        %3629 = vmatmul.f32.gmra.mxu0 %v3628
        %v3630 = vpop.f32.mrf.mxu0
        %v3631 = vadd.f32 %v3601, %v3630
        %v3632 = vand.u32 %v3505, 4294901760
        %v3633 = vsub.f32 %v3505, %v3632
        %v3634 = vand.u32 %v3633, 4294901760
        %3635 = vmatmul.f32.gmra.mxu0 %v3634
        %v3636 = vpop.f32.mrf.mxu0
        %v3637 = vadd.f32 %v3606, %v3636
        %3638 = vdwg.mxu0
        %3639 = vmatpush.msra.mxu0 0.0
        %3640 = vmatpush.msra.mxu0 0.0
        %3641 = vmatpush.msra.mxu0 0.0
        %3642 = vmatpush.msra.mxu0 0.0
        %3643 = vmatpush.msra.mxu0 0.0
        %3644 = vmatpush.msra.mxu0 0.0
        %3645 = vmatpush.msra.mxu0 0.0
        %3646 = vmatpush.msra.mxu0 0.0
        %3647 = vmatpush.msra.mxu0 0.0
        %3648 = vmatpush.msra.mxu0 0.0
        %3649 = vmatpush.msra.mxu0 0.0
        %3650 = vmatpush.msra.mxu0 0.0
        %3651 = vmatpush.msra.mxu0 0.0
        %3652 = vmatpush.msra.mxu0 0.0
        %v3653 = vand.u32 %v3498, 4294901760
        %v3654 = vsub.f32 %v3498, %v3653
        %v3655 = vand.u32 %v3654, 4294901760
        %3656 = vmatpush.msra.mxu0 %v3655
        %v3657 = vand.u32 %v3496, 4294901760
        %v3658 = vsub.f32 %v3496, %v3657
        %v3659 = vand.u32 %v3658, 4294901760
        %3660 = vmatpush.msra.mxu0 %v3659
        %v3661 = vand.u32 %v3502, 4294901760
        %3662 = vmatmul.f32.gmra.mxu0 %v3661
        %v3663 = vpop.f32.mrf.mxu0
        %v3664 = vadd.f32 %v3631, %v3663
        %v3665 = vand.u32 %v3505, 4294901760
        %3666 = vmatmul.f32.gmra.mxu0 %v3665
        %v3667 = vpop.f32.mrf.mxu0
        %v3668 = vadd.f32 %v3637, %v3667
        %3669 = vdwg.mxu0
        %3670 = vmatpush.msra.mxu0 0.0
        %3671 = vmatpush.msra.mxu0 0.0
        %3672 = vmatpush.msra.mxu0 0.0
        %3673 = vmatpush.msra.mxu0 0.0
        %3674 = vmatpush.msra.mxu0 0.0
        %3675 = vmatpush.msra.mxu0 0.0
        %3676 = vmatpush.msra.mxu0 0.0
        %3677 = vmatpush.msra.mxu0 0.0
        %3678 = vmatpush.msra.mxu0 0.0
        %3679 = vmatpush.msra.mxu0 0.0
        %3680 = vmatpush.msra.mxu0 0.0
        %3681 = vmatpush.msra.mxu0 0.0
        %3682 = vmatpush.msra.mxu0 0.0
        %3683 = vmatpush.msra.mxu0 0.0
        %v3684 = vand.u32 %v3498, 4294901760
        %3685 = vmatpush.msra.mxu0 %v3684
        %v3686 = vand.u32 %v3496, 4294901760
        %3687 = vmatpush.msra.mxu0 %v3686
        %v3688 = vand.u32 %v3502, 4294901760
        %3689 = vmatmul.f32.gmra.mxu0 %v3688
        %v3690 = vpop.f32.mrf.mxu0
        %v3691 = vadd.f32 %v3664, %v3690
        %v3692 = vand.u32 %v3505, 4294901760
        %3693 = vmatmul.f32.gmra.mxu0 %v3692
        %v3694 = vpop.f32.mrf.mxu0
        %v3695 = vadd.f32 %v3668, %v3694
        %3696 = vdwg.mxu0
        %s3697 = scalar_lea.vmem %s4, 32
        %v3698 = vld [vmem:[%s3697] sm:$0xff]
        %v3699 = vld [vmem:[%s3697 + $0x8] sm:$0xff]
        %v3700 = vld [vmem:[%s3697 + $0x10] sm:$0xff]
        %v3701 = vld [vmem:[%s3697 + $0x18] sm:$0xff]
        %s3702 = scalar_lea.vmem [#allocation8], 1
        %v3703 = vld [vmem:[%s3702] sm:$0x1]
        %v3705 = vperm.slane %v3703, 0
        %v3708 = vsel %vm1768, %v3691, 0
        %v3711 = vsel %vm1768, %v3695, 0
        %3713 = vmatpush.msra.mxu0 0.0
        %3714 = vmatpush.msra.mxu0 0.0
        %3715 = vmatpush.msra.mxu0 0.0
        %3716 = vmatpush.msra.mxu0 0.0
        %3717 = vmatpush.msra.mxu0 0.0
        %3718 = vmatpush.msra.mxu0 0.0
        %3719 = vmatpush.msra.mxu0 0.0
        %3720 = vmatpush.msra.mxu0 0.0
        %3721 = vmatpush.msra.mxu0 0.0
        %3722 = vmatpush.msra.mxu0 0.0
        %3723 = vmatpush.msra.mxu0 0.0
        %3724 = vmatpush.msra.mxu0 0.0
        %v3725 = vand.u32 %v3701, 4294901760
        %3726 = vmatpush.msra.mxu0 %v3725
        %v3727 = vand.u32 %v3700, 4294901760
        %3728 = vmatpush.msra.mxu0 %v3727
        %v3729 = vand.u32 %v3699, 4294901760
        %3730 = vmatpush.msra.mxu0 %v3729
        %v3731 = vand.u32 %v3698, 4294901760
        %3732 = vmatpush.msra.mxu0 %v3731
        %v3733 = vand.u32 %v3708, 4294901760
        %v3734 = vsub.f32 %v3708, %v3733
        %v3735 = vand.u32 %v3734, 4294901760
        %v3736 = vsub.f32 %v3734, %v3735
        %v3737 = vand.u32 %v3736, 4294901760
        %3738 = vmatmul.f32.gmra.mxu0 %v3737
        %v3739 = vpop.f32.mrf.mxu0
        %v3740 = vadd.f32 %v3705, %v3739
        %v3741 = vand.u32 %v3711, 4294901760
        %v3742 = vsub.f32 %v3711, %v3741
        %v3743 = vand.u32 %v3742, 4294901760
        %v3744 = vsub.f32 %v3742, %v3743
        %v3745 = vand.u32 %v3744, 4294901760
        %3746 = vmatmul.f32.gmra.mxu0 %v3745
        %v3747 = vpop.f32.mrf.mxu0
        %v3748 = vadd.f32 %v3705, %v3747
        %3749 = vdwg.mxu0
        %3750 = vmatpush.msra.mxu0 0.0
        %3751 = vmatpush.msra.mxu0 0.0
        %3752 = vmatpush.msra.mxu0 0.0
        %3753 = vmatpush.msra.mxu0 0.0
        %3754 = vmatpush.msra.mxu0 0.0
        %3755 = vmatpush.msra.mxu0 0.0
        %3756 = vmatpush.msra.mxu0 0.0
        %3757 = vmatpush.msra.mxu0 0.0
        %3758 = vmatpush.msra.mxu0 0.0
        %3759 = vmatpush.msra.mxu0 0.0
        %3760 = vmatpush.msra.mxu0 0.0
        %3761 = vmatpush.msra.mxu0 0.0
        %v3762 = vand.u32 %v3701, 4294901760
        %v3763 = vsub.f32 %v3701, %v3762
        %v3764 = vand.u32 %v3763, 4294901760
        %v3765 = vsub.f32 %v3763, %v3764
        %v3766 = vand.u32 %v3765, 4294901760
        %3767 = vmatpush.msra.mxu0 %v3766
        %v3768 = vand.u32 %v3700, 4294901760
        %v3769 = vsub.f32 %v3700, %v3768
        %v3770 = vand.u32 %v3769, 4294901760
        %v3771 = vsub.f32 %v3769, %v3770
        %v3772 = vand.u32 %v3771, 4294901760
        %3773 = vmatpush.msra.mxu0 %v3772
        %v3774 = vand.u32 %v3699, 4294901760
        %v3775 = vsub.f32 %v3699, %v3774
        %v3776 = vand.u32 %v3775, 4294901760
        %v3777 = vsub.f32 %v3775, %v3776
        %v3778 = vand.u32 %v3777, 4294901760
        %3779 = vmatpush.msra.mxu0 %v3778
        %v3780 = vand.u32 %v3698, 4294901760
        %v3781 = vsub.f32 %v3698, %v3780
        %v3782 = vand.u32 %v3781, 4294901760
        %v3783 = vsub.f32 %v3781, %v3782
        %v3784 = vand.u32 %v3783, 4294901760
        %3785 = vmatpush.msra.mxu0 %v3784
        %v3786 = vand.u32 %v3708, 4294901760
        %3787 = vmatmul.f32.gmra.mxu0 %v3786
        %v3788 = vpop.f32.mrf.mxu0
        %v3789 = vadd.f32 %v3740, %v3788
        %v3790 = vand.u32 %v3711, 4294901760
        %3791 = vmatmul.f32.gmra.mxu0 %v3790
        %v3792 = vpop.f32.mrf.mxu0
        %v3793 = vadd.f32 %v3748, %v3792
        %3794 = vdwg.mxu0
        %3795 = vmatpush.msra.mxu0 0.0
        %3796 = vmatpush.msra.mxu0 0.0
        %3797 = vmatpush.msra.mxu0 0.0
        %3798 = vmatpush.msra.mxu0 0.0
        %3799 = vmatpush.msra.mxu0 0.0
        %3800 = vmatpush.msra.mxu0 0.0
        %3801 = vmatpush.msra.mxu0 0.0
        %3802 = vmatpush.msra.mxu0 0.0
        %3803 = vmatpush.msra.mxu0 0.0
        %3804 = vmatpush.msra.mxu0 0.0
        %3805 = vmatpush.msra.mxu0 0.0
        %3806 = vmatpush.msra.mxu0 0.0
        %v3807 = vand.u32 %v3701, 4294901760
        %v3808 = vsub.f32 %v3701, %v3807
        %3809 = vmatpush.msra.mxu0 %v3808
        %v3810 = vand.u32 %v3700, 4294901760
        %v3811 = vsub.f32 %v3700, %v3810
        %3812 = vmatpush.msra.mxu0 %v3811
        %v3813 = vand.u32 %v3699, 4294901760
        %v3814 = vsub.f32 %v3699, %v3813
        %3815 = vmatpush.msra.mxu0 %v3814
        %v3816 = vand.u32 %v3698, 4294901760
        %v3817 = vsub.f32 %v3698, %v3816
        %3818 = vmatpush.msra.mxu0 %v3817
        %v3819 = vand.u32 %v3708, 4294901760
        %v3820 = vsub.f32 %v3708, %v3819
        %3821 = vmatmul.f32.gmra.mxu0 %v3820
        %v3822 = vpop.f32.mrf.mxu0
        %v3823 = vadd.f32 %v3789, %v3822
        %v3824 = vand.u32 %v3711, 4294901760
        %v3825 = vsub.f32 %v3711, %v3824
        %3826 = vmatmul.f32.gmra.mxu0 %v3825
        %v3827 = vpop.f32.mrf.mxu0
        %v3828 = vadd.f32 %v3793, %v3827
        %3829 = vdwg.mxu0
        %3830 = vmatpush.msra.mxu0 0.0
        %3831 = vmatpush.msra.mxu0 0.0
        %3832 = vmatpush.msra.mxu0 0.0
        %3833 = vmatpush.msra.mxu0 0.0
        %3834 = vmatpush.msra.mxu0 0.0
        %3835 = vmatpush.msra.mxu0 0.0
        %3836 = vmatpush.msra.mxu0 0.0
        %3837 = vmatpush.msra.mxu0 0.0
        %3838 = vmatpush.msra.mxu0 0.0
        %3839 = vmatpush.msra.mxu0 0.0
        %3840 = vmatpush.msra.mxu0 0.0
        %3841 = vmatpush.msra.mxu0 0.0
        %v3842 = vand.u32 %v3701, 4294901760
        %3843 = vmatpush.msra.mxu0 %v3842
        %v3844 = vand.u32 %v3700, 4294901760
        %3845 = vmatpush.msra.mxu0 %v3844
        %v3846 = vand.u32 %v3699, 4294901760
        %3847 = vmatpush.msra.mxu0 %v3846
        %v3848 = vand.u32 %v3698, 4294901760
        %3849 = vmatpush.msra.mxu0 %v3848
        %v3850 = vand.u32 %v3708, 4294901760
        %v3851 = vsub.f32 %v3708, %v3850
        %v3852 = vand.u32 %v3851, 4294901760
        %3853 = vmatmul.f32.gmra.mxu0 %v3852
        %v3854 = vpop.f32.mrf.mxu0
        %v3855 = vadd.f32 %v3823, %v3854
        %v3856 = vand.u32 %v3711, 4294901760
        %v3857 = vsub.f32 %v3711, %v3856
        %v3858 = vand.u32 %v3857, 4294901760
        %3859 = vmatmul.f32.gmra.mxu0 %v3858
        %v3860 = vpop.f32.mrf.mxu0
        %v3861 = vadd.f32 %v3828, %v3860
        %3862 = vdwg.mxu0
        %3863 = vmatpush.msra.mxu0 0.0
        %3864 = vmatpush.msra.mxu0 0.0
        %3865 = vmatpush.msra.mxu0 0.0
        %3866 = vmatpush.msra.mxu0 0.0
        %3867 = vmatpush.msra.mxu0 0.0
        %3868 = vmatpush.msra.mxu0 0.0
        %3869 = vmatpush.msra.mxu0 0.0
        %3870 = vmatpush.msra.mxu0 0.0
        %3871 = vmatpush.msra.mxu0 0.0
        %3872 = vmatpush.msra.mxu0 0.0
        %3873 = vmatpush.msra.mxu0 0.0
        %3874 = vmatpush.msra.mxu0 0.0
        %v3875 = vand.u32 %v3701, 4294901760
        %v3876 = vsub.f32 %v3701, %v3875
        %v3877 = vand.u32 %v3876, 4294901760
        %3878 = vmatpush.msra.mxu0 %v3877
        %v3879 = vand.u32 %v3700, 4294901760
        %v3880 = vsub.f32 %v3700, %v3879
        %v3881 = vand.u32 %v3880, 4294901760
        %3882 = vmatpush.msra.mxu0 %v3881
        %v3883 = vand.u32 %v3699, 4294901760
        %v3884 = vsub.f32 %v3699, %v3883
        %v3885 = vand.u32 %v3884, 4294901760
        %3886 = vmatpush.msra.mxu0 %v3885
        %v3887 = vand.u32 %v3698, 4294901760
        %v3888 = vsub.f32 %v3698, %v3887
        %v3889 = vand.u32 %v3888, 4294901760
        %3890 = vmatpush.msra.mxu0 %v3889
        %v3891 = vand.u32 %v3708, 4294901760
        %3892 = vmatmul.f32.gmra.mxu0 %v3891
        %v3893 = vpop.f32.mrf.mxu0
        %v3894 = vadd.f32 %v3855, %v3893
        %v3895 = vand.u32 %v3711, 4294901760
        %3896 = vmatmul.f32.gmra.mxu0 %v3895
        %v3897 = vpop.f32.mrf.mxu0
        %v3898 = vadd.f32 %v3861, %v3897
        %3899 = vdwg.mxu0
        %3900 = vmatpush.msra.mxu0 0.0
        %3901 = vmatpush.msra.mxu0 0.0
        %3902 = vmatpush.msra.mxu0 0.0
        %3903 = vmatpush.msra.mxu0 0.0
        %3904 = vmatpush.msra.mxu0 0.0
        %3905 = vmatpush.msra.mxu0 0.0
        %3906 = vmatpush.msra.mxu0 0.0
        %3907 = vmatpush.msra.mxu0 0.0
        %3908 = vmatpush.msra.mxu0 0.0
        %3909 = vmatpush.msra.mxu0 0.0
        %3910 = vmatpush.msra.mxu0 0.0
        %3911 = vmatpush.msra.mxu0 0.0
        %v3912 = vand.u32 %v3701, 4294901760
        %3913 = vmatpush.msra.mxu0 %v3912
        %v3914 = vand.u32 %v3700, 4294901760
        %3915 = vmatpush.msra.mxu0 %v3914
        %v3916 = vand.u32 %v3699, 4294901760
        %3917 = vmatpush.msra.mxu0 %v3916
        %v3918 = vand.u32 %v3698, 4294901760
        %3919 = vmatpush.msra.mxu0 %v3918
        %v3920 = vand.u32 %v3708, 4294901760
        %3921 = vmatmul.f32.gmra.mxu0 %v3920
        %v3922 = vpop.f32.mrf.mxu0
        %v3923 = vadd.f32 %v3894, %v3922
        %v3924 = vand.u32 %v3711, 4294901760
        %3925 = vmatmul.f32.gmra.mxu0 %v3924
        %v3926 = vpop.f32.mrf.mxu0
        %v3927 = vadd.f32 %v3898, %v3926
        %3928 = vdwg.mxu0
        %s3929 = scalar_lea.vmem %s6, 128
        %v3930 = vld [vmem:[%s3929] sm:$0xff]
        %v3931 = vld [vmem:[%s3929 + $0x8] sm:$0xff]
        %v3932 = vld [vmem:[%s3929 + $0x10] sm:$0xff]
        %v3933 = vld [vmem:[%s3929 + $0x18] sm:$0xff]
        %v3934 = vld [vmem:[%s3929 + $0x20] sm:$0xff]
        %v3935 = vld [vmem:[%s3929 + $0x28] sm:$0xff]
        %v3936 = vld [vmem:[%s3929 + $0x30] sm:$0xff]
        %v3937 = vld [vmem:[%s3929 + $0x38] sm:$0xff]
        %v3938 = vld [vmem:[%s3929 + $0x40] sm:$0xff]
        %v3939 = vld [vmem:[%s3929 + $0x48] sm:$0xff]
        %v3940 = vld [vmem:[%s3929 + $0x50] sm:$0xff]
        %v3941 = vld [vmem:[%s3929 + $0x58] sm:$0xff]
        %v3942 = vld [vmem:[%s3929 + $0x60] sm:$0xff]
        %v3943 = vld [vmem:[%s3929 + $0x68] sm:$0xff]
        %v3944 = vld [vmem:[%s3929 + $0x70] sm:$0xff]
        %v3945 = vld [vmem:[%s3929 + $0x78] sm:$0xff]
        %s3946 = scalar_lea.vmem [#allocation10], 1
        %v3947 = vld [vmem:[%s3946] sm:$0x1]
        %v3949 = vperm.slane %v3947, 0
        %v3951 = vand.u32 %v3945, 4294901760
        %3952 = vmatpush.msra.mxu0 %v3951
        %v3953 = vand.u32 %v3944, 4294901760
        %3954 = vmatpush.msra.mxu0 %v3953
        %v3955 = vand.u32 %v3943, 4294901760
        %3956 = vmatpush.msra.mxu0 %v3955
        %v3957 = vand.u32 %v3942, 4294901760
        %3958 = vmatpush.msra.mxu0 %v3957
        %v3959 = vand.u32 %v3941, 4294901760
        %3960 = vmatpush.msra.mxu0 %v3959
        %v3961 = vand.u32 %v3940, 4294901760
        %3962 = vmatpush.msra.mxu0 %v3961
        %v3963 = vand.u32 %v3939, 4294901760
        %3964 = vmatpush.msra.mxu0 %v3963
        %v3965 = vand.u32 %v3938, 4294901760
        %3966 = vmatpush.msra.mxu0 %v3965
        %v3967 = vand.u32 %v3937, 4294901760
        %3968 = vmatpush.msra.mxu0 %v3967
        %v3969 = vand.u32 %v3936, 4294901760
        %3970 = vmatpush.msra.mxu0 %v3969
        %v3971 = vand.u32 %v3935, 4294901760
        %3972 = vmatpush.msra.mxu0 %v3971
        %v3973 = vand.u32 %v3934, 4294901760
        %3974 = vmatpush.msra.mxu0 %v3973
        %v3975 = vand.u32 %v3933, 4294901760
        %3976 = vmatpush.msra.mxu0 %v3975
        %v3977 = vand.u32 %v3932, 4294901760
        %3978 = vmatpush.msra.mxu0 %v3977
        %v3979 = vand.u32 %v3931, 4294901760
        %3980 = vmatpush.msra.mxu0 %v3979
        %v3981 = vand.u32 %v3930, 4294901760
        %3982 = vmatpush.msra.mxu0 %v3981
        %v3983 = vand.u32 %v3923, 4294901760
        %v3984 = vsub.f32 %v3923, %v3983
        %v3985 = vand.u32 %v3984, 4294901760
        %v3986 = vsub.f32 %v3984, %v3985
        %v3987 = vand.u32 %v3986, 4294901760
        %3988 = vmatmul.f32.gmra.mxu0 %v3987
        %v3989 = vpop.f32.mrf.mxu0
        %v3990 = vadd.f32 %v3949, %v3989
        %v3991 = vand.u32 %v3927, 4294901760
        %v3992 = vsub.f32 %v3927, %v3991
        %v3993 = vand.u32 %v3992, 4294901760
        %v3994 = vsub.f32 %v3992, %v3993
        %v3995 = vand.u32 %v3994, 4294901760
        %3996 = vmatmul.f32.gmra.mxu0 %v3995
        %v3997 = vpop.f32.mrf.mxu0
        %v3998 = vadd.f32 %v3949, %v3997
        %3999 = vdwg.mxu0
        %v4000 = vand.u32 %v3945, 4294901760
        %v4001 = vsub.f32 %v3945, %v4000
        %v4002 = vand.u32 %v4001, 4294901760
        %v4003 = vsub.f32 %v4001, %v4002
        %v4004 = vand.u32 %v4003, 4294901760
        %4005 = vmatpush.msra.mxu0 %v4004
        %v4006 = vand.u32 %v3944, 4294901760
        %v4007 = vsub.f32 %v3944, %v4006
        %v4008 = vand.u32 %v4007, 4294901760
        %v4009 = vsub.f32 %v4007, %v4008
        %v4010 = vand.u32 %v4009, 4294901760
        %4011 = vmatpush.msra.mxu0 %v4010
        %v4012 = vand.u32 %v3943, 4294901760
        %v4013 = vsub.f32 %v3943, %v4012
        %v4014 = vand.u32 %v4013, 4294901760
        %v4015 = vsub.f32 %v4013, %v4014
        %v4016 = vand.u32 %v4015, 4294901760
        %4017 = vmatpush.msra.mxu0 %v4016
        %v4018 = vand.u32 %v3942, 4294901760
        %v4019 = vsub.f32 %v3942, %v4018
        %v4020 = vand.u32 %v4019, 4294901760
        %v4021 = vsub.f32 %v4019, %v4020
        %v4022 = vand.u32 %v4021, 4294901760
        %4023 = vmatpush.msra.mxu0 %v4022
        %v4024 = vand.u32 %v3941, 4294901760
        %v4025 = vsub.f32 %v3941, %v4024
        %v4026 = vand.u32 %v4025, 4294901760
        %v4027 = vsub.f32 %v4025, %v4026
        %v4028 = vand.u32 %v4027, 4294901760
        %4029 = vmatpush.msra.mxu0 %v4028
        %v4030 = vand.u32 %v3940, 4294901760
        %v4031 = vsub.f32 %v3940, %v4030
        %v4032 = vand.u32 %v4031, 4294901760
        %v4033 = vsub.f32 %v4031, %v4032
        %v4034 = vand.u32 %v4033, 4294901760
        %4035 = vmatpush.msra.mxu0 %v4034
        %v4036 = vand.u32 %v3939, 4294901760
        %v4037 = vsub.f32 %v3939, %v4036
        %v4038 = vand.u32 %v4037, 4294901760
        %v4039 = vsub.f32 %v4037, %v4038
        %v4040 = vand.u32 %v4039, 4294901760
        %4041 = vmatpush.msra.mxu0 %v4040
        %v4042 = vand.u32 %v3938, 4294901760
        %v4043 = vsub.f32 %v3938, %v4042
        %v4044 = vand.u32 %v4043, 4294901760
        %v4045 = vsub.f32 %v4043, %v4044
        %v4046 = vand.u32 %v4045, 4294901760
        %4047 = vmatpush.msra.mxu0 %v4046
        %v4048 = vand.u32 %v3937, 4294901760
        %v4049 = vsub.f32 %v3937, %v4048
        %v4050 = vand.u32 %v4049, 4294901760
        %v4051 = vsub.f32 %v4049, %v4050
        %v4052 = vand.u32 %v4051, 4294901760
        %4053 = vmatpush.msra.mxu0 %v4052
        %v4054 = vand.u32 %v3936, 4294901760
        %v4055 = vsub.f32 %v3936, %v4054
        %v4056 = vand.u32 %v4055, 4294901760
        %v4057 = vsub.f32 %v4055, %v4056
        %v4058 = vand.u32 %v4057, 4294901760
        %4059 = vmatpush.msra.mxu0 %v4058
        %v4060 = vand.u32 %v3935, 4294901760
        %v4061 = vsub.f32 %v3935, %v4060
        %v4062 = vand.u32 %v4061, 4294901760
        %v4063 = vsub.f32 %v4061, %v4062
        %v4064 = vand.u32 %v4063, 4294901760
        %4065 = vmatpush.msra.mxu0 %v4064
        %v4066 = vand.u32 %v3934, 4294901760
        %v4067 = vsub.f32 %v3934, %v4066
        %v4068 = vand.u32 %v4067, 4294901760
        %v4069 = vsub.f32 %v4067, %v4068
        %v4070 = vand.u32 %v4069, 4294901760
        %4071 = vmatpush.msra.mxu0 %v4070
        %v4072 = vand.u32 %v3933, 4294901760
        %v4073 = vsub.f32 %v3933, %v4072
        %v4074 = vand.u32 %v4073, 4294901760
        %v4075 = vsub.f32 %v4073, %v4074
        %v4076 = vand.u32 %v4075, 4294901760
        %4077 = vmatpush.msra.mxu0 %v4076
        %v4078 = vand.u32 %v3932, 4294901760
        %v4079 = vsub.f32 %v3932, %v4078
        %v4080 = vand.u32 %v4079, 4294901760
        %v4081 = vsub.f32 %v4079, %v4080
        %v4082 = vand.u32 %v4081, 4294901760
        %4083 = vmatpush.msra.mxu0 %v4082
        %v4084 = vand.u32 %v3931, 4294901760
        %v4085 = vsub.f32 %v3931, %v4084
        %v4086 = vand.u32 %v4085, 4294901760
        %v4087 = vsub.f32 %v4085, %v4086
        %v4088 = vand.u32 %v4087, 4294901760
        %4089 = vmatpush.msra.mxu0 %v4088
        %v4090 = vand.u32 %v3930, 4294901760
        %v4091 = vsub.f32 %v3930, %v4090
        %v4092 = vand.u32 %v4091, 4294901760
        %v4093 = vsub.f32 %v4091, %v4092
        %v4094 = vand.u32 %v4093, 4294901760
        %4095 = vmatpush.msra.mxu0 %v4094
        %v4096 = vand.u32 %v3923, 4294901760
        %4097 = vmatmul.f32.gmra.mxu0 %v4096
        %v4098 = vpop.f32.mrf.mxu0
        %v4099 = vadd.f32 %v3990, %v4098
        %v4100 = vand.u32 %v3927, 4294901760
        %4101 = vmatmul.f32.gmra.mxu0 %v4100
        %v4102 = vpop.f32.mrf.mxu0
        %v4103 = vadd.f32 %v3998, %v4102
        %4104 = vdwg.mxu0
        %v4105 = vand.u32 %v3945, 4294901760
        %v4106 = vsub.f32 %v3945, %v4105
        %4107 = vmatpush.msra.mxu0 %v4106
        %v4108 = vand.u32 %v3944, 4294901760
        %v4109 = vsub.f32 %v3944, %v4108
        %4110 = vmatpush.msra.mxu0 %v4109
        %v4111 = vand.u32 %v3943, 4294901760
        %v4112 = vsub.f32 %v3943, %v4111
        %4113 = vmatpush.msra.mxu0 %v4112
        %v4114 = vand.u32 %v3942, 4294901760
        %v4115 = vsub.f32 %v3942, %v4114
        %4116 = vmatpush.msra.mxu0 %v4115
        %v4117 = vand.u32 %v3941, 4294901760
        %v4118 = vsub.f32 %v3941, %v4117
        %4119 = vmatpush.msra.mxu0 %v4118
        %v4120 = vand.u32 %v3940, 4294901760
        %v4121 = vsub.f32 %v3940, %v4120
        %4122 = vmatpush.msra.mxu0 %v4121
        %v4123 = vand.u32 %v3939, 4294901760
        %v4124 = vsub.f32 %v3939, %v4123
        %4125 = vmatpush.msra.mxu0 %v4124
        %v4126 = vand.u32 %v3938, 4294901760
        %v4127 = vsub.f32 %v3938, %v4126
        %4128 = vmatpush.msra.mxu0 %v4127
        %v4129 = vand.u32 %v3937, 4294901760
        %v4130 = vsub.f32 %v3937, %v4129
        %4131 = vmatpush.msra.mxu0 %v4130
        %v4132 = vand.u32 %v3936, 4294901760
        %v4133 = vsub.f32 %v3936, %v4132
        %4134 = vmatpush.msra.mxu0 %v4133
        %v4135 = vand.u32 %v3935, 4294901760
        %v4136 = vsub.f32 %v3935, %v4135
        %4137 = vmatpush.msra.mxu0 %v4136
        %v4138 = vand.u32 %v3934, 4294901760
        %v4139 = vsub.f32 %v3934, %v4138
        %4140 = vmatpush.msra.mxu0 %v4139
        %v4141 = vand.u32 %v3933, 4294901760
        %v4142 = vsub.f32 %v3933, %v4141
        %4143 = vmatpush.msra.mxu0 %v4142
        %v4144 = vand.u32 %v3932, 4294901760
        %v4145 = vsub.f32 %v3932, %v4144
        %4146 = vmatpush.msra.mxu0 %v4145
        %v4147 = vand.u32 %v3931, 4294901760
        %v4148 = vsub.f32 %v3931, %v4147
        %4149 = vmatpush.msra.mxu0 %v4148
        %v4150 = vand.u32 %v3930, 4294901760
        %v4151 = vsub.f32 %v3930, %v4150
        %4152 = vmatpush.msra.mxu0 %v4151
        %v4153 = vand.u32 %v3923, 4294901760
        %v4154 = vsub.f32 %v3923, %v4153
        %4155 = vmatmul.f32.gmra.mxu0 %v4154
        %v4156 = vpop.f32.mrf.mxu0
        %v4157 = vadd.f32 %v4099, %v4156
        %v4158 = vand.u32 %v3927, 4294901760
        %v4159 = vsub.f32 %v3927, %v4158
        %4160 = vmatmul.f32.gmra.mxu0 %v4159
        %v4161 = vpop.f32.mrf.mxu0
        %v4162 = vadd.f32 %v4103, %v4161
        %4163 = vdwg.mxu0
        %v4164 = vand.u32 %v3945, 4294901760
        %4165 = vmatpush.msra.mxu0 %v4164
        %v4166 = vand.u32 %v3944, 4294901760
        %4167 = vmatpush.msra.mxu0 %v4166
        %v4168 = vand.u32 %v3943, 4294901760
        %4169 = vmatpush.msra.mxu0 %v4168
        %v4170 = vand.u32 %v3942, 4294901760
        %4171 = vmatpush.msra.mxu0 %v4170
        %v4172 = vand.u32 %v3941, 4294901760
        %4173 = vmatpush.msra.mxu0 %v4172
        %v4174 = vand.u32 %v3940, 4294901760
        %4175 = vmatpush.msra.mxu0 %v4174
        %v4176 = vand.u32 %v3939, 4294901760
        %4177 = vmatpush.msra.mxu0 %v4176
        %v4178 = vand.u32 %v3938, 4294901760
        %4179 = vmatpush.msra.mxu0 %v4178
        %v4180 = vand.u32 %v3937, 4294901760
        %4181 = vmatpush.msra.mxu0 %v4180
        %v4182 = vand.u32 %v3936, 4294901760
        %4183 = vmatpush.msra.mxu0 %v4182
        %v4184 = vand.u32 %v3935, 4294901760
        %4185 = vmatpush.msra.mxu0 %v4184
        %v4186 = vand.u32 %v3934, 4294901760
        %4187 = vmatpush.msra.mxu0 %v4186
        %v4188 = vand.u32 %v3933, 4294901760
        %4189 = vmatpush.msra.mxu0 %v4188
        %v4190 = vand.u32 %v3932, 4294901760
        %4191 = vmatpush.msra.mxu0 %v4190
        %v4192 = vand.u32 %v3931, 4294901760
        %4193 = vmatpush.msra.mxu0 %v4192
        %v4194 = vand.u32 %v3930, 4294901760
        %4195 = vmatpush.msra.mxu0 %v4194
        %v4196 = vand.u32 %v3923, 4294901760
        %v4197 = vsub.f32 %v3923, %v4196
        %v4198 = vand.u32 %v4197, 4294901760
        %4199 = vmatmul.f32.gmra.mxu0 %v4198
        %v4200 = vpop.f32.mrf.mxu0
        %v4201 = vadd.f32 %v4157, %v4200
        %v4202 = vand.u32 %v3927, 4294901760
        %v4203 = vsub.f32 %v3927, %v4202
        %v4204 = vand.u32 %v4203, 4294901760
        %4205 = vmatmul.f32.gmra.mxu0 %v4204
        %v4206 = vpop.f32.mrf.mxu0
        %v4207 = vadd.f32 %v4162, %v4206
        %4208 = vdwg.mxu0
        %v4209 = vand.u32 %v3945, 4294901760
        %v4210 = vsub.f32 %v3945, %v4209
        %v4211 = vand.u32 %v4210, 4294901760
        %4212 = vmatpush.msra.mxu0 %v4211
        %v4213 = vand.u32 %v3944, 4294901760
        %v4214 = vsub.f32 %v3944, %v4213
        %v4215 = vand.u32 %v4214, 4294901760
        %4216 = vmatpush.msra.mxu0 %v4215
        %v4217 = vand.u32 %v3943, 4294901760
        %v4218 = vsub.f32 %v3943, %v4217
        %v4219 = vand.u32 %v4218, 4294901760
        %4220 = vmatpush.msra.mxu0 %v4219
        %v4221 = vand.u32 %v3942, 4294901760
        %v4222 = vsub.f32 %v3942, %v4221
        %v4223 = vand.u32 %v4222, 4294901760
        %4224 = vmatpush.msra.mxu0 %v4223
        %v4225 = vand.u32 %v3941, 4294901760
        %v4226 = vsub.f32 %v3941, %v4225
        %v4227 = vand.u32 %v4226, 4294901760
        %4228 = vmatpush.msra.mxu0 %v4227
        %v4229 = vand.u32 %v3940, 4294901760
        %v4230 = vsub.f32 %v3940, %v4229
        %v4231 = vand.u32 %v4230, 4294901760
        %4232 = vmatpush.msra.mxu0 %v4231
        %v4233 = vand.u32 %v3939, 4294901760
        %v4234 = vsub.f32 %v3939, %v4233
        %v4235 = vand.u32 %v4234, 4294901760
        %4236 = vmatpush.msra.mxu0 %v4235
        %v4237 = vand.u32 %v3938, 4294901760
        %v4238 = vsub.f32 %v3938, %v4237
        %v4239 = vand.u32 %v4238, 4294901760
        %4240 = vmatpush.msra.mxu0 %v4239
        %v4241 = vand.u32 %v3937, 4294901760
        %v4242 = vsub.f32 %v3937, %v4241
        %v4243 = vand.u32 %v4242, 4294901760
        %4244 = vmatpush.msra.mxu0 %v4243
        %v4245 = vand.u32 %v3936, 4294901760
        %v4246 = vsub.f32 %v3936, %v4245
        %v4247 = vand.u32 %v4246, 4294901760
        %4248 = vmatpush.msra.mxu0 %v4247
        %v4249 = vand.u32 %v3935, 4294901760
        %v4250 = vsub.f32 %v3935, %v4249
        %v4251 = vand.u32 %v4250, 4294901760
        %4252 = vmatpush.msra.mxu0 %v4251
        %v4253 = vand.u32 %v3934, 4294901760
        %v4254 = vsub.f32 %v3934, %v4253
        %v4255 = vand.u32 %v4254, 4294901760
        %4256 = vmatpush.msra.mxu0 %v4255
        %v4257 = vand.u32 %v3933, 4294901760
        %v4258 = vsub.f32 %v3933, %v4257
        %v4259 = vand.u32 %v4258, 4294901760
        %4260 = vmatpush.msra.mxu0 %v4259
        %v4261 = vand.u32 %v3932, 4294901760
        %v4262 = vsub.f32 %v3932, %v4261
        %v4263 = vand.u32 %v4262, 4294901760
        %4264 = vmatpush.msra.mxu0 %v4263
        %v4265 = vand.u32 %v3931, 4294901760
        %v4266 = vsub.f32 %v3931, %v4265
        %v4267 = vand.u32 %v4266, 4294901760
        %4268 = vmatpush.msra.mxu0 %v4267
        %v4269 = vand.u32 %v3930, 4294901760
        %v4270 = vsub.f32 %v3930, %v4269
        %v4271 = vand.u32 %v4270, 4294901760
        %4272 = vmatpush.msra.mxu0 %v4271
        %v4273 = vand.u32 %v3923, 4294901760
        %4274 = vmatmul.f32.gmra.mxu0 %v4273
        %v4275 = vpop.f32.mrf.mxu0
        %v4276 = vadd.f32 %v4201, %v4275
        %v4277 = vand.u32 %v3927, 4294901760
        %4278 = vmatmul.f32.gmra.mxu0 %v4277
        %v4279 = vpop.f32.mrf.mxu0
        %v4280 = vadd.f32 %v4207, %v4279
        %4281 = vdwg.mxu0
        %v4282 = vand.u32 %v3945, 4294901760
        %4283 = vmatpush.msra.mxu0 %v4282
        %v4284 = vand.u32 %v3944, 4294901760
        %4285 = vmatpush.msra.mxu0 %v4284
        %v4286 = vand.u32 %v3943, 4294901760
        %4287 = vmatpush.msra.mxu0 %v4286
        %v4288 = vand.u32 %v3942, 4294901760
        %4289 = vmatpush.msra.mxu0 %v4288
        %v4290 = vand.u32 %v3941, 4294901760
        %4291 = vmatpush.msra.mxu0 %v4290
        %v4292 = vand.u32 %v3940, 4294901760
        %4293 = vmatpush.msra.mxu0 %v4292
        %v4294 = vand.u32 %v3939, 4294901760
        %4295 = vmatpush.msra.mxu0 %v4294
        %v4296 = vand.u32 %v3938, 4294901760
        %4297 = vmatpush.msra.mxu0 %v4296
        %v4298 = vand.u32 %v3937, 4294901760
        %4299 = vmatpush.msra.mxu0 %v4298
        %v4300 = vand.u32 %v3936, 4294901760
        %4301 = vmatpush.msra.mxu0 %v4300
        %v4302 = vand.u32 %v3935, 4294901760
        %4303 = vmatpush.msra.mxu0 %v4302
        %v4304 = vand.u32 %v3934, 4294901760
        %4305 = vmatpush.msra.mxu0 %v4304
        %v4306 = vand.u32 %v3933, 4294901760
        %4307 = vmatpush.msra.mxu0 %v4306
        %v4308 = vand.u32 %v3932, 4294901760
        %4309 = vmatpush.msra.mxu0 %v4308
        %v4310 = vand.u32 %v3931, 4294901760
        %4311 = vmatpush.msra.mxu0 %v4310
        %v4312 = vand.u32 %v3930, 4294901760
        %4313 = vmatpush.msra.mxu0 %v4312
        %v4314 = vand.u32 %v3923, 4294901760
        %4315 = vmatmul.f32.gmra.mxu0 %v4314
        %v4316 = vpop.f32.mrf.mxu0
        %v4317 = vadd.f32 %v4276, %v4316
        %v4318 = vand.u32 %v3927, 4294901760
        %4319 = vmatmul.f32.gmra.mxu0 %v4318
        %v4320 = vpop.f32.mrf.mxu0
        %v4321 = vadd.f32 %v4280, %v4320
        %4322 = vdwg.mxu0
        %v4323 = vmax.f32 %v4317, 0.0
        %v4324 = vmax.f32 %v4321, 0.0
        %s4325 = scalar_lea.vmem %s8, 64
        %v4326 = vld [vmem:[%s4325] sm:$0xff]
        %v4327 = vld [vmem:[%s4325 + $0x8] sm:$0xff]
        %v4328 = vld [vmem:[%s4325 + $0x10] sm:$0xff]
        %v4329 = vld [vmem:[%s4325 + $0x18] sm:$0xff]
        %v4330 = vld [vmem:[%s4325 + $0x20] sm:$0xff]
        %v4331 = vld [vmem:[%s4325 + $0x28] sm:$0xff]
        %v4332 = vld [vmem:[%s4325 + $0x30] sm:$0xff]
        %v4333 = vld [vmem:[%s4325 + $0x38] sm:$0xff]
        %s4334 = scalar_lea.vmem [#allocation11], 1
        %v4335 = vld [vmem:[%s4334] sm:$0x1]
        %v4337 = vperm.slane %v4335, 0
        %v4340 = vsel %vm2860, %v4323, 0
        %v4343 = vsel %vm2860, %v4324, 0
        %4345 = vmatpush.msra.mxu0 0.0
        %4346 = vmatpush.msra.mxu0 0.0
        %4347 = vmatpush.msra.mxu0 0.0
        %4348 = vmatpush.msra.mxu0 0.0
        %4349 = vmatpush.msra.mxu0 0.0
        %4350 = vmatpush.msra.mxu0 0.0
        %4351 = vmatpush.msra.mxu0 0.0
        %4352 = vmatpush.msra.mxu0 0.0
        %v4353 = vand.u32 %v4333, 4294901760
        %4354 = vmatpush.msra.mxu0 %v4353
        %v4355 = vand.u32 %v4332, 4294901760
        %4356 = vmatpush.msra.mxu0 %v4355
        %v4357 = vand.u32 %v4331, 4294901760
        %4358 = vmatpush.msra.mxu0 %v4357
        %v4359 = vand.u32 %v4330, 4294901760
        %4360 = vmatpush.msra.mxu0 %v4359
        %v4361 = vand.u32 %v4329, 4294901760
        %4362 = vmatpush.msra.mxu0 %v4361
        %v4363 = vand.u32 %v4328, 4294901760
        %4364 = vmatpush.msra.mxu0 %v4363
        %v4365 = vand.u32 %v4327, 4294901760
        %4366 = vmatpush.msra.mxu0 %v4365
        %v4367 = vand.u32 %v4326, 4294901760
        %4368 = vmatpush.msra.mxu0 %v4367
        %v4369 = vand.u32 %v4340, 4294901760
        %v4370 = vsub.f32 %v4340, %v4369
        %v4371 = vand.u32 %v4370, 4294901760
        %v4372 = vsub.f32 %v4370, %v4371
        %v4373 = vand.u32 %v4372, 4294901760
        %4374 = vmatmul.f32.gmra.mxu0 %v4373
        %v4375 = vpop.f32.mrf.mxu0
        %v4376 = vadd.f32 %v4337, %v4375
        %v4377 = vand.u32 %v4343, 4294901760
        %v4378 = vsub.f32 %v4343, %v4377
        %v4379 = vand.u32 %v4378, 4294901760
        %v4380 = vsub.f32 %v4378, %v4379
        %v4381 = vand.u32 %v4380, 4294901760
        %4382 = vmatmul.f32.gmra.mxu0 %v4381
        %v4383 = vpop.f32.mrf.mxu0
        %v4384 = vadd.f32 %v4337, %v4383
        %4385 = vdwg.mxu0
        %4386 = vmatpush.msra.mxu0 0.0
        %4387 = vmatpush.msra.mxu0 0.0
        %4388 = vmatpush.msra.mxu0 0.0
        %4389 = vmatpush.msra.mxu0 0.0
        %4390 = vmatpush.msra.mxu0 0.0
        %4391 = vmatpush.msra.mxu0 0.0
        %4392 = vmatpush.msra.mxu0 0.0
        %4393 = vmatpush.msra.mxu0 0.0
        %v4394 = vand.u32 %v4333, 4294901760
        %v4395 = vsub.f32 %v4333, %v4394
        %v4396 = vand.u32 %v4395, 4294901760
        %v4397 = vsub.f32 %v4395, %v4396
        %v4398 = vand.u32 %v4397, 4294901760
        %4399 = vmatpush.msra.mxu0 %v4398
        %v4400 = vand.u32 %v4332, 4294901760
        %v4401 = vsub.f32 %v4332, %v4400
        %v4402 = vand.u32 %v4401, 4294901760
        %v4403 = vsub.f32 %v4401, %v4402
        %v4404 = vand.u32 %v4403, 4294901760
        %4405 = vmatpush.msra.mxu0 %v4404
        %v4406 = vand.u32 %v4331, 4294901760
        %v4407 = vsub.f32 %v4331, %v4406
        %v4408 = vand.u32 %v4407, 4294901760
        %v4409 = vsub.f32 %v4407, %v4408
        %v4410 = vand.u32 %v4409, 4294901760
        %4411 = vmatpush.msra.mxu0 %v4410
        %v4412 = vand.u32 %v4330, 4294901760
        %v4413 = vsub.f32 %v4330, %v4412
        %v4414 = vand.u32 %v4413, 4294901760
        %v4415 = vsub.f32 %v4413, %v4414
        %v4416 = vand.u32 %v4415, 4294901760
        %4417 = vmatpush.msra.mxu0 %v4416
        %v4418 = vand.u32 %v4329, 4294901760
        %v4419 = vsub.f32 %v4329, %v4418
        %v4420 = vand.u32 %v4419, 4294901760
        %v4421 = vsub.f32 %v4419, %v4420
        %v4422 = vand.u32 %v4421, 4294901760
        %4423 = vmatpush.msra.mxu0 %v4422
        %v4424 = vand.u32 %v4328, 4294901760
        %v4425 = vsub.f32 %v4328, %v4424
        %v4426 = vand.u32 %v4425, 4294901760
        %v4427 = vsub.f32 %v4425, %v4426
        %v4428 = vand.u32 %v4427, 4294901760
        %4429 = vmatpush.msra.mxu0 %v4428
        %v4430 = vand.u32 %v4327, 4294901760
        %v4431 = vsub.f32 %v4327, %v4430
        %v4432 = vand.u32 %v4431, 4294901760
        %v4433 = vsub.f32 %v4431, %v4432
        %v4434 = vand.u32 %v4433, 4294901760
        %4435 = vmatpush.msra.mxu0 %v4434
        %v4436 = vand.u32 %v4326, 4294901760
        %v4437 = vsub.f32 %v4326, %v4436
        %v4438 = vand.u32 %v4437, 4294901760
        %v4439 = vsub.f32 %v4437, %v4438
        %v4440 = vand.u32 %v4439, 4294901760
        %4441 = vmatpush.msra.mxu0 %v4440
        %v4442 = vand.u32 %v4340, 4294901760
        %4443 = vmatmul.f32.gmra.mxu0 %v4442
        %v4444 = vpop.f32.mrf.mxu0
        %v4445 = vadd.f32 %v4376, %v4444
        %v4446 = vand.u32 %v4343, 4294901760
        %4447 = vmatmul.f32.gmra.mxu0 %v4446
        %v4448 = vpop.f32.mrf.mxu0
        %v4449 = vadd.f32 %v4384, %v4448
        %4450 = vdwg.mxu0
        %4451 = vmatpush.msra.mxu0 0.0
        %4452 = vmatpush.msra.mxu0 0.0
        %4453 = vmatpush.msra.mxu0 0.0
        %4454 = vmatpush.msra.mxu0 0.0
        %4455 = vmatpush.msra.mxu0 0.0
        %4456 = vmatpush.msra.mxu0 0.0
        %4457 = vmatpush.msra.mxu0 0.0
        %4458 = vmatpush.msra.mxu0 0.0
        %v4459 = vand.u32 %v4333, 4294901760
        %v4460 = vsub.f32 %v4333, %v4459
        %4461 = vmatpush.msra.mxu0 %v4460
        %v4462 = vand.u32 %v4332, 4294901760
        %v4463 = vsub.f32 %v4332, %v4462
        %4464 = vmatpush.msra.mxu0 %v4463
        %v4465 = vand.u32 %v4331, 4294901760
        %v4466 = vsub.f32 %v4331, %v4465
        %4467 = vmatpush.msra.mxu0 %v4466
        %v4468 = vand.u32 %v4330, 4294901760
        %v4469 = vsub.f32 %v4330, %v4468
        %4470 = vmatpush.msra.mxu0 %v4469
        %v4471 = vand.u32 %v4329, 4294901760
        %v4472 = vsub.f32 %v4329, %v4471
        %4473 = vmatpush.msra.mxu0 %v4472
        %v4474 = vand.u32 %v4328, 4294901760
        %v4475 = vsub.f32 %v4328, %v4474
        %4476 = vmatpush.msra.mxu0 %v4475
        %v4477 = vand.u32 %v4327, 4294901760
        %v4478 = vsub.f32 %v4327, %v4477
        %4479 = vmatpush.msra.mxu0 %v4478
        %v4480 = vand.u32 %v4326, 4294901760
        %v4481 = vsub.f32 %v4326, %v4480
        %4482 = vmatpush.msra.mxu0 %v4481
        %v4483 = vand.u32 %v4340, 4294901760
        %v4484 = vsub.f32 %v4340, %v4483
        %4485 = vmatmul.f32.gmra.mxu0 %v4484
        %v4486 = vpop.f32.mrf.mxu0
        %v4487 = vadd.f32 %v4445, %v4486
        %v4488 = vand.u32 %v4343, 4294901760
        %v4489 = vsub.f32 %v4343, %v4488
        %4490 = vmatmul.f32.gmra.mxu0 %v4489
        %v4491 = vpop.f32.mrf.mxu0
        %v4492 = vadd.f32 %v4449, %v4491
        %4493 = vdwg.mxu0
        %4494 = vmatpush.msra.mxu0 0.0
        %4495 = vmatpush.msra.mxu0 0.0
        %4496 = vmatpush.msra.mxu0 0.0
        %4497 = vmatpush.msra.mxu0 0.0
        %4498 = vmatpush.msra.mxu0 0.0
        %4499 = vmatpush.msra.mxu0 0.0
        %4500 = vmatpush.msra.mxu0 0.0
        %4501 = vmatpush.msra.mxu0 0.0
        %v4502 = vand.u32 %v4333, 4294901760
        %4503 = vmatpush.msra.mxu0 %v4502
        %v4504 = vand.u32 %v4332, 4294901760
        %4505 = vmatpush.msra.mxu0 %v4504
        %v4506 = vand.u32 %v4331, 4294901760
        %4507 = vmatpush.msra.mxu0 %v4506
        %v4508 = vand.u32 %v4330, 4294901760
        %4509 = vmatpush.msra.mxu0 %v4508
        %v4510 = vand.u32 %v4329, 4294901760
        %4511 = vmatpush.msra.mxu0 %v4510
        %v4512 = vand.u32 %v4328, 4294901760
        %4513 = vmatpush.msra.mxu0 %v4512
        %v4514 = vand.u32 %v4327, 4294901760
        %4515 = vmatpush.msra.mxu0 %v4514
        %v4516 = vand.u32 %v4326, 4294901760
        %4517 = vmatpush.msra.mxu0 %v4516
        %v4518 = vand.u32 %v4340, 4294901760
        %v4519 = vsub.f32 %v4340, %v4518
        %v4520 = vand.u32 %v4519, 4294901760
        %4521 = vmatmul.f32.gmra.mxu0 %v4520
        %v4522 = vpop.f32.mrf.mxu0
        %v4523 = vadd.f32 %v4487, %v4522
        %v4524 = vand.u32 %v4343, 4294901760
        %v4525 = vsub.f32 %v4343, %v4524
        %v4526 = vand.u32 %v4525, 4294901760
        %4527 = vmatmul.f32.gmra.mxu0 %v4526
        %v4528 = vpop.f32.mrf.mxu0
        %v4529 = vadd.f32 %v4492, %v4528
        %4530 = vdwg.mxu0
        %4531 = vmatpush.msra.mxu0 0.0
        %4532 = vmatpush.msra.mxu0 0.0
        %4533 = vmatpush.msra.mxu0 0.0
        %4534 = vmatpush.msra.mxu0 0.0
        %4535 = vmatpush.msra.mxu0 0.0
        %4536 = vmatpush.msra.mxu0 0.0
        %4537 = vmatpush.msra.mxu0 0.0
        %4538 = vmatpush.msra.mxu0 0.0
        %v4539 = vand.u32 %v4333, 4294901760
        %v4540 = vsub.f32 %v4333, %v4539
        %v4541 = vand.u32 %v4540, 4294901760
        %4542 = vmatpush.msra.mxu0 %v4541
        %v4543 = vand.u32 %v4332, 4294901760
        %v4544 = vsub.f32 %v4332, %v4543
        %v4545 = vand.u32 %v4544, 4294901760
        %4546 = vmatpush.msra.mxu0 %v4545
        %v4547 = vand.u32 %v4331, 4294901760
        %v4548 = vsub.f32 %v4331, %v4547
        %v4549 = vand.u32 %v4548, 4294901760
        %4550 = vmatpush.msra.mxu0 %v4549
        %v4551 = vand.u32 %v4330, 4294901760
        %v4552 = vsub.f32 %v4330, %v4551
        %v4553 = vand.u32 %v4552, 4294901760
        %4554 = vmatpush.msra.mxu0 %v4553
        %v4555 = vand.u32 %v4329, 4294901760
        %v4556 = vsub.f32 %v4329, %v4555
        %v4557 = vand.u32 %v4556, 4294901760
        %4558 = vmatpush.msra.mxu0 %v4557
        %v4559 = vand.u32 %v4328, 4294901760
        %v4560 = vsub.f32 %v4328, %v4559
        %v4561 = vand.u32 %v4560, 4294901760
        %4562 = vmatpush.msra.mxu0 %v4561
        %v4563 = vand.u32 %v4327, 4294901760
        %v4564 = vsub.f32 %v4327, %v4563
        %v4565 = vand.u32 %v4564, 4294901760
        %4566 = vmatpush.msra.mxu0 %v4565
        %v4567 = vand.u32 %v4326, 4294901760
        %v4568 = vsub.f32 %v4326, %v4567
        %v4569 = vand.u32 %v4568, 4294901760
        %4570 = vmatpush.msra.mxu0 %v4569
        %v4571 = vand.u32 %v4340, 4294901760
        %4572 = vmatmul.f32.gmra.mxu0 %v4571
        %v4573 = vpop.f32.mrf.mxu0
        %v4574 = vadd.f32 %v4523, %v4573
        %v4575 = vand.u32 %v4343, 4294901760
        %4576 = vmatmul.f32.gmra.mxu0 %v4575
        %v4577 = vpop.f32.mrf.mxu0
        %v4578 = vadd.f32 %v4529, %v4577
        %4579 = vdwg.mxu0
        %4580 = vmatpush.msra.mxu0 0.0
        %4581 = vmatpush.msra.mxu0 0.0
        %4582 = vmatpush.msra.mxu0 0.0
        %4583 = vmatpush.msra.mxu0 0.0
        %4584 = vmatpush.msra.mxu0 0.0
        %4585 = vmatpush.msra.mxu0 0.0
        %4586 = vmatpush.msra.mxu0 0.0
        %4587 = vmatpush.msra.mxu0 0.0
        %v4588 = vand.u32 %v4333, 4294901760
        %4589 = vmatpush.msra.mxu0 %v4588
        %v4590 = vand.u32 %v4332, 4294901760
        %4591 = vmatpush.msra.mxu0 %v4590
        %v4592 = vand.u32 %v4331, 4294901760
        %4593 = vmatpush.msra.mxu0 %v4592
        %v4594 = vand.u32 %v4330, 4294901760
        %4595 = vmatpush.msra.mxu0 %v4594
        %v4596 = vand.u32 %v4329, 4294901760
        %4597 = vmatpush.msra.mxu0 %v4596
        %v4598 = vand.u32 %v4328, 4294901760
        %4599 = vmatpush.msra.mxu0 %v4598
        %v4600 = vand.u32 %v4327, 4294901760
        %4601 = vmatpush.msra.mxu0 %v4600
        %v4602 = vand.u32 %v4326, 4294901760
        %4603 = vmatpush.msra.mxu0 %v4602
        %v4604 = vand.u32 %v4340, 4294901760
        %4605 = vmatmul.f32.gmra.mxu0 %v4604
        %v4606 = vpop.f32.mrf.mxu0
        %v4607 = vadd.f32 %v4574, %v4606
        %v4608 = vand.u32 %v4343, 4294901760
        %4609 = vmatmul.f32.gmra.mxu0 %v4608
        %v4610 = vpop.f32.mrf.mxu0
        %v4611 = vadd.f32 %v4578, %v4610
        %4612 = vdwg.mxu0
        %s4613 = scalar_lea.vmem %s10, 2
        %v4614 = vld [vmem:[%s4613] sm:$0x3]
        %v4615 = vadd.f32 %v3923, %v4607
        %v4616 = vadd.f32 %v3927, %v4611
        %4617 = vadd.xlane.f32.xlu0 %v4615
        %v4618 = vpop.xlane.xlu0 %4617
        %4619 = vadd.xlane.f32.xlu0 %v4616
        %v4620 = vpop.xlane.xlu0 %4619
        %v4621 = vmul.f32 %v4618, %v3148
        %v4622 = vmul.f32 %v4620, %v3148
        %v4623 = vsub.f32 %v4615, %v4621
        %v4624 = vsub.f32 %v4616, %v4622
        %v4625 = vmul.f32 %v4623, %v4623
        %v4626 = vmul.f32 %v4624, %v4624
        %4627 = vadd.xlane.f32.xlu0 %v4625
        %v4628 = vpop.xlane.xlu0 %4627
        %4629 = vadd.xlane.f32.xlu0 %v4626
        %v4630 = vpop.xlane.xlu0 %4629
        %v4631 = vmul.f32 %v4628, %v3165
        %v4632 = vmul.f32 %v4630, %v3165
        %v4633 = vrsqrt.pop %v4631
        %v4634 = vmul.f32 %v4633, %v4631
        %v4635 = vmul.f32 %v4634, %v4633
        %v4636 = vmul.f32 0.5, %v4635
        %v4637 = vsub.f32 1.5, %v4636
        %v4638 = vmul.f32 %v4633, %v4637
        %v4639 = vmul.f32 %v4631, %v4638
        %vm4640 = vcmp.eq.f32.partialorder %v4631, inf
        %v4641 = vsel %vm4640, %v4631, %v4639
        %vm4642 = vcmp.eq.f32.partialorder %v4631, 0.0
        %v4643 = vand.u32 %v4631, 2147483648
        %v4644 = vsel %vm4642, %v4643, %v4641
        %v4645 = vrsqrt.pop %v4632
        %v4646 = vmul.f32 %v4645, %v4632
        %v4647 = vmul.f32 %v4646, %v4645
        %v4648 = vmul.f32 0.5, %v4647
        %v4649 = vsub.f32 1.5, %v4648
        %v4650 = vmul.f32 %v4645, %v4649
        %v4651 = vmul.f32 %v4632, %v4650
        %vm4652 = vcmp.eq.f32.partialorder %v4632, inf
        %v4653 = vsel %vm4652, %v4632, %v4651
        %vm4654 = vcmp.eq.f32.partialorder %v4632, 0.0
        %v4655 = vand.u32 %v4632, 2147483648
        %v4656 = vsel %vm4654, %v4655, %v4653
        %v4657 = vadd.f32 %v4644, 1e-06
        %v4658 = vadd.f32 %v4656, 1e-06
        %v4659 = vrcp.pop %v4657
        %v4660 = vmul.f32 %v4657, %v4659
        %v4661 = vsub.f32 1.0, %v4660
        %v4662 = vmul.f32 %v4659, %v4661
        %v4663 = vadd.f32 %v4659, %v4662
        %vm4664 = vweird.f32 %v4657
        %vm4665 = vweird.f32 %v4659
        %vm4666 = vmor %vm4664, %vm4665
        %v4667 = vsel %vm4666, %v4659, %v4663
        %v4668 = vand.u32 2147483647, %v4657
        %vm4669 = vcmp.eq.f32.partialorder %v4668, 8.507059e+37
        %v4670 = vand.u32 %v4657, 2147483648
        %v4671 = vor.u32 1.1754944e-38, %v4670
        %v4672 = vsel %vm4669, %v4671, %v4667
        %v4673 = vmul.f32 %v4623, %v4672
        %v4674 = vrcp.pop %v4658
        %v4675 = vmul.f32 %v4658, %v4674
        %v4676 = vsub.f32 1.0, %v4675
        %v4677 = vmul.f32 %v4674, %v4676
        %v4678 = vadd.f32 %v4674, %v4677
        %vm4679 = vweird.f32 %v4658
        %vm4680 = vweird.f32 %v4674
        %vm4681 = vmor %vm4679, %vm4680
        %v4682 = vsel %vm4681, %v4674, %v4678
        %v4683 = vand.u32 2147483647, %v4658
        %vm4684 = vcmp.eq.f32.partialorder %v4683, 8.507059e+37
        %v4685 = vand.u32 %v4658, 2147483648
        %v4686 = vor.u32 1.1754944e-38, %v4685
        %v4687 = vsel %vm4684, %v4686, %v4682
        %v4688 = vmul.f32 %v4624, %v4687
        %v4689 = vperm.slane %v4614, 0
        %v4690 = vmul.f32 %v4689, %v4673
        %v4691 = vmul.f32 %v4689, %v4688
        %v4692 = vperm.slane %v4614, 1
        %v4693 = vadd.f32 %v4690, %v4692
        %v4694 = vadd.f32 %v4691, %v4692
        %v4695 = vadd.f32 %v3230, %v4693
        %v4696 = vadd.f32 %v3231, %v4694
        %4697 = vrot.lane.b32.xlu0 %v1018, 64
        %v4698 = vpop.permute.xlu0 %4697
        %4699 = vrot.lane.b32.xlu0 %v1022, 64
        %v4700 = vpop.permute.xlu0 %4699
        %4701 = vrot.lane.b32.xlu0 %v1390, 64
        %v4702 = vpop.permute.xlu0 %4701
        %4703 = vrot.lane.b32.xlu0 %v1394, 64
        %v4704 = vpop.permute.xlu0 %4703
        %v4705 = vsel %vm1768, %v4698, 0
        %v4707 = vsel %vm1768, %v4700, 0
        %v4709 = vsel %vm1768, %v4702, 0
        %v4711 = vsel %vm1768, %v4704, 0
        %4713 = vmatpush.xpose.msra.mxu0 0.0
        %4714 = vmatpush.xpose.msra.mxu0 0.0
        %4715 = vmatpush.xpose.msra.mxu0 0.0
        %4716 = vmatpush.xpose.msra.mxu0 0.0
        %4717 = vmatpush.xpose.msra.mxu0 0.0
        %4718 = vmatpush.xpose.msra.mxu0 0.0
        %4719 = vmatpush.xpose.msra.mxu0 0.0
        %4720 = vmatpush.xpose.msra.mxu0 0.0
        %4721 = vmatpush.xpose.msra.mxu0 0.0
        %4722 = vmatpush.xpose.msra.mxu0 0.0
        %4723 = vmatpush.xpose.msra.mxu0 0.0
        %4724 = vmatpush.xpose.msra.mxu0 0.0
        %4725 = vmatpush.xpose.msra.mxu0 0.0
        %4726 = vmatpush.xpose.msra.mxu0 0.0
        %v4727 = vand.u32 %v4711, 4294901760
        %4728 = vmatpush.xpose.msra.mxu0 %v4727
        %v4729 = vand.u32 %v4709, 4294901760
        %4730 = vmatpush.xpose.msra.mxu0 %v4729
        %v4731 = vand.u32 %v4705, 4294901760
        %v4732 = vsub.f32 %v4705, %v4731
        %v4733 = vand.u32 %v4732, 4294901760
        %v4734 = vsub.f32 %v4732, %v4733
        %v4735 = vand.u32 %v4734, 4294901760
        %4736 = vmatmul.f32.gmra.mxu0 %v4735
        %v4737 = vpop.f32.mrf.mxu0
        %v4738 = vadd.f32 0.0, %v4737
        %v4739 = vand.u32 %v4707, 4294901760
        %v4740 = vsub.f32 %v4707, %v4739
        %v4741 = vand.u32 %v4740, 4294901760
        %v4742 = vsub.f32 %v4740, %v4741
        %v4743 = vand.u32 %v4742, 4294901760
        %4744 = vmatmul.f32.gmra.mxu0 %v4743
        %v4745 = vpop.f32.mrf.mxu0
        %v4746 = vadd.f32 0.0, %v4745
        %4747 = vdwg.mxu0
        %4748 = vmatpush.xpose.msra.mxu0 0.0
        %4749 = vmatpush.xpose.msra.mxu0 0.0
        %4750 = vmatpush.xpose.msra.mxu0 0.0
        %4751 = vmatpush.xpose.msra.mxu0 0.0
        %4752 = vmatpush.xpose.msra.mxu0 0.0
        %4753 = vmatpush.xpose.msra.mxu0 0.0
        %4754 = vmatpush.xpose.msra.mxu0 0.0
        %4755 = vmatpush.xpose.msra.mxu0 0.0
        %4756 = vmatpush.xpose.msra.mxu0 0.0
        %4757 = vmatpush.xpose.msra.mxu0 0.0
        %4758 = vmatpush.xpose.msra.mxu0 0.0
        %4759 = vmatpush.xpose.msra.mxu0 0.0
        %4760 = vmatpush.xpose.msra.mxu0 0.0
        %4761 = vmatpush.xpose.msra.mxu0 0.0
        %v4762 = vand.u32 %v4711, 4294901760
        %v4763 = vsub.f32 %v4711, %v4762
        %v4764 = vand.u32 %v4763, 4294901760
        %v4765 = vsub.f32 %v4763, %v4764
        %v4766 = vand.u32 %v4765, 4294901760
        %4767 = vmatpush.xpose.msra.mxu0 %v4766
        %v4768 = vand.u32 %v4709, 4294901760
        %v4769 = vsub.f32 %v4709, %v4768
        %v4770 = vand.u32 %v4769, 4294901760
        %v4771 = vsub.f32 %v4769, %v4770
        %v4772 = vand.u32 %v4771, 4294901760
        %4773 = vmatpush.xpose.msra.mxu0 %v4772
        %v4774 = vand.u32 %v4705, 4294901760
        %4775 = vmatmul.f32.gmra.mxu0 %v4774
        %v4776 = vpop.f32.mrf.mxu0
        %v4777 = vadd.f32 %v4738, %v4776
        %v4778 = vand.u32 %v4707, 4294901760
        %4779 = vmatmul.f32.gmra.mxu0 %v4778
        %v4780 = vpop.f32.mrf.mxu0
        %v4781 = vadd.f32 %v4746, %v4780
        %4782 = vdwg.mxu0
        %4783 = vmatpush.xpose.msra.mxu0 0.0
        %4784 = vmatpush.xpose.msra.mxu0 0.0
        %4785 = vmatpush.xpose.msra.mxu0 0.0
        %4786 = vmatpush.xpose.msra.mxu0 0.0
        %4787 = vmatpush.xpose.msra.mxu0 0.0
        %4788 = vmatpush.xpose.msra.mxu0 0.0
        %4789 = vmatpush.xpose.msra.mxu0 0.0
        %4790 = vmatpush.xpose.msra.mxu0 0.0
        %4791 = vmatpush.xpose.msra.mxu0 0.0
        %4792 = vmatpush.xpose.msra.mxu0 0.0
        %4793 = vmatpush.xpose.msra.mxu0 0.0
        %4794 = vmatpush.xpose.msra.mxu0 0.0
        %4795 = vmatpush.xpose.msra.mxu0 0.0
        %4796 = vmatpush.xpose.msra.mxu0 0.0
        %v4797 = vand.u32 %v4711, 4294901760
        %v4798 = vsub.f32 %v4711, %v4797
        %4799 = vmatpush.xpose.msra.mxu0 %v4798
        %v4800 = vand.u32 %v4709, 4294901760
        %v4801 = vsub.f32 %v4709, %v4800
        %4802 = vmatpush.xpose.msra.mxu0 %v4801
        %v4803 = vand.u32 %v4705, 4294901760
        %v4804 = vsub.f32 %v4705, %v4803
        %4805 = vmatmul.f32.gmra.mxu0 %v4804
        %v4806 = vpop.f32.mrf.mxu0
        %v4807 = vadd.f32 %v4777, %v4806
        %v4808 = vand.u32 %v4707, 4294901760
        %v4809 = vsub.f32 %v4707, %v4808
        %4810 = vmatmul.f32.gmra.mxu0 %v4809
        %v4811 = vpop.f32.mrf.mxu0
        %v4812 = vadd.f32 %v4781, %v4811
        %4813 = vdwg.mxu0
        %4814 = vmatpush.xpose.msra.mxu0 0.0
        %4815 = vmatpush.xpose.msra.mxu0 0.0
        %4816 = vmatpush.xpose.msra.mxu0 0.0
        %4817 = vmatpush.xpose.msra.mxu0 0.0
        %4818 = vmatpush.xpose.msra.mxu0 0.0
        %4819 = vmatpush.xpose.msra.mxu0 0.0
        %4820 = vmatpush.xpose.msra.mxu0 0.0
        %4821 = vmatpush.xpose.msra.mxu0 0.0
        %4822 = vmatpush.xpose.msra.mxu0 0.0
        %4823 = vmatpush.xpose.msra.mxu0 0.0
        %4824 = vmatpush.xpose.msra.mxu0 0.0
        %4825 = vmatpush.xpose.msra.mxu0 0.0
        %4826 = vmatpush.xpose.msra.mxu0 0.0
        %4827 = vmatpush.xpose.msra.mxu0 0.0
        %v4828 = vand.u32 %v4711, 4294901760
        %4829 = vmatpush.xpose.msra.mxu0 %v4828
        %v4830 = vand.u32 %v4709, 4294901760
        %4831 = vmatpush.xpose.msra.mxu0 %v4830
        %v4832 = vand.u32 %v4705, 4294901760
        %v4833 = vsub.f32 %v4705, %v4832
        %v4834 = vand.u32 %v4833, 4294901760
        %4835 = vmatmul.f32.gmra.mxu0 %v4834
        %v4836 = vpop.f32.mrf.mxu0
        %v4837 = vadd.f32 %v4807, %v4836
        %v4838 = vand.u32 %v4707, 4294901760
        %v4839 = vsub.f32 %v4707, %v4838
        %v4840 = vand.u32 %v4839, 4294901760
        %4841 = vmatmul.f32.gmra.mxu0 %v4840
        %v4842 = vpop.f32.mrf.mxu0
        %v4843 = vadd.f32 %v4812, %v4842
        %4844 = vdwg.mxu0
        %4845 = vmatpush.xpose.msra.mxu0 0.0
        %4846 = vmatpush.xpose.msra.mxu0 0.0
        %4847 = vmatpush.xpose.msra.mxu0 0.0
        %4848 = vmatpush.xpose.msra.mxu0 0.0
        %4849 = vmatpush.xpose.msra.mxu0 0.0
        %4850 = vmatpush.xpose.msra.mxu0 0.0
        %4851 = vmatpush.xpose.msra.mxu0 0.0
        %4852 = vmatpush.xpose.msra.mxu0 0.0
        %4853 = vmatpush.xpose.msra.mxu0 0.0
        %4854 = vmatpush.xpose.msra.mxu0 0.0
        %4855 = vmatpush.xpose.msra.mxu0 0.0
        %4856 = vmatpush.xpose.msra.mxu0 0.0
        %4857 = vmatpush.xpose.msra.mxu0 0.0
        %4858 = vmatpush.xpose.msra.mxu0 0.0
        %v4859 = vand.u32 %v4711, 4294901760
        %v4860 = vsub.f32 %v4711, %v4859
        %v4861 = vand.u32 %v4860, 4294901760
        %4862 = vmatpush.xpose.msra.mxu0 %v4861
        %v4863 = vand.u32 %v4709, 4294901760
        %v4864 = vsub.f32 %v4709, %v4863
        %v4865 = vand.u32 %v4864, 4294901760
        %4866 = vmatpush.xpose.msra.mxu0 %v4865
        %v4867 = vand.u32 %v4705, 4294901760
        %4868 = vmatmul.f32.gmra.mxu0 %v4867
        %v4869 = vpop.f32.mrf.mxu0
        %v4870 = vadd.f32 %v4837, %v4869
        %v4871 = vand.u32 %v4707, 4294901760
        %4872 = vmatmul.f32.gmra.mxu0 %v4871
        %v4873 = vpop.f32.mrf.mxu0
        %v4874 = vadd.f32 %v4843, %v4873
        %4875 = vdwg.mxu0
        %4876 = vmatpush.xpose.msra.mxu0 0.0
        %4877 = vmatpush.xpose.msra.mxu0 0.0
        %4878 = vmatpush.xpose.msra.mxu0 0.0
        %4879 = vmatpush.xpose.msra.mxu0 0.0
        %4880 = vmatpush.xpose.msra.mxu0 0.0
        %4881 = vmatpush.xpose.msra.mxu0 0.0
        %4882 = vmatpush.xpose.msra.mxu0 0.0
        %4883 = vmatpush.xpose.msra.mxu0 0.0
        %4884 = vmatpush.xpose.msra.mxu0 0.0
        %4885 = vmatpush.xpose.msra.mxu0 0.0
        %4886 = vmatpush.xpose.msra.mxu0 0.0
        %4887 = vmatpush.xpose.msra.mxu0 0.0
        %4888 = vmatpush.xpose.msra.mxu0 0.0
        %4889 = vmatpush.xpose.msra.mxu0 0.0
        %v4890 = vand.u32 %v4711, 4294901760
        %4891 = vmatpush.xpose.msra.mxu0 %v4890
        %v4892 = vand.u32 %v4709, 4294901760
        %4893 = vmatpush.xpose.msra.mxu0 %v4892
        %v4894 = vand.u32 %v4705, 4294901760
        %4895 = vmatmul.f32.gmra.mxu0 %v4894
        %v4896 = vpop.f32.mrf.mxu0
        %v4897 = vadd.f32 %v4870, %v4896
        %v4898 = vand.u32 %v4707, 4294901760
        %4899 = vmatmul.f32.gmra.mxu0 %v4898
        %v4900 = vpop.f32.mrf.mxu0
        %v4901 = vadd.f32 %v4874, %v4900
        %4902 = vdwg.mxu0
        %v4903 = vmul.f32 %v4897, 0.17677669
        %v4904 = vmul.f32 %v4901, 0.17677669
        %v4905 = vsel %vm1973, -1e+09, %v4903
        %v4906 = vsel %vm1974, -1e+09, %v4904
        %v4907 = vsel %vm1977, %v4905, -inf
        %4908 = vmax.xlane.f32.xlu0 %v4907
        %v4909 = vpop.xlane.xlu0 %4908
        %v4910 = vsel %vm1977, %v4906, -inf
        %4911 = vmax.xlane.f32.xlu0 %v4910
        %v4912 = vpop.xlane.xlu0 %4911
        %v4913 = vsub.f32 %v4905, %v4909
        %v4914 = vsub.f32 %v4906, %v4912
        %v4915 = vmul.f32 %v4913, 1.442695
        %v4916 = vpow.pop %v4915
        %v4917 = vmul.f32 %v4914, 1.442695
        %v4918 = vpow.pop %v4917
        %v4919 = vsel %vm1977, %v4916, 0.0
        %4920 = vadd.xlane.f32.xlu0 %v4919
        %v4921 = vpop.xlane.xlu0 %4920
        %v4922 = vsel %vm1977, %v4918, 0.0
        %4923 = vadd.xlane.f32.xlu0 %v4922
        %v4924 = vpop.xlane.xlu0 %4923
        %v4925 = vrcp.pop %v4921
        %v4926 = vmul.f32 %v4921, %v4925
        %v4927 = vsub.f32 1.0, %v4926
        %v4928 = vmul.f32 %v4925, %v4927
        %v4929 = vadd.f32 %v4925, %v4928
        %vm4930 = vweird.f32 %v4921
        %vm4931 = vweird.f32 %v4925
        %vm4932 = vmor %vm4930, %vm4931
        %v4933 = vsel %vm4932, %v4925, %v4929
        %v4934 = vand.u32 2147483647, %v4921
        %vm4935 = vcmp.eq.f32.partialorder %v4934, 8.507059e+37
        %v4936 = vand.u32 %v4921, 2147483648
        %v4937 = vor.u32 1.1754944e-38, %v4936
        %v4938 = vsel %vm4935, %v4937, %v4933
        %v4939 = vmul.f32 %v4916, %v4938
        %v4940 = vrcp.pop %v4924
        %v4941 = vmul.f32 %v4924, %v4940
        %v4942 = vsub.f32 1.0, %v4941
        %v4943 = vmul.f32 %v4940, %v4942
        %v4944 = vadd.f32 %v4940, %v4943
        %vm4945 = vweird.f32 %v4924
        %vm4946 = vweird.f32 %v4940
        %vm4947 = vmor %vm4945, %vm4946
        %v4948 = vsel %vm4947, %v4940, %v4944
        %v4949 = vand.u32 2147483647, %v4924
        %vm4950 = vcmp.eq.f32.partialorder %v4949, 8.507059e+37
        %v4951 = vand.u32 %v4924, 2147483648
        %v4952 = vor.u32 1.1754944e-38, %v4951
        %v4953 = vsel %vm4950, %v4952, %v4948
        %v4954 = vmul.f32 %v4918, %v4953
        %s4955 = scalar_lea.vmem %s591, 32 [#allocation15]
        %4956 = vst.msk [vmem:[%s4955] sm:$0xff] %vm1977, %v4939
        %4957 = vst.msk [vmem:[%s4955 + $0x8] sm:$0xff] %vm1977, %v4954
        %4958 = vrot.lane.b32.xlu0 %v1762, 64
        %v4959 = vpop.permute.xlu0 %4958
        %4960 = vrot.lane.b32.xlu0 %v1766, 64
        %v4961 = vpop.permute.xlu0 %4960
        %v4965 = vsel %vm1977, %v4939, 0
        %v4968 = vsel %vm1977, %v4954, 0
        %4970 = vmatpush.msra.mxu0 0.0
        %4971 = vmatpush.msra.mxu0 0.0
        %4972 = vmatpush.msra.mxu0 0.0
        %4973 = vmatpush.msra.mxu0 0.0
        %4974 = vmatpush.msra.mxu0 0.0
        %4975 = vmatpush.msra.mxu0 0.0
        %4976 = vmatpush.msra.mxu0 0.0
        %4977 = vmatpush.msra.mxu0 0.0
        %4978 = vmatpush.msra.mxu0 0.0
        %4979 = vmatpush.msra.mxu0 0.0
        %4980 = vmatpush.msra.mxu0 0.0
        %4981 = vmatpush.msra.mxu0 0.0
        %4982 = vmatpush.msra.mxu0 0.0
        %4983 = vmatpush.msra.mxu0 0.0
        %v4984 = vand.u32 %v4961, 4294901760
        %4985 = vmatpush.msra.mxu0 %v4984
        %v4986 = vand.u32 %v4959, 4294901760
        %4987 = vmatpush.msra.mxu0 %v4986
        %v4988 = vand.u32 %v4965, 4294901760
        %v4989 = vsub.f32 %v4965, %v4988
        %v4990 = vand.u32 %v4989, 4294901760
        %v4991 = vsub.f32 %v4989, %v4990
        %v4992 = vand.u32 %v4991, 4294901760
        %4993 = vmatmul.f32.gmra.mxu0 %v4992
        %v4994 = vpop.f32.mrf.mxu0
        %v4995 = vadd.f32 0.0, %v4994
        %v4996 = vand.u32 %v4968, 4294901760
        %v4997 = vsub.f32 %v4968, %v4996
        %v4998 = vand.u32 %v4997, 4294901760
        %v4999 = vsub.f32 %v4997, %v4998
        %v5000 = vand.u32 %v4999, 4294901760
        %5001 = vmatmul.f32.gmra.mxu0 %v5000
        %v5002 = vpop.f32.mrf.mxu0
        %v5003 = vadd.f32 0.0, %v5002
        %5004 = vdwg.mxu0
        %5005 = vmatpush.msra.mxu0 0.0
        %5006 = vmatpush.msra.mxu0 0.0
        %5007 = vmatpush.msra.mxu0 0.0
        %5008 = vmatpush.msra.mxu0 0.0
        %5009 = vmatpush.msra.mxu0 0.0
        %5010 = vmatpush.msra.mxu0 0.0
        %5011 = vmatpush.msra.mxu0 0.0
        %5012 = vmatpush.msra.mxu0 0.0
        %5013 = vmatpush.msra.mxu0 0.0
        %5014 = vmatpush.msra.mxu0 0.0
        %5015 = vmatpush.msra.mxu0 0.0
        %5016 = vmatpush.msra.mxu0 0.0
        %5017 = vmatpush.msra.mxu0 0.0
        %5018 = vmatpush.msra.mxu0 0.0
        %v5019 = vand.u32 %v4961, 4294901760
        %v5020 = vsub.f32 %v4961, %v5019
        %v5021 = vand.u32 %v5020, 4294901760
        %v5022 = vsub.f32 %v5020, %v5021
        %v5023 = vand.u32 %v5022, 4294901760
        %5024 = vmatpush.msra.mxu0 %v5023
        %v5025 = vand.u32 %v4959, 4294901760
        %v5026 = vsub.f32 %v4959, %v5025
        %v5027 = vand.u32 %v5026, 4294901760
        %v5028 = vsub.f32 %v5026, %v5027
        %v5029 = vand.u32 %v5028, 4294901760
        %5030 = vmatpush.msra.mxu0 %v5029
        %v5031 = vand.u32 %v4965, 4294901760
        %5032 = vmatmul.f32.gmra.mxu0 %v5031
        %v5033 = vpop.f32.mrf.mxu0
        %v5034 = vadd.f32 %v4995, %v5033
        %v5035 = vand.u32 %v4968, 4294901760
        %5036 = vmatmul.f32.gmra.mxu0 %v5035
        %v5037 = vpop.f32.mrf.mxu0
        %v5038 = vadd.f32 %v5003, %v5037
        %5039 = vdwg.mxu0
        %5040 = vmatpush.msra.mxu0 0.0
        %5041 = vmatpush.msra.mxu0 0.0
        %5042 = vmatpush.msra.mxu0 0.0
        %5043 = vmatpush.msra.mxu0 0.0
        %5044 = vmatpush.msra.mxu0 0.0
        %5045 = vmatpush.msra.mxu0 0.0
        %5046 = vmatpush.msra.mxu0 0.0
        %5047 = vmatpush.msra.mxu0 0.0
        %5048 = vmatpush.msra.mxu0 0.0
        %5049 = vmatpush.msra.mxu0 0.0
        %5050 = vmatpush.msra.mxu0 0.0
        %5051 = vmatpush.msra.mxu0 0.0
        %5052 = vmatpush.msra.mxu0 0.0
        %5053 = vmatpush.msra.mxu0 0.0
        %v5054 = vand.u32 %v4961, 4294901760
        %v5055 = vsub.f32 %v4961, %v5054
        %5056 = vmatpush.msra.mxu0 %v5055
        %v5057 = vand.u32 %v4959, 4294901760
        %v5058 = vsub.f32 %v4959, %v5057
        %5059 = vmatpush.msra.mxu0 %v5058
        %v5060 = vand.u32 %v4965, 4294901760
        %v5061 = vsub.f32 %v4965, %v5060
        %5062 = vmatmul.f32.gmra.mxu0 %v5061
        %v5063 = vpop.f32.mrf.mxu0
        %v5064 = vadd.f32 %v5034, %v5063
        %v5065 = vand.u32 %v4968, 4294901760
        %v5066 = vsub.f32 %v4968, %v5065
        %5067 = vmatmul.f32.gmra.mxu0 %v5066
        %v5068 = vpop.f32.mrf.mxu0
        %v5069 = vadd.f32 %v5038, %v5068
        %5070 = vdwg.mxu0
        %5071 = vmatpush.msra.mxu0 0.0
        %5072 = vmatpush.msra.mxu0 0.0
        %5073 = vmatpush.msra.mxu0 0.0
        %5074 = vmatpush.msra.mxu0 0.0
        %5075 = vmatpush.msra.mxu0 0.0
        %5076 = vmatpush.msra.mxu0 0.0
        %5077 = vmatpush.msra.mxu0 0.0
        %5078 = vmatpush.msra.mxu0 0.0
        %5079 = vmatpush.msra.mxu0 0.0
        %5080 = vmatpush.msra.mxu0 0.0
        %5081 = vmatpush.msra.mxu0 0.0
        %5082 = vmatpush.msra.mxu0 0.0
        %5083 = vmatpush.msra.mxu0 0.0
        %5084 = vmatpush.msra.mxu0 0.0
        %v5085 = vand.u32 %v4961, 4294901760
        %5086 = vmatpush.msra.mxu0 %v5085
        %v5087 = vand.u32 %v4959, 4294901760
        %5088 = vmatpush.msra.mxu0 %v5087
        %v5089 = vand.u32 %v4965, 4294901760
        %v5090 = vsub.f32 %v4965, %v5089
        %v5091 = vand.u32 %v5090, 4294901760
        %5092 = vmatmul.f32.gmra.mxu0 %v5091
        %v5093 = vpop.f32.mrf.mxu0
        %v5094 = vadd.f32 %v5064, %v5093
        %v5095 = vand.u32 %v4968, 4294901760
        %v5096 = vsub.f32 %v4968, %v5095
        %v5097 = vand.u32 %v5096, 4294901760
        %5098 = vmatmul.f32.gmra.mxu0 %v5097
        %v5099 = vpop.f32.mrf.mxu0
        %v5100 = vadd.f32 %v5069, %v5099
        %5101 = vdwg.mxu0
        %5102 = vmatpush.msra.mxu0 0.0
        %5103 = vmatpush.msra.mxu0 0.0
        %5104 = vmatpush.msra.mxu0 0.0
        %5105 = vmatpush.msra.mxu0 0.0
        %5106 = vmatpush.msra.mxu0 0.0
        %5107 = vmatpush.msra.mxu0 0.0
        %5108 = vmatpush.msra.mxu0 0.0
        %5109 = vmatpush.msra.mxu0 0.0
        %5110 = vmatpush.msra.mxu0 0.0
        %5111 = vmatpush.msra.mxu0 0.0
        %5112 = vmatpush.msra.mxu0 0.0
        %5113 = vmatpush.msra.mxu0 0.0
        %5114 = vmatpush.msra.mxu0 0.0
        %5115 = vmatpush.msra.mxu0 0.0
        %v5116 = vand.u32 %v4961, 4294901760
        %v5117 = vsub.f32 %v4961, %v5116
        %v5118 = vand.u32 %v5117, 4294901760
        %5119 = vmatpush.msra.mxu0 %v5118
        %v5120 = vand.u32 %v4959, 4294901760
        %v5121 = vsub.f32 %v4959, %v5120
        %v5122 = vand.u32 %v5121, 4294901760
        %5123 = vmatpush.msra.mxu0 %v5122
        %v5124 = vand.u32 %v4965, 4294901760
        %5125 = vmatmul.f32.gmra.mxu0 %v5124
        %v5126 = vpop.f32.mrf.mxu0
        %v5127 = vadd.f32 %v5094, %v5126
        %v5128 = vand.u32 %v4968, 4294901760
        %5129 = vmatmul.f32.gmra.mxu0 %v5128
        %v5130 = vpop.f32.mrf.mxu0
        %v5131 = vadd.f32 %v5100, %v5130
        %5132 = vdwg.mxu0
        %5133 = vmatpush.msra.mxu0 0.0
        %5134 = vmatpush.msra.mxu0 0.0
        %5135 = vmatpush.msra.mxu0 0.0
        %5136 = vmatpush.msra.mxu0 0.0
        %5137 = vmatpush.msra.mxu0 0.0
        %5138 = vmatpush.msra.mxu0 0.0
        %5139 = vmatpush.msra.mxu0 0.0
        %5140 = vmatpush.msra.mxu0 0.0
        %5141 = vmatpush.msra.mxu0 0.0
        %5142 = vmatpush.msra.mxu0 0.0
        %5143 = vmatpush.msra.mxu0 0.0
        %5144 = vmatpush.msra.mxu0 0.0
        %5145 = vmatpush.msra.mxu0 0.0
        %5146 = vmatpush.msra.mxu0 0.0
        %v5147 = vand.u32 %v4961, 4294901760
        %5148 = vmatpush.msra.mxu0 %v5147
        %v5149 = vand.u32 %v4959, 4294901760
        %5150 = vmatpush.msra.mxu0 %v5149
        %v5151 = vand.u32 %v4965, 4294901760
        %5152 = vmatmul.f32.gmra.mxu0 %v5151
        %v5153 = vpop.f32.mrf.mxu0
        %v5154 = vadd.f32 %v5127, %v5153
        %v5155 = vand.u32 %v4968, 4294901760
        %5156 = vmatmul.f32.gmra.mxu0 %v5155
        %v5157 = vpop.f32.mrf.mxu0
        %v5158 = vadd.f32 %v5131, %v5157
        %5159 = vdwg.mxu0
        %s5160 = scalar_lea.vmem %s4, 64
        %v5161 = vld [vmem:[%s5160] sm:$0xff]
        %v5162 = vld [vmem:[%s5160 + $0x8] sm:$0xff]
        %v5163 = vld [vmem:[%s5160 + $0x10] sm:$0xff]
        %v5164 = vld [vmem:[%s5160 + $0x18] sm:$0xff]
        %s5165 = scalar_lea.vmem [#allocation8], 2
        %v5166 = vld [vmem:[%s5165] sm:$0x1]
        %v5168 = vperm.slane %v5166, 0
        %v5171 = vsel %vm1768, %v5154, 0
        %v5174 = vsel %vm1768, %v5158, 0
        %5176 = vmatpush.msra.mxu0 0.0
        %5177 = vmatpush.msra.mxu0 0.0
        %5178 = vmatpush.msra.mxu0 0.0
        %5179 = vmatpush.msra.mxu0 0.0
        %5180 = vmatpush.msra.mxu0 0.0
        %5181 = vmatpush.msra.mxu0 0.0
        %5182 = vmatpush.msra.mxu0 0.0
        %5183 = vmatpush.msra.mxu0 0.0
        %5184 = vmatpush.msra.mxu0 0.0
        %5185 = vmatpush.msra.mxu0 0.0
        %5186 = vmatpush.msra.mxu0 0.0
        %5187 = vmatpush.msra.mxu0 0.0
        %v5188 = vand.u32 %v5164, 4294901760
        %5189 = vmatpush.msra.mxu0 %v5188
        %v5190 = vand.u32 %v5163, 4294901760
        %5191 = vmatpush.msra.mxu0 %v5190
        %v5192 = vand.u32 %v5162, 4294901760
        %5193 = vmatpush.msra.mxu0 %v5192
        %v5194 = vand.u32 %v5161, 4294901760
        %5195 = vmatpush.msra.mxu0 %v5194
        %v5196 = vand.u32 %v5171, 4294901760
        %v5197 = vsub.f32 %v5171, %v5196
        %v5198 = vand.u32 %v5197, 4294901760
        %v5199 = vsub.f32 %v5197, %v5198
        %v5200 = vand.u32 %v5199, 4294901760
        %5201 = vmatmul.f32.gmra.mxu0 %v5200
        %v5202 = vpop.f32.mrf.mxu0
        %v5203 = vadd.f32 %v5168, %v5202
        %v5204 = vand.u32 %v5174, 4294901760
        %v5205 = vsub.f32 %v5174, %v5204
        %v5206 = vand.u32 %v5205, 4294901760
        %v5207 = vsub.f32 %v5205, %v5206
        %v5208 = vand.u32 %v5207, 4294901760
        %5209 = vmatmul.f32.gmra.mxu0 %v5208
        %v5210 = vpop.f32.mrf.mxu0
        %v5211 = vadd.f32 %v5168, %v5210
        %5212 = vdwg.mxu0
        %5213 = vmatpush.msra.mxu0 0.0
        %5214 = vmatpush.msra.mxu0 0.0
        %5215 = vmatpush.msra.mxu0 0.0
        %5216 = vmatpush.msra.mxu0 0.0
        %5217 = vmatpush.msra.mxu0 0.0
        %5218 = vmatpush.msra.mxu0 0.0
        %5219 = vmatpush.msra.mxu0 0.0
        %5220 = vmatpush.msra.mxu0 0.0
        %5221 = vmatpush.msra.mxu0 0.0
        %5222 = vmatpush.msra.mxu0 0.0
        %5223 = vmatpush.msra.mxu0 0.0
        %5224 = vmatpush.msra.mxu0 0.0
        %v5225 = vand.u32 %v5164, 4294901760
        %v5226 = vsub.f32 %v5164, %v5225
        %v5227 = vand.u32 %v5226, 4294901760
        %v5228 = vsub.f32 %v5226, %v5227
        %v5229 = vand.u32 %v5228, 4294901760
        %5230 = vmatpush.msra.mxu0 %v5229
        %v5231 = vand.u32 %v5163, 4294901760
        %v5232 = vsub.f32 %v5163, %v5231
        %v5233 = vand.u32 %v5232, 4294901760
        %v5234 = vsub.f32 %v5232, %v5233
        %v5235 = vand.u32 %v5234, 4294901760
        %5236 = vmatpush.msra.mxu0 %v5235
        %v5237 = vand.u32 %v5162, 4294901760
        %v5238 = vsub.f32 %v5162, %v5237
        %v5239 = vand.u32 %v5238, 4294901760
        %v5240 = vsub.f32 %v5238, %v5239
        %v5241 = vand.u32 %v5240, 4294901760
        %5242 = vmatpush.msra.mxu0 %v5241
        %v5243 = vand.u32 %v5161, 4294901760
        %v5244 = vsub.f32 %v5161, %v5243
        %v5245 = vand.u32 %v5244, 4294901760
        %v5246 = vsub.f32 %v5244, %v5245
        %v5247 = vand.u32 %v5246, 4294901760
        %5248 = vmatpush.msra.mxu0 %v5247
        %v5249 = vand.u32 %v5171, 4294901760
        %5250 = vmatmul.f32.gmra.mxu0 %v5249
        %v5251 = vpop.f32.mrf.mxu0
        %v5252 = vadd.f32 %v5203, %v5251
        %v5253 = vand.u32 %v5174, 4294901760
        %5254 = vmatmul.f32.gmra.mxu0 %v5253
        %v5255 = vpop.f32.mrf.mxu0
        %v5256 = vadd.f32 %v5211, %v5255
        %5257 = vdwg.mxu0
        %5258 = vmatpush.msra.mxu0 0.0
        %5259 = vmatpush.msra.mxu0 0.0
        %5260 = vmatpush.msra.mxu0 0.0
        %5261 = vmatpush.msra.mxu0 0.0
        %5262 = vmatpush.msra.mxu0 0.0
        %5263 = vmatpush.msra.mxu0 0.0
        %5264 = vmatpush.msra.mxu0 0.0
        %5265 = vmatpush.msra.mxu0 0.0
        %5266 = vmatpush.msra.mxu0 0.0
        %5267 = vmatpush.msra.mxu0 0.0
        %5268 = vmatpush.msra.mxu0 0.0
        %5269 = vmatpush.msra.mxu0 0.0
        %v5270 = vand.u32 %v5164, 4294901760
        %v5271 = vsub.f32 %v5164, %v5270
        %5272 = vmatpush.msra.mxu0 %v5271
        %v5273 = vand.u32 %v5163, 4294901760
        %v5274 = vsub.f32 %v5163, %v5273
        %5275 = vmatpush.msra.mxu0 %v5274
        %v5276 = vand.u32 %v5162, 4294901760
        %v5277 = vsub.f32 %v5162, %v5276
        %5278 = vmatpush.msra.mxu0 %v5277
        %v5279 = vand.u32 %v5161, 4294901760
        %v5280 = vsub.f32 %v5161, %v5279
        %5281 = vmatpush.msra.mxu0 %v5280
        %v5282 = vand.u32 %v5171, 4294901760
        %v5283 = vsub.f32 %v5171, %v5282
        %5284 = vmatmul.f32.gmra.mxu0 %v5283
        %v5285 = vpop.f32.mrf.mxu0
        %v5286 = vadd.f32 %v5252, %v5285
        %v5287 = vand.u32 %v5174, 4294901760
        %v5288 = vsub.f32 %v5174, %v5287
        %5289 = vmatmul.f32.gmra.mxu0 %v5288
        %v5290 = vpop.f32.mrf.mxu0
        %v5291 = vadd.f32 %v5256, %v5290
        %5292 = vdwg.mxu0
        %5293 = vmatpush.msra.mxu0 0.0
        %5294 = vmatpush.msra.mxu0 0.0
        %5295 = vmatpush.msra.mxu0 0.0
        %5296 = vmatpush.msra.mxu0 0.0
        %5297 = vmatpush.msra.mxu0 0.0
        %5298 = vmatpush.msra.mxu0 0.0
        %5299 = vmatpush.msra.mxu0 0.0
        %5300 = vmatpush.msra.mxu0 0.0
        %5301 = vmatpush.msra.mxu0 0.0
        %5302 = vmatpush.msra.mxu0 0.0
        %5303 = vmatpush.msra.mxu0 0.0
        %5304 = vmatpush.msra.mxu0 0.0
        %v5305 = vand.u32 %v5164, 4294901760
        %5306 = vmatpush.msra.mxu0 %v5305
        %v5307 = vand.u32 %v5163, 4294901760
        %5308 = vmatpush.msra.mxu0 %v5307
        %v5309 = vand.u32 %v5162, 4294901760
        %5310 = vmatpush.msra.mxu0 %v5309
        %v5311 = vand.u32 %v5161, 4294901760
        %5312 = vmatpush.msra.mxu0 %v5311
        %v5313 = vand.u32 %v5171, 4294901760
        %v5314 = vsub.f32 %v5171, %v5313
        %v5315 = vand.u32 %v5314, 4294901760
        %5316 = vmatmul.f32.gmra.mxu0 %v5315
        %v5317 = vpop.f32.mrf.mxu0
        %v5318 = vadd.f32 %v5286, %v5317
        %v5319 = vand.u32 %v5174, 4294901760
        %v5320 = vsub.f32 %v5174, %v5319
        %v5321 = vand.u32 %v5320, 4294901760
        %5322 = vmatmul.f32.gmra.mxu0 %v5321
        %v5323 = vpop.f32.mrf.mxu0
        %v5324 = vadd.f32 %v5291, %v5323
        %5325 = vdwg.mxu0
        %5326 = vmatpush.msra.mxu0 0.0
        %5327 = vmatpush.msra.mxu0 0.0
        %5328 = vmatpush.msra.mxu0 0.0
        %5329 = vmatpush.msra.mxu0 0.0
        %5330 = vmatpush.msra.mxu0 0.0
        %5331 = vmatpush.msra.mxu0 0.0
        %5332 = vmatpush.msra.mxu0 0.0
        %5333 = vmatpush.msra.mxu0 0.0
        %5334 = vmatpush.msra.mxu0 0.0
        %5335 = vmatpush.msra.mxu0 0.0
        %5336 = vmatpush.msra.mxu0 0.0
        %5337 = vmatpush.msra.mxu0 0.0
        %v5338 = vand.u32 %v5164, 4294901760
        %v5339 = vsub.f32 %v5164, %v5338
        %v5340 = vand.u32 %v5339, 4294901760
        %5341 = vmatpush.msra.mxu0 %v5340
        %v5342 = vand.u32 %v5163, 4294901760
        %v5343 = vsub.f32 %v5163, %v5342
        %v5344 = vand.u32 %v5343, 4294901760
        %5345 = vmatpush.msra.mxu0 %v5344
        %v5346 = vand.u32 %v5162, 4294901760
        %v5347 = vsub.f32 %v5162, %v5346
        %v5348 = vand.u32 %v5347, 4294901760
        %5349 = vmatpush.msra.mxu0 %v5348
        %v5350 = vand.u32 %v5161, 4294901760
        %v5351 = vsub.f32 %v5161, %v5350
        %v5352 = vand.u32 %v5351, 4294901760
        %5353 = vmatpush.msra.mxu0 %v5352
        %v5354 = vand.u32 %v5171, 4294901760
        %5355 = vmatmul.f32.gmra.mxu0 %v5354
        %v5356 = vpop.f32.mrf.mxu0
        %v5357 = vadd.f32 %v5318, %v5356
        %v5358 = vand.u32 %v5174, 4294901760
        %5359 = vmatmul.f32.gmra.mxu0 %v5358
        %v5360 = vpop.f32.mrf.mxu0
        %v5361 = vadd.f32 %v5324, %v5360
        %5362 = vdwg.mxu0
        %5363 = vmatpush.msra.mxu0 0.0
        %5364 = vmatpush.msra.mxu0 0.0
        %5365 = vmatpush.msra.mxu0 0.0
        %5366 = vmatpush.msra.mxu0 0.0
        %5367 = vmatpush.msra.mxu0 0.0
        %5368 = vmatpush.msra.mxu0 0.0
        %5369 = vmatpush.msra.mxu0 0.0
        %5370 = vmatpush.msra.mxu0 0.0
        %5371 = vmatpush.msra.mxu0 0.0
        %5372 = vmatpush.msra.mxu0 0.0
        %5373 = vmatpush.msra.mxu0 0.0
        %5374 = vmatpush.msra.mxu0 0.0
        %v5375 = vand.u32 %v5164, 4294901760
        %5376 = vmatpush.msra.mxu0 %v5375
        %v5377 = vand.u32 %v5163, 4294901760
        %5378 = vmatpush.msra.mxu0 %v5377
        %v5379 = vand.u32 %v5162, 4294901760
        %5380 = vmatpush.msra.mxu0 %v5379
        %v5381 = vand.u32 %v5161, 4294901760
        %5382 = vmatpush.msra.mxu0 %v5381
        %v5383 = vand.u32 %v5171, 4294901760
        %5384 = vmatmul.f32.gmra.mxu0 %v5383
        %v5385 = vpop.f32.mrf.mxu0
        %v5386 = vadd.f32 %v5357, %v5385
        %v5387 = vand.u32 %v5174, 4294901760
        %5388 = vmatmul.f32.gmra.mxu0 %v5387
        %v5389 = vpop.f32.mrf.mxu0
        %v5390 = vadd.f32 %v5361, %v5389
        %5391 = vdwg.mxu0
        %s5392 = scalar_lea.vmem %s6, 256
        %v5393 = vld [vmem:[%s5392] sm:$0xff]
        %v5394 = vld [vmem:[%s5392 + $0x8] sm:$0xff]
        %v5395 = vld [vmem:[%s5392 + $0x10] sm:$0xff]
        %v5396 = vld [vmem:[%s5392 + $0x18] sm:$0xff]
        %v5397 = vld [vmem:[%s5392 + $0x20] sm:$0xff]
        %v5398 = vld [vmem:[%s5392 + $0x28] sm:$0xff]
        %v5399 = vld [vmem:[%s5392 + $0x30] sm:$0xff]
        %v5400 = vld [vmem:[%s5392 + $0x38] sm:$0xff]
        %v5401 = vld [vmem:[%s5392 + $0x40] sm:$0xff]
        %v5402 = vld [vmem:[%s5392 + $0x48] sm:$0xff]
        %v5403 = vld [vmem:[%s5392 + $0x50] sm:$0xff]
        %v5404 = vld [vmem:[%s5392 + $0x58] sm:$0xff]
        %v5405 = vld [vmem:[%s5392 + $0x60] sm:$0xff]
        %v5406 = vld [vmem:[%s5392 + $0x68] sm:$0xff]
        %v5407 = vld [vmem:[%s5392 + $0x70] sm:$0xff]
        %v5408 = vld [vmem:[%s5392 + $0x78] sm:$0xff]
        %s5409 = scalar_lea.vmem [#allocation10], 2
        %v5410 = vld [vmem:[%s5409] sm:$0x1]
        %v5412 = vperm.slane %v5410, 0
        %v5414 = vand.u32 %v5408, 4294901760
        %5415 = vmatpush.msra.mxu0 %v5414
        %v5416 = vand.u32 %v5407, 4294901760
        %5417 = vmatpush.msra.mxu0 %v5416
        %v5418 = vand.u32 %v5406, 4294901760
        %5419 = vmatpush.msra.mxu0 %v5418
        %v5420 = vand.u32 %v5405, 4294901760
        %5421 = vmatpush.msra.mxu0 %v5420
        %v5422 = vand.u32 %v5404, 4294901760
        %5423 = vmatpush.msra.mxu0 %v5422
        %v5424 = vand.u32 %v5403, 4294901760
        %5425 = vmatpush.msra.mxu0 %v5424
        %v5426 = vand.u32 %v5402, 4294901760
        %5427 = vmatpush.msra.mxu0 %v5426
        %v5428 = vand.u32 %v5401, 4294901760
        %5429 = vmatpush.msra.mxu0 %v5428
        %v5430 = vand.u32 %v5400, 4294901760
        %5431 = vmatpush.msra.mxu0 %v5430
        %v5432 = vand.u32 %v5399, 4294901760
        %5433 = vmatpush.msra.mxu0 %v5432
        %v5434 = vand.u32 %v5398, 4294901760
        %5435 = vmatpush.msra.mxu0 %v5434
        %v5436 = vand.u32 %v5397, 4294901760
        %5437 = vmatpush.msra.mxu0 %v5436
        %v5438 = vand.u32 %v5396, 4294901760
        %5439 = vmatpush.msra.mxu0 %v5438
        %v5440 = vand.u32 %v5395, 4294901760
        %5441 = vmatpush.msra.mxu0 %v5440
        %v5442 = vand.u32 %v5394, 4294901760
        %5443 = vmatpush.msra.mxu0 %v5442
        %v5444 = vand.u32 %v5393, 4294901760
        %5445 = vmatpush.msra.mxu0 %v5444
        %v5446 = vand.u32 %v5386, 4294901760
        %v5447 = vsub.f32 %v5386, %v5446
        %v5448 = vand.u32 %v5447, 4294901760
        %v5449 = vsub.f32 %v5447, %v5448
        %v5450 = vand.u32 %v5449, 4294901760
        %5451 = vmatmul.f32.gmra.mxu0 %v5450
        %v5452 = vpop.f32.mrf.mxu0
        %v5453 = vadd.f32 %v5412, %v5452
        %v5454 = vand.u32 %v5390, 4294901760
        %v5455 = vsub.f32 %v5390, %v5454
        %v5456 = vand.u32 %v5455, 4294901760
        %v5457 = vsub.f32 %v5455, %v5456
        %v5458 = vand.u32 %v5457, 4294901760
        %5459 = vmatmul.f32.gmra.mxu0 %v5458
        %v5460 = vpop.f32.mrf.mxu0
        %v5461 = vadd.f32 %v5412, %v5460
        %5462 = vdwg.mxu0
        %v5463 = vand.u32 %v5408, 4294901760
        %v5464 = vsub.f32 %v5408, %v5463
        %v5465 = vand.u32 %v5464, 4294901760
        %v5466 = vsub.f32 %v5464, %v5465
        %v5467 = vand.u32 %v5466, 4294901760
        %5468 = vmatpush.msra.mxu0 %v5467
        %v5469 = vand.u32 %v5407, 4294901760
        %v5470 = vsub.f32 %v5407, %v5469
        %v5471 = vand.u32 %v5470, 4294901760
        %v5472 = vsub.f32 %v5470, %v5471
        %v5473 = vand.u32 %v5472, 4294901760
        %5474 = vmatpush.msra.mxu0 %v5473
        %v5475 = vand.u32 %v5406, 4294901760
        %v5476 = vsub.f32 %v5406, %v5475
        %v5477 = vand.u32 %v5476, 4294901760
        %v5478 = vsub.f32 %v5476, %v5477
        %v5479 = vand.u32 %v5478, 4294901760
        %5480 = vmatpush.msra.mxu0 %v5479
        %v5481 = vand.u32 %v5405, 4294901760
        %v5482 = vsub.f32 %v5405, %v5481
        %v5483 = vand.u32 %v5482, 4294901760
        %v5484 = vsub.f32 %v5482, %v5483
        %v5485 = vand.u32 %v5484, 4294901760
        %5486 = vmatpush.msra.mxu0 %v5485
        %v5487 = vand.u32 %v5404, 4294901760
        %v5488 = vsub.f32 %v5404, %v5487
        %v5489 = vand.u32 %v5488, 4294901760
        %v5490 = vsub.f32 %v5488, %v5489
        %v5491 = vand.u32 %v5490, 4294901760
        %5492 = vmatpush.msra.mxu0 %v5491
        %v5493 = vand.u32 %v5403, 4294901760
        %v5494 = vsub.f32 %v5403, %v5493
        %v5495 = vand.u32 %v5494, 4294901760
        %v5496 = vsub.f32 %v5494, %v5495
        %v5497 = vand.u32 %v5496, 4294901760
        %5498 = vmatpush.msra.mxu0 %v5497
        %v5499 = vand.u32 %v5402, 4294901760
        %v5500 = vsub.f32 %v5402, %v5499
        %v5501 = vand.u32 %v5500, 4294901760
        %v5502 = vsub.f32 %v5500, %v5501
        %v5503 = vand.u32 %v5502, 4294901760
        %5504 = vmatpush.msra.mxu0 %v5503
        %v5505 = vand.u32 %v5401, 4294901760
        %v5506 = vsub.f32 %v5401, %v5505
        %v5507 = vand.u32 %v5506, 4294901760
        %v5508 = vsub.f32 %v5506, %v5507
        %v5509 = vand.u32 %v5508, 4294901760
        %5510 = vmatpush.msra.mxu0 %v5509
        %v5511 = vand.u32 %v5400, 4294901760
        %v5512 = vsub.f32 %v5400, %v5511
        %v5513 = vand.u32 %v5512, 4294901760
        %v5514 = vsub.f32 %v5512, %v5513
        %v5515 = vand.u32 %v5514, 4294901760
        %5516 = vmatpush.msra.mxu0 %v5515
        %v5517 = vand.u32 %v5399, 4294901760
        %v5518 = vsub.f32 %v5399, %v5517
        %v5519 = vand.u32 %v5518, 4294901760
        %v5520 = vsub.f32 %v5518, %v5519
        %v5521 = vand.u32 %v5520, 4294901760
        %5522 = vmatpush.msra.mxu0 %v5521
        %v5523 = vand.u32 %v5398, 4294901760
        %v5524 = vsub.f32 %v5398, %v5523
        %v5525 = vand.u32 %v5524, 4294901760
        %v5526 = vsub.f32 %v5524, %v5525
        %v5527 = vand.u32 %v5526, 4294901760
        %5528 = vmatpush.msra.mxu0 %v5527
        %v5529 = vand.u32 %v5397, 4294901760
        %v5530 = vsub.f32 %v5397, %v5529
        %v5531 = vand.u32 %v5530, 4294901760
        %v5532 = vsub.f32 %v5530, %v5531
        %v5533 = vand.u32 %v5532, 4294901760
        %5534 = vmatpush.msra.mxu0 %v5533
        %v5535 = vand.u32 %v5396, 4294901760
        %v5536 = vsub.f32 %v5396, %v5535
        %v5537 = vand.u32 %v5536, 4294901760
        %v5538 = vsub.f32 %v5536, %v5537
        %v5539 = vand.u32 %v5538, 4294901760
        %5540 = vmatpush.msra.mxu0 %v5539
        %v5541 = vand.u32 %v5395, 4294901760
        %v5542 = vsub.f32 %v5395, %v5541
        %v5543 = vand.u32 %v5542, 4294901760
        %v5544 = vsub.f32 %v5542, %v5543
        %v5545 = vand.u32 %v5544, 4294901760
        %5546 = vmatpush.msra.mxu0 %v5545
        %v5547 = vand.u32 %v5394, 4294901760
        %v5548 = vsub.f32 %v5394, %v5547
        %v5549 = vand.u32 %v5548, 4294901760
        %v5550 = vsub.f32 %v5548, %v5549
        %v5551 = vand.u32 %v5550, 4294901760
        %5552 = vmatpush.msra.mxu0 %v5551
        %v5553 = vand.u32 %v5393, 4294901760
        %v5554 = vsub.f32 %v5393, %v5553
        %v5555 = vand.u32 %v5554, 4294901760
        %v5556 = vsub.f32 %v5554, %v5555
        %v5557 = vand.u32 %v5556, 4294901760
        %5558 = vmatpush.msra.mxu0 %v5557
        %v5559 = vand.u32 %v5386, 4294901760
        %5560 = vmatmul.f32.gmra.mxu0 %v5559
        %v5561 = vpop.f32.mrf.mxu0
        %v5562 = vadd.f32 %v5453, %v5561
        %v5563 = vand.u32 %v5390, 4294901760
        %5564 = vmatmul.f32.gmra.mxu0 %v5563
        %v5565 = vpop.f32.mrf.mxu0
        %v5566 = vadd.f32 %v5461, %v5565
        %5567 = vdwg.mxu0
        %v5568 = vand.u32 %v5408, 4294901760
        %v5569 = vsub.f32 %v5408, %v5568
        %5570 = vmatpush.msra.mxu0 %v5569
        %v5571 = vand.u32 %v5407, 4294901760
        %v5572 = vsub.f32 %v5407, %v5571
        %5573 = vmatpush.msra.mxu0 %v5572
        %v5574 = vand.u32 %v5406, 4294901760
        %v5575 = vsub.f32 %v5406, %v5574
        %5576 = vmatpush.msra.mxu0 %v5575
        %v5577 = vand.u32 %v5405, 4294901760
        %v5578 = vsub.f32 %v5405, %v5577
        %5579 = vmatpush.msra.mxu0 %v5578
        %v5580 = vand.u32 %v5404, 4294901760
        %v5581 = vsub.f32 %v5404, %v5580
        %5582 = vmatpush.msra.mxu0 %v5581
        %v5583 = vand.u32 %v5403, 4294901760
        %v5584 = vsub.f32 %v5403, %v5583
        %5585 = vmatpush.msra.mxu0 %v5584
        %v5586 = vand.u32 %v5402, 4294901760
        %v5587 = vsub.f32 %v5402, %v5586
        %5588 = vmatpush.msra.mxu0 %v5587
        %v5589 = vand.u32 %v5401, 4294901760
        %v5590 = vsub.f32 %v5401, %v5589
        %5591 = vmatpush.msra.mxu0 %v5590
        %v5592 = vand.u32 %v5400, 4294901760
        %v5593 = vsub.f32 %v5400, %v5592
        %5594 = vmatpush.msra.mxu0 %v5593
        %v5595 = vand.u32 %v5399, 4294901760
        %v5596 = vsub.f32 %v5399, %v5595
        %5597 = vmatpush.msra.mxu0 %v5596
        %v5598 = vand.u32 %v5398, 4294901760
        %v5599 = vsub.f32 %v5398, %v5598
        %5600 = vmatpush.msra.mxu0 %v5599
        %v5601 = vand.u32 %v5397, 4294901760
        %v5602 = vsub.f32 %v5397, %v5601
        %5603 = vmatpush.msra.mxu0 %v5602
        %v5604 = vand.u32 %v5396, 4294901760
        %v5605 = vsub.f32 %v5396, %v5604
        %5606 = vmatpush.msra.mxu0 %v5605
        %v5607 = vand.u32 %v5395, 4294901760
        %v5608 = vsub.f32 %v5395, %v5607
        %5609 = vmatpush.msra.mxu0 %v5608
        %v5610 = vand.u32 %v5394, 4294901760
        %v5611 = vsub.f32 %v5394, %v5610
        %5612 = vmatpush.msra.mxu0 %v5611
        %v5613 = vand.u32 %v5393, 4294901760
        %v5614 = vsub.f32 %v5393, %v5613
        %5615 = vmatpush.msra.mxu0 %v5614
        %v5616 = vand.u32 %v5386, 4294901760
        %v5617 = vsub.f32 %v5386, %v5616
        %5618 = vmatmul.f32.gmra.mxu0 %v5617
        %v5619 = vpop.f32.mrf.mxu0
        %v5620 = vadd.f32 %v5562, %v5619
        %v5621 = vand.u32 %v5390, 4294901760
        %v5622 = vsub.f32 %v5390, %v5621
        %5623 = vmatmul.f32.gmra.mxu0 %v5622
        %v5624 = vpop.f32.mrf.mxu0
        %v5625 = vadd.f32 %v5566, %v5624
        %5626 = vdwg.mxu0
        %v5627 = vand.u32 %v5408, 4294901760
        %5628 = vmatpush.msra.mxu0 %v5627
        %v5629 = vand.u32 %v5407, 4294901760
        %5630 = vmatpush.msra.mxu0 %v5629
        %v5631 = vand.u32 %v5406, 4294901760
        %5632 = vmatpush.msra.mxu0 %v5631
        %v5633 = vand.u32 %v5405, 4294901760
        %5634 = vmatpush.msra.mxu0 %v5633
        %v5635 = vand.u32 %v5404, 4294901760
        %5636 = vmatpush.msra.mxu0 %v5635
        %v5637 = vand.u32 %v5403, 4294901760
        %5638 = vmatpush.msra.mxu0 %v5637
        %v5639 = vand.u32 %v5402, 4294901760
        %5640 = vmatpush.msra.mxu0 %v5639
        %v5641 = vand.u32 %v5401, 4294901760
        %5642 = vmatpush.msra.mxu0 %v5641
        %v5643 = vand.u32 %v5400, 4294901760
        %5644 = vmatpush.msra.mxu0 %v5643
        %v5645 = vand.u32 %v5399, 4294901760
        %5646 = vmatpush.msra.mxu0 %v5645
        %v5647 = vand.u32 %v5398, 4294901760
        %5648 = vmatpush.msra.mxu0 %v5647
        %v5649 = vand.u32 %v5397, 4294901760
        %5650 = vmatpush.msra.mxu0 %v5649
        %v5651 = vand.u32 %v5396, 4294901760
        %5652 = vmatpush.msra.mxu0 %v5651
        %v5653 = vand.u32 %v5395, 4294901760
        %5654 = vmatpush.msra.mxu0 %v5653
        %v5655 = vand.u32 %v5394, 4294901760
        %5656 = vmatpush.msra.mxu0 %v5655
        %v5657 = vand.u32 %v5393, 4294901760
        %5658 = vmatpush.msra.mxu0 %v5657
        %v5659 = vand.u32 %v5386, 4294901760
        %v5660 = vsub.f32 %v5386, %v5659
        %v5661 = vand.u32 %v5660, 4294901760
        %5662 = vmatmul.f32.gmra.mxu0 %v5661
        %v5663 = vpop.f32.mrf.mxu0
        %v5664 = vadd.f32 %v5620, %v5663
        %v5665 = vand.u32 %v5390, 4294901760
        %v5666 = vsub.f32 %v5390, %v5665
        %v5667 = vand.u32 %v5666, 4294901760
        %5668 = vmatmul.f32.gmra.mxu0 %v5667
        %v5669 = vpop.f32.mrf.mxu0
        %v5670 = vadd.f32 %v5625, %v5669
        %5671 = vdwg.mxu0
        %v5672 = vand.u32 %v5408, 4294901760
        %v5673 = vsub.f32 %v5408, %v5672
        %v5674 = vand.u32 %v5673, 4294901760
        %5675 = vmatpush.msra.mxu0 %v5674
        %v5676 = vand.u32 %v5407, 4294901760
        %v5677 = vsub.f32 %v5407, %v5676
        %v5678 = vand.u32 %v5677, 4294901760
        %5679 = vmatpush.msra.mxu0 %v5678
        %v5680 = vand.u32 %v5406, 4294901760
        %v5681 = vsub.f32 %v5406, %v5680
        %v5682 = vand.u32 %v5681, 4294901760
        %5683 = vmatpush.msra.mxu0 %v5682
        %v5684 = vand.u32 %v5405, 4294901760
        %v5685 = vsub.f32 %v5405, %v5684
        %v5686 = vand.u32 %v5685, 4294901760
        %5687 = vmatpush.msra.mxu0 %v5686
        %v5688 = vand.u32 %v5404, 4294901760
        %v5689 = vsub.f32 %v5404, %v5688
        %v5690 = vand.u32 %v5689, 4294901760
        %5691 = vmatpush.msra.mxu0 %v5690
        %v5692 = vand.u32 %v5403, 4294901760
        %v5693 = vsub.f32 %v5403, %v5692
        %v5694 = vand.u32 %v5693, 4294901760
        %5695 = vmatpush.msra.mxu0 %v5694
        %v5696 = vand.u32 %v5402, 4294901760
        %v5697 = vsub.f32 %v5402, %v5696
        %v5698 = vand.u32 %v5697, 4294901760
        %5699 = vmatpush.msra.mxu0 %v5698
        %v5700 = vand.u32 %v5401, 4294901760
        %v5701 = vsub.f32 %v5401, %v5700
        %v5702 = vand.u32 %v5701, 4294901760
        %5703 = vmatpush.msra.mxu0 %v5702
        %v5704 = vand.u32 %v5400, 4294901760
        %v5705 = vsub.f32 %v5400, %v5704
        %v5706 = vand.u32 %v5705, 4294901760
        %5707 = vmatpush.msra.mxu0 %v5706
        %v5708 = vand.u32 %v5399, 4294901760
        %v5709 = vsub.f32 %v5399, %v5708
        %v5710 = vand.u32 %v5709, 4294901760
        %5711 = vmatpush.msra.mxu0 %v5710
        %v5712 = vand.u32 %v5398, 4294901760
        %v5713 = vsub.f32 %v5398, %v5712
        %v5714 = vand.u32 %v5713, 4294901760
        %5715 = vmatpush.msra.mxu0 %v5714
        %v5716 = vand.u32 %v5397, 4294901760
        %v5717 = vsub.f32 %v5397, %v5716
        %v5718 = vand.u32 %v5717, 4294901760
        %5719 = vmatpush.msra.mxu0 %v5718
        %v5720 = vand.u32 %v5396, 4294901760
        %v5721 = vsub.f32 %v5396, %v5720
        %v5722 = vand.u32 %v5721, 4294901760
        %5723 = vmatpush.msra.mxu0 %v5722
        %v5724 = vand.u32 %v5395, 4294901760
        %v5725 = vsub.f32 %v5395, %v5724
        %v5726 = vand.u32 %v5725, 4294901760
        %5727 = vmatpush.msra.mxu0 %v5726
        %v5728 = vand.u32 %v5394, 4294901760
        %v5729 = vsub.f32 %v5394, %v5728
        %v5730 = vand.u32 %v5729, 4294901760
        %5731 = vmatpush.msra.mxu0 %v5730
        %v5732 = vand.u32 %v5393, 4294901760
        %v5733 = vsub.f32 %v5393, %v5732
        %v5734 = vand.u32 %v5733, 4294901760
        %5735 = vmatpush.msra.mxu0 %v5734
        %v5736 = vand.u32 %v5386, 4294901760
        %5737 = vmatmul.f32.gmra.mxu0 %v5736
        %v5738 = vpop.f32.mrf.mxu0
        %v5739 = vadd.f32 %v5664, %v5738
        %v5740 = vand.u32 %v5390, 4294901760
        %5741 = vmatmul.f32.gmra.mxu0 %v5740
        %v5742 = vpop.f32.mrf.mxu0
        %v5743 = vadd.f32 %v5670, %v5742
        %5744 = vdwg.mxu0
        %v5745 = vand.u32 %v5408, 4294901760
        %5746 = vmatpush.msra.mxu0 %v5745
        %v5747 = vand.u32 %v5407, 4294901760
        %5748 = vmatpush.msra.mxu0 %v5747
        %v5749 = vand.u32 %v5406, 4294901760
        %5750 = vmatpush.msra.mxu0 %v5749
        %v5751 = vand.u32 %v5405, 4294901760
        %5752 = vmatpush.msra.mxu0 %v5751
        %v5753 = vand.u32 %v5404, 4294901760
        %5754 = vmatpush.msra.mxu0 %v5753
        %v5755 = vand.u32 %v5403, 4294901760
        %5756 = vmatpush.msra.mxu0 %v5755
        %v5757 = vand.u32 %v5402, 4294901760
        %5758 = vmatpush.msra.mxu0 %v5757
        %v5759 = vand.u32 %v5401, 4294901760
        %5760 = vmatpush.msra.mxu0 %v5759
        %v5761 = vand.u32 %v5400, 4294901760
        %5762 = vmatpush.msra.mxu0 %v5761
        %v5763 = vand.u32 %v5399, 4294901760
        %5764 = vmatpush.msra.mxu0 %v5763
        %v5765 = vand.u32 %v5398, 4294901760
        %5766 = vmatpush.msra.mxu0 %v5765
        %v5767 = vand.u32 %v5397, 4294901760
        %5768 = vmatpush.msra.mxu0 %v5767
        %v5769 = vand.u32 %v5396, 4294901760
        %5770 = vmatpush.msra.mxu0 %v5769
        %v5771 = vand.u32 %v5395, 4294901760
        %5772 = vmatpush.msra.mxu0 %v5771
        %v5773 = vand.u32 %v5394, 4294901760
        %5774 = vmatpush.msra.mxu0 %v5773
        %v5775 = vand.u32 %v5393, 4294901760
        %5776 = vmatpush.msra.mxu0 %v5775
        %v5777 = vand.u32 %v5386, 4294901760
        %5778 = vmatmul.f32.gmra.mxu0 %v5777
        %v5779 = vpop.f32.mrf.mxu0
        %v5780 = vadd.f32 %v5739, %v5779
        %v5781 = vand.u32 %v5390, 4294901760
        %5782 = vmatmul.f32.gmra.mxu0 %v5781
        %v5783 = vpop.f32.mrf.mxu0
        %v5784 = vadd.f32 %v5743, %v5783
        %5785 = vdwg.mxu0
        %v5786 = vmax.f32 %v5780, 0.0
        %v5787 = vmax.f32 %v5784, 0.0
        %s5788 = scalar_lea.vmem %s8, 128
        %v5789 = vld [vmem:[%s5788] sm:$0xff]
        %v5790 = vld [vmem:[%s5788 + $0x8] sm:$0xff]
        %v5791 = vld [vmem:[%s5788 + $0x10] sm:$0xff]
        %v5792 = vld [vmem:[%s5788 + $0x18] sm:$0xff]
        %v5793 = vld [vmem:[%s5788 + $0x20] sm:$0xff]
        %v5794 = vld [vmem:[%s5788 + $0x28] sm:$0xff]
        %v5795 = vld [vmem:[%s5788 + $0x30] sm:$0xff]
        %v5796 = vld [vmem:[%s5788 + $0x38] sm:$0xff]
        %s5797 = scalar_lea.vmem [#allocation11], 2
        %v5798 = vld [vmem:[%s5797] sm:$0x1]
        %v5800 = vperm.slane %v5798, 0
        %v5803 = vsel %vm2860, %v5786, 0
        %v5806 = vsel %vm2860, %v5787, 0
        %5808 = vmatpush.msra.mxu0 0.0
        %5809 = vmatpush.msra.mxu0 0.0
        %5810 = vmatpush.msra.mxu0 0.0
        %5811 = vmatpush.msra.mxu0 0.0
        %5812 = vmatpush.msra.mxu0 0.0
        %5813 = vmatpush.msra.mxu0 0.0
        %5814 = vmatpush.msra.mxu0 0.0
        %5815 = vmatpush.msra.mxu0 0.0
        %v5816 = vand.u32 %v5796, 4294901760
        %5817 = vmatpush.msra.mxu0 %v5816
        %v5818 = vand.u32 %v5795, 4294901760
        %5819 = vmatpush.msra.mxu0 %v5818
        %v5820 = vand.u32 %v5794, 4294901760
        %5821 = vmatpush.msra.mxu0 %v5820
        %v5822 = vand.u32 %v5793, 4294901760
        %5823 = vmatpush.msra.mxu0 %v5822
        %v5824 = vand.u32 %v5792, 4294901760
        %5825 = vmatpush.msra.mxu0 %v5824
        %v5826 = vand.u32 %v5791, 4294901760
        %5827 = vmatpush.msra.mxu0 %v5826
        %v5828 = vand.u32 %v5790, 4294901760
        %5829 = vmatpush.msra.mxu0 %v5828
        %v5830 = vand.u32 %v5789, 4294901760
        %5831 = vmatpush.msra.mxu0 %v5830
        %v5832 = vand.u32 %v5803, 4294901760
        %v5833 = vsub.f32 %v5803, %v5832
        %v5834 = vand.u32 %v5833, 4294901760
        %v5835 = vsub.f32 %v5833, %v5834
        %v5836 = vand.u32 %v5835, 4294901760
        %5837 = vmatmul.f32.gmra.mxu0 %v5836
        %v5838 = vpop.f32.mrf.mxu0
        %v5839 = vadd.f32 %v5800, %v5838
        %v5840 = vand.u32 %v5806, 4294901760
        %v5841 = vsub.f32 %v5806, %v5840
        %v5842 = vand.u32 %v5841, 4294901760
        %v5843 = vsub.f32 %v5841, %v5842
        %v5844 = vand.u32 %v5843, 4294901760
        %5845 = vmatmul.f32.gmra.mxu0 %v5844
        %v5846 = vpop.f32.mrf.mxu0
        %v5847 = vadd.f32 %v5800, %v5846
        %5848 = vdwg.mxu0
        %5849 = vmatpush.msra.mxu0 0.0
        %5850 = vmatpush.msra.mxu0 0.0
        %5851 = vmatpush.msra.mxu0 0.0
        %5852 = vmatpush.msra.mxu0 0.0
        %5853 = vmatpush.msra.mxu0 0.0
        %5854 = vmatpush.msra.mxu0 0.0
        %5855 = vmatpush.msra.mxu0 0.0
        %5856 = vmatpush.msra.mxu0 0.0
        %v5857 = vand.u32 %v5796, 4294901760
        %v5858 = vsub.f32 %v5796, %v5857
        %v5859 = vand.u32 %v5858, 4294901760
        %v5860 = vsub.f32 %v5858, %v5859
        %v5861 = vand.u32 %v5860, 4294901760
        %5862 = vmatpush.msra.mxu0 %v5861
        %v5863 = vand.u32 %v5795, 4294901760
        %v5864 = vsub.f32 %v5795, %v5863
        %v5865 = vand.u32 %v5864, 4294901760
        %v5866 = vsub.f32 %v5864, %v5865
        %v5867 = vand.u32 %v5866, 4294901760
        %5868 = vmatpush.msra.mxu0 %v5867
        %v5869 = vand.u32 %v5794, 4294901760
        %v5870 = vsub.f32 %v5794, %v5869
        %v5871 = vand.u32 %v5870, 4294901760
        %v5872 = vsub.f32 %v5870, %v5871
        %v5873 = vand.u32 %v5872, 4294901760
        %5874 = vmatpush.msra.mxu0 %v5873
        %v5875 = vand.u32 %v5793, 4294901760
        %v5876 = vsub.f32 %v5793, %v5875
        %v5877 = vand.u32 %v5876, 4294901760
        %v5878 = vsub.f32 %v5876, %v5877
        %v5879 = vand.u32 %v5878, 4294901760
        %5880 = vmatpush.msra.mxu0 %v5879
        %v5881 = vand.u32 %v5792, 4294901760
        %v5882 = vsub.f32 %v5792, %v5881
        %v5883 = vand.u32 %v5882, 4294901760
        %v5884 = vsub.f32 %v5882, %v5883
        %v5885 = vand.u32 %v5884, 4294901760
        %5886 = vmatpush.msra.mxu0 %v5885
        %v5887 = vand.u32 %v5791, 4294901760
        %v5888 = vsub.f32 %v5791, %v5887
        %v5889 = vand.u32 %v5888, 4294901760
        %v5890 = vsub.f32 %v5888, %v5889
        %v5891 = vand.u32 %v5890, 4294901760
        %5892 = vmatpush.msra.mxu0 %v5891
        %v5893 = vand.u32 %v5790, 4294901760
        %v5894 = vsub.f32 %v5790, %v5893
        %v5895 = vand.u32 %v5894, 4294901760
        %v5896 = vsub.f32 %v5894, %v5895
        %v5897 = vand.u32 %v5896, 4294901760
        %5898 = vmatpush.msra.mxu0 %v5897
        %v5899 = vand.u32 %v5789, 4294901760
        %v5900 = vsub.f32 %v5789, %v5899
        %v5901 = vand.u32 %v5900, 4294901760
        %v5902 = vsub.f32 %v5900, %v5901
        %v5903 = vand.u32 %v5902, 4294901760
        %5904 = vmatpush.msra.mxu0 %v5903
        %v5905 = vand.u32 %v5803, 4294901760
        %5906 = vmatmul.f32.gmra.mxu0 %v5905
        %v5907 = vpop.f32.mrf.mxu0
        %v5908 = vadd.f32 %v5839, %v5907
        %v5909 = vand.u32 %v5806, 4294901760
        %5910 = vmatmul.f32.gmra.mxu0 %v5909
        %v5911 = vpop.f32.mrf.mxu0
        %v5912 = vadd.f32 %v5847, %v5911
        %5913 = vdwg.mxu0
        %5914 = vmatpush.msra.mxu0 0.0
        %5915 = vmatpush.msra.mxu0 0.0
        %5916 = vmatpush.msra.mxu0 0.0
        %5917 = vmatpush.msra.mxu0 0.0
        %5918 = vmatpush.msra.mxu0 0.0
        %5919 = vmatpush.msra.mxu0 0.0
        %5920 = vmatpush.msra.mxu0 0.0
        %5921 = vmatpush.msra.mxu0 0.0
        %v5922 = vand.u32 %v5796, 4294901760
        %v5923 = vsub.f32 %v5796, %v5922
        %5924 = vmatpush.msra.mxu0 %v5923
        %v5925 = vand.u32 %v5795, 4294901760
        %v5926 = vsub.f32 %v5795, %v5925
        %5927 = vmatpush.msra.mxu0 %v5926
        %v5928 = vand.u32 %v5794, 4294901760
        %v5929 = vsub.f32 %v5794, %v5928
        %5930 = vmatpush.msra.mxu0 %v5929
        %v5931 = vand.u32 %v5793, 4294901760
        %v5932 = vsub.f32 %v5793, %v5931
        %5933 = vmatpush.msra.mxu0 %v5932
        %v5934 = vand.u32 %v5792, 4294901760
        %v5935 = vsub.f32 %v5792, %v5934
        %5936 = vmatpush.msra.mxu0 %v5935
        %v5937 = vand.u32 %v5791, 4294901760
        %v5938 = vsub.f32 %v5791, %v5937
        %5939 = vmatpush.msra.mxu0 %v5938
        %v5940 = vand.u32 %v5790, 4294901760
        %v5941 = vsub.f32 %v5790, %v5940
        %5942 = vmatpush.msra.mxu0 %v5941
        %v5943 = vand.u32 %v5789, 4294901760
        %v5944 = vsub.f32 %v5789, %v5943
        %5945 = vmatpush.msra.mxu0 %v5944
        %v5946 = vand.u32 %v5803, 4294901760
        %v5947 = vsub.f32 %v5803, %v5946
        %5948 = vmatmul.f32.gmra.mxu0 %v5947
        %v5949 = vpop.f32.mrf.mxu0
        %v5950 = vadd.f32 %v5908, %v5949
        %v5951 = vand.u32 %v5806, 4294901760
        %v5952 = vsub.f32 %v5806, %v5951
        %5953 = vmatmul.f32.gmra.mxu0 %v5952
        %v5954 = vpop.f32.mrf.mxu0
        %v5955 = vadd.f32 %v5912, %v5954
        %5956 = vdwg.mxu0
        %5957 = vmatpush.msra.mxu0 0.0
        %5958 = vmatpush.msra.mxu0 0.0
        %5959 = vmatpush.msra.mxu0 0.0
        %5960 = vmatpush.msra.mxu0 0.0
        %5961 = vmatpush.msra.mxu0 0.0
        %5962 = vmatpush.msra.mxu0 0.0
        %5963 = vmatpush.msra.mxu0 0.0
        %5964 = vmatpush.msra.mxu0 0.0
        %v5965 = vand.u32 %v5796, 4294901760
        %5966 = vmatpush.msra.mxu0 %v5965
        %v5967 = vand.u32 %v5795, 4294901760
        %5968 = vmatpush.msra.mxu0 %v5967
        %v5969 = vand.u32 %v5794, 4294901760
        %5970 = vmatpush.msra.mxu0 %v5969
        %v5971 = vand.u32 %v5793, 4294901760
        %5972 = vmatpush.msra.mxu0 %v5971
        %v5973 = vand.u32 %v5792, 4294901760
        %5974 = vmatpush.msra.mxu0 %v5973
        %v5975 = vand.u32 %v5791, 4294901760
        %5976 = vmatpush.msra.mxu0 %v5975
        %v5977 = vand.u32 %v5790, 4294901760
        %5978 = vmatpush.msra.mxu0 %v5977
        %v5979 = vand.u32 %v5789, 4294901760
        %5980 = vmatpush.msra.mxu0 %v5979
        %v5981 = vand.u32 %v5803, 4294901760
        %v5982 = vsub.f32 %v5803, %v5981
        %v5983 = vand.u32 %v5982, 4294901760
        %5984 = vmatmul.f32.gmra.mxu0 %v5983
        %v5985 = vpop.f32.mrf.mxu0
        %v5986 = vadd.f32 %v5950, %v5985
        %v5987 = vand.u32 %v5806, 4294901760
        %v5988 = vsub.f32 %v5806, %v5987
        %v5989 = vand.u32 %v5988, 4294901760
        %5990 = vmatmul.f32.gmra.mxu0 %v5989
        %v5991 = vpop.f32.mrf.mxu0
        %v5992 = vadd.f32 %v5955, %v5991
        %5993 = vdwg.mxu0
        %5994 = vmatpush.msra.mxu0 0.0
        %5995 = vmatpush.msra.mxu0 0.0
        %5996 = vmatpush.msra.mxu0 0.0
        %5997 = vmatpush.msra.mxu0 0.0
        %5998 = vmatpush.msra.mxu0 0.0
        %5999 = vmatpush.msra.mxu0 0.0
        %6000 = vmatpush.msra.mxu0 0.0
        %6001 = vmatpush.msra.mxu0 0.0
        %v6002 = vand.u32 %v5796, 4294901760
        %v6003 = vsub.f32 %v5796, %v6002
        %v6004 = vand.u32 %v6003, 4294901760
        %6005 = vmatpush.msra.mxu0 %v6004
        %v6006 = vand.u32 %v5795, 4294901760
        %v6007 = vsub.f32 %v5795, %v6006
        %v6008 = vand.u32 %v6007, 4294901760
        %6009 = vmatpush.msra.mxu0 %v6008
        %v6010 = vand.u32 %v5794, 4294901760
        %v6011 = vsub.f32 %v5794, %v6010
        %v6012 = vand.u32 %v6011, 4294901760
        %6013 = vmatpush.msra.mxu0 %v6012
        %v6014 = vand.u32 %v5793, 4294901760
        %v6015 = vsub.f32 %v5793, %v6014
        %v6016 = vand.u32 %v6015, 4294901760
        %6017 = vmatpush.msra.mxu0 %v6016
        %v6018 = vand.u32 %v5792, 4294901760
        %v6019 = vsub.f32 %v5792, %v6018
        %v6020 = vand.u32 %v6019, 4294901760
        %6021 = vmatpush.msra.mxu0 %v6020
        %v6022 = vand.u32 %v5791, 4294901760
        %v6023 = vsub.f32 %v5791, %v6022
        %v6024 = vand.u32 %v6023, 4294901760
        %6025 = vmatpush.msra.mxu0 %v6024
        %v6026 = vand.u32 %v5790, 4294901760
        %v6027 = vsub.f32 %v5790, %v6026
        %v6028 = vand.u32 %v6027, 4294901760
        %6029 = vmatpush.msra.mxu0 %v6028
        %v6030 = vand.u32 %v5789, 4294901760
        %v6031 = vsub.f32 %v5789, %v6030
        %v6032 = vand.u32 %v6031, 4294901760
        %6033 = vmatpush.msra.mxu0 %v6032
        %v6034 = vand.u32 %v5803, 4294901760
        %6035 = vmatmul.f32.gmra.mxu0 %v6034
        %v6036 = vpop.f32.mrf.mxu0
        %v6037 = vadd.f32 %v5986, %v6036
        %v6038 = vand.u32 %v5806, 4294901760
        %6039 = vmatmul.f32.gmra.mxu0 %v6038
        %v6040 = vpop.f32.mrf.mxu0
        %v6041 = vadd.f32 %v5992, %v6040
        %6042 = vdwg.mxu0
        %6043 = vmatpush.msra.mxu0 0.0
        %6044 = vmatpush.msra.mxu0 0.0
        %6045 = vmatpush.msra.mxu0 0.0
        %6046 = vmatpush.msra.mxu0 0.0
        %6047 = vmatpush.msra.mxu0 0.0
        %6048 = vmatpush.msra.mxu0 0.0
        %6049 = vmatpush.msra.mxu0 0.0
        %6050 = vmatpush.msra.mxu0 0.0
        %v6051 = vand.u32 %v5796, 4294901760
        %6052 = vmatpush.msra.mxu0 %v6051
        %v6053 = vand.u32 %v5795, 4294901760
        %6054 = vmatpush.msra.mxu0 %v6053
        %v6055 = vand.u32 %v5794, 4294901760
        %6056 = vmatpush.msra.mxu0 %v6055
        %v6057 = vand.u32 %v5793, 4294901760
        %6058 = vmatpush.msra.mxu0 %v6057
        %v6059 = vand.u32 %v5792, 4294901760
        %6060 = vmatpush.msra.mxu0 %v6059
        %v6061 = vand.u32 %v5791, 4294901760
        %6062 = vmatpush.msra.mxu0 %v6061
        %v6063 = vand.u32 %v5790, 4294901760
        %6064 = vmatpush.msra.mxu0 %v6063
        %v6065 = vand.u32 %v5789, 4294901760
        %6066 = vmatpush.msra.mxu0 %v6065
        %v6067 = vand.u32 %v5803, 4294901760
        %6068 = vmatmul.f32.gmra.mxu0 %v6067
        %v6069 = vpop.f32.mrf.mxu0
        %v6070 = vadd.f32 %v6037, %v6069
        %v6071 = vand.u32 %v5806, 4294901760
        %6072 = vmatmul.f32.gmra.mxu0 %v6071
        %v6073 = vpop.f32.mrf.mxu0
        %v6074 = vadd.f32 %v6041, %v6073
        %6075 = vdwg.mxu0
        %s6076 = scalar_lea.vmem %s10, 4
        %v6077 = vld [vmem:[%s6076] sm:$0x3]
        %v6078 = vadd.f32 %v5386, %v6070
        %v6079 = vadd.f32 %v5390, %v6074
        %6080 = vadd.xlane.f32.xlu0 %v6078
        %v6081 = vpop.xlane.xlu0 %6080
        %6082 = vadd.xlane.f32.xlu0 %v6079
        %v6083 = vpop.xlane.xlu0 %6082
        %v6084 = vmul.f32 %v6081, %v3148
        %v6085 = vmul.f32 %v6083, %v3148
        %v6086 = vsub.f32 %v6078, %v6084
        %v6087 = vsub.f32 %v6079, %v6085
        %v6088 = vmul.f32 %v6086, %v6086
        %v6089 = vmul.f32 %v6087, %v6087
        %6090 = vadd.xlane.f32.xlu0 %v6088
        %v6091 = vpop.xlane.xlu0 %6090
        %6092 = vadd.xlane.f32.xlu0 %v6089
        %v6093 = vpop.xlane.xlu0 %6092
        %v6094 = vmul.f32 %v6091, %v3165
        %v6095 = vmul.f32 %v6093, %v3165
        %v6096 = vrsqrt.pop %v6094
        %v6097 = vmul.f32 %v6096, %v6094
        %v6098 = vmul.f32 %v6097, %v6096
        %v6099 = vmul.f32 0.5, %v6098
        %v6100 = vsub.f32 1.5, %v6099
        %v6101 = vmul.f32 %v6096, %v6100
        %v6102 = vmul.f32 %v6094, %v6101
        %vm6103 = vcmp.eq.f32.partialorder %v6094, inf
        %v6104 = vsel %vm6103, %v6094, %v6102
        %vm6105 = vcmp.eq.f32.partialorder %v6094, 0.0
        %v6106 = vand.u32 %v6094, 2147483648
        %v6107 = vsel %vm6105, %v6106, %v6104
        %v6108 = vrsqrt.pop %v6095
        %v6109 = vmul.f32 %v6108, %v6095
        %v6110 = vmul.f32 %v6109, %v6108
        %v6111 = vmul.f32 0.5, %v6110
        %v6112 = vsub.f32 1.5, %v6111
        %v6113 = vmul.f32 %v6108, %v6112
        %v6114 = vmul.f32 %v6095, %v6113
        %vm6115 = vcmp.eq.f32.partialorder %v6095, inf
        %v6116 = vsel %vm6115, %v6095, %v6114
        %vm6117 = vcmp.eq.f32.partialorder %v6095, 0.0
        %v6118 = vand.u32 %v6095, 2147483648
        %v6119 = vsel %vm6117, %v6118, %v6116
        %v6120 = vadd.f32 %v6107, 1e-06
        %v6121 = vadd.f32 %v6119, 1e-06
        %v6122 = vrcp.pop %v6120
        %v6123 = vmul.f32 %v6120, %v6122
        %v6124 = vsub.f32 1.0, %v6123
        %v6125 = vmul.f32 %v6122, %v6124
        %v6126 = vadd.f32 %v6122, %v6125
        %vm6127 = vweird.f32 %v6120
        %vm6128 = vweird.f32 %v6122
        %vm6129 = vmor %vm6127, %vm6128
        %v6130 = vsel %vm6129, %v6122, %v6126
        %v6131 = vand.u32 2147483647, %v6120
        %vm6132 = vcmp.eq.f32.partialorder %v6131, 8.507059e+37
        %v6133 = vand.u32 %v6120, 2147483648
        %v6134 = vor.u32 1.1754944e-38, %v6133
        %v6135 = vsel %vm6132, %v6134, %v6130
        %v6136 = vmul.f32 %v6086, %v6135
        %v6137 = vrcp.pop %v6121
        %v6138 = vmul.f32 %v6121, %v6137
        %v6139 = vsub.f32 1.0, %v6138
        %v6140 = vmul.f32 %v6137, %v6139
        %v6141 = vadd.f32 %v6137, %v6140
        %vm6142 = vweird.f32 %v6121
        %vm6143 = vweird.f32 %v6137
        %vm6144 = vmor %vm6142, %vm6143
        %v6145 = vsel %vm6144, %v6137, %v6141
        %v6146 = vand.u32 2147483647, %v6121
        %vm6147 = vcmp.eq.f32.partialorder %v6146, 8.507059e+37
        %v6148 = vand.u32 %v6121, 2147483648
        %v6149 = vor.u32 1.1754944e-38, %v6148
        %v6150 = vsel %vm6147, %v6149, %v6145
        %v6151 = vmul.f32 %v6087, %v6150
        %v6152 = vperm.slane %v6077, 0
        %v6153 = vmul.f32 %v6152, %v6136
        %v6154 = vmul.f32 %v6152, %v6151
        %v6155 = vperm.slane %v6077, 1
        %v6156 = vadd.f32 %v6153, %v6155
        %v6157 = vadd.f32 %v6154, %v6155
        %v6158 = vadd.f32 %v4695, %v6156
        %v6159 = vadd.f32 %v4696, %v6157
        %6160 = vrot.lane.b32.xlu0 %v1018, 32
        %v6161 = vpop.permute.xlu0 %6160
        %6162 = vrot.lane.b32.xlu0 %v1022, 32
        %v6163 = vpop.permute.xlu0 %6162
        %6164 = vrot.lane.b32.xlu0 %v1390, 32
        %v6165 = vpop.permute.xlu0 %6164
        %6166 = vrot.lane.b32.xlu0 %v1394, 32
        %v6167 = vpop.permute.xlu0 %6166
        %v6168 = vsel %vm1768, %v6161, 0
        %v6170 = vsel %vm1768, %v6163, 0
        %v6172 = vsel %vm1768, %v6165, 0
        %v6174 = vsel %vm1768, %v6167, 0
        %6176 = vmatpush.xpose.msra.mxu0 0.0
        %6177 = vmatpush.xpose.msra.mxu0 0.0
        %6178 = vmatpush.xpose.msra.mxu0 0.0
        %6179 = vmatpush.xpose.msra.mxu0 0.0
        %6180 = vmatpush.xpose.msra.mxu0 0.0
        %6181 = vmatpush.xpose.msra.mxu0 0.0
        %6182 = vmatpush.xpose.msra.mxu0 0.0
        %6183 = vmatpush.xpose.msra.mxu0 0.0
        %6184 = vmatpush.xpose.msra.mxu0 0.0
        %6185 = vmatpush.xpose.msra.mxu0 0.0
        %6186 = vmatpush.xpose.msra.mxu0 0.0
        %6187 = vmatpush.xpose.msra.mxu0 0.0
        %6188 = vmatpush.xpose.msra.mxu0 0.0
        %6189 = vmatpush.xpose.msra.mxu0 0.0
        %v6190 = vand.u32 %v6174, 4294901760
        %6191 = vmatpush.xpose.msra.mxu0 %v6190
        %v6192 = vand.u32 %v6172, 4294901760
        %6193 = vmatpush.xpose.msra.mxu0 %v6192
        %v6194 = vand.u32 %v6168, 4294901760
        %v6195 = vsub.f32 %v6168, %v6194
        %v6196 = vand.u32 %v6195, 4294901760
        %v6197 = vsub.f32 %v6195, %v6196
        %v6198 = vand.u32 %v6197, 4294901760
        %6199 = vmatmul.f32.gmra.mxu0 %v6198
        %v6200 = vpop.f32.mrf.mxu0
        %v6201 = vadd.f32 0.0, %v6200
        %v6202 = vand.u32 %v6170, 4294901760
        %v6203 = vsub.f32 %v6170, %v6202
        %v6204 = vand.u32 %v6203, 4294901760
        %v6205 = vsub.f32 %v6203, %v6204
        %v6206 = vand.u32 %v6205, 4294901760
        %6207 = vmatmul.f32.gmra.mxu0 %v6206
        %v6208 = vpop.f32.mrf.mxu0
        %v6209 = vadd.f32 0.0, %v6208
        %6210 = vdwg.mxu0
        %6211 = vmatpush.xpose.msra.mxu0 0.0
        %6212 = vmatpush.xpose.msra.mxu0 0.0
        %6213 = vmatpush.xpose.msra.mxu0 0.0
        %6214 = vmatpush.xpose.msra.mxu0 0.0
        %6215 = vmatpush.xpose.msra.mxu0 0.0
        %6216 = vmatpush.xpose.msra.mxu0 0.0
        %6217 = vmatpush.xpose.msra.mxu0 0.0
        %6218 = vmatpush.xpose.msra.mxu0 0.0
        %6219 = vmatpush.xpose.msra.mxu0 0.0
        %6220 = vmatpush.xpose.msra.mxu0 0.0
        %6221 = vmatpush.xpose.msra.mxu0 0.0
        %6222 = vmatpush.xpose.msra.mxu0 0.0
        %6223 = vmatpush.xpose.msra.mxu0 0.0
        %6224 = vmatpush.xpose.msra.mxu0 0.0
        %v6225 = vand.u32 %v6174, 4294901760
        %v6226 = vsub.f32 %v6174, %v6225
        %v6227 = vand.u32 %v6226, 4294901760
        %v6228 = vsub.f32 %v6226, %v6227
        %v6229 = vand.u32 %v6228, 4294901760
        %6230 = vmatpush.xpose.msra.mxu0 %v6229
        %v6231 = vand.u32 %v6172, 4294901760
        %v6232 = vsub.f32 %v6172, %v6231
        %v6233 = vand.u32 %v6232, 4294901760
        %v6234 = vsub.f32 %v6232, %v6233
        %v6235 = vand.u32 %v6234, 4294901760
        %6236 = vmatpush.xpose.msra.mxu0 %v6235
        %v6237 = vand.u32 %v6168, 4294901760
        %6238 = vmatmul.f32.gmra.mxu0 %v6237
        %v6239 = vpop.f32.mrf.mxu0
        %v6240 = vadd.f32 %v6201, %v6239
        %v6241 = vand.u32 %v6170, 4294901760
        %6242 = vmatmul.f32.gmra.mxu0 %v6241
        %v6243 = vpop.f32.mrf.mxu0
        %v6244 = vadd.f32 %v6209, %v6243
        %6245 = vdwg.mxu0
        %6246 = vmatpush.xpose.msra.mxu0 0.0
        %6247 = vmatpush.xpose.msra.mxu0 0.0
        %6248 = vmatpush.xpose.msra.mxu0 0.0
        %6249 = vmatpush.xpose.msra.mxu0 0.0
        %6250 = vmatpush.xpose.msra.mxu0 0.0
        %6251 = vmatpush.xpose.msra.mxu0 0.0
        %6252 = vmatpush.xpose.msra.mxu0 0.0
        %6253 = vmatpush.xpose.msra.mxu0 0.0
        %6254 = vmatpush.xpose.msra.mxu0 0.0
        %6255 = vmatpush.xpose.msra.mxu0 0.0
        %6256 = vmatpush.xpose.msra.mxu0 0.0
        %6257 = vmatpush.xpose.msra.mxu0 0.0
        %6258 = vmatpush.xpose.msra.mxu0 0.0
        %6259 = vmatpush.xpose.msra.mxu0 0.0
        %v6260 = vand.u32 %v6174, 4294901760
        %v6261 = vsub.f32 %v6174, %v6260
        %6262 = vmatpush.xpose.msra.mxu0 %v6261
        %v6263 = vand.u32 %v6172, 4294901760
        %v6264 = vsub.f32 %v6172, %v6263
        %6265 = vmatpush.xpose.msra.mxu0 %v6264
        %v6266 = vand.u32 %v6168, 4294901760
        %v6267 = vsub.f32 %v6168, %v6266
        %6268 = vmatmul.f32.gmra.mxu0 %v6267
        %v6269 = vpop.f32.mrf.mxu0
        %v6270 = vadd.f32 %v6240, %v6269
        %v6271 = vand.u32 %v6170, 4294901760
        %v6272 = vsub.f32 %v6170, %v6271
        %6273 = vmatmul.f32.gmra.mxu0 %v6272
        %v6274 = vpop.f32.mrf.mxu0
        %v6275 = vadd.f32 %v6244, %v6274
        %6276 = vdwg.mxu0
        %6277 = vmatpush.xpose.msra.mxu0 0.0
        %6278 = vmatpush.xpose.msra.mxu0 0.0
        %6279 = vmatpush.xpose.msra.mxu0 0.0
        %6280 = vmatpush.xpose.msra.mxu0 0.0
        %6281 = vmatpush.xpose.msra.mxu0 0.0
        %6282 = vmatpush.xpose.msra.mxu0 0.0
        %6283 = vmatpush.xpose.msra.mxu0 0.0
        %6284 = vmatpush.xpose.msra.mxu0 0.0
        %6285 = vmatpush.xpose.msra.mxu0 0.0
        %6286 = vmatpush.xpose.msra.mxu0 0.0
        %6287 = vmatpush.xpose.msra.mxu0 0.0
        %6288 = vmatpush.xpose.msra.mxu0 0.0
        %6289 = vmatpush.xpose.msra.mxu0 0.0
        %6290 = vmatpush.xpose.msra.mxu0 0.0
        %v6291 = vand.u32 %v6174, 4294901760
        %6292 = vmatpush.xpose.msra.mxu0 %v6291
        %v6293 = vand.u32 %v6172, 4294901760
        %6294 = vmatpush.xpose.msra.mxu0 %v6293
        %v6295 = vand.u32 %v6168, 4294901760
        %v6296 = vsub.f32 %v6168, %v6295
        %v6297 = vand.u32 %v6296, 4294901760
        %6298 = vmatmul.f32.gmra.mxu0 %v6297
        %v6299 = vpop.f32.mrf.mxu0
        %v6300 = vadd.f32 %v6270, %v6299
        %v6301 = vand.u32 %v6170, 4294901760
        %v6302 = vsub.f32 %v6170, %v6301
        %v6303 = vand.u32 %v6302, 4294901760
        %6304 = vmatmul.f32.gmra.mxu0 %v6303
        %v6305 = vpop.f32.mrf.mxu0
        %v6306 = vadd.f32 %v6275, %v6305
        %6307 = vdwg.mxu0
        %6308 = vmatpush.xpose.msra.mxu0 0.0
        %6309 = vmatpush.xpose.msra.mxu0 0.0
        %6310 = vmatpush.xpose.msra.mxu0 0.0
        %6311 = vmatpush.xpose.msra.mxu0 0.0
        %6312 = vmatpush.xpose.msra.mxu0 0.0
        %6313 = vmatpush.xpose.msra.mxu0 0.0
        %6314 = vmatpush.xpose.msra.mxu0 0.0
        %6315 = vmatpush.xpose.msra.mxu0 0.0
        %6316 = vmatpush.xpose.msra.mxu0 0.0
        %6317 = vmatpush.xpose.msra.mxu0 0.0
        %6318 = vmatpush.xpose.msra.mxu0 0.0
        %6319 = vmatpush.xpose.msra.mxu0 0.0
        %6320 = vmatpush.xpose.msra.mxu0 0.0
        %6321 = vmatpush.xpose.msra.mxu0 0.0
        %v6322 = vand.u32 %v6174, 4294901760
        %v6323 = vsub.f32 %v6174, %v6322
        %v6324 = vand.u32 %v6323, 4294901760
        %6325 = vmatpush.xpose.msra.mxu0 %v6324
        %v6326 = vand.u32 %v6172, 4294901760
        %v6327 = vsub.f32 %v6172, %v6326
        %v6328 = vand.u32 %v6327, 4294901760
        %6329 = vmatpush.xpose.msra.mxu0 %v6328
        %v6330 = vand.u32 %v6168, 4294901760
        %6331 = vmatmul.f32.gmra.mxu0 %v6330
        %v6332 = vpop.f32.mrf.mxu0
        %v6333 = vadd.f32 %v6300, %v6332
        %v6334 = vand.u32 %v6170, 4294901760
        %6335 = vmatmul.f32.gmra.mxu0 %v6334
        %v6336 = vpop.f32.mrf.mxu0
        %v6337 = vadd.f32 %v6306, %v6336
        %6338 = vdwg.mxu0
        %6339 = vmatpush.xpose.msra.mxu0 0.0
        %6340 = vmatpush.xpose.msra.mxu0 0.0
        %6341 = vmatpush.xpose.msra.mxu0 0.0
        %6342 = vmatpush.xpose.msra.mxu0 0.0
        %6343 = vmatpush.xpose.msra.mxu0 0.0
        %6344 = vmatpush.xpose.msra.mxu0 0.0
        %6345 = vmatpush.xpose.msra.mxu0 0.0
        %6346 = vmatpush.xpose.msra.mxu0 0.0
        %6347 = vmatpush.xpose.msra.mxu0 0.0
        %6348 = vmatpush.xpose.msra.mxu0 0.0
        %6349 = vmatpush.xpose.msra.mxu0 0.0
        %6350 = vmatpush.xpose.msra.mxu0 0.0
        %6351 = vmatpush.xpose.msra.mxu0 0.0
        %6352 = vmatpush.xpose.msra.mxu0 0.0
        %v6353 = vand.u32 %v6174, 4294901760
        %6354 = vmatpush.xpose.msra.mxu0 %v6353
        %v6355 = vand.u32 %v6172, 4294901760
        %6356 = vmatpush.xpose.msra.mxu0 %v6355
        %v6357 = vand.u32 %v6168, 4294901760
        %6358 = vmatmul.f32.gmra.mxu0 %v6357
        %v6359 = vpop.f32.mrf.mxu0
        %v6360 = vadd.f32 %v6333, %v6359
        %v6361 = vand.u32 %v6170, 4294901760
        %6362 = vmatmul.f32.gmra.mxu0 %v6361
        %v6363 = vpop.f32.mrf.mxu0
        %v6364 = vadd.f32 %v6337, %v6363
        %6365 = vdwg.mxu0
        %v6366 = vmul.f32 %v6360, 0.17677669
        %v6367 = vmul.f32 %v6364, 0.17677669
        %v6368 = vsel %vm1973, -1e+09, %v6366
        %v6369 = vsel %vm1974, -1e+09, %v6367
        %v6370 = vsel %vm1977, %v6368, -inf
        %6371 = vmax.xlane.f32.xlu0 %v6370
        %v6372 = vpop.xlane.xlu0 %6371
        %v6373 = vsel %vm1977, %v6369, -inf
        %6374 = vmax.xlane.f32.xlu0 %v6373
        %v6375 = vpop.xlane.xlu0 %6374
        %v6376 = vsub.f32 %v6368, %v6372
        %v6377 = vsub.f32 %v6369, %v6375
        %v6378 = vmul.f32 %v6376, 1.442695
        %v6379 = vpow.pop %v6378
        %v6380 = vmul.f32 %v6377, 1.442695
        %v6381 = vpow.pop %v6380
        %v6382 = vsel %vm1977, %v6379, 0.0
        %6383 = vadd.xlane.f32.xlu0 %v6382
        %v6384 = vpop.xlane.xlu0 %6383
        %v6385 = vsel %vm1977, %v6381, 0.0
        %6386 = vadd.xlane.f32.xlu0 %v6385
        %v6387 = vpop.xlane.xlu0 %6386
        %v6388 = vrcp.pop %v6384
        %v6389 = vmul.f32 %v6384, %v6388
        %v6390 = vsub.f32 1.0, %v6389
        %v6391 = vmul.f32 %v6388, %v6390
        %v6392 = vadd.f32 %v6388, %v6391
        %vm6393 = vweird.f32 %v6384
        %vm6394 = vweird.f32 %v6388
        %vm6395 = vmor %vm6393, %vm6394
        %v6396 = vsel %vm6395, %v6388, %v6392
        %v6397 = vand.u32 2147483647, %v6384
        %vm6398 = vcmp.eq.f32.partialorder %v6397, 8.507059e+37
        %v6399 = vand.u32 %v6384, 2147483648
        %v6400 = vor.u32 1.1754944e-38, %v6399
        %v6401 = vsel %vm6398, %v6400, %v6396
        %v6402 = vmul.f32 %v6379, %v6401
        %v6403 = vrcp.pop %v6387
        %v6404 = vmul.f32 %v6387, %v6403
        %v6405 = vsub.f32 1.0, %v6404
        %v6406 = vmul.f32 %v6403, %v6405
        %v6407 = vadd.f32 %v6403, %v6406
        %vm6408 = vweird.f32 %v6387
        %vm6409 = vweird.f32 %v6403
        %vm6410 = vmor %vm6408, %vm6409
        %v6411 = vsel %vm6410, %v6403, %v6407
        %v6412 = vand.u32 2147483647, %v6387
        %vm6413 = vcmp.eq.f32.partialorder %v6412, 8.507059e+37
        %v6414 = vand.u32 %v6387, 2147483648
        %v6415 = vor.u32 1.1754944e-38, %v6414
        %v6416 = vsel %vm6413, %v6415, %v6411
        %v6417 = vmul.f32 %v6381, %v6416
        %s6418 = scalar_lea.vmem %s591, 48 [#allocation15]
        %6419 = vst.msk [vmem:[%s6418] sm:$0xff] %vm1977, %v6402
        %6420 = vst.msk [vmem:[%s6418 + $0x8] sm:$0xff] %vm1977, %v6417
        %6421 = vrot.lane.b32.xlu0 %v1762, 32
        %v6422 = vpop.permute.xlu0 %6421
        %6423 = vrot.lane.b32.xlu0 %v1766, 32
        %v6424 = vpop.permute.xlu0 %6423
        %v6428 = vsel %vm1977, %v6402, 0
        %v6431 = vsel %vm1977, %v6417, 0
        %6433 = vmatpush.msra.mxu0 0.0
        %6434 = vmatpush.msra.mxu0 0.0
        %6435 = vmatpush.msra.mxu0 0.0
        %6436 = vmatpush.msra.mxu0 0.0
        %6437 = vmatpush.msra.mxu0 0.0
        %6438 = vmatpush.msra.mxu0 0.0
        %6439 = vmatpush.msra.mxu0 0.0
        %6440 = vmatpush.msra.mxu0 0.0
        %6441 = vmatpush.msra.mxu0 0.0
        %6442 = vmatpush.msra.mxu0 0.0
        %6443 = vmatpush.msra.mxu0 0.0
        %6444 = vmatpush.msra.mxu0 0.0
        %6445 = vmatpush.msra.mxu0 0.0
        %6446 = vmatpush.msra.mxu0 0.0
        %v6447 = vand.u32 %v6424, 4294901760
        %6448 = vmatpush.msra.mxu0 %v6447
        %v6449 = vand.u32 %v6422, 4294901760
        %6450 = vmatpush.msra.mxu0 %v6449
        %v6451 = vand.u32 %v6428, 4294901760
        %v6452 = vsub.f32 %v6428, %v6451
        %v6453 = vand.u32 %v6452, 4294901760
        %v6454 = vsub.f32 %v6452, %v6453
        %v6455 = vand.u32 %v6454, 4294901760
        %6456 = vmatmul.f32.gmra.mxu0 %v6455
        %v6457 = vpop.f32.mrf.mxu0
        %v6458 = vadd.f32 0.0, %v6457
        %v6459 = vand.u32 %v6431, 4294901760
        %v6460 = vsub.f32 %v6431, %v6459
        %v6461 = vand.u32 %v6460, 4294901760
        %v6462 = vsub.f32 %v6460, %v6461
        %v6463 = vand.u32 %v6462, 4294901760
        %6464 = vmatmul.f32.gmra.mxu0 %v6463
        %v6465 = vpop.f32.mrf.mxu0
        %v6466 = vadd.f32 0.0, %v6465
        %6467 = vdwg.mxu0
        %6468 = vmatpush.msra.mxu0 0.0
        %6469 = vmatpush.msra.mxu0 0.0
        %6470 = vmatpush.msra.mxu0 0.0
        %6471 = vmatpush.msra.mxu0 0.0
        %6472 = vmatpush.msra.mxu0 0.0
        %6473 = vmatpush.msra.mxu0 0.0
        %6474 = vmatpush.msra.mxu0 0.0
        %6475 = vmatpush.msra.mxu0 0.0
        %6476 = vmatpush.msra.mxu0 0.0
        %6477 = vmatpush.msra.mxu0 0.0
        %6478 = vmatpush.msra.mxu0 0.0
        %6479 = vmatpush.msra.mxu0 0.0
        %6480 = vmatpush.msra.mxu0 0.0
        %6481 = vmatpush.msra.mxu0 0.0
        %v6482 = vand.u32 %v6424, 4294901760
        %v6483 = vsub.f32 %v6424, %v6482
        %v6484 = vand.u32 %v6483, 4294901760
        %v6485 = vsub.f32 %v6483, %v6484
        %v6486 = vand.u32 %v6485, 4294901760
        %6487 = vmatpush.msra.mxu0 %v6486
        %v6488 = vand.u32 %v6422, 4294901760
        %v6489 = vsub.f32 %v6422, %v6488
        %v6490 = vand.u32 %v6489, 4294901760
        %v6491 = vsub.f32 %v6489, %v6490
        %v6492 = vand.u32 %v6491, 4294901760
        %6493 = vmatpush.msra.mxu0 %v6492
        %v6494 = vand.u32 %v6428, 4294901760
        %6495 = vmatmul.f32.gmra.mxu0 %v6494
        %v6496 = vpop.f32.mrf.mxu0
        %v6497 = vadd.f32 %v6458, %v6496
        %v6498 = vand.u32 %v6431, 4294901760
        %6499 = vmatmul.f32.gmra.mxu0 %v6498
        %v6500 = vpop.f32.mrf.mxu0
        %v6501 = vadd.f32 %v6466, %v6500
        %6502 = vdwg.mxu0
        %6503 = vmatpush.msra.mxu0 0.0
        %6504 = vmatpush.msra.mxu0 0.0
        %6505 = vmatpush.msra.mxu0 0.0
        %6506 = vmatpush.msra.mxu0 0.0
        %6507 = vmatpush.msra.mxu0 0.0
        %6508 = vmatpush.msra.mxu0 0.0
        %6509 = vmatpush.msra.mxu0 0.0
        %6510 = vmatpush.msra.mxu0 0.0
        %6511 = vmatpush.msra.mxu0 0.0
        %6512 = vmatpush.msra.mxu0 0.0
        %6513 = vmatpush.msra.mxu0 0.0
        %6514 = vmatpush.msra.mxu0 0.0
        %6515 = vmatpush.msra.mxu0 0.0
        %6516 = vmatpush.msra.mxu0 0.0
        %v6517 = vand.u32 %v6424, 4294901760
        %v6518 = vsub.f32 %v6424, %v6517
        %6519 = vmatpush.msra.mxu0 %v6518
        %v6520 = vand.u32 %v6422, 4294901760
        %v6521 = vsub.f32 %v6422, %v6520
        %6522 = vmatpush.msra.mxu0 %v6521
        %v6523 = vand.u32 %v6428, 4294901760
        %v6524 = vsub.f32 %v6428, %v6523
        %6525 = vmatmul.f32.gmra.mxu0 %v6524
        %v6526 = vpop.f32.mrf.mxu0
        %v6527 = vadd.f32 %v6497, %v6526
        %v6528 = vand.u32 %v6431, 4294901760
        %v6529 = vsub.f32 %v6431, %v6528
        %6530 = vmatmul.f32.gmra.mxu0 %v6529
        %v6531 = vpop.f32.mrf.mxu0
        %v6532 = vadd.f32 %v6501, %v6531
        %6533 = vdwg.mxu0
        %6534 = vmatpush.msra.mxu0 0.0
        %6535 = vmatpush.msra.mxu0 0.0
        %6536 = vmatpush.msra.mxu0 0.0
        %6537 = vmatpush.msra.mxu0 0.0
        %6538 = vmatpush.msra.mxu0 0.0
        %6539 = vmatpush.msra.mxu0 0.0
        %6540 = vmatpush.msra.mxu0 0.0
        %6541 = vmatpush.msra.mxu0 0.0
        %6542 = vmatpush.msra.mxu0 0.0
        %6543 = vmatpush.msra.mxu0 0.0
        %6544 = vmatpush.msra.mxu0 0.0
        %6545 = vmatpush.msra.mxu0 0.0
        %6546 = vmatpush.msra.mxu0 0.0
        %6547 = vmatpush.msra.mxu0 0.0
        %v6548 = vand.u32 %v6424, 4294901760
        %6549 = vmatpush.msra.mxu0 %v6548
        %v6550 = vand.u32 %v6422, 4294901760
        %6551 = vmatpush.msra.mxu0 %v6550
        %v6552 = vand.u32 %v6428, 4294901760
        %v6553 = vsub.f32 %v6428, %v6552
        %v6554 = vand.u32 %v6553, 4294901760
        %6555 = vmatmul.f32.gmra.mxu0 %v6554
        %v6556 = vpop.f32.mrf.mxu0
        %v6557 = vadd.f32 %v6527, %v6556
        %v6558 = vand.u32 %v6431, 4294901760
        %v6559 = vsub.f32 %v6431, %v6558
        %v6560 = vand.u32 %v6559, 4294901760
        %6561 = vmatmul.f32.gmra.mxu0 %v6560
        %v6562 = vpop.f32.mrf.mxu0
        %v6563 = vadd.f32 %v6532, %v6562
        %6564 = vdwg.mxu0
        %6565 = vmatpush.msra.mxu0 0.0
        %6566 = vmatpush.msra.mxu0 0.0
        %6567 = vmatpush.msra.mxu0 0.0
        %6568 = vmatpush.msra.mxu0 0.0
        %6569 = vmatpush.msra.mxu0 0.0
        %6570 = vmatpush.msra.mxu0 0.0
        %6571 = vmatpush.msra.mxu0 0.0
        %6572 = vmatpush.msra.mxu0 0.0
        %6573 = vmatpush.msra.mxu0 0.0
        %6574 = vmatpush.msra.mxu0 0.0
        %6575 = vmatpush.msra.mxu0 0.0
        %6576 = vmatpush.msra.mxu0 0.0
        %6577 = vmatpush.msra.mxu0 0.0
        %6578 = vmatpush.msra.mxu0 0.0
        %v6579 = vand.u32 %v6424, 4294901760
        %v6580 = vsub.f32 %v6424, %v6579
        %v6581 = vand.u32 %v6580, 4294901760
        %6582 = vmatpush.msra.mxu0 %v6581
        %v6583 = vand.u32 %v6422, 4294901760
        %v6584 = vsub.f32 %v6422, %v6583
        %v6585 = vand.u32 %v6584, 4294901760
        %6586 = vmatpush.msra.mxu0 %v6585
        %v6587 = vand.u32 %v6428, 4294901760
        %6588 = vmatmul.f32.gmra.mxu0 %v6587
        %v6589 = vpop.f32.mrf.mxu0
        %v6590 = vadd.f32 %v6557, %v6589
        %v6591 = vand.u32 %v6431, 4294901760
        %6592 = vmatmul.f32.gmra.mxu0 %v6591
        %v6593 = vpop.f32.mrf.mxu0
        %v6594 = vadd.f32 %v6563, %v6593
        %6595 = vdwg.mxu0
        %6596 = vmatpush.msra.mxu0 0.0
        %6597 = vmatpush.msra.mxu0 0.0
        %6598 = vmatpush.msra.mxu0 0.0
        %6599 = vmatpush.msra.mxu0 0.0
        %6600 = vmatpush.msra.mxu0 0.0
        %6601 = vmatpush.msra.mxu0 0.0
        %6602 = vmatpush.msra.mxu0 0.0
        %6603 = vmatpush.msra.mxu0 0.0
        %6604 = vmatpush.msra.mxu0 0.0
        %6605 = vmatpush.msra.mxu0 0.0
        %6606 = vmatpush.msra.mxu0 0.0
        %6607 = vmatpush.msra.mxu0 0.0
        %6608 = vmatpush.msra.mxu0 0.0
        %6609 = vmatpush.msra.mxu0 0.0
        %v6610 = vand.u32 %v6424, 4294901760
        %6611 = vmatpush.msra.mxu0 %v6610
        %v6612 = vand.u32 %v6422, 4294901760
        %6613 = vmatpush.msra.mxu0 %v6612
        %v6614 = vand.u32 %v6428, 4294901760
        %6615 = vmatmul.f32.gmra.mxu0 %v6614
        %v6616 = vpop.f32.mrf.mxu0
        %v6617 = vadd.f32 %v6590, %v6616
        %v6618 = vand.u32 %v6431, 4294901760
        %6619 = vmatmul.f32.gmra.mxu0 %v6618
        %v6620 = vpop.f32.mrf.mxu0
        %v6621 = vadd.f32 %v6594, %v6620
        %6622 = vdwg.mxu0
        %s6623 = scalar_lea.vmem %s4, 96
        %v6624 = vld [vmem:[%s6623] sm:$0xff]
        %v6625 = vld [vmem:[%s6623 + $0x8] sm:$0xff]
        %v6626 = vld [vmem:[%s6623 + $0x10] sm:$0xff]
        %v6627 = vld [vmem:[%s6623 + $0x18] sm:$0xff]
        %s6628 = scalar_lea.vmem [#allocation8], 3
        %v6629 = vld [vmem:[%s6628] sm:$0x1]
        %v6631 = vperm.slane %v6629, 0
        %v6634 = vsel %vm1768, %v6617, 0
        %v6637 = vsel %vm1768, %v6621, 0
        %6639 = vmatpush.msra.mxu0 0.0
        %6640 = vmatpush.msra.mxu0 0.0
        %6641 = vmatpush.msra.mxu0 0.0
        %6642 = vmatpush.msra.mxu0 0.0
        %6643 = vmatpush.msra.mxu0 0.0
        %6644 = vmatpush.msra.mxu0 0.0
        %6645 = vmatpush.msra.mxu0 0.0
        %6646 = vmatpush.msra.mxu0 0.0
        %6647 = vmatpush.msra.mxu0 0.0
        %6648 = vmatpush.msra.mxu0 0.0
        %6649 = vmatpush.msra.mxu0 0.0
        %6650 = vmatpush.msra.mxu0 0.0
        %v6651 = vand.u32 %v6627, 4294901760
        %6652 = vmatpush.msra.mxu0 %v6651
        %v6653 = vand.u32 %v6626, 4294901760
        %6654 = vmatpush.msra.mxu0 %v6653
        %v6655 = vand.u32 %v6625, 4294901760
        %6656 = vmatpush.msra.mxu0 %v6655
        %v6657 = vand.u32 %v6624, 4294901760
        %6658 = vmatpush.msra.mxu0 %v6657
        %v6659 = vand.u32 %v6634, 4294901760
        %v6660 = vsub.f32 %v6634, %v6659
        %v6661 = vand.u32 %v6660, 4294901760
        %v6662 = vsub.f32 %v6660, %v6661
        %v6663 = vand.u32 %v6662, 4294901760
        %6664 = vmatmul.f32.gmra.mxu0 %v6663
        %v6665 = vpop.f32.mrf.mxu0
        %v6666 = vadd.f32 %v6631, %v6665
        %v6667 = vand.u32 %v6637, 4294901760
        %v6668 = vsub.f32 %v6637, %v6667
        %v6669 = vand.u32 %v6668, 4294901760
        %v6670 = vsub.f32 %v6668, %v6669
        %v6671 = vand.u32 %v6670, 4294901760
        %6672 = vmatmul.f32.gmra.mxu0 %v6671
        %v6673 = vpop.f32.mrf.mxu0
        %v6674 = vadd.f32 %v6631, %v6673
        %6675 = vdwg.mxu0
        %6676 = vmatpush.msra.mxu0 0.0
        %6677 = vmatpush.msra.mxu0 0.0
        %6678 = vmatpush.msra.mxu0 0.0
        %6679 = vmatpush.msra.mxu0 0.0
        %6680 = vmatpush.msra.mxu0 0.0
        %6681 = vmatpush.msra.mxu0 0.0
        %6682 = vmatpush.msra.mxu0 0.0
        %6683 = vmatpush.msra.mxu0 0.0
        %6684 = vmatpush.msra.mxu0 0.0
        %6685 = vmatpush.msra.mxu0 0.0
        %6686 = vmatpush.msra.mxu0 0.0
        %6687 = vmatpush.msra.mxu0 0.0
        %v6688 = vand.u32 %v6627, 4294901760
        %v6689 = vsub.f32 %v6627, %v6688
        %v6690 = vand.u32 %v6689, 4294901760
        %v6691 = vsub.f32 %v6689, %v6690
        %v6692 = vand.u32 %v6691, 4294901760
        %6693 = vmatpush.msra.mxu0 %v6692
        %v6694 = vand.u32 %v6626, 4294901760
        %v6695 = vsub.f32 %v6626, %v6694
        %v6696 = vand.u32 %v6695, 4294901760
        %v6697 = vsub.f32 %v6695, %v6696
        %v6698 = vand.u32 %v6697, 4294901760
        %6699 = vmatpush.msra.mxu0 %v6698
        %v6700 = vand.u32 %v6625, 4294901760
        %v6701 = vsub.f32 %v6625, %v6700
        %v6702 = vand.u32 %v6701, 4294901760
        %v6703 = vsub.f32 %v6701, %v6702
        %v6704 = vand.u32 %v6703, 4294901760
        %6705 = vmatpush.msra.mxu0 %v6704
        %v6706 = vand.u32 %v6624, 4294901760
        %v6707 = vsub.f32 %v6624, %v6706
        %v6708 = vand.u32 %v6707, 4294901760
        %v6709 = vsub.f32 %v6707, %v6708
        %v6710 = vand.u32 %v6709, 4294901760
        %6711 = vmatpush.msra.mxu0 %v6710
        %v6712 = vand.u32 %v6634, 4294901760
        %6713 = vmatmul.f32.gmra.mxu0 %v6712
        %v6714 = vpop.f32.mrf.mxu0
        %v6715 = vadd.f32 %v6666, %v6714
        %v6716 = vand.u32 %v6637, 4294901760
        %6717 = vmatmul.f32.gmra.mxu0 %v6716
        %v6718 = vpop.f32.mrf.mxu0
        %v6719 = vadd.f32 %v6674, %v6718
        %6720 = vdwg.mxu0
        %6721 = vmatpush.msra.mxu0 0.0
        %6722 = vmatpush.msra.mxu0 0.0
        %6723 = vmatpush.msra.mxu0 0.0
        %6724 = vmatpush.msra.mxu0 0.0
        %6725 = vmatpush.msra.mxu0 0.0
        %6726 = vmatpush.msra.mxu0 0.0
        %6727 = vmatpush.msra.mxu0 0.0
        %6728 = vmatpush.msra.mxu0 0.0
        %6729 = vmatpush.msra.mxu0 0.0
        %6730 = vmatpush.msra.mxu0 0.0
        %6731 = vmatpush.msra.mxu0 0.0
        %6732 = vmatpush.msra.mxu0 0.0
        %v6733 = vand.u32 %v6627, 4294901760
        %v6734 = vsub.f32 %v6627, %v6733
        %6735 = vmatpush.msra.mxu0 %v6734
        %v6736 = vand.u32 %v6626, 4294901760
        %v6737 = vsub.f32 %v6626, %v6736
        %6738 = vmatpush.msra.mxu0 %v6737
        %v6739 = vand.u32 %v6625, 4294901760
        %v6740 = vsub.f32 %v6625, %v6739
        %6741 = vmatpush.msra.mxu0 %v6740
        %v6742 = vand.u32 %v6624, 4294901760
        %v6743 = vsub.f32 %v6624, %v6742
        %6744 = vmatpush.msra.mxu0 %v6743
        %v6745 = vand.u32 %v6634, 4294901760
        %v6746 = vsub.f32 %v6634, %v6745
        %6747 = vmatmul.f32.gmra.mxu0 %v6746
        %v6748 = vpop.f32.mrf.mxu0
        %v6749 = vadd.f32 %v6715, %v6748
        %v6750 = vand.u32 %v6637, 4294901760
        %v6751 = vsub.f32 %v6637, %v6750
        %6752 = vmatmul.f32.gmra.mxu0 %v6751
        %v6753 = vpop.f32.mrf.mxu0
        %v6754 = vadd.f32 %v6719, %v6753
        %6755 = vdwg.mxu0
        %6756 = vmatpush.msra.mxu0 0.0
        %6757 = vmatpush.msra.mxu0 0.0
        %6758 = vmatpush.msra.mxu0 0.0
        %6759 = vmatpush.msra.mxu0 0.0
        %6760 = vmatpush.msra.mxu0 0.0
        %6761 = vmatpush.msra.mxu0 0.0
        %6762 = vmatpush.msra.mxu0 0.0
        %6763 = vmatpush.msra.mxu0 0.0
        %6764 = vmatpush.msra.mxu0 0.0
        %6765 = vmatpush.msra.mxu0 0.0
        %6766 = vmatpush.msra.mxu0 0.0
        %6767 = vmatpush.msra.mxu0 0.0
        %v6768 = vand.u32 %v6627, 4294901760
        %6769 = vmatpush.msra.mxu0 %v6768
        %v6770 = vand.u32 %v6626, 4294901760
        %6771 = vmatpush.msra.mxu0 %v6770
        %v6772 = vand.u32 %v6625, 4294901760
        %6773 = vmatpush.msra.mxu0 %v6772
        %v6774 = vand.u32 %v6624, 4294901760
        %6775 = vmatpush.msra.mxu0 %v6774
        %v6776 = vand.u32 %v6634, 4294901760
        %v6777 = vsub.f32 %v6634, %v6776
        %v6778 = vand.u32 %v6777, 4294901760
        %6779 = vmatmul.f32.gmra.mxu0 %v6778
        %v6780 = vpop.f32.mrf.mxu0
        %v6781 = vadd.f32 %v6749, %v6780
        %v6782 = vand.u32 %v6637, 4294901760
        %v6783 = vsub.f32 %v6637, %v6782
        %v6784 = vand.u32 %v6783, 4294901760
        %6785 = vmatmul.f32.gmra.mxu0 %v6784
        %v6786 = vpop.f32.mrf.mxu0
        %v6787 = vadd.f32 %v6754, %v6786
        %6788 = vdwg.mxu0
        %6789 = vmatpush.msra.mxu0 0.0
        %6790 = vmatpush.msra.mxu0 0.0
        %6791 = vmatpush.msra.mxu0 0.0
        %6792 = vmatpush.msra.mxu0 0.0
        %6793 = vmatpush.msra.mxu0 0.0
        %6794 = vmatpush.msra.mxu0 0.0
        %6795 = vmatpush.msra.mxu0 0.0
        %6796 = vmatpush.msra.mxu0 0.0
        %6797 = vmatpush.msra.mxu0 0.0
        %6798 = vmatpush.msra.mxu0 0.0
        %6799 = vmatpush.msra.mxu0 0.0
        %6800 = vmatpush.msra.mxu0 0.0
        %v6801 = vand.u32 %v6627, 4294901760
        %v6802 = vsub.f32 %v6627, %v6801
        %v6803 = vand.u32 %v6802, 4294901760
        %6804 = vmatpush.msra.mxu0 %v6803
        %v6805 = vand.u32 %v6626, 4294901760
        %v6806 = vsub.f32 %v6626, %v6805
        %v6807 = vand.u32 %v6806, 4294901760
        %6808 = vmatpush.msra.mxu0 %v6807
        %v6809 = vand.u32 %v6625, 4294901760
        %v6810 = vsub.f32 %v6625, %v6809
        %v6811 = vand.u32 %v6810, 4294901760
        %6812 = vmatpush.msra.mxu0 %v6811
        %v6813 = vand.u32 %v6624, 4294901760
        %v6814 = vsub.f32 %v6624, %v6813
        %v6815 = vand.u32 %v6814, 4294901760
        %6816 = vmatpush.msra.mxu0 %v6815
        %v6817 = vand.u32 %v6634, 4294901760
        %6818 = vmatmul.f32.gmra.mxu0 %v6817
        %v6819 = vpop.f32.mrf.mxu0
        %v6820 = vadd.f32 %v6781, %v6819
        %v6821 = vand.u32 %v6637, 4294901760
        %6822 = vmatmul.f32.gmra.mxu0 %v6821
        %v6823 = vpop.f32.mrf.mxu0
        %v6824 = vadd.f32 %v6787, %v6823
        %6825 = vdwg.mxu0
        %6826 = vmatpush.msra.mxu0 0.0
        %6827 = vmatpush.msra.mxu0 0.0
        %6828 = vmatpush.msra.mxu0 0.0
        %6829 = vmatpush.msra.mxu0 0.0
        %6830 = vmatpush.msra.mxu0 0.0
        %6831 = vmatpush.msra.mxu0 0.0
        %6832 = vmatpush.msra.mxu0 0.0
        %6833 = vmatpush.msra.mxu0 0.0
        %6834 = vmatpush.msra.mxu0 0.0
        %6835 = vmatpush.msra.mxu0 0.0
        %6836 = vmatpush.msra.mxu0 0.0
        %6837 = vmatpush.msra.mxu0 0.0
        %v6838 = vand.u32 %v6627, 4294901760
        %6839 = vmatpush.msra.mxu0 %v6838
        %v6840 = vand.u32 %v6626, 4294901760
        %6841 = vmatpush.msra.mxu0 %v6840
        %v6842 = vand.u32 %v6625, 4294901760
        %6843 = vmatpush.msra.mxu0 %v6842
        %v6844 = vand.u32 %v6624, 4294901760
        %6845 = vmatpush.msra.mxu0 %v6844
        %v6846 = vand.u32 %v6634, 4294901760
        %6847 = vmatmul.f32.gmra.mxu0 %v6846
        %v6848 = vpop.f32.mrf.mxu0
        %v6849 = vadd.f32 %v6820, %v6848
        %v6850 = vand.u32 %v6637, 4294901760
        %6851 = vmatmul.f32.gmra.mxu0 %v6850
        %v6852 = vpop.f32.mrf.mxu0
        %v6853 = vadd.f32 %v6824, %v6852
        %6854 = vdwg.mxu0
        %s6855 = scalar_lea.vmem %s6, 384
        %v6856 = vld [vmem:[%s6855] sm:$0xff]
        %v6857 = vld [vmem:[%s6855 + $0x8] sm:$0xff]
        %v6858 = vld [vmem:[%s6855 + $0x10] sm:$0xff]
        %v6859 = vld [vmem:[%s6855 + $0x18] sm:$0xff]
        %v6860 = vld [vmem:[%s6855 + $0x20] sm:$0xff]
        %v6861 = vld [vmem:[%s6855 + $0x28] sm:$0xff]
        %v6862 = vld [vmem:[%s6855 + $0x30] sm:$0xff]
        %v6863 = vld [vmem:[%s6855 + $0x38] sm:$0xff]
        %v6864 = vld [vmem:[%s6855 + $0x40] sm:$0xff]
        %v6865 = vld [vmem:[%s6855 + $0x48] sm:$0xff]
        %v6866 = vld [vmem:[%s6855 + $0x50] sm:$0xff]
        %v6867 = vld [vmem:[%s6855 + $0x58] sm:$0xff]
        %v6868 = vld [vmem:[%s6855 + $0x60] sm:$0xff]
        %v6869 = vld [vmem:[%s6855 + $0x68] sm:$0xff]
        %v6870 = vld [vmem:[%s6855 + $0x70] sm:$0xff]
        %v6871 = vld [vmem:[%s6855 + $0x78] sm:$0xff]
        %s6872 = scalar_lea.vmem [#allocation10], 3
        %v6873 = vld [vmem:[%s6872] sm:$0x1]
        %v6875 = vperm.slane %v6873, 0
        %v6877 = vand.u32 %v6871, 4294901760
        %6878 = vmatpush.msra.mxu0 %v6877
        %v6879 = vand.u32 %v6870, 4294901760
        %6880 = vmatpush.msra.mxu0 %v6879
        %v6881 = vand.u32 %v6869, 4294901760
        %6882 = vmatpush.msra.mxu0 %v6881
        %v6883 = vand.u32 %v6868, 4294901760
        %6884 = vmatpush.msra.mxu0 %v6883
        %v6885 = vand.u32 %v6867, 4294901760
        %6886 = vmatpush.msra.mxu0 %v6885
        %v6887 = vand.u32 %v6866, 4294901760
        %6888 = vmatpush.msra.mxu0 %v6887
        %v6889 = vand.u32 %v6865, 4294901760
        %6890 = vmatpush.msra.mxu0 %v6889
        %v6891 = vand.u32 %v6864, 4294901760
        %6892 = vmatpush.msra.mxu0 %v6891
        %v6893 = vand.u32 %v6863, 4294901760
        %6894 = vmatpush.msra.mxu0 %v6893
        %v6895 = vand.u32 %v6862, 4294901760
        %6896 = vmatpush.msra.mxu0 %v6895
        %v6897 = vand.u32 %v6861, 4294901760
        %6898 = vmatpush.msra.mxu0 %v6897
        %v6899 = vand.u32 %v6860, 4294901760
        %6900 = vmatpush.msra.mxu0 %v6899
        %v6901 = vand.u32 %v6859, 4294901760
        %6902 = vmatpush.msra.mxu0 %v6901
        %v6903 = vand.u32 %v6858, 4294901760
        %6904 = vmatpush.msra.mxu0 %v6903
        %v6905 = vand.u32 %v6857, 4294901760
        %6906 = vmatpush.msra.mxu0 %v6905
        %v6907 = vand.u32 %v6856, 4294901760
        %6908 = vmatpush.msra.mxu0 %v6907
        %v6909 = vand.u32 %v6849, 4294901760
        %v6910 = vsub.f32 %v6849, %v6909
        %v6911 = vand.u32 %v6910, 4294901760
        %v6912 = vsub.f32 %v6910, %v6911
        %v6913 = vand.u32 %v6912, 4294901760
        %6914 = vmatmul.f32.gmra.mxu0 %v6913
        %v6915 = vpop.f32.mrf.mxu0
        %v6916 = vadd.f32 %v6875, %v6915
        %v6917 = vand.u32 %v6853, 4294901760
        %v6918 = vsub.f32 %v6853, %v6917
        %v6919 = vand.u32 %v6918, 4294901760
        %v6920 = vsub.f32 %v6918, %v6919
        %v6921 = vand.u32 %v6920, 4294901760
        %6922 = vmatmul.f32.gmra.mxu0 %v6921
        %v6923 = vpop.f32.mrf.mxu0
        %v6924 = vadd.f32 %v6875, %v6923
        %6925 = vdwg.mxu0
        %v6926 = vand.u32 %v6871, 4294901760
        %v6927 = vsub.f32 %v6871, %v6926
        %v6928 = vand.u32 %v6927, 4294901760
        %v6929 = vsub.f32 %v6927, %v6928
        %v6930 = vand.u32 %v6929, 4294901760
        %6931 = vmatpush.msra.mxu0 %v6930
        %v6932 = vand.u32 %v6870, 4294901760
        %v6933 = vsub.f32 %v6870, %v6932
        %v6934 = vand.u32 %v6933, 4294901760
        %v6935 = vsub.f32 %v6933, %v6934
        %v6936 = vand.u32 %v6935, 4294901760
        %6937 = vmatpush.msra.mxu0 %v6936
        %v6938 = vand.u32 %v6869, 4294901760
        %v6939 = vsub.f32 %v6869, %v6938
        %v6940 = vand.u32 %v6939, 4294901760
        %v6941 = vsub.f32 %v6939, %v6940
        %v6942 = vand.u32 %v6941, 4294901760
        %6943 = vmatpush.msra.mxu0 %v6942
        %v6944 = vand.u32 %v6868, 4294901760
        %v6945 = vsub.f32 %v6868, %v6944
        %v6946 = vand.u32 %v6945, 4294901760
        %v6947 = vsub.f32 %v6945, %v6946
        %v6948 = vand.u32 %v6947, 4294901760
        %6949 = vmatpush.msra.mxu0 %v6948
        %v6950 = vand.u32 %v6867, 4294901760
        %v6951 = vsub.f32 %v6867, %v6950
        %v6952 = vand.u32 %v6951, 4294901760
        %v6953 = vsub.f32 %v6951, %v6952
        %v6954 = vand.u32 %v6953, 4294901760
        %6955 = vmatpush.msra.mxu0 %v6954
        %v6956 = vand.u32 %v6866, 4294901760
        %v6957 = vsub.f32 %v6866, %v6956
        %v6958 = vand.u32 %v6957, 4294901760
        %v6959 = vsub.f32 %v6957, %v6958
        %v6960 = vand.u32 %v6959, 4294901760
        %6961 = vmatpush.msra.mxu0 %v6960
        %v6962 = vand.u32 %v6865, 4294901760
        %v6963 = vsub.f32 %v6865, %v6962
        %v6964 = vand.u32 %v6963, 4294901760
        %v6965 = vsub.f32 %v6963, %v6964
        %v6966 = vand.u32 %v6965, 4294901760
        %6967 = vmatpush.msra.mxu0 %v6966
        %v6968 = vand.u32 %v6864, 4294901760
        %v6969 = vsub.f32 %v6864, %v6968
        %v6970 = vand.u32 %v6969, 4294901760
        %v6971 = vsub.f32 %v6969, %v6970
        %v6972 = vand.u32 %v6971, 4294901760
        %6973 = vmatpush.msra.mxu0 %v6972
        %v6974 = vand.u32 %v6863, 4294901760
        %v6975 = vsub.f32 %v6863, %v6974
        %v6976 = vand.u32 %v6975, 4294901760
        %v6977 = vsub.f32 %v6975, %v6976
        %v6978 = vand.u32 %v6977, 4294901760
        %6979 = vmatpush.msra.mxu0 %v6978
        %v6980 = vand.u32 %v6862, 4294901760
        %v6981 = vsub.f32 %v6862, %v6980
        %v6982 = vand.u32 %v6981, 4294901760
        %v6983 = vsub.f32 %v6981, %v6982
        %v6984 = vand.u32 %v6983, 4294901760
        %6985 = vmatpush.msra.mxu0 %v6984
        %v6986 = vand.u32 %v6861, 4294901760
        %v6987 = vsub.f32 %v6861, %v6986
        %v6988 = vand.u32 %v6987, 4294901760
        %v6989 = vsub.f32 %v6987, %v6988
        %v6990 = vand.u32 %v6989, 4294901760
        %6991 = vmatpush.msra.mxu0 %v6990
        %v6992 = vand.u32 %v6860, 4294901760
        %v6993 = vsub.f32 %v6860, %v6992
        %v6994 = vand.u32 %v6993, 4294901760
        %v6995 = vsub.f32 %v6993, %v6994
        %v6996 = vand.u32 %v6995, 4294901760
        %6997 = vmatpush.msra.mxu0 %v6996
        %v6998 = vand.u32 %v6859, 4294901760
        %v6999 = vsub.f32 %v6859, %v6998
        %v7000 = vand.u32 %v6999, 4294901760
        %v7001 = vsub.f32 %v6999, %v7000
        %v7002 = vand.u32 %v7001, 4294901760
        %7003 = vmatpush.msra.mxu0 %v7002
        %v7004 = vand.u32 %v6858, 4294901760
        %v7005 = vsub.f32 %v6858, %v7004
        %v7006 = vand.u32 %v7005, 4294901760
        %v7007 = vsub.f32 %v7005, %v7006
        %v7008 = vand.u32 %v7007, 4294901760
        %7009 = vmatpush.msra.mxu0 %v7008
        %v7010 = vand.u32 %v6857, 4294901760
        %v7011 = vsub.f32 %v6857, %v7010
        %v7012 = vand.u32 %v7011, 4294901760
        %v7013 = vsub.f32 %v7011, %v7012
        %v7014 = vand.u32 %v7013, 4294901760
        %7015 = vmatpush.msra.mxu0 %v7014
        %v7016 = vand.u32 %v6856, 4294901760
        %v7017 = vsub.f32 %v6856, %v7016
        %v7018 = vand.u32 %v7017, 4294901760
        %v7019 = vsub.f32 %v7017, %v7018
        %v7020 = vand.u32 %v7019, 4294901760
        %7021 = vmatpush.msra.mxu0 %v7020
        %v7022 = vand.u32 %v6849, 4294901760
        %7023 = vmatmul.f32.gmra.mxu0 %v7022
        %v7024 = vpop.f32.mrf.mxu0
        %v7025 = vadd.f32 %v6916, %v7024
        %v7026 = vand.u32 %v6853, 4294901760
        %7027 = vmatmul.f32.gmra.mxu0 %v7026
        %v7028 = vpop.f32.mrf.mxu0
        %v7029 = vadd.f32 %v6924, %v7028
        %7030 = vdwg.mxu0
        %v7031 = vand.u32 %v6871, 4294901760
        %v7032 = vsub.f32 %v6871, %v7031
        %7033 = vmatpush.msra.mxu0 %v7032
        %v7034 = vand.u32 %v6870, 4294901760
        %v7035 = vsub.f32 %v6870, %v7034
        %7036 = vmatpush.msra.mxu0 %v7035
        %v7037 = vand.u32 %v6869, 4294901760
        %v7038 = vsub.f32 %v6869, %v7037
        %7039 = vmatpush.msra.mxu0 %v7038
        %v7040 = vand.u32 %v6868, 4294901760
        %v7041 = vsub.f32 %v6868, %v7040
        %7042 = vmatpush.msra.mxu0 %v7041
        %v7043 = vand.u32 %v6867, 4294901760
        %v7044 = vsub.f32 %v6867, %v7043
        %7045 = vmatpush.msra.mxu0 %v7044
        %v7046 = vand.u32 %v6866, 4294901760
        %v7047 = vsub.f32 %v6866, %v7046
        %7048 = vmatpush.msra.mxu0 %v7047
        %v7049 = vand.u32 %v6865, 4294901760
        %v7050 = vsub.f32 %v6865, %v7049
        %7051 = vmatpush.msra.mxu0 %v7050
        %v7052 = vand.u32 %v6864, 4294901760
        %v7053 = vsub.f32 %v6864, %v7052
        %7054 = vmatpush.msra.mxu0 %v7053
        %v7055 = vand.u32 %v6863, 4294901760
        %v7056 = vsub.f32 %v6863, %v7055
        %7057 = vmatpush.msra.mxu0 %v7056
        %v7058 = vand.u32 %v6862, 4294901760
        %v7059 = vsub.f32 %v6862, %v7058
        %7060 = vmatpush.msra.mxu0 %v7059
        %v7061 = vand.u32 %v6861, 4294901760
        %v7062 = vsub.f32 %v6861, %v7061
        %7063 = vmatpush.msra.mxu0 %v7062
        %v7064 = vand.u32 %v6860, 4294901760
        %v7065 = vsub.f32 %v6860, %v7064
        %7066 = vmatpush.msra.mxu0 %v7065
        %v7067 = vand.u32 %v6859, 4294901760
        %v7068 = vsub.f32 %v6859, %v7067
        %7069 = vmatpush.msra.mxu0 %v7068
        %v7070 = vand.u32 %v6858, 4294901760
        %v7071 = vsub.f32 %v6858, %v7070
        %7072 = vmatpush.msra.mxu0 %v7071
        %v7073 = vand.u32 %v6857, 4294901760
        %v7074 = vsub.f32 %v6857, %v7073
        %7075 = vmatpush.msra.mxu0 %v7074
        %v7076 = vand.u32 %v6856, 4294901760
        %v7077 = vsub.f32 %v6856, %v7076
        %7078 = vmatpush.msra.mxu0 %v7077
        %v7079 = vand.u32 %v6849, 4294901760
        %v7080 = vsub.f32 %v6849, %v7079
        %7081 = vmatmul.f32.gmra.mxu0 %v7080
        %v7082 = vpop.f32.mrf.mxu0
        %v7083 = vadd.f32 %v7025, %v7082
        %v7084 = vand.u32 %v6853, 4294901760
        %v7085 = vsub.f32 %v6853, %v7084
        %7086 = vmatmul.f32.gmra.mxu0 %v7085
        %v7087 = vpop.f32.mrf.mxu0
        %v7088 = vadd.f32 %v7029, %v7087
        %7089 = vdwg.mxu0
        %v7090 = vand.u32 %v6871, 4294901760
        %7091 = vmatpush.msra.mxu0 %v7090
        %v7092 = vand.u32 %v6870, 4294901760
        %7093 = vmatpush.msra.mxu0 %v7092
        %v7094 = vand.u32 %v6869, 4294901760
        %7095 = vmatpush.msra.mxu0 %v7094
        %v7096 = vand.u32 %v6868, 4294901760
        %7097 = vmatpush.msra.mxu0 %v7096
        %v7098 = vand.u32 %v6867, 4294901760
        %7099 = vmatpush.msra.mxu0 %v7098
        %v7100 = vand.u32 %v6866, 4294901760
        %7101 = vmatpush.msra.mxu0 %v7100
        %v7102 = vand.u32 %v6865, 4294901760
        %7103 = vmatpush.msra.mxu0 %v7102
        %v7104 = vand.u32 %v6864, 4294901760
        %7105 = vmatpush.msra.mxu0 %v7104
        %v7106 = vand.u32 %v6863, 4294901760
        %7107 = vmatpush.msra.mxu0 %v7106
        %v7108 = vand.u32 %v6862, 4294901760
        %7109 = vmatpush.msra.mxu0 %v7108
        %v7110 = vand.u32 %v6861, 4294901760
        %7111 = vmatpush.msra.mxu0 %v7110
        %v7112 = vand.u32 %v6860, 4294901760
        %7113 = vmatpush.msra.mxu0 %v7112
        %v7114 = vand.u32 %v6859, 4294901760
        %7115 = vmatpush.msra.mxu0 %v7114
        %v7116 = vand.u32 %v6858, 4294901760
        %7117 = vmatpush.msra.mxu0 %v7116
        %v7118 = vand.u32 %v6857, 4294901760
        %7119 = vmatpush.msra.mxu0 %v7118
        %v7120 = vand.u32 %v6856, 4294901760
        %7121 = vmatpush.msra.mxu0 %v7120
        %v7122 = vand.u32 %v6849, 4294901760
        %v7123 = vsub.f32 %v6849, %v7122
        %v7124 = vand.u32 %v7123, 4294901760
        %7125 = vmatmul.f32.gmra.mxu0 %v7124
        %v7126 = vpop.f32.mrf.mxu0
        %v7127 = vadd.f32 %v7083, %v7126
        %v7128 = vand.u32 %v6853, 4294901760
        %v7129 = vsub.f32 %v6853, %v7128
        %v7130 = vand.u32 %v7129, 4294901760
        %7131 = vmatmul.f32.gmra.mxu0 %v7130
        %v7132 = vpop.f32.mrf.mxu0
        %v7133 = vadd.f32 %v7088, %v7132
        %7134 = vdwg.mxu0
        %v7135 = vand.u32 %v6871, 4294901760
        %v7136 = vsub.f32 %v6871, %v7135
        %v7137 = vand.u32 %v7136, 4294901760
        %7138 = vmatpush.msra.mxu0 %v7137
        %v7139 = vand.u32 %v6870, 4294901760
        %v7140 = vsub.f32 %v6870, %v7139
        %v7141 = vand.u32 %v7140, 4294901760
        %7142 = vmatpush.msra.mxu0 %v7141
        %v7143 = vand.u32 %v6869, 4294901760
        %v7144 = vsub.f32 %v6869, %v7143
        %v7145 = vand.u32 %v7144, 4294901760
        %7146 = vmatpush.msra.mxu0 %v7145
        %v7147 = vand.u32 %v6868, 4294901760
        %v7148 = vsub.f32 %v6868, %v7147
        %v7149 = vand.u32 %v7148, 4294901760
        %7150 = vmatpush.msra.mxu0 %v7149
        %v7151 = vand.u32 %v6867, 4294901760
        %v7152 = vsub.f32 %v6867, %v7151
        %v7153 = vand.u32 %v7152, 4294901760
        %7154 = vmatpush.msra.mxu0 %v7153
        %v7155 = vand.u32 %v6866, 4294901760
        %v7156 = vsub.f32 %v6866, %v7155
        %v7157 = vand.u32 %v7156, 4294901760
        %7158 = vmatpush.msra.mxu0 %v7157
        %v7159 = vand.u32 %v6865, 4294901760
        %v7160 = vsub.f32 %v6865, %v7159
        %v7161 = vand.u32 %v7160, 4294901760
        %7162 = vmatpush.msra.mxu0 %v7161
        %v7163 = vand.u32 %v6864, 4294901760
        %v7164 = vsub.f32 %v6864, %v7163
        %v7165 = vand.u32 %v7164, 4294901760
        %7166 = vmatpush.msra.mxu0 %v7165
        %v7167 = vand.u32 %v6863, 4294901760
        %v7168 = vsub.f32 %v6863, %v7167
        %v7169 = vand.u32 %v7168, 4294901760
        %7170 = vmatpush.msra.mxu0 %v7169
        %v7171 = vand.u32 %v6862, 4294901760
        %v7172 = vsub.f32 %v6862, %v7171
        %v7173 = vand.u32 %v7172, 4294901760
        %7174 = vmatpush.msra.mxu0 %v7173
        %v7175 = vand.u32 %v6861, 4294901760
        %v7176 = vsub.f32 %v6861, %v7175
        %v7177 = vand.u32 %v7176, 4294901760
        %7178 = vmatpush.msra.mxu0 %v7177
        %v7179 = vand.u32 %v6860, 4294901760
        %v7180 = vsub.f32 %v6860, %v7179
        %v7181 = vand.u32 %v7180, 4294901760
        %7182 = vmatpush.msra.mxu0 %v7181
        %v7183 = vand.u32 %v6859, 4294901760
        %v7184 = vsub.f32 %v6859, %v7183
        %v7185 = vand.u32 %v7184, 4294901760
        %7186 = vmatpush.msra.mxu0 %v7185
        %v7187 = vand.u32 %v6858, 4294901760
        %v7188 = vsub.f32 %v6858, %v7187
        %v7189 = vand.u32 %v7188, 4294901760
        %7190 = vmatpush.msra.mxu0 %v7189
        %v7191 = vand.u32 %v6857, 4294901760
        %v7192 = vsub.f32 %v6857, %v7191
        %v7193 = vand.u32 %v7192, 4294901760
        %7194 = vmatpush.msra.mxu0 %v7193
        %v7195 = vand.u32 %v6856, 4294901760
        %v7196 = vsub.f32 %v6856, %v7195
        %v7197 = vand.u32 %v7196, 4294901760
        %7198 = vmatpush.msra.mxu0 %v7197
        %v7199 = vand.u32 %v6849, 4294901760
        %7200 = vmatmul.f32.gmra.mxu0 %v7199
        %v7201 = vpop.f32.mrf.mxu0
        %v7202 = vadd.f32 %v7127, %v7201
        %v7203 = vand.u32 %v6853, 4294901760
        %7204 = vmatmul.f32.gmra.mxu0 %v7203
        %v7205 = vpop.f32.mrf.mxu0
        %v7206 = vadd.f32 %v7133, %v7205
        %7207 = vdwg.mxu0
        %v7208 = vand.u32 %v6871, 4294901760
        %7209 = vmatpush.msra.mxu0 %v7208
        %v7210 = vand.u32 %v6870, 4294901760
        %7211 = vmatpush.msra.mxu0 %v7210
        %v7212 = vand.u32 %v6869, 4294901760
        %7213 = vmatpush.msra.mxu0 %v7212
        %v7214 = vand.u32 %v6868, 4294901760
        %7215 = vmatpush.msra.mxu0 %v7214
        %v7216 = vand.u32 %v6867, 4294901760
        %7217 = vmatpush.msra.mxu0 %v7216
        %v7218 = vand.u32 %v6866, 4294901760
        %7219 = vmatpush.msra.mxu0 %v7218
        %v7220 = vand.u32 %v6865, 4294901760
        %7221 = vmatpush.msra.mxu0 %v7220
        %v7222 = vand.u32 %v6864, 4294901760
        %7223 = vmatpush.msra.mxu0 %v7222
        %v7224 = vand.u32 %v6863, 4294901760
        %7225 = vmatpush.msra.mxu0 %v7224
        %v7226 = vand.u32 %v6862, 4294901760
        %7227 = vmatpush.msra.mxu0 %v7226
        %v7228 = vand.u32 %v6861, 4294901760
        %7229 = vmatpush.msra.mxu0 %v7228
        %v7230 = vand.u32 %v6860, 4294901760
        %7231 = vmatpush.msra.mxu0 %v7230
        %v7232 = vand.u32 %v6859, 4294901760
        %7233 = vmatpush.msra.mxu0 %v7232
        %v7234 = vand.u32 %v6858, 4294901760
        %7235 = vmatpush.msra.mxu0 %v7234
        %v7236 = vand.u32 %v6857, 4294901760
        %7237 = vmatpush.msra.mxu0 %v7236
        %v7238 = vand.u32 %v6856, 4294901760
        %7239 = vmatpush.msra.mxu0 %v7238
        %v7240 = vand.u32 %v6849, 4294901760
        %7241 = vmatmul.f32.gmra.mxu0 %v7240
        %v7242 = vpop.f32.mrf.mxu0
        %v7243 = vadd.f32 %v7202, %v7242
        %v7244 = vand.u32 %v6853, 4294901760
        %7245 = vmatmul.f32.gmra.mxu0 %v7244
        %v7246 = vpop.f32.mrf.mxu0
        %v7247 = vadd.f32 %v7206, %v7246
        %7248 = vdwg.mxu0
        %v7249 = vmax.f32 %v7243, 0.0
        %v7250 = vmax.f32 %v7247, 0.0
        %s7251 = scalar_lea.vmem %s8, 192
        %v7252 = vld [vmem:[%s7251] sm:$0xff]
        %v7253 = vld [vmem:[%s7251 + $0x8] sm:$0xff]
        %v7254 = vld [vmem:[%s7251 + $0x10] sm:$0xff]
        %v7255 = vld [vmem:[%s7251 + $0x18] sm:$0xff]
        %v7256 = vld [vmem:[%s7251 + $0x20] sm:$0xff]
        %v7257 = vld [vmem:[%s7251 + $0x28] sm:$0xff]
        %v7258 = vld [vmem:[%s7251 + $0x30] sm:$0xff]
        %v7259 = vld [vmem:[%s7251 + $0x38] sm:$0xff]
        %s7260 = scalar_lea.vmem [#allocation11], 3
        %v7261 = vld [vmem:[%s7260] sm:$0x1]
        %v7263 = vperm.slane %v7261, 0
        %v7266 = vsel %vm2860, %v7249, 0
        %v7269 = vsel %vm2860, %v7250, 0
        %7271 = vmatpush.msra.mxu0 0.0
        %7272 = vmatpush.msra.mxu0 0.0
        %7273 = vmatpush.msra.mxu0 0.0
        %7274 = vmatpush.msra.mxu0 0.0
        %7275 = vmatpush.msra.mxu0 0.0
        %7276 = vmatpush.msra.mxu0 0.0
        %7277 = vmatpush.msra.mxu0 0.0
        %7278 = vmatpush.msra.mxu0 0.0
        %v7279 = vand.u32 %v7259, 4294901760
        %7280 = vmatpush.msra.mxu0 %v7279
        %v7281 = vand.u32 %v7258, 4294901760
        %7282 = vmatpush.msra.mxu0 %v7281
        %v7283 = vand.u32 %v7257, 4294901760
        %7284 = vmatpush.msra.mxu0 %v7283
        %v7285 = vand.u32 %v7256, 4294901760
        %7286 = vmatpush.msra.mxu0 %v7285
        %v7287 = vand.u32 %v7255, 4294901760
        %7288 = vmatpush.msra.mxu0 %v7287
        %v7289 = vand.u32 %v7254, 4294901760
        %7290 = vmatpush.msra.mxu0 %v7289
        %v7291 = vand.u32 %v7253, 4294901760
        %7292 = vmatpush.msra.mxu0 %v7291
        %v7293 = vand.u32 %v7252, 4294901760
        %7294 = vmatpush.msra.mxu0 %v7293
        %v7295 = vand.u32 %v7266, 4294901760
        %v7296 = vsub.f32 %v7266, %v7295
        %v7297 = vand.u32 %v7296, 4294901760
        %v7298 = vsub.f32 %v7296, %v7297
        %v7299 = vand.u32 %v7298, 4294901760
        %7300 = vmatmul.f32.gmra.mxu0 %v7299
        %v7301 = vpop.f32.mrf.mxu0
        %v7302 = vadd.f32 %v7263, %v7301
        %v7303 = vand.u32 %v7269, 4294901760
        %v7304 = vsub.f32 %v7269, %v7303
        %v7305 = vand.u32 %v7304, 4294901760
        %v7306 = vsub.f32 %v7304, %v7305
        %v7307 = vand.u32 %v7306, 4294901760
        %7308 = vmatmul.f32.gmra.mxu0 %v7307
        %v7309 = vpop.f32.mrf.mxu0
        %v7310 = vadd.f32 %v7263, %v7309
        %7311 = vdwg.mxu0
        %7312 = vmatpush.msra.mxu0 0.0
        %7313 = vmatpush.msra.mxu0 0.0
        %7314 = vmatpush.msra.mxu0 0.0
        %7315 = vmatpush.msra.mxu0 0.0
        %7316 = vmatpush.msra.mxu0 0.0
        %7317 = vmatpush.msra.mxu0 0.0
        %7318 = vmatpush.msra.mxu0 0.0
        %7319 = vmatpush.msra.mxu0 0.0
        %v7320 = vand.u32 %v7259, 4294901760
        %v7321 = vsub.f32 %v7259, %v7320
        %v7322 = vand.u32 %v7321, 4294901760
        %v7323 = vsub.f32 %v7321, %v7322
        %v7324 = vand.u32 %v7323, 4294901760
        %7325 = vmatpush.msra.mxu0 %v7324
        %v7326 = vand.u32 %v7258, 4294901760
        %v7327 = vsub.f32 %v7258, %v7326
        %v7328 = vand.u32 %v7327, 4294901760
        %v7329 = vsub.f32 %v7327, %v7328
        %v7330 = vand.u32 %v7329, 4294901760
        %7331 = vmatpush.msra.mxu0 %v7330
        %v7332 = vand.u32 %v7257, 4294901760
        %v7333 = vsub.f32 %v7257, %v7332
        %v7334 = vand.u32 %v7333, 4294901760
        %v7335 = vsub.f32 %v7333, %v7334
        %v7336 = vand.u32 %v7335, 4294901760
        %7337 = vmatpush.msra.mxu0 %v7336
        %v7338 = vand.u32 %v7256, 4294901760
        %v7339 = vsub.f32 %v7256, %v7338
        %v7340 = vand.u32 %v7339, 4294901760
        %v7341 = vsub.f32 %v7339, %v7340
        %v7342 = vand.u32 %v7341, 4294901760
        %7343 = vmatpush.msra.mxu0 %v7342
        %v7344 = vand.u32 %v7255, 4294901760
        %v7345 = vsub.f32 %v7255, %v7344
        %v7346 = vand.u32 %v7345, 4294901760
        %v7347 = vsub.f32 %v7345, %v7346
        %v7348 = vand.u32 %v7347, 4294901760
        %7349 = vmatpush.msra.mxu0 %v7348
        %v7350 = vand.u32 %v7254, 4294901760
        %v7351 = vsub.f32 %v7254, %v7350
        %v7352 = vand.u32 %v7351, 4294901760
        %v7353 = vsub.f32 %v7351, %v7352
        %v7354 = vand.u32 %v7353, 4294901760
        %7355 = vmatpush.msra.mxu0 %v7354
        %v7356 = vand.u32 %v7253, 4294901760
        %v7357 = vsub.f32 %v7253, %v7356
        %v7358 = vand.u32 %v7357, 4294901760
        %v7359 = vsub.f32 %v7357, %v7358
        %v7360 = vand.u32 %v7359, 4294901760
        %7361 = vmatpush.msra.mxu0 %v7360
        %v7362 = vand.u32 %v7252, 4294901760
        %v7363 = vsub.f32 %v7252, %v7362
        %v7364 = vand.u32 %v7363, 4294901760
        %v7365 = vsub.f32 %v7363, %v7364
        %v7366 = vand.u32 %v7365, 4294901760
        %7367 = vmatpush.msra.mxu0 %v7366
        %v7368 = vand.u32 %v7266, 4294901760
        %7369 = vmatmul.f32.gmra.mxu0 %v7368
        %v7370 = vpop.f32.mrf.mxu0
        %v7371 = vadd.f32 %v7302, %v7370
        %v7372 = vand.u32 %v7269, 4294901760
        %7373 = vmatmul.f32.gmra.mxu0 %v7372
        %v7374 = vpop.f32.mrf.mxu0
        %v7375 = vadd.f32 %v7310, %v7374
        %7376 = vdwg.mxu0
        %7377 = vmatpush.msra.mxu0 0.0
        %7378 = vmatpush.msra.mxu0 0.0
        %7379 = vmatpush.msra.mxu0 0.0
        %7380 = vmatpush.msra.mxu0 0.0
        %7381 = vmatpush.msra.mxu0 0.0
        %7382 = vmatpush.msra.mxu0 0.0
        %7383 = vmatpush.msra.mxu0 0.0
        %7384 = vmatpush.msra.mxu0 0.0
        %v7385 = vand.u32 %v7259, 4294901760
        %v7386 = vsub.f32 %v7259, %v7385
        %7387 = vmatpush.msra.mxu0 %v7386
        %v7388 = vand.u32 %v7258, 4294901760
        %v7389 = vsub.f32 %v7258, %v7388
        %7390 = vmatpush.msra.mxu0 %v7389
        %v7391 = vand.u32 %v7257, 4294901760
        %v7392 = vsub.f32 %v7257, %v7391
        %7393 = vmatpush.msra.mxu0 %v7392
        %v7394 = vand.u32 %v7256, 4294901760
        %v7395 = vsub.f32 %v7256, %v7394
        %7396 = vmatpush.msra.mxu0 %v7395
        %v7397 = vand.u32 %v7255, 4294901760
        %v7398 = vsub.f32 %v7255, %v7397
        %7399 = vmatpush.msra.mxu0 %v7398
        %v7400 = vand.u32 %v7254, 4294901760
        %v7401 = vsub.f32 %v7254, %v7400
        %7402 = vmatpush.msra.mxu0 %v7401
        %v7403 = vand.u32 %v7253, 4294901760
        %v7404 = vsub.f32 %v7253, %v7403
        %7405 = vmatpush.msra.mxu0 %v7404
        %v7406 = vand.u32 %v7252, 4294901760
        %v7407 = vsub.f32 %v7252, %v7406
        %7408 = vmatpush.msra.mxu0 %v7407
        %v7409 = vand.u32 %v7266, 4294901760
        %v7410 = vsub.f32 %v7266, %v7409
        %7411 = vmatmul.f32.gmra.mxu0 %v7410
        %v7412 = vpop.f32.mrf.mxu0
        %v7413 = vadd.f32 %v7371, %v7412
        %v7414 = vand.u32 %v7269, 4294901760
        %v7415 = vsub.f32 %v7269, %v7414
        %7416 = vmatmul.f32.gmra.mxu0 %v7415
        %v7417 = vpop.f32.mrf.mxu0
        %v7418 = vadd.f32 %v7375, %v7417
        %7419 = vdwg.mxu0
        %7420 = vmatpush.msra.mxu0 0.0
        %7421 = vmatpush.msra.mxu0 0.0
        %7422 = vmatpush.msra.mxu0 0.0
        %7423 = vmatpush.msra.mxu0 0.0
        %7424 = vmatpush.msra.mxu0 0.0
        %7425 = vmatpush.msra.mxu0 0.0
        %7426 = vmatpush.msra.mxu0 0.0
        %7427 = vmatpush.msra.mxu0 0.0
        %v7428 = vand.u32 %v7259, 4294901760
        %7429 = vmatpush.msra.mxu0 %v7428
        %v7430 = vand.u32 %v7258, 4294901760
        %7431 = vmatpush.msra.mxu0 %v7430
        %v7432 = vand.u32 %v7257, 4294901760
        %7433 = vmatpush.msra.mxu0 %v7432
        %v7434 = vand.u32 %v7256, 4294901760
        %7435 = vmatpush.msra.mxu0 %v7434
        %v7436 = vand.u32 %v7255, 4294901760
        %7437 = vmatpush.msra.mxu0 %v7436
        %v7438 = vand.u32 %v7254, 4294901760
        %7439 = vmatpush.msra.mxu0 %v7438
        %v7440 = vand.u32 %v7253, 4294901760
        %7441 = vmatpush.msra.mxu0 %v7440
        %v7442 = vand.u32 %v7252, 4294901760
        %7443 = vmatpush.msra.mxu0 %v7442
        %v7444 = vand.u32 %v7266, 4294901760
        %v7445 = vsub.f32 %v7266, %v7444
        %v7446 = vand.u32 %v7445, 4294901760
        %7447 = vmatmul.f32.gmra.mxu0 %v7446
        %v7448 = vpop.f32.mrf.mxu0
        %v7449 = vadd.f32 %v7413, %v7448
        %v7450 = vand.u32 %v7269, 4294901760
        %v7451 = vsub.f32 %v7269, %v7450
        %v7452 = vand.u32 %v7451, 4294901760
        %7453 = vmatmul.f32.gmra.mxu0 %v7452
        %v7454 = vpop.f32.mrf.mxu0
        %v7455 = vadd.f32 %v7418, %v7454
        %7456 = vdwg.mxu0
        %7457 = vmatpush.msra.mxu0 0.0
        %7458 = vmatpush.msra.mxu0 0.0
        %7459 = vmatpush.msra.mxu0 0.0
        %7460 = vmatpush.msra.mxu0 0.0
        %7461 = vmatpush.msra.mxu0 0.0
        %7462 = vmatpush.msra.mxu0 0.0
        %7463 = vmatpush.msra.mxu0 0.0
        %7464 = vmatpush.msra.mxu0 0.0
        %v7465 = vand.u32 %v7259, 4294901760
        %v7466 = vsub.f32 %v7259, %v7465
        %v7467 = vand.u32 %v7466, 4294901760
        %7468 = vmatpush.msra.mxu0 %v7467
        %v7469 = vand.u32 %v7258, 4294901760
        %v7470 = vsub.f32 %v7258, %v7469
        %v7471 = vand.u32 %v7470, 4294901760
        %7472 = vmatpush.msra.mxu0 %v7471
        %v7473 = vand.u32 %v7257, 4294901760
        %v7474 = vsub.f32 %v7257, %v7473
        %v7475 = vand.u32 %v7474, 4294901760
        %7476 = vmatpush.msra.mxu0 %v7475
        %v7477 = vand.u32 %v7256, 4294901760
        %v7478 = vsub.f32 %v7256, %v7477
        %v7479 = vand.u32 %v7478, 4294901760
        %7480 = vmatpush.msra.mxu0 %v7479
        %v7481 = vand.u32 %v7255, 4294901760
        %v7482 = vsub.f32 %v7255, %v7481
        %v7483 = vand.u32 %v7482, 4294901760
        %7484 = vmatpush.msra.mxu0 %v7483
        %v7485 = vand.u32 %v7254, 4294901760
        %v7486 = vsub.f32 %v7254, %v7485
        %v7487 = vand.u32 %v7486, 4294901760
        %7488 = vmatpush.msra.mxu0 %v7487
        %v7489 = vand.u32 %v7253, 4294901760
        %v7490 = vsub.f32 %v7253, %v7489
        %v7491 = vand.u32 %v7490, 4294901760
        %7492 = vmatpush.msra.mxu0 %v7491
        %v7493 = vand.u32 %v7252, 4294901760
        %v7494 = vsub.f32 %v7252, %v7493
        %v7495 = vand.u32 %v7494, 4294901760
        %7496 = vmatpush.msra.mxu0 %v7495
        %v7497 = vand.u32 %v7266, 4294901760
        %7498 = vmatmul.f32.gmra.mxu0 %v7497
        %v7499 = vpop.f32.mrf.mxu0
        %v7500 = vadd.f32 %v7449, %v7499
        %v7501 = vand.u32 %v7269, 4294901760
        %7502 = vmatmul.f32.gmra.mxu0 %v7501
        %v7503 = vpop.f32.mrf.mxu0
        %v7504 = vadd.f32 %v7455, %v7503
        %7505 = vdwg.mxu0
        %7506 = vmatpush.msra.mxu0 0.0
        %7507 = vmatpush.msra.mxu0 0.0
        %7508 = vmatpush.msra.mxu0 0.0
        %7509 = vmatpush.msra.mxu0 0.0
        %7510 = vmatpush.msra.mxu0 0.0
        %7511 = vmatpush.msra.mxu0 0.0
        %7512 = vmatpush.msra.mxu0 0.0
        %7513 = vmatpush.msra.mxu0 0.0
        %v7514 = vand.u32 %v7259, 4294901760
        %7515 = vmatpush.msra.mxu0 %v7514
        %v7516 = vand.u32 %v7258, 4294901760
        %7517 = vmatpush.msra.mxu0 %v7516
        %v7518 = vand.u32 %v7257, 4294901760
        %7519 = vmatpush.msra.mxu0 %v7518
        %v7520 = vand.u32 %v7256, 4294901760
        %7521 = vmatpush.msra.mxu0 %v7520
        %v7522 = vand.u32 %v7255, 4294901760
        %7523 = vmatpush.msra.mxu0 %v7522
        %v7524 = vand.u32 %v7254, 4294901760
        %7525 = vmatpush.msra.mxu0 %v7524
        %v7526 = vand.u32 %v7253, 4294901760
        %7527 = vmatpush.msra.mxu0 %v7526
        %v7528 = vand.u32 %v7252, 4294901760
        %7529 = vmatpush.msra.mxu0 %v7528
        %v7530 = vand.u32 %v7266, 4294901760
        %7531 = vmatmul.f32.gmra.mxu0 %v7530
        %v7532 = vpop.f32.mrf.mxu0
        %v7533 = vadd.f32 %v7500, %v7532
        %v7534 = vand.u32 %v7269, 4294901760
        %7535 = vmatmul.f32.gmra.mxu0 %v7534
        %v7536 = vpop.f32.mrf.mxu0
        %v7537 = vadd.f32 %v7504, %v7536
        %7538 = vdwg.mxu0
        %s7539 = scalar_lea.vmem %s10, 6
        %v7540 = vld [vmem:[%s7539] sm:$0x3]
        %v7541 = vadd.f32 %v6849, %v7533
        %v7542 = vadd.f32 %v6853, %v7537
        %7543 = vadd.xlane.f32.xlu0 %v7541
        %v7544 = vpop.xlane.xlu0 %7543
        %7545 = vadd.xlane.f32.xlu0 %v7542
        %v7546 = vpop.xlane.xlu0 %7545
        %v7547 = vmul.f32 %v7544, %v3148
        %v7548 = vmul.f32 %v7546, %v3148
        %v7549 = vsub.f32 %v7541, %v7547
        %v7550 = vsub.f32 %v7542, %v7548
        %v7551 = vmul.f32 %v7549, %v7549
        %v7552 = vmul.f32 %v7550, %v7550
        %7553 = vadd.xlane.f32.xlu0 %v7551
        %v7554 = vpop.xlane.xlu0 %7553
        %7555 = vadd.xlane.f32.xlu0 %v7552
        %v7556 = vpop.xlane.xlu0 %7555
        %v7557 = vmul.f32 %v7554, %v3165
        %v7558 = vmul.f32 %v7556, %v3165
        %v7559 = vrsqrt.pop %v7557
        %v7560 = vmul.f32 %v7559, %v7557
        %v7561 = vmul.f32 %v7560, %v7559
        %v7562 = vmul.f32 0.5, %v7561
        %v7563 = vsub.f32 1.5, %v7562
        %v7564 = vmul.f32 %v7559, %v7563
        %v7565 = vmul.f32 %v7557, %v7564
        %vm7566 = vcmp.eq.f32.partialorder %v7557, inf
        %v7567 = vsel %vm7566, %v7557, %v7565
        %vm7568 = vcmp.eq.f32.partialorder %v7557, 0.0
        %v7569 = vand.u32 %v7557, 2147483648
        %v7570 = vsel %vm7568, %v7569, %v7567
        %v7571 = vrsqrt.pop %v7558
        %v7572 = vmul.f32 %v7571, %v7558
        %v7573 = vmul.f32 %v7572, %v7571
        %v7574 = vmul.f32 0.5, %v7573
        %v7575 = vsub.f32 1.5, %v7574
        %v7576 = vmul.f32 %v7571, %v7575
        %v7577 = vmul.f32 %v7558, %v7576
        %vm7578 = vcmp.eq.f32.partialorder %v7558, inf
        %v7579 = vsel %vm7578, %v7558, %v7577
        %vm7580 = vcmp.eq.f32.partialorder %v7558, 0.0
        %v7581 = vand.u32 %v7558, 2147483648
        %v7582 = vsel %vm7580, %v7581, %v7579
        %v7583 = vadd.f32 %v7570, 1e-06
        %v7584 = vadd.f32 %v7582, 1e-06
        %v7585 = vrcp.pop %v7583
        %v7586 = vmul.f32 %v7583, %v7585
        %v7587 = vsub.f32 1.0, %v7586
        %v7588 = vmul.f32 %v7585, %v7587
        %v7589 = vadd.f32 %v7585, %v7588
        %vm7590 = vweird.f32 %v7583
        %vm7591 = vweird.f32 %v7585
        %vm7592 = vmor %vm7590, %vm7591
        %v7593 = vsel %vm7592, %v7585, %v7589
        %v7594 = vand.u32 2147483647, %v7583
        %vm7595 = vcmp.eq.f32.partialorder %v7594, 8.507059e+37
        %v7596 = vand.u32 %v7583, 2147483648
        %v7597 = vor.u32 1.1754944e-38, %v7596
        %v7598 = vsel %vm7595, %v7597, %v7593
        %v7599 = vmul.f32 %v7549, %v7598
        %v7600 = vrcp.pop %v7584
        %v7601 = vmul.f32 %v7584, %v7600
        %v7602 = vsub.f32 1.0, %v7601
        %v7603 = vmul.f32 %v7600, %v7602
        %v7604 = vadd.f32 %v7600, %v7603
        %vm7605 = vweird.f32 %v7584
        %vm7606 = vweird.f32 %v7600
        %vm7607 = vmor %vm7605, %vm7606
        %v7608 = vsel %vm7607, %v7600, %v7604
        %v7609 = vand.u32 2147483647, %v7584
        %vm7610 = vcmp.eq.f32.partialorder %v7609, 8.507059e+37
        %v7611 = vand.u32 %v7584, 2147483648
        %v7612 = vor.u32 1.1754944e-38, %v7611
        %v7613 = vsel %vm7610, %v7612, %v7608
        %v7614 = vmul.f32 %v7550, %v7613
        %v7615 = vperm.slane %v7540, 0
        %v7616 = vmul.f32 %v7615, %v7599
        %v7617 = vmul.f32 %v7615, %v7614
        %v7618 = vperm.slane %v7540, 1
        %v7619 = vadd.f32 %v7616, %v7618
        %v7620 = vadd.f32 %v7617, %v7618
        %v7621 = vadd.f32 %v6158, %v7619
        %v7622 = vadd.f32 %v6159, %v7620
        %v7623 = vld [vmem:[#allocation13] sm:$0x3]
        %v7624 = vadd.f32 %v592, %v7621
        %v7625 = vadd.f32 %v593, %v7622
        %7626 = vadd.xlane.f32.xlu0 %v7624
        %v7627 = vpop.xlane.xlu0 %7626
        %7628 = vadd.xlane.f32.xlu0 %v7625
        %v7629 = vpop.xlane.xlu0 %7628
        %v7630 = vmul.f32 %v7627, %v3148
        %v7631 = vmul.f32 %v7629, %v3148
        %v7632 = vsub.f32 %v7624, %v7630
        %v7633 = vsub.f32 %v7625, %v7631
        %v7634 = vmul.f32 %v7632, %v7632
        %v7635 = vmul.f32 %v7633, %v7633
        %7636 = vadd.xlane.f32.xlu0 %v7634
        %v7637 = vpop.xlane.xlu0 %7636
        %7638 = vadd.xlane.f32.xlu0 %v7635
        %v7639 = vpop.xlane.xlu0 %7638
        %v7640 = vmul.f32 %v7637, %v3165
        %v7641 = vmul.f32 %v7639, %v3165
        %v7642 = vrsqrt.pop %v7640
        %v7643 = vmul.f32 %v7642, %v7640
        %v7644 = vmul.f32 %v7643, %v7642
        %v7645 = vmul.f32 0.5, %v7644
        %v7646 = vsub.f32 1.5, %v7645
        %v7647 = vmul.f32 %v7642, %v7646
        %v7648 = vmul.f32 %v7640, %v7647
        %vm7649 = vcmp.eq.f32.partialorder %v7640, inf
        %v7650 = vsel %vm7649, %v7640, %v7648
        %vm7651 = vcmp.eq.f32.partialorder %v7640, 0.0
        %v7652 = vand.u32 %v7640, 2147483648
        %v7653 = vsel %vm7651, %v7652, %v7650
        %v7654 = vrsqrt.pop %v7641
        %v7655 = vmul.f32 %v7654, %v7641
        %v7656 = vmul.f32 %v7655, %v7654
        %v7657 = vmul.f32 0.5, %v7656
        %v7658 = vsub.f32 1.5, %v7657
        %v7659 = vmul.f32 %v7654, %v7658
        %v7660 = vmul.f32 %v7641, %v7659
        %vm7661 = vcmp.eq.f32.partialorder %v7641, inf
        %v7662 = vsel %vm7661, %v7641, %v7660
        %vm7663 = vcmp.eq.f32.partialorder %v7641, 0.0
        %v7664 = vand.u32 %v7641, 2147483648
        %v7665 = vsel %vm7663, %v7664, %v7662
        %v7666 = vadd.f32 %v7653, 1e-06
        %v7667 = vadd.f32 %v7665, 1e-06
        %v7668 = vrcp.pop %v7666
        %v7669 = vmul.f32 %v7666, %v7668
        %v7670 = vsub.f32 1.0, %v7669
        %v7671 = vmul.f32 %v7668, %v7670
        %v7672 = vadd.f32 %v7668, %v7671
        %vm7673 = vweird.f32 %v7666
        %vm7674 = vweird.f32 %v7668
        %vm7675 = vmor %vm7673, %vm7674
        %v7676 = vsel %vm7675, %v7668, %v7672
        %v7677 = vand.u32 2147483647, %v7666
        %vm7678 = vcmp.eq.f32.partialorder %v7677, 8.507059e+37
        %v7679 = vand.u32 %v7666, 2147483648
        %v7680 = vor.u32 1.1754944e-38, %v7679
        %v7681 = vsel %vm7678, %v7680, %v7676
        %v7682 = vmul.f32 %v7632, %v7681
        %v7683 = vrcp.pop %v7667
        %v7684 = vmul.f32 %v7667, %v7683
        %v7685 = vsub.f32 1.0, %v7684
        %v7686 = vmul.f32 %v7683, %v7685
        %v7687 = vadd.f32 %v7683, %v7686
        %vm7688 = vweird.f32 %v7667
        %vm7689 = vweird.f32 %v7683
        %vm7690 = vmor %vm7688, %vm7689
        %v7691 = vsel %vm7690, %v7683, %v7687
        %v7692 = vand.u32 2147483647, %v7667
        %vm7693 = vcmp.eq.f32.partialorder %v7692, 8.507059e+37
        %v7694 = vand.u32 %v7667, 2147483648
        %v7695 = vor.u32 1.1754944e-38, %v7694
        %v7696 = vsel %vm7693, %v7695, %v7691
        %v7697 = vmul.f32 %v7633, %v7696
        %v7698 = vperm.slane %v7623, 0
        %v7699 = vmul.f32 %v7698, %v7682
        %v7700 = vmul.f32 %v7698, %v7697
        %v7701 = vperm.slane %v7623, 1
        %v7702 = vadd.f32 %v7699, %v7701
        %v7703 = vadd.f32 %v7700, %v7701
        %7704 = vst [vmem:[%s584] sm:$0xff] %v7702
        %7705 = vst [vmem:[%s584 + $0x8] sm:$0xff] %v7703
        %s7706 = sand.u32 %s309, 1
        %s7707 = scalar_lea.sflag [#allocation4], %s7706
        %s7708 = sand.u32 %s309, 1
        %s7709 = smul.addr %s7708, 16
        %s7710 = scalar_lea.vmem [#allocation14], %s7709
        %s7711 = sand.u32 %s335, 1
        %s7712 = scalar_lea.sflag [#allocation16], %s7711
        %s7713 = sand.u32 %s335, 1
        %s7714 = smul.addr %s7713, 64
        %s7715 = scalar_lea.vmem [#allocation15], %s7714
        // Predicated region
        $region97: #{tpu_custom_call.1} parent=67 // pred_check
          %p7716 = pneg %p319
        $region98: #{tpu_custom_call.1} parent=67 // pred_check_branch
          %7718 = sbr.rel (%p7716) target = $region100
        $region99: #{tpu_custom_call.1} parent=67 // pred_region
          %7720 = vsyncadd %s7707, 0
          %s7721 = smul.addr %s39, 2
          %s7722 = smul.addr %s7721, 8
          %s7723 = scalar_lea.hbm %s12, %s7722
          %s7724 = sshll.u32 %s7710, 4
          %s7725 = int_to_ptr.vmem [resolvable:$true] %s7724
          %s7726 = sshll.u32 %s7723, 4
          %s7727 = int_to_ptr.hbm [resolvable:$true] %s7726
          %7732 = dma.vmem_to_hbm [thread:$0]  %s7725, 256, %s7727, %s7707, 128, 128, 8
        $region100: #{tpu_custom_call.1} parent=67 // pred_fallthru
          _
        // Predicated region
        $region101: #{tpu_custom_call.1} parent=67 // pred_check
          %p7733 = pneg %p345
        $region102: #{tpu_custom_call.1} parent=67 // pred_check_branch
          %7735 = sbr.rel (%p7733) target = $region104
        $region103: #{tpu_custom_call.1} parent=67 // pred_region
          %7737 = vsyncadd %s7712, 0
          %s7738 = smul.addr %s39, 8
          %s7739 = smul.addr %s7738, 8
          %s7740 = scalar_lea.hbm %s13, %s7739
          %s7741 = sshll.u32 %s7715, 4
          %s7742 = int_to_ptr.vmem [resolvable:$true] %s7741
          %s7743 = sshll.u32 %s7740, 4
          %s7744 = int_to_ptr.hbm [resolvable:$true] %s7743
          %7749 = dma.vmem_to_hbm [thread:$0]  %s7742, 1024, %s7744, %s7712, 128, 128, 8
        $region104: #{tpu_custom_call.1} parent=67 // pred_fallthru
          _
      $region68: #{tpu_custom_call.1} parent=5 // pred_fallthru
        _
      %p7750 = scmp.le.s32.totalorder 2, %s34
      // Predicated region
      $region105: #{tpu_custom_call.1} parent=5 // pred_check
        %p7751 = pneg %p7750
      $region106: #{tpu_custom_call.1} parent=5 // pred_check_branch
        %7753 = sbr.rel (%p7751) target = $region108
      $region107: #{tpu_custom_call.1} parent=5 // pred_region
        %s7754 = ssub.s32 %s34, 2
        // Predicated region
        $region109: #{tpu_custom_call.1} parent=107 // pred_check
          %p7755 = pneg %p325
        $region110: #{tpu_custom_call.1} parent=107 // pred_check_branch
          %7757 = sbr.rel (%p7755) target = $region112
        $region111: #{tpu_custom_call.1} parent=107 // pred_region
          %s7758 = sand.u32 %s310, 1
          %s7759 = scalar_lea.sflag [#allocation4], %s7758
          %s7760 = sand.u32 %s310, 1
          %s7761 = smul.addr %s7760, 16
          %s7762 = scalar_lea.vmem [#allocation14], %s7761
          %7764 = dma.done %s7759, 256
        $region112: #{tpu_custom_call.1} parent=107 // pred_fallthru
          _
        // Predicated region
        $region113: #{tpu_custom_call.1} parent=107 // pred_check
          %p7765 = pneg %p351
        $region114: #{tpu_custom_call.1} parent=107 // pred_check_branch
          %7767 = sbr.rel (%p7765) target = $region116
        $region115: #{tpu_custom_call.1} parent=107 // pred_region
          %s7768 = sand.u32 %s336, 1
          %s7769 = scalar_lea.sflag [#allocation16], %s7768
          %s7770 = sand.u32 %s336, 1
          %s7771 = smul.addr %s7770, 64
          %s7772 = scalar_lea.vmem [#allocation15], %s7771
          %7774 = dma.done %s7769, 1024
        $region116: #{tpu_custom_call.1} parent=107 // pred_fallthru
          _
      $region108: #{tpu_custom_call.1} parent=5 // pred_fallthru
        _
    $region6: #{tpu_custom_call.1} parent=1 // loop_footer
      %s38 = sadd.s32 1, %s34
    $region7: #{tpu_custom_call.1} parent=1 // loop_footer_branch
      %33 = sbr.rel target = $region3
    $region8: #{tpu_custom_call.1} parent=1 // loop_exit
      _
    %7775 = vsyncpa [#allocation3], 1
    %s7776 = scalar_lea.sflag [#allocation3], 1
    %7777 = vsyncpa %s7776, 1
    %7778 = vsyncpa [#allocation6], 1
    %s7779 = scalar_lea.sflag [#allocation6], 1
    %7780 = vsyncpa %s7779, 1
    %7781 = vsyncpa [#allocation9], 1
    %7782 = vsyncpa [#allocation12], 1
    %7783 = vsyncpa [#allocation4], 1
    %s7784 = scalar_lea.sflag [#allocation4], 1
    %7785 = vsyncpa %s7784, 1
    %7786 = vsyncpa [#allocation16], 1
    %s7787 = scalar_lea.sflag [#allocation16], 1
    %7788 = vsyncpa %s7787, 1

</llo_original>
